<compile_context>
chip_gen: v7x
topology: tpu7x:2x2x1
jax: 0.10.0
libtpu: 0.0.40
codegen_flags: <defaults>
</compile_context>

<pallas_src>
import jax
import jax.numpy as jnp
from jax.experimental import pallas as pl
from jax.experimental.pallas import tpu as pltpu


def _round_up(x, m):
    return ((x + m - 1) // m) * m


# ----------------------------------------------------------------------------------
# Pallas kernel: one (batch, N-tile) per grid step, channel-major.
# ----------------------------------------------------------------------------------
def adaptive_weight_kernel(rel_ref, feat_ref,
                           w0_ref, b0_ref, w1_ref, b1_ref,
                           wout_ref, scale_ref, bias_ref,
                           out_ref):
    # rel_ref  : (1, 3,  K, TN) f32    feat_ref : (1, C, K, TN) bf16
    # out_ref  : (1, Co, TN)    f32    (already PyTorch NCL layout)
    C = feat_ref.shape[1]
    K = feat_ref.shape[2]
    TN = feat_ref.shape[3]

    w0 = w0_ref[...]            # (C, 3)  f32
    b0 = b0_ref[...]            # (C, 1)  f32
    w1 = w1_ref[...]            # (C, C)  bf16 (MXU operand)
    b1 = b1_ref[...]            # (C, 1)  f32

    pooled = jnp.full((C, TN), -jnp.inf, dtype=jnp.float32)

    # K (= nsample) is small and static -> plain Python unroll, all slice indices static.
    for k in range(K):
        rel_k = rel_ref[0, :, k, :]                          # (3, TN) f32
        feat_k = feat_ref[0, :, k, :].astype(jnp.float32)    # (C, TN) f32

        # conv0 (1x1, depth-3 contraction): 3 VPU FMAs instead of a wasteful MXU matmul
        h = (w0[:, 0:1] * rel_k[0:1, :]
             + w0[:, 1:2] * rel_k[1:2, :]
             + w0[:, 2:3] * rel_k[2:3, :]
             + b0)
        h = jnp.maximum(h, 0.0)                              # relu0

        # conv1 (1x1): (C,C) @ (C,TN) on the MXU, bf16 operands, f32 accumulate
        h2 = jnp.dot(w1, h.astype(jnp.bfloat16),
                     preferred_element_type=jnp.float32) + b1

        # adaptive weighting + running max over the neighborhood (reduction='max')
        pooled = jnp.maximum(pooled, feat_k * h2)

    # output Conv1d(C->Co, 1, bias=False) + folded BatchNorm1d (eval) + ReLU
    out = jnp.dot(wout_ref[...], pooled.astype(jnp.bfloat16),
                  preferred_element_type=jnp.float32)        # (Co, TN)
    out = out * scale_ref[...] + bias_ref[...]
    out_ref[0] = jnp.maximum(out, 0.0).astype(out_ref.dtype)


# ----------------------------------------------------------------------------------
# MaskedQueryAndGroup (ball query + gather, normalize_xyz=True, use_xyz=False): JAX glue.
# Gathers directly into channel-major / lane-dense layouts for the kernel.
# ----------------------------------------------------------------------------------
def masked_query_and_group(query_xyz, support_xyz, query_mask, support_mask,
                           support_features, radius, nsample):
    B, N1, _ = query_xyz.shape
    N2 = support_xyz.shape[1]

    diff = query_xyz[:, :, None, :] - support_xyz[:, None, :, :]        # [B,N1,N2,3]
    dist2 = jnp.sum(diff * diff, axis=-1)                               # [B,N1,N2]
    valid = (dist2 < radius * radius) & (support_mask[:, None, :] > 0)

    # ordered ball query: first `nsample` valid support indices per query point
    ar = jnp.arange(N2)[None, None, :]
    order_key = jnp.where(valid, ar, ar + N2)
    idx = jnp.argsort(order_key, axis=-1)[..., :nsample]                # [B,N1,K]
    nbr_valid = jnp.take_along_axis(valid, idx, axis=-1)                # [B,N1,K]
    # fill empty slots with the first slot's index (mirrors the CUDA grouper behavior)
    # TODO(synk): a query with zero in-radius neighbors aggregates an arbitrary support
    # point (same as the fill-with-first CUDA behavior); not masked to -inf here.
    idx = jnp.where(nbr_valid, idx, idx[..., :1])

    idx_kn = jnp.transpose(idx, (0, 2, 1))                              # [B,K,N1]

    # channel-major gathers -> point axis is the lane-dense last dim, no NHWC intermediates
    sxyz_cm = jnp.transpose(support_xyz, (0, 2, 1))                     # [B,3,N2]
    grouped_xyz = jnp.take_along_axis(sxyz_cm[:, :, None, :],
                                      idx_kn[:, None, :, :], axis=3)    # [B,3,K,N1]
    qxyz_cm = jnp.transpose(query_xyz, (0, 2, 1))                       # [B,3,N1]
    rel_pos = (grouped_xyz - qxyz_cm[:, :, None, :]) / radius           # normalize_xyz=True

    feats_b = support_features.astype(jnp.bfloat16)                     # halve gather+DMA bytes
    grouped_feat = jnp.take_along_axis(feats_b[:, :, None, :],
                                       idx_kn[:, None, :, :], axis=3)   # [B,C,K,N1]

    nbr_mask = jnp.transpose(nbr_valid, (0, 2, 1)).astype(query_xyz.dtype)  # unused for 'max'
    return grouped_feat, rel_pos, nbr_mask


# ----------------------------------------------------------------------------------
# Forward wrapper
# ----------------------------------------------------------------------------------
def adaptive_weight_forward(query_xyz, support_xyz, query_mask, support_mask,
                            support_features, params, radius, nsample, tile_n=256):
    # TODO(synk): query_mask only affects 'avg'/'sum' reductions in the reference module;
    # it is unused for reduction='max', matching the original forward semantics.
    B, N1, _ = query_xyz.shape
    C_in = support_features.shape[1]
    C_out = params["w_out"].shape[0]

    grouped_feat, rel_pos, _ = masked_query_and_group(
        query_xyz, support_xyz, query_mask, support_mask, support_features,
        radius, nsample)

    # pad the point axis to a lane-friendly tile multiple
    TN = min(tile_n, _round_up(N1, 128))
    N1p = _round_up(N1, TN)
    if N1p != N1:
        pad = ((0, 0), (0, 0), (0, 0), (0, N1p - N1))
        grouped_feat = jnp.pad(grouped_feat, pad)
        rel_pos = jnp.pad(rel_pos, pad)
    n_tiles = N1p // TN

    w1_b = params["w1"].astype(jnp.bfloat16)
    wout_b = params["w_out"].astype(jnp.bfloat16)

    flops = 2 * B * N1p * nsample * C_in * (3 + C_in) + 2 * B * N1p * C_in * C_out
    bytes_accessed = (grouped_feat.size * 2 + rel_pos.size * 4
                      + B * C_out * N1p * 4
                      + (w1_b.size + wout_b.size) * 2
                      + (params["w0"].size + params["b0"].size + params["b1"].size
                         + params["bn_scale"].size + params["bn_bias"].size) * 4)

    kernel = pl.pallas_call(
        adaptive_weight_kernel,
        out_shape=jax.ShapeDtypeStruct((B, C_out, N1p), jnp.float32),
        grid=(B, n_tiles),
        in_specs=[
            pl.BlockSpec((1, 3, nsample, TN),    lambda b, n: (b, 0, 0, n)),
            pl.BlockSpec((1, C_in, nsample, TN), lambda b, n: (b, 0, 0, n)),
            # weights/biases: constant index maps -> VMEM-resident across all grid steps
            pl.BlockSpec((C_in, 3),      lambda b, n: (0, 0)),
            pl.BlockSpec((C_in, 1),      lambda b, n: (0, 0)),
            pl.BlockSpec((C_in, C_in),   lambda b, n: (0, 0)),
            pl.BlockSpec((C_in, 1),      lambda b, n: (0, 0)),
            pl.BlockSpec((C_out, C_in),  lambda b, n: (0, 0)),
            pl.BlockSpec((C_out, 1),     lambda b, n: (0, 0)),
            pl.BlockSpec((C_out, 1),     lambda b, n: (0, 0)),
        ],
        out_specs=pl.BlockSpec((1, C_out, TN), lambda b, n: (b, 0, n)),
        compiler_params=pltpu.CompilerParams(
            dimension_semantics=("parallel", "parallel"),
            vmem_limit_bytes=32 * 1024 * 1024),
        cost_estimate=pl.CostEstimate(flops=int(flops), transcendentals=0,
                                      bytes_accessed=int(bytes_accessed)),
    )
    out = kernel(rel_pos, grouped_feat,
                 params["w0"], params["b0"], w1_b, params["b1"],
                 wout_b, params["bn_scale"], params["bn_bias"])
    return out[:, :, :N1]          # [B, C_out, npoint] -- already NCL, no post-transpose


# ----------------------------------------------------------------------------------
# Deterministic parameter init (channel-major weights; synthetic, no checkpoint)
# ----------------------------------------------------------------------------------
def init_params(key, c_in, c_out):
    k0, k1, k2, k3, k4, k5, k6 = jax.random.split(key, 7)
    w0 = 0.2 * jax.random.normal(k0, (c_in, 3), jnp.float32)        # Conv2d(3, C_in, 1).weight
    b0 = 0.05 * jax.random.normal(k1, (c_in, 1), jnp.float32)
    w1 = 0.2 * jax.random.normal(k2, (c_in, c_in), jnp.float32)     # Conv2d(C_in, C_in, 1).weight
    b1 = 0.05 * jax.random.normal(k3, (c_in, 1), jnp.float32)
    w_out = 0.1 * jax.random.normal(k4, (c_out, c_in), jnp.float32) # Conv1d(C_in, C_out, 1, bias=False)
    # BatchNorm1d folded to affine (inference-mode running stats: mean=0, var=1)
    # TODO(synk): training-mode BatchNorm (batch statistics) not reproduced; folded eval-mode BN used.
    gamma = 1.0 + 0.1 * jax.random.normal(k5, (c_out, 1), jnp.float32)
    beta = 0.05 * jax.random.normal(k6, (c_out, 1), jnp.float32)
    eps = 1e-5
    bn_scale = gamma / jnp.sqrt(1.0 + eps)
    bn_bias = beta
    return dict(w0=w0, b0=b0, w1=w1, b1=b1, w_out=w_out,
                bn_scale=bn_scale, bn_bias=bn_bias)


if __name__ == "__main__":
    B, N1, N2 = 2, 512, 1024
    C_IN, C_OUT = 32, 64
    RADIUS, NSAMPLE = 0.4, 16

    key = jax.random.PRNGKey(0)
    k_xyz, k_feat, k_m1, k_m2, k_params = jax.random.split(key, 5)

    support_xyz = jax.random.uniform(k_xyz, (B, N2, 3), jnp.float32)
    query_xyz = support_xyz[:, :N1, :]                              # queries are a subsample
    support_features = jax.random.normal(k_feat, (B, C_IN, N2), jnp.float32)
    query_mask = (jax.random.uniform(k_m1, (B, N1)) > 0.1).astype(jnp.float32)
    support_mask = (jax.random.uniform(k_m2, (B, N2)) > 0.1).astype(jnp.float32)

    params = init_params(k_params, C_IN, C_OUT)

    out = adaptive_weight_forward(query_xyz, support_xyz, query_mask, support_mask,
                                  support_features, params, RADIUS, NSAMPLE)
    out = jax.block_until_ready(out)
    assert out.shape == (B, C_OUT, N1) and out.dtype == jnp.float32
    print("KERNEL_OK")
</pallas_src>

<mosaic_0001>
module attributes {stable_mosaic.version = 11 : i64} {
  func.func @adaptive_weight_kernel(%arg0: i32, %arg1: i32, %arg2: memref<1x3x16x256xf32, #tpu.memory_space<vmem>>, %arg3: memref<1x32x16x256xbf16, #tpu.memory_space<vmem>>, %arg4: memref<32x3xf32, #tpu.memory_space<vmem>>, %arg5: memref<32x1xf32, #tpu.memory_space<vmem>>, %arg6: memref<32x32xbf16, #tpu.memory_space<vmem>>, %arg7: memref<32x1xf32, #tpu.memory_space<vmem>>, %arg8: memref<64x32xbf16, #tpu.memory_space<vmem>>, %arg9: memref<64x1xf32, #tpu.memory_space<vmem>>, %arg10: memref<64x1xf32, #tpu.memory_space<vmem>>, %arg11: memref<1x64x256xf32, #tpu.memory_space<vmem>>) attributes {dimension_semantics = [#tpu.dimension_semantics<parallel>, #tpu.dimension_semantics<parallel>], iteration_bounds = array<i64: 2, 2>, scalar_prefetch = 0 : i64, scratch_operands = 0 : i64, tpu.core_type = #tpu.core_type<tc>, window_params = [{transform_indices = @transform_0, window_bounds = array<i64: 1, 3, 16, 256>}, {transform_indices = @transform_1, window_bounds = array<i64: 1, 32, 16, 256>}, {pipeline_mode = #tpu.pipeline_mode<synchronous>, transform_indices = @transform_2, window_bounds = array<i64: 32, 3>}, {pipeline_mode = #tpu.pipeline_mode<synchronous>, transform_indices = @transform_3, window_bounds = array<i64: 32, 1>}, {pipeline_mode = #tpu.pipeline_mode<synchronous>, transform_indices = @transform_4, window_bounds = array<i64: 32, 32>}, {pipeline_mode = #tpu.pipeline_mode<synchronous>, transform_indices = @transform_5, window_bounds = array<i64: 32, 1>}, {pipeline_mode = #tpu.pipeline_mode<synchronous>, transform_indices = @transform_6, window_bounds = array<i64: 64, 32>}, {pipeline_mode = #tpu.pipeline_mode<synchronous>, transform_indices = @transform_7, window_bounds = array<i64: 64, 1>}, {pipeline_mode = #tpu.pipeline_mode<synchronous>, transform_indices = @transform_8, window_bounds = array<i64: 64, 1>}, {transform_indices = @transform_9, window_bounds = array<i64: 1, 64, 256>}]} {
    %c0 = arith.constant 0 : index
    %c0_0 = arith.constant 0 : index
    %0 = vector.load %arg4[%c0, %c0_0] : memref<32x3xf32, #tpu.memory_space<vmem>>, vector<32x3xf32>
    %c0_1 = arith.constant 0 : index
    %c0_2 = arith.constant 0 : index
    %1 = vector.load %arg5[%c0_1, %c0_2] : memref<32x1xf32, #tpu.memory_space<vmem>>, vector<32x1xf32>
    %c0_3 = arith.constant 0 : index
    %c0_4 = arith.constant 0 : index
    %2 = vector.load %arg6[%c0_3, %c0_4] : memref<32x32xbf16, #tpu.memory_space<vmem>>, vector<32x32xbf16>
    %c0_5 = arith.constant 0 : index
    %c0_6 = arith.constant 0 : index
    %3 = vector.load %arg7[%c0_5, %c0_6] : memref<32x1xf32, #tpu.memory_space<vmem>>, vector<32x1xf32>
    %cst = arith.constant 0xFF800000 : f32
    %4 = vector.broadcast %cst : f32 to vector<32x256xf32>
    %c0_7 = arith.constant 0 : index
    %c0_8 = arith.constant 0 : index
    %c0_9 = arith.constant 0 : index
    %c0_10 = arith.constant 0 : index
    %5 = vector.load %arg2[%c0_7, %c0_8, %c0_9, %c0_10] : memref<1x3x16x256xf32, #tpu.memory_space<vmem>>, vector<1x3x1x256xf32>
    %6 = vector.shape_cast %5 : vector<1x3x1x256xf32> to vector<3x256xf32>
    %c0_11 = arith.constant 0 : index
    %c0_12 = arith.constant 0 : index
    %c0_13 = arith.constant 0 : index
    %c0_14 = arith.constant 0 : index
    %7 = vector.load %arg3[%c0_11, %c0_12, %c0_13, %c0_14] : memref<1x32x16x256xbf16, #tpu.memory_space<vmem>>, vector<1x32x1x256xbf16>
    %8 = vector.shape_cast %7 : vector<1x32x1x256xbf16> to vector<32x256xbf16>
    %9 = arith.extf %8 : vector<32x256xbf16> to vector<32x256xf32>
    %10 = vector.extract_strided_slice %0 {offsets = [0, 0], sizes = [32, 1], strides = [1, 1]} : vector<32x3xf32> to vector<32x1xf32>
    %11 = vector.extract_strided_slice %6 {offsets = [0, 0], sizes = [1, 256], strides = [1, 1]} : vector<3x256xf32> to vector<1x256xf32>
    %12 = vector.broadcast %10 : vector<32x1xf32> to vector<32x256xf32>
    %13 = vector.broadcast %11 : vector<1x256xf32> to vector<32x256xf32>
    %14 = arith.mulf %12, %13 : vector<32x256xf32>
    %15 = vector.extract_strided_slice %0 {offsets = [0, 1], sizes = [32, 1], strides = [1, 1]} : vector<32x3xf32> to vector<32x1xf32>
    %16 = vector.extract_strided_slice %6 {offsets = [1, 0], sizes = [1, 256], strides = [1, 1]} : vector<3x256xf32> to vector<1x256xf32>
    %17 = vector.broadcast %15 : vector<32x1xf32> to vector<32x256xf32>
    %18 = vector.broadcast %16 : vector<1x256xf32> to vector<32x256xf32>
    %19 = arith.mulf %17, %18 : vector<32x256xf32>
    %20 = arith.addf %14, %19 : vector<32x256xf32>
    %21 = vector.extract_strided_slice %0 {offsets = [0, 2], sizes = [32, 1], strides = [1, 1]} : vector<32x3xf32> to vector<32x1xf32>
    %22 = vector.extract_strided_slice %6 {offsets = [2, 0], sizes = [1, 256], strides = [1, 1]} : vector<3x256xf32> to vector<1x256xf32>
    %23 = vector.broadcast %21 : vector<32x1xf32> to vector<32x256xf32>
    %24 = vector.broadcast %22 : vector<1x256xf32> to vector<32x256xf32>
    %25 = arith.mulf %23, %24 : vector<32x256xf32>
    %26 = arith.addf %20, %25 : vector<32x256xf32>
    %27 = vector.broadcast %1 : vector<32x1xf32> to vector<32x256xf32>
    %28 = arith.addf %26, %27 : vector<32x256xf32>
    %cst_15 = arith.constant 0.000000e+00 : f32
    %29 = vector.broadcast %cst_15 : f32 to vector<32x256xf32>
    %30 = arith.maximumf %28, %29 : vector<32x256xf32>
    %31 = arith.truncf %30 : vector<32x256xf32> to vector<32x256xbf16>
    %cst_16 = arith.constant dense<0.000000e+00> : vector<32x256xf32>
    %32 = tpu.matmul %2, %31, %cst_16 {dimension_numbers = #tpu.dot_dimension_numbers<[1], [0], [0], [1], [0, 0, 1, 1], [], []>} : vector<32x32xbf16>, vector<32x256xbf16>, vector<32x256xf32> -> vector<32x256xf32>
    %33 = vector.broadcast %3 : vector<32x1xf32> to vector<32x256xf32>
    %34 = arith.addf %32, %33 : vector<32x256xf32>
    %35 = arith.mulf %9, %34 : vector<32x256xf32>
    %36 = arith.maximumf %4, %35 : vector<32x256xf32>
    %c0_17 = arith.constant 0 : index
    %c0_18 = arith.constant 0 : index
    %c1 = arith.constant 1 : index
    %c0_19 = arith.constant 0 : index
    %37 = vector.load %arg2[%c0_17, %c0_18, %c1, %c0_19] : memref<1x3x16x256xf32, #tpu.memory_space<vmem>>, vector<1x3x1x256xf32>
    %38 = vector.shape_cast %37 : vector<1x3x1x256xf32> to vector<3x256xf32>
    %c0_20 = arith.constant 0 : index
    %c0_21 = arith.constant 0 : index
    %c1_22 = arith.constant 1 : index
    %c0_23 = arith.constant 0 : index
    %39 = vector.load %arg3[%c0_20, %c0_21, %c1_22, %c0_23] : memref<1x32x16x256xbf16, #tpu.memory_space<vmem>>, vector<1x32x1x256xbf16>
    %40 = vector.shape_cast %39 : vector<1x32x1x256xbf16> to vector<32x256xbf16>
    %41 = arith.extf %40 : vector<32x256xbf16> to vector<32x256xf32>
    %42 = vector.extract_strided_slice %0 {offsets = [0, 0], sizes = [32, 1], strides = [1, 1]} : vector<32x3xf32> to vector<32x1xf32>
    %43 = vector.extract_strided_slice %38 {offsets = [0, 0], sizes = [1, 256], strides = [1, 1]} : vector<3x256xf32> to vector<1x256xf32>
    %44 = vector.broadcast %42 : vector<32x1xf32> to vector<32x256xf32>
    %45 = vector.broadcast %43 : vector<1x256xf32> to vector<32x256xf32>
    %46 = arith.mulf %44, %45 : vector<32x256xf32>
    %47 = vector.extract_strided_slice %0 {offsets = [0, 1], sizes = [32, 1], strides = [1, 1]} : vector<32x3xf32> to vector<32x1xf32>
    %48 = vector.extract_strided_slice %38 {offsets = [1, 0], sizes = [1, 256], strides = [1, 1]} : vector<3x256xf32> to vector<1x256xf32>
    %49 = vector.broadcast %47 : vector<32x1xf32> to vector<32x256xf32>
    %50 = vector.broadcast %48 : vector<1x256xf32> to vector<32x256xf32>
    %51 = arith.mulf %49, %50 : vector<32x256xf32>
    %52 = arith.addf %46, %51 : vector<32x256xf32>
    %53 = vector.extract_strided_slice %0 {offsets = [0, 2], sizes = [32, 1], strides = [1, 1]} : vector<32x3xf32> to vector<32x1xf32>
    %54 = vector.extract_strided_slice %38 {offsets = [2, 0], sizes = [1, 256], strides = [1, 1]} : vector<3x256xf32> to vector<1x256xf32>
    %55 = vector.broadcast %53 : vector<32x1xf32> to vector<32x256xf32>
    %56 = vector.broadcast %54 : vector<1x256xf32> to vector<32x256xf32>
    %57 = arith.mulf %55, %56 : vector<32x256xf32>
    %58 = arith.addf %52, %57 : vector<32x256xf32>
    %59 = vector.broadcast %1 : vector<32x1xf32> to vector<32x256xf32>
    %60 = arith.addf %58, %59 : vector<32x256xf32>
    %cst_24 = arith.constant 0.000000e+00 : f32
    %61 = vector.broadcast %cst_24 : f32 to vector<32x256xf32>
    %62 = arith.maximumf %60, %61 : vector<32x256xf32>
    %63 = arith.truncf %62 : vector<32x256xf32> to vector<32x256xbf16>
    %cst_25 = arith.constant dense<0.000000e+00> : vector<32x256xf32>
    %64 = tpu.matmul %2, %63, %cst_25 {dimension_numbers = #tpu.dot_dimension_numbers<[1], [0], [0], [1], [0, 0, 1, 1], [], []>} : vector<32x32xbf16>, vector<32x256xbf16>, vector<32x256xf32> -> vector<32x256xf32>
    %65 = vector.broadcast %3 : vector<32x1xf32> to vector<32x256xf32>
    %66 = arith.addf %64, %65 : vector<32x256xf32>
    %67 = arith.mulf %41, %66 : vector<32x256xf32>
    %68 = arith.maximumf %36, %67 : vector<32x256xf32>
    %c0_26 = arith.constant 0 : index
    %c0_27 = arith.constant 0 : index
    %c2 = arith.constant 2 : index
    %c0_28 = arith.constant 0 : index
    %69 = vector.load %arg2[%c0_26, %c0_27, %c2, %c0_28] : memref<1x3x16x256xf32, #tpu.memory_space<vmem>>, vector<1x3x1x256xf32>
    %70 = vector.shape_cast %69 : vector<1x3x1x256xf32> to vector<3x256xf32>
    %c0_29 = arith.constant 0 : index
    %c0_30 = arith.constant 0 : index
    %c2_31 = arith.constant 2 : index
    %c0_32 = arith.constant 0 : index
    %71 = vector.load %arg3[%c0_29, %c0_30, %c2_31, %c0_32] : memref<1x32x16x256xbf16, #tpu.memory_space<vmem>>, vector<1x32x1x256xbf16>
    %72 = vector.shape_cast %71 : vector<1x32x1x256xbf16> to vector<32x256xbf16>
    %73 = arith.extf %72 : vector<32x256xbf16> to vector<32x256xf32>
    %74 = vector.extract_strided_slice %0 {offsets = [0, 0], sizes = [32, 1], strides = [1, 1]} : vector<32x3xf32> to vector<32x1xf32>
    %75 = vector.extract_strided_slice %70 {offsets = [0, 0], sizes = [1, 256], strides = [1, 1]} : vector<3x256xf32> to vector<1x256xf32>
    %76 = vector.broadcast %74 : vector<32x1xf32> to vector<32x256xf32>
    %77 = vector.broadcast %75 : vector<1x256xf32> to vector<32x256xf32>
    %78 = arith.mulf %76, %77 : vector<32x256xf32>
    %79 = vector.extract_strided_slice %0 {offsets = [0, 1], sizes = [32, 1], strides = [1, 1]} : vector<32x3xf32> to vector<32x1xf32>
    %80 = vector.extract_strided_slice %70 {offsets = [1, 0], sizes = [1, 256], strides = [1, 1]} : vector<3x256xf32> to vector<1x256xf32>
    %81 = vector.broadcast %79 : vector<32x1xf32> to vector<32x256xf32>
    %82 = vector.broadcast %80 : vector<1x256xf32> to vector<32x256xf32>
    %83 = arith.mulf %81, %82 : vector<32x256xf32>
    %84 = arith.addf %78, %83 : vector<32x256xf32>
    %85 = vector.extract_strided_slice %0 {offsets = [0, 2], sizes = [32, 1], strides = [1, 1]} : vector<32x3xf32> to vector<32x1xf32>
    %86 = vector.extract_strided_slice %70 {offsets = [2, 0], sizes = [1, 256], strides = [1, 1]} : vector<3x256xf32> to vector<1x256xf32>
    %87 = vector.broadcast %85 : vector<32x1xf32> to vector<32x256xf32>
    %88 = vector.broadcast %86 : vector<1x256xf32> to vector<32x256xf32>
    %89 = arith.mulf %87, %88 : vector<32x256xf32>
    %90 = arith.addf %84, %89 : vector<32x256xf32>
    %91 = vector.broadcast %1 : vector<32x1xf32> to vector<32x256xf32>
    %92 = arith.addf %90, %91 : vector<32x256xf32>
    %cst_33 = arith.constant 0.000000e+00 : f32
    %93 = vector.broadcast %cst_33 : f32 to vector<32x256xf32>
    %94 = arith.maximumf %92, %93 : vector<32x256xf32>
    %95 = arith.truncf %94 : vector<32x256xf32> to vector<32x256xbf16>
    %cst_34 = arith.constant dense<0.000000e+00> : vector<32x256xf32>
    %96 = tpu.matmul %2, %95, %cst_34 {dimension_numbers = #tpu.dot_dimension_numbers<[1], [0], [0], [1], [0, 0, 1, 1], [], []>} : vector<32x32xbf16>, vector<32x256xbf16>, vector<32x256xf32> -> vector<32x256xf32>
    %97 = vector.broadcast %3 : vector<32x1xf32> to vector<32x256xf32>
    %98 = arith.addf %96, %97 : vector<32x256xf32>
    %99 = arith.mulf %73, %98 : vector<32x256xf32>
    %100 = arith.maximumf %68, %99 : vector<32x256xf32>
    %c0_35 = arith.constant 0 : index
    %c0_36 = arith.constant 0 : index
    %c3 = arith.constant 3 : index
    %c0_37 = arith.constant 0 : index
    %101 = vector.load %arg2[%c0_35, %c0_36, %c3, %c0_37] : memref<1x3x16x256xf32, #tpu.memory_space<vmem>>, vector<1x3x1x256xf32>
    %102 = vector.shape_cast %101 : vector<1x3x1x256xf32> to vector<3x256xf32>
    %c0_38 = arith.constant 0 : index
    %c0_39 = arith.constant 0 : index
    %c3_40 = arith.constant 3 : index
    %c0_41 = arith.constant 0 : index
    %103 = vector.load %arg3[%c0_38, %c0_39, %c3_40, %c0_41] : memref<1x32x16x256xbf16, #tpu.memory_space<vmem>>, vector<1x32x1x256xbf16>
    %104 = vector.shape_cast %103 : vector<1x32x1x256xbf16> to vector<32x256xbf16>
    %105 = arith.extf %104 : vector<32x256xbf16> to vector<32x256xf32>
    %106 = vector.extract_strided_slice %0 {offsets = [0, 0], sizes = [32, 1], strides = [1, 1]} : vector<32x3xf32> to vector<32x1xf32>
    %107 = vector.extract_strided_slice %102 {offsets = [0, 0], sizes = [1, 256], strides = [1, 1]} : vector<3x256xf32> to vector<1x256xf32>
    %108 = vector.broadcast %106 : vector<32x1xf32> to vector<32x256xf32>
    %109 = vector.broadcast %107 : vector<1x256xf32> to vector<32x256xf32>
    %110 = arith.mulf %108, %109 : vector<32x256xf32>
    %111 = vector.extract_strided_slice %0 {offsets = [0, 1], sizes = [32, 1], strides = [1, 1]} : vector<32x3xf32> to vector<32x1xf32>
    %112 = vector.extract_strided_slice %102 {offsets = [1, 0], sizes = [1, 256], strides = [1, 1]} : vector<3x256xf32> to vector<1x256xf32>
    %113 = vector.broadcast %111 : vector<32x1xf32> to vector<32x256xf32>
    %114 = vector.broadcast %112 : vector<1x256xf32> to vector<32x256xf32>
    %115 = arith.mulf %113, %114 : vector<32x256xf32>
    %116 = arith.addf %110, %115 : vector<32x256xf32>
    %117 = vector.extract_strided_slice %0 {offsets = [0, 2], sizes = [32, 1], strides = [1, 1]} : vector<32x3xf32> to vector<32x1xf32>
    %118 = vector.extract_strided_slice %102 {offsets = [2, 0], sizes = [1, 256], strides = [1, 1]} : vector<3x256xf32> to vector<1x256xf32>
    %119 = vector.broadcast %117 : vector<32x1xf32> to vector<32x256xf32>
    %120 = vector.broadcast %118 : vector<1x256xf32> to vector<32x256xf32>
    %121 = arith.mulf %119, %120 : vector<32x256xf32>
    %122 = arith.addf %116, %121 : vector<32x256xf32>
    %123 = vector.broadcast %1 : vector<32x1xf32> to vector<32x256xf32>
    %124 = arith.addf %122, %123 : vector<32x256xf32>
    %cst_42 = arith.constant 0.000000e+00 : f32
    %125 = vector.broadcast %cst_42 : f32 to vector<32x256xf32>
    %126 = arith.maximumf %124, %125 : vector<32x256xf32>
    %127 = arith.truncf %126 : vector<32x256xf32> to vector<32x256xbf16>
    %cst_43 = arith.constant dense<0.000000e+00> : vector<32x256xf32>
    %128 = tpu.matmul %2, %127, %cst_43 {dimension_numbers = #tpu.dot_dimension_numbers<[1], [0], [0], [1], [0, 0, 1, 1], [], []>} : vector<32x32xbf16>, vector<32x256xbf16>, vector<32x256xf32> -> vector<32x256xf32>
    %129 = vector.broadcast %3 : vector<32x1xf32> to vector<32x256xf32>
    %130 = arith.addf %128, %129 : vector<32x256xf32>
    %131 = arith.mulf %105, %130 : vector<32x256xf32>
    %132 = arith.maximumf %100, %131 : vector<32x256xf32>
    %c0_44 = arith.constant 0 : index
    %c0_45 = arith.constant 0 : index
    %c4 = arith.constant 4 : index
    %c0_46 = arith.constant 0 : index
    %133 = vector.load %arg2[%c0_44, %c0_45, %c4, %c0_46] : memref<1x3x16x256xf32, #tpu.memory_space<vmem>>, vector<1x3x1x256xf32>
    %134 = vector.shape_cast %133 : vector<1x3x1x256xf32> to vector<3x256xf32>
    %c0_47 = arith.constant 0 : index
    %c0_48 = arith.constant 0 : index
    %c4_49 = arith.constant 4 : index
    %c0_50 = arith.constant 0 : index
    %135 = vector.load %arg3[%c0_47, %c0_48, %c4_49, %c0_50] : memref<1x32x16x256xbf16, #tpu.memory_space<vmem>>, vector<1x32x1x256xbf16>
    %136 = vector.shape_cast %135 : vector<1x32x1x256xbf16> to vector<32x256xbf16>
    %137 = arith.extf %136 : vector<32x256xbf16> to vector<32x256xf32>
    %138 = vector.extract_strided_slice %0 {offsets = [0, 0], sizes = [32, 1], strides = [1, 1]} : vector<32x3xf32> to vector<32x1xf32>
    %139 = vector.extract_strided_slice %134 {offsets = [0, 0], sizes = [1, 256], strides = [1, 1]} : vector<3x256xf32> to vector<1x256xf32>
    %140 = vector.broadcast %138 : vector<32x1xf32> to vector<32x256xf32>
    %141 = vector.broadcast %139 : vector<1x256xf32> to vector<32x256xf32>
    %142 = arith.mulf %140, %141 : vector<32x256xf32>
    %143 = vector.extract_strided_slice %0 {offsets = [0, 1], sizes = [32, 1], strides = [1, 1]} : vector<32x3xf32> to vector<32x1xf32>
    %144 = vector.extract_strided_slice %134 {offsets = [1, 0], sizes = [1, 256], strides = [1, 1]} : vector<3x256xf32> to vector<1x256xf32>
    %145 = vector.broadcast %143 : vector<32x1xf32> to vector<32x256xf32>
    %146 = vector.broadcast %144 : vector<1x256xf32> to vector<32x256xf32>
    %147 = arith.mulf %145, %146 : vector<32x256xf32>
    %148 = arith.addf %142, %147 : vector<32x256xf32>
    %149 = vector.extract_strided_slice %0 {offsets = [0, 2], sizes = [32, 1], strides = [1, 1]} : vector<32x3xf32> to vector<32x1xf32>
    %150 = vector.extract_strided_slice %134 {offsets = [2, 0], sizes = [1, 256], strides = [1, 1]} : vector<3x256xf32> to vector<1x256xf32>
    %151 = vector.broadcast %149 : vector<32x1xf32> to vector<32x256xf32>
    %152 = vector.broadcast %150 : vector<1x256xf32> to vector<32x256xf32>
    %153 = arith.mulf %151, %152 : vector<32x256xf32>
    %154 = arith.addf %148, %153 : vector<32x256xf32>
    %155 = vector.broadcast %1 : vector<32x1xf32> to vector<32x256xf32>
    %156 = arith.addf %154, %155 : vector<32x256xf32>
    %cst_51 = arith.constant 0.000000e+00 : f32
    %157 = vector.broadcast %cst_51 : f32 to vector<32x256xf32>
    %158 = arith.maximumf %156, %157 : vector<32x256xf32>
    %159 = arith.truncf %158 : vector<32x256xf32> to vector<32x256xbf16>
    %cst_52 = arith.constant dense<0.000000e+00> : vector<32x256xf32>
    %160 = tpu.matmul %2, %159, %cst_52 {dimension_numbers = #tpu.dot_dimension_numbers<[1], [0], [0], [1], [0, 0, 1, 1], [], []>} : vector<32x32xbf16>, vector<32x256xbf16>, vector<32x256xf32> -> vector<32x256xf32>
    %161 = vector.broadcast %3 : vector<32x1xf32> to vector<32x256xf32>
    %162 = arith.addf %160, %161 : vector<32x256xf32>
    %163 = arith.mulf %137, %162 : vector<32x256xf32>
    %164 = arith.maximumf %132, %163 : vector<32x256xf32>
    %c0_53 = arith.constant 0 : index
    %c0_54 = arith.constant 0 : index
    %c5 = arith.constant 5 : index
    %c0_55 = arith.constant 0 : index
    %165 = vector.load %arg2[%c0_53, %c0_54, %c5, %c0_55] : memref<1x3x16x256xf32, #tpu.memory_space<vmem>>, vector<1x3x1x256xf32>
    %166 = vector.shape_cast %165 : vector<1x3x1x256xf32> to vector<3x256xf32>
    %c0_56 = arith.constant 0 : index
    %c0_57 = arith.constant 0 : index
    %c5_58 = arith.constant 5 : index
    %c0_59 = arith.constant 0 : index
    %167 = vector.load %arg3[%c0_56, %c0_57, %c5_58, %c0_59] : memref<1x32x16x256xbf16, #tpu.memory_space<vmem>>, vector<1x32x1x256xbf16>
    %168 = vector.shape_cast %167 : vector<1x32x1x256xbf16> to vector<32x256xbf16>
    %169 = arith.extf %168 : vector<32x256xbf16> to vector<32x256xf32>
    %170 = vector.extract_strided_slice %0 {offsets = [0, 0], sizes = [32, 1], strides = [1, 1]} : vector<32x3xf32> to vector<32x1xf32>
    %171 = vector.extract_strided_slice %166 {offsets = [0, 0], sizes = [1, 256], strides = [1, 1]} : vector<3x256xf32> to vector<1x256xf32>
    %172 = vector.broadcast %170 : vector<32x1xf32> to vector<32x256xf32>
    %173 = vector.broadcast %171 : vector<1x256xf32> to vector<32x256xf32>
    %174 = arith.mulf %172, %173 : vector<32x256xf32>
    %175 = vector.extract_strided_slice %0 {offsets = [0, 1], sizes = [32, 1], strides = [1, 1]} : vector<32x3xf32> to vector<32x1xf32>
    %176 = vector.extract_strided_slice %166 {offsets = [1, 0], sizes = [1, 256], strides = [1, 1]} : vector<3x256xf32> to vector<1x256xf32>
    %177 = vector.broadcast %175 : vector<32x1xf32> to vector<32x256xf32>
    %178 = vector.broadcast %176 : vector<1x256xf32> to vector<32x256xf32>
    %179 = arith.mulf %177, %178 : vector<32x256xf32>
    %180 = arith.addf %174, %179 : vector<32x256xf32>
    %181 = vector.extract_strided_slice %0 {offsets = [0, 2], sizes = [32, 1], strides = [1, 1]} : vector<32x3xf32> to vector<32x1xf32>
    %182 = vector.extract_strided_slice %166 {offsets = [2, 0], sizes = [1, 256], strides = [1, 1]} : vector<3x256xf32> to vector<1x256xf32>
    %183 = vector.broadcast %181 : vector<32x1xf32> to vector<32x256xf32>
    %184 = vector.broadcast %182 : vector<1x256xf32> to vector<32x256xf32>
    %185 = arith.mulf %183, %184 : vector<32x256xf32>
    %186 = arith.addf %180, %185 : vector<32x256xf32>
    %187 = vector.broadcast %1 : vector<32x1xf32> to vector<32x256xf32>
    %188 = arith.addf %186, %187 : vector<32x256xf32>
    %cst_60 = arith.constant 0.000000e+00 : f32
    %189 = vector.broadcast %cst_60 : f32 to vector<32x256xf32>
    %190 = arith.maximumf %188, %189 : vector<32x256xf32>
    %191 = arith.truncf %190 : vector<32x256xf32> to vector<32x256xbf16>
    %cst_61 = arith.constant dense<0.000000e+00> : vector<32x256xf32>
    %192 = tpu.matmul %2, %191, %cst_61 {dimension_numbers = #tpu.dot_dimension_numbers<[1], [0], [0], [1], [0, 0, 1, 1], [], []>} : vector<32x32xbf16>, vector<32x256xbf16>, vector<32x256xf32> -> vector<32x256xf32>
    %193 = vector.broadcast %3 : vector<32x1xf32> to vector<32x256xf32>
    %194 = arith.addf %192, %193 : vector<32x256xf32>
    %195 = arith.mulf %169, %194 : vector<32x256xf32>
    %196 = arith.maximumf %164, %195 : vector<32x256xf32>
    %c0_62 = arith.constant 0 : index
    %c0_63 = arith.constant 0 : index
    %c6 = arith.constant 6 : index
    %c0_64 = arith.constant 0 : index
    %197 = vector.load %arg2[%c0_62, %c0_63, %c6, %c0_64] : memref<1x3x16x256xf32, #tpu.memory_space<vmem>>, vector<1x3x1x256xf32>
    %198 = vector.shape_cast %197 : vector<1x3x1x256xf32> to vector<3x256xf32>
    %c0_65 = arith.constant 0 : index
    %c0_66 = arith.constant 0 : index
    %c6_67 = arith.constant 6 : index
    %c0_68 = arith.constant 0 : index
    %199 = vector.load %arg3[%c0_65, %c0_66, %c6_67, %c0_68] : memref<1x32x16x256xbf16, #tpu.memory_space<vmem>>, vector<1x32x1x256xbf16>
    %200 = vector.shape_cast %199 : vector<1x32x1x256xbf16> to vector<32x256xbf16>
    %201 = arith.extf %200 : vector<32x256xbf16> to vector<32x256xf32>
    %202 = vector.extract_strided_slice %0 {offsets = [0, 0], sizes = [32, 1], strides = [1, 1]} : vector<32x3xf32> to vector<32x1xf32>
    %203 = vector.extract_strided_slice %198 {offsets = [0, 0], sizes = [1, 256], strides = [1, 1]} : vector<3x256xf32> to vector<1x256xf32>
    %204 = vector.broadcast %202 : vector<32x1xf32> to vector<32x256xf32>
    %205 = vector.broadcast %203 : vector<1x256xf32> to vector<32x256xf32>
    %206 = arith.mulf %204, %205 : vector<32x256xf32>
    %207 = vector.extract_strided_slice %0 {offsets = [0, 1], sizes = [32, 1], strides = [1, 1]} : vector<32x3xf32> to vector<32x1xf32>
    %208 = vector.extract_strided_slice %198 {offsets = [1, 0], sizes = [1, 256], strides = [1, 1]} : vector<3x256xf32> to vector<1x256xf32>
    %209 = vector.broadcast %207 : vector<32x1xf32> to vector<32x256xf32>
    %210 = vector.broadcast %208 : vector<1x256xf32> to vector<32x256xf32>
    %211 = arith.mulf %209, %210 : vector<32x256xf32>
    %212 = arith.addf %206, %211 : vector<32x256xf32>
    %213 = vector.extract_strided_slice %0 {offsets = [0, 2], sizes = [32, 1], strides = [1, 1]} : vector<32x3xf32> to vector<32x1xf32>
    %214 = vector.extract_strided_slice %198 {offsets = [2, 0], sizes = [1, 256], strides = [1, 1]} : vector<3x256xf32> to vector<1x256xf32>
    %215 = vector.broadcast %213 : vector<32x1xf32> to vector<32x256xf32>
    %216 = vector.broadcast %214 : vector<1x256xf32> to vector<32x256xf32>
    %217 = arith.mulf %215, %216 : vector<32x256xf32>
    %218 = arith.addf %212, %217 : vector<32x256xf32>
    %219 = vector.broadcast %1 : vector<32x1xf32> to vector<32x256xf32>
    %220 = arith.addf %218, %219 : vector<32x256xf32>
    %cst_69 = arith.constant 0.000000e+00 : f32
    %221 = vector.broadcast %cst_69 : f32 to vector<32x256xf32>
    %222 = arith.maximumf %220, %221 : vector<32x256xf32>
    %223 = arith.truncf %222 : vector<32x256xf32> to vector<32x256xbf16>
    %cst_70 = arith.constant dense<0.000000e+00> : vector<32x256xf32>
    %224 = tpu.matmul %2, %223, %cst_70 {dimension_numbers = #tpu.dot_dimension_numbers<[1], [0], [0], [1], [0, 0, 1, 1], [], []>} : vector<32x32xbf16>, vector<32x256xbf16>, vector<32x256xf32> -> vector<32x256xf32>
    %225 = vector.broadcast %3 : vector<32x1xf32> to vector<32x256xf32>
    %226 = arith.addf %224, %225 : vector<32x256xf32>
    %227 = arith.mulf %201, %226 : vector<32x256xf32>
    %228 = arith.maximumf %196, %227 : vector<32x256xf32>
    %c0_71 = arith.constant 0 : index
    %c0_72 = arith.constant 0 : index
    %c7 = arith.constant 7 : index
    %c0_73 = arith.constant 0 : index
    %229 = vector.load %arg2[%c0_71, %c0_72, %c7, %c0_73] : memref<1x3x16x256xf32, #tpu.memory_space<vmem>>, vector<1x3x1x256xf32>
    %230 = vector.shape_cast %229 : vector<1x3x1x256xf32> to vector<3x256xf32>
    %c0_74 = arith.constant 0 : index
    %c0_75 = arith.constant 0 : index
    %c7_76 = arith.constant 7 : index
    %c0_77 = arith.constant 0 : index
    %231 = vector.load %arg3[%c0_74, %c0_75, %c7_76, %c0_77] : memref<1x32x16x256xbf16, #tpu.memory_space<vmem>>, vector<1x32x1x256xbf16>
    %232 = vector.shape_cast %231 : vector<1x32x1x256xbf16> to vector<32x256xbf16>
    %233 = arith.extf %232 : vector<32x256xbf16> to vector<32x256xf32>
    %234 = vector.extract_strided_slice %0 {offsets = [0, 0], sizes = [32, 1], strides = [1, 1]} : vector<32x3xf32> to vector<32x1xf32>
    %235 = vector.extract_strided_slice %230 {offsets = [0, 0], sizes = [1, 256], strides = [1, 1]} : vector<3x256xf32> to vector<1x256xf32>
    %236 = vector.broadcast %234 : vector<32x1xf32> to vector<32x256xf32>
    %237 = vector.broadcast %235 : vector<1x256xf32> to vector<32x256xf32>
    %238 = arith.mulf %236, %237 : vector<32x256xf32>
    %239 = vector.extract_strided_slice %0 {offsets = [0, 1], sizes = [32, 1], strides = [1, 1]} : vector<32x3xf32> to vector<32x1xf32>
    %240 = vector.extract_strided_slice %230 {offsets = [1, 0], sizes = [1, 256], strides = [1, 1]} : vector<3x256xf32> to vector<1x256xf32>
    %241 = vector.broadcast %239 : vector<32x1xf32> to vector<32x256xf32>
    %242 = vector.broadcast %240 : vector<1x256xf32> to vector<32x256xf32>
    %243 = arith.mulf %241, %242 : vector<32x256xf32>
    %244 = arith.addf %238, %243 : vector<32x256xf32>
    %245 = vector.extract_strided_slice %0 {offsets = [0, 2], sizes = [32, 1], strides = [1, 1]} : vector<32x3xf32> to vector<32x1xf32>
    %246 = vector.extract_strided_slice %230 {offsets = [2, 0], sizes = [1, 256], strides = [1, 1]} : vector<3x256xf32> to vector<1x256xf32>
    %247 = vector.broadcast %245 : vector<32x1xf32> to vector<32x256xf32>
    %248 = vector.broadcast %246 : vector<1x256xf32> to vector<32x256xf32>
    %249 = arith.mulf %247, %248 : vector<32x256xf32>
    %250 = arith.addf %244, %249 : vector<32x256xf32>
    %251 = vector.broadcast %1 : vector<32x1xf32> to vector<32x256xf32>
    %252 = arith.addf %250, %251 : vector<32x256xf32>
    %cst_78 = arith.constant 0.000000e+00 : f32
    %253 = vector.broadcast %cst_78 : f32 to vector<32x256xf32>
    %254 = arith.maximumf %252, %253 : vector<32x256xf32>
    %255 = arith.truncf %254 : vector<32x256xf32> to vector<32x256xbf16>
    %cst_79 = arith.constant dense<0.000000e+00> : vector<32x256xf32>
    %256 = tpu.matmul %2, %255, %cst_79 {dimension_numbers = #tpu.dot_dimension_numbers<[1], [0], [0], [1], [0, 0, 1, 1], [], []>} : vector<32x32xbf16>, vector<32x256xbf16>, vector<32x256xf32> -> vector<32x256xf32>
    %257 = vector.broadcast %3 : vector<32x1xf32> to vector<32x256xf32>
    %258 = arith.addf %256, %257 : vector<32x256xf32>
    %259 = arith.mulf %233, %258 : vector<32x256xf32>
    %260 = arith.maximumf %228, %259 : vector<32x256xf32>
    %c0_80 = arith.constant 0 : index
    %c0_81 = arith.constant 0 : index
    %c8 = arith.constant 8 : index
    %c0_82 = arith.constant 0 : index
    %261 = vector.load %arg2[%c0_80, %c0_81, %c8, %c0_82] : memref<1x3x16x256xf32, #tpu.memory_space<vmem>>, vector<1x3x1x256xf32>
    %262 = vector.shape_cast %261 : vector<1x3x1x256xf32> to vector<3x256xf32>
    %c0_83 = arith.constant 0 : index
    %c0_84 = arith.constant 0 : index
    %c8_85 = arith.constant 8 : index
    %c0_86 = arith.constant 0 : index
    %263 = vector.load %arg3[%c0_83, %c0_84, %c8_85, %c0_86] : memref<1x32x16x256xbf16, #tpu.memory_space<vmem>>, vector<1x32x1x256xbf16>
    %264 = vector.shape_cast %263 : vector<1x32x1x256xbf16> to vector<32x256xbf16>
    %265 = arith.extf %264 : vector<32x256xbf16> to vector<32x256xf32>
    %266 = vector.extract_strided_slice %0 {offsets = [0, 0], sizes = [32, 1], strides = [1, 1]} : vector<32x3xf32> to vector<32x1xf32>
    %267 = vector.extract_strided_slice %262 {offsets = [0, 0], sizes = [1, 256], strides = [1, 1]} : vector<3x256xf32> to vector<1x256xf32>
    %268 = vector.broadcast %266 : vector<32x1xf32> to vector<32x256xf32>
    %269 = vector.broadcast %267 : vector<1x256xf32> to vector<32x256xf32>
    %270 = arith.mulf %268, %269 : vector<32x256xf32>
    %271 = vector.extract_strided_slice %0 {offsets = [0, 1], sizes = [32, 1], strides = [1, 1]} : vector<32x3xf32> to vector<32x1xf32>
    %272 = vector.extract_strided_slice %262 {offsets = [1, 0], sizes = [1, 256], strides = [1, 1]} : vector<3x256xf32> to vector<1x256xf32>
    %273 = vector.broadcast %271 : vector<32x1xf32> to vector<32x256xf32>
    %274 = vector.broadcast %272 : vector<1x256xf32> to vector<32x256xf32>
    %275 = arith.mulf %273, %274 : vector<32x256xf32>
    %276 = arith.addf %270, %275 : vector<32x256xf32>
    %277 = vector.extract_strided_slice %0 {offsets = [0, 2], sizes = [32, 1], strides = [1, 1]} : vector<32x3xf32> to vector<32x1xf32>
    %278 = vector.extract_strided_slice %262 {offsets = [2, 0], sizes = [1, 256], strides = [1, 1]} : vector<3x256xf32> to vector<1x256xf32>
    %279 = vector.broadcast %277 : vector<32x1xf32> to vector<32x256xf32>
    %280 = vector.broadcast %278 : vector<1x256xf32> to vector<32x256xf32>
    %281 = arith.mulf %279, %280 : vector<32x256xf32>
    %282 = arith.addf %276, %281 : vector<32x256xf32>
    %283 = vector.broadcast %1 : vector<32x1xf32> to vector<32x256xf32>
    %284 = arith.addf %282, %283 : vector<32x256xf32>
    %cst_87 = arith.constant 0.000000e+00 : f32
    %285 = vector.broadcast %cst_87 : f32 to vector<32x256xf32>
    %286 = arith.maximumf %284, %285 : vector<32x256xf32>
    %287 = arith.truncf %286 : vector<32x256xf32> to vector<32x256xbf16>
    %cst_88 = arith.constant dense<0.000000e+00> : vector<32x256xf32>
    %288 = tpu.matmul %2, %287, %cst_88 {dimension_numbers = #tpu.dot_dimension_numbers<[1], [0], [0], [1], [0, 0, 1, 1], [], []>} : vector<32x32xbf16>, vector<32x256xbf16>, vector<32x256xf32> -> vector<32x256xf32>
    %289 = vector.broadcast %3 : vector<32x1xf32> to vector<32x256xf32>
    %290 = arith.addf %288, %289 : vector<32x256xf32>
    %291 = arith.mulf %265, %290 : vector<32x256xf32>
    %292 = arith.maximumf %260, %291 : vector<32x256xf32>
    %c0_89 = arith.constant 0 : index
    %c0_90 = arith.constant 0 : index
    %c9 = arith.constant 9 : index
    %c0_91 = arith.constant 0 : index
    %293 = vector.load %arg2[%c0_89, %c0_90, %c9, %c0_91] : memref<1x3x16x256xf32, #tpu.memory_space<vmem>>, vector<1x3x1x256xf32>
    %294 = vector.shape_cast %293 : vector<1x3x1x256xf32> to vector<3x256xf32>
    %c0_92 = arith.constant 0 : index
    %c0_93 = arith.constant 0 : index
    %c9_94 = arith.constant 9 : index
    %c0_95 = arith.constant 0 : index
    %295 = vector.load %arg3[%c0_92, %c0_93, %c9_94, %c0_95] : memref<1x32x16x256xbf16, #tpu.memory_space<vmem>>, vector<1x32x1x256xbf16>
    %296 = vector.shape_cast %295 : vector<1x32x1x256xbf16> to vector<32x256xbf16>
    %297 = arith.extf %296 : vector<32x256xbf16> to vector<32x256xf32>
    %298 = vector.extract_strided_slice %0 {offsets = [0, 0], sizes = [32, 1], strides = [1, 1]} : vector<32x3xf32> to vector<32x1xf32>
    %299 = vector.extract_strided_slice %294 {offsets = [0, 0], sizes = [1, 256], strides = [1, 1]} : vector<3x256xf32> to vector<1x256xf32>
    %300 = vector.broadcast %298 : vector<32x1xf32> to vector<32x256xf32>
    %301 = vector.broadcast %299 : vector<1x256xf32> to vector<32x256xf32>
    %302 = arith.mulf %300, %301 : vector<32x256xf32>
    %303 = vector.extract_strided_slice %0 {offsets = [0, 1], sizes = [32, 1], strides = [1, 1]} : vector<32x3xf32> to vector<32x1xf32>
    %304 = vector.extract_strided_slice %294 {offsets = [1, 0], sizes = [1, 256], strides = [1, 1]} : vector<3x256xf32> to vector<1x256xf32>
    %305 = vector.broadcast %303 : vector<32x1xf32> to vector<32x256xf32>
    %306 = vector.broadcast %304 : vector<1x256xf32> to vector<32x256xf32>
    %307 = arith.mulf %305, %306 : vector<32x256xf32>
    %308 = arith.addf %302, %307 : vector<32x256xf32>
    %309 = vector.extract_strided_slice %0 {offsets = [0, 2], sizes = [32, 1], strides = [1, 1]} : vector<32x3xf32> to vector<32x1xf32>
    %310 = vector.extract_strided_slice %294 {offsets = [2, 0], sizes = [1, 256], strides = [1, 1]} : vector<3x256xf32> to vector<1x256xf32>
    %311 = vector.broadcast %309 : vector<32x1xf32> to vector<32x256xf32>
    %312 = vector.broadcast %310 : vector<1x256xf32> to vector<32x256xf32>
    %313 = arith.mulf %311, %312 : vector<32x256xf32>
    %314 = arith.addf %308, %313 : vector<32x256xf32>
    %315 = vector.broadcast %1 : vector<32x1xf32> to vector<32x256xf32>
    %316 = arith.addf %314, %315 : vector<32x256xf32>
    %cst_96 = arith.constant 0.000000e+00 : f32
    %317 = vector.broadcast %cst_96 : f32 to vector<32x256xf32>
    %318 = arith.maximumf %316, %317 : vector<32x256xf32>
    %319 = arith.truncf %318 : vector<32x256xf32> to vector<32x256xbf16>
    %cst_97 = arith.constant dense<0.000000e+00> : vector<32x256xf32>
    %320 = tpu.matmul %2, %319, %cst_97 {dimension_numbers = #tpu.dot_dimension_numbers<[1], [0], [0], [1], [0, 0, 1, 1], [], []>} : vector<32x32xbf16>, vector<32x256xbf16>, vector<32x256xf32> -> vector<32x256xf32>
    %321 = vector.broadcast %3 : vector<32x1xf32> to vector<32x256xf32>
    %322 = arith.addf %320, %321 : vector<32x256xf32>
    %323 = arith.mulf %297, %322 : vector<32x256xf32>
    %324 = arith.maximumf %292, %323 : vector<32x256xf32>
    %c0_98 = arith.constant 0 : index
    %c0_99 = arith.constant 0 : index
    %c10 = arith.constant 10 : index
    %c0_100 = arith.constant 0 : index
    %325 = vector.load %arg2[%c0_98, %c0_99, %c10, %c0_100] : memref<1x3x16x256xf32, #tpu.memory_space<vmem>>, vector<1x3x1x256xf32>
    %326 = vector.shape_cast %325 : vector<1x3x1x256xf32> to vector<3x256xf32>
    %c0_101 = arith.constant 0 : index
    %c0_102 = arith.constant 0 : index
    %c10_103 = arith.constant 10 : index
    %c0_104 = arith.constant 0 : index
    %327 = vector.load %arg3[%c0_101, %c0_102, %c10_103, %c0_104] : memref<1x32x16x256xbf16, #tpu.memory_space<vmem>>, vector<1x32x1x256xbf16>
    %328 = vector.shape_cast %327 : vector<1x32x1x256xbf16> to vector<32x256xbf16>
    %329 = arith.extf %328 : vector<32x256xbf16> to vector<32x256xf32>
    %330 = vector.extract_strided_slice %0 {offsets = [0, 0], sizes = [32, 1], strides = [1, 1]} : vector<32x3xf32> to vector<32x1xf32>
    %331 = vector.extract_strided_slice %326 {offsets = [0, 0], sizes = [1, 256], strides = [1, 1]} : vector<3x256xf32> to vector<1x256xf32>
    %332 = vector.broadcast %330 : vector<32x1xf32> to vector<32x256xf32>
    %333 = vector.broadcast %331 : vector<1x256xf32> to vector<32x256xf32>
    %334 = arith.mulf %332, %333 : vector<32x256xf32>
    %335 = vector.extract_strided_slice %0 {offsets = [0, 1], sizes = [32, 1], strides = [1, 1]} : vector<32x3xf32> to vector<32x1xf32>
    %336 = vector.extract_strided_slice %326 {offsets = [1, 0], sizes = [1, 256], strides = [1, 1]} : vector<3x256xf32> to vector<1x256xf32>
    %337 = vector.broadcast %335 : vector<32x1xf32> to vector<32x256xf32>
    %338 = vector.broadcast %336 : vector<1x256xf32> to vector<32x256xf32>
    %339 = arith.mulf %337, %338 : vector<32x256xf32>
    %340 = arith.addf %334, %339 : vector<32x256xf32>
    %341 = vector.extract_strided_slice %0 {offsets = [0, 2], sizes = [32, 1], strides = [1, 1]} : vector<32x3xf32> to vector<32x1xf32>
    %342 = vector.extract_strided_slice %326 {offsets = [2, 0], sizes = [1, 256], strides = [1, 1]} : vector<3x256xf32> to vector<1x256xf32>
    %343 = vector.broadcast %341 : vector<32x1xf32> to vector<32x256xf32>
    %344 = vector.broadcast %342 : vector<1x256xf32> to vector<32x256xf32>
    %345 = arith.mulf %343, %344 : vector<32x256xf32>
    %346 = arith.addf %340, %345 : vector<32x256xf32>
    %347 = vector.broadcast %1 : vector<32x1xf32> to vector<32x256xf32>
    %348 = arith.addf %346, %347 : vector<32x256xf32>
    %cst_105 = arith.constant 0.000000e+00 : f32
    %349 = vector.broadcast %cst_105 : f32 to vector<32x256xf32>
    %350 = arith.maximumf %348, %349 : vector<32x256xf32>
    %351 = arith.truncf %350 : vector<32x256xf32> to vector<32x256xbf16>
    %cst_106 = arith.constant dense<0.000000e+00> : vector<32x256xf32>
    %352 = tpu.matmul %2, %351, %cst_106 {dimension_numbers = #tpu.dot_dimension_numbers<[1], [0], [0], [1], [0, 0, 1, 1], [], []>} : vector<32x32xbf16>, vector<32x256xbf16>, vector<32x256xf32> -> vector<32x256xf32>
    %353 = vector.broadcast %3 : vector<32x1xf32> to vector<32x256xf32>
    %354 = arith.addf %352, %353 : vector<32x256xf32>
    %355 = arith.mulf %329, %354 : vector<32x256xf32>
    %356 = arith.maximumf %324, %355 : vector<32x256xf32>
    %c0_107 = arith.constant 0 : index
    %c0_108 = arith.constant 0 : index
    %c11 = arith.constant 11 : index
    %c0_109 = arith.constant 0 : index
    %357 = vector.load %arg2[%c0_107, %c0_108, %c11, %c0_109] : memref<1x3x16x256xf32, #tpu.memory_space<vmem>>, vector<1x3x1x256xf32>
    %358 = vector.shape_cast %357 : vector<1x3x1x256xf32> to vector<3x256xf32>
    %c0_110 = arith.constant 0 : index
    %c0_111 = arith.constant 0 : index
    %c11_112 = arith.constant 11 : index
    %c0_113 = arith.constant 0 : index
    %359 = vector.load %arg3[%c0_110, %c0_111, %c11_112, %c0_113] : memref<1x32x16x256xbf16, #tpu.memory_space<vmem>>, vector<1x32x1x256xbf16>
    %360 = vector.shape_cast %359 : vector<1x32x1x256xbf16> to vector<32x256xbf16>
    %361 = arith.extf %360 : vector<32x256xbf16> to vector<32x256xf32>
    %362 = vector.extract_strided_slice %0 {offsets = [0, 0], sizes = [32, 1], strides = [1, 1]} : vector<32x3xf32> to vector<32x1xf32>
    %363 = vector.extract_strided_slice %358 {offsets = [0, 0], sizes = [1, 256], strides = [1, 1]} : vector<3x256xf32> to vector<1x256xf32>
    %364 = vector.broadcast %362 : vector<32x1xf32> to vector<32x256xf32>
    %365 = vector.broadcast %363 : vector<1x256xf32> to vector<32x256xf32>
    %366 = arith.mulf %364, %365 : vector<32x256xf32>
    %367 = vector.extract_strided_slice %0 {offsets = [0, 1], sizes = [32, 1], strides = [1, 1]} : vector<32x3xf32> to vector<32x1xf32>
    %368 = vector.extract_strided_slice %358 {offsets = [1, 0], sizes = [1, 256], strides = [1, 1]} : vector<3x256xf32> to vector<1x256xf32>
    %369 = vector.broadcast %367 : vector<32x1xf32> to vector<32x256xf32>
    %370 = vector.broadcast %368 : vector<1x256xf32> to vector<32x256xf32>
    %371 = arith.mulf %369, %370 : vector<32x256xf32>
    %372 = arith.addf %366, %371 : vector<32x256xf32>
    %373 = vector.extract_strided_slice %0 {offsets = [0, 2], sizes = [32, 1], strides = [1, 1]} : vector<32x3xf32> to vector<32x1xf32>
    %374 = vector.extract_strided_slice %358 {offsets = [2, 0], sizes = [1, 256], strides = [1, 1]} : vector<3x256xf32> to vector<1x256xf32>
    %375 = vector.broadcast %373 : vector<32x1xf32> to vector<32x256xf32>
    %376 = vector.broadcast %374 : vector<1x256xf32> to vector<32x256xf32>
    %377 = arith.mulf %375, %376 : vector<32x256xf32>
    %378 = arith.addf %372, %377 : vector<32x256xf32>
    %379 = vector.broadcast %1 : vector<32x1xf32> to vector<32x256xf32>
    %380 = arith.addf %378, %379 : vector<32x256xf32>
    %cst_114 = arith.constant 0.000000e+00 : f32
    %381 = vector.broadcast %cst_114 : f32 to vector<32x256xf32>
    %382 = arith.maximumf %380, %381 : vector<32x256xf32>
    %383 = arith.truncf %382 : vector<32x256xf32> to vector<32x256xbf16>
    %cst_115 = arith.constant dense<0.000000e+00> : vector<32x256xf32>
    %384 = tpu.matmul %2, %383, %cst_115 {dimension_numbers = #tpu.dot_dimension_numbers<[1], [0], [0], [1], [0, 0, 1, 1], [], []>} : vector<32x32xbf16>, vector<32x256xbf16>, vector<32x256xf32> -> vector<32x256xf32>
    %385 = vector.broadcast %3 : vector<32x1xf32> to vector<32x256xf32>
    %386 = arith.addf %384, %385 : vector<32x256xf32>
    %387 = arith.mulf %361, %386 : vector<32x256xf32>
    %388 = arith.maximumf %356, %387 : vector<32x256xf32>
    %c0_116 = arith.constant 0 : index
    %c0_117 = arith.constant 0 : index
    %c12 = arith.constant 12 : index
    %c0_118 = arith.constant 0 : index
    %389 = vector.load %arg2[%c0_116, %c0_117, %c12, %c0_118] : memref<1x3x16x256xf32, #tpu.memory_space<vmem>>, vector<1x3x1x256xf32>
    %390 = vector.shape_cast %389 : vector<1x3x1x256xf32> to vector<3x256xf32>
    %c0_119 = arith.constant 0 : index
    %c0_120 = arith.constant 0 : index
    %c12_121 = arith.constant 12 : index
    %c0_122 = arith.constant 0 : index
    %391 = vector.load %arg3[%c0_119, %c0_120, %c12_121, %c0_122] : memref<1x32x16x256xbf16, #tpu.memory_space<vmem>>, vector<1x32x1x256xbf16>
    %392 = vector.shape_cast %391 : vector<1x32x1x256xbf16> to vector<32x256xbf16>
    %393 = arith.extf %392 : vector<32x256xbf16> to vector<32x256xf32>
    %394 = vector.extract_strided_slice %0 {offsets = [0, 0], sizes = [32, 1], strides = [1, 1]} : vector<32x3xf32> to vector<32x1xf32>
    %395 = vector.extract_strided_slice %390 {offsets = [0, 0], sizes = [1, 256], strides = [1, 1]} : vector<3x256xf32> to vector<1x256xf32>
    %396 = vector.broadcast %394 : vector<32x1xf32> to vector<32x256xf32>
    %397 = vector.broadcast %395 : vector<1x256xf32> to vector<32x256xf32>
    %398 = arith.mulf %396, %397 : vector<32x256xf32>
    %399 = vector.extract_strided_slice %0 {offsets = [0, 1], sizes = [32, 1], strides = [1, 1]} : vector<32x3xf32> to vector<32x1xf32>
    %400 = vector.extract_strided_slice %390 {offsets = [1, 0], sizes = [1, 256], strides = [1, 1]} : vector<3x256xf32> to vector<1x256xf32>
    %401 = vector.broadcast %399 : vector<32x1xf32> to vector<32x256xf32>
    %402 = vector.broadcast %400 : vector<1x256xf32> to vector<32x256xf32>
    %403 = arith.mulf %401, %402 : vector<32x256xf32>
    %404 = arith.addf %398, %403 : vector<32x256xf32>
    %405 = vector.extract_strided_slice %0 {offsets = [0, 2], sizes = [32, 1], strides = [1, 1]} : vector<32x3xf32> to vector<32x1xf32>
    %406 = vector.extract_strided_slice %390 {offsets = [2, 0], sizes = [1, 256], strides = [1, 1]} : vector<3x256xf32> to vector<1x256xf32>
    %407 = vector.broadcast %405 : vector<32x1xf32> to vector<32x256xf32>
    %408 = vector.broadcast %406 : vector<1x256xf32> to vector<32x256xf32>
    %409 = arith.mulf %407, %408 : vector<32x256xf32>
    %410 = arith.addf %404, %409 : vector<32x256xf32>
    %411 = vector.broadcast %1 : vector<32x1xf32> to vector<32x256xf32>
    %412 = arith.addf %410, %411 : vector<32x256xf32>
    %cst_123 = arith.constant 0.000000e+00 : f32
    %413 = vector.broadcast %cst_123 : f32 to vector<32x256xf32>
    %414 = arith.maximumf %412, %413 : vector<32x256xf32>
    %415 = arith.truncf %414 : vector<32x256xf32> to vector<32x256xbf16>
    %cst_124 = arith.constant dense<0.000000e+00> : vector<32x256xf32>
    %416 = tpu.matmul %2, %415, %cst_124 {dimension_numbers = #tpu.dot_dimension_numbers<[1], [0], [0], [1], [0, 0, 1, 1], [], []>} : vector<32x32xbf16>, vector<32x256xbf16>, vector<32x256xf32> -> vector<32x256xf32>
    %417 = vector.broadcast %3 : vector<32x1xf32> to vector<32x256xf32>
    %418 = arith.addf %416, %417 : vector<32x256xf32>
    %419 = arith.mulf %393, %418 : vector<32x256xf32>
    %420 = arith.maximumf %388, %419 : vector<32x256xf32>
    %c0_125 = arith.constant 0 : index
    %c0_126 = arith.constant 0 : index
    %c13 = arith.constant 13 : index
    %c0_127 = arith.constant 0 : index
    %421 = vector.load %arg2[%c0_125, %c0_126, %c13, %c0_127] : memref<1x3x16x256xf32, #tpu.memory_space<vmem>>, vector<1x3x1x256xf32>
    %422 = vector.shape_cast %421 : vector<1x3x1x256xf32> to vector<3x256xf32>
    %c0_128 = arith.constant 0 : index
    %c0_129 = arith.constant 0 : index
    %c13_130 = arith.constant 13 : index
    %c0_131 = arith.constant 0 : index
    %423 = vector.load %arg3[%c0_128, %c0_129, %c13_130, %c0_131] : memref<1x32x16x256xbf16, #tpu.memory_space<vmem>>, vector<1x32x1x256xbf16>
    %424 = vector.shape_cast %423 : vector<1x32x1x256xbf16> to vector<32x256xbf16>
    %425 = arith.extf %424 : vector<32x256xbf16> to vector<32x256xf32>
    %426 = vector.extract_strided_slice %0 {offsets = [0, 0], sizes = [32, 1], strides = [1, 1]} : vector<32x3xf32> to vector<32x1xf32>
    %427 = vector.extract_strided_slice %422 {offsets = [0, 0], sizes = [1, 256], strides = [1, 1]} : vector<3x256xf32> to vector<1x256xf32>
    %428 = vector.broadcast %426 : vector<32x1xf32> to vector<32x256xf32>
    %429 = vector.broadcast %427 : vector<1x256xf32> to vector<32x256xf32>
    %430 = arith.mulf %428, %429 : vector<32x256xf32>
    %431 = vector.extract_strided_slice %0 {offsets = [0, 1], sizes = [32, 1], strides = [1, 1]} : vector<32x3xf32> to vector<32x1xf32>
    %432 = vector.extract_strided_slice %422 {offsets = [1, 0], sizes = [1, 256], strides = [1, 1]} : vector<3x256xf32> to vector<1x256xf32>
    %433 = vector.broadcast %431 : vector<32x1xf32> to vector<32x256xf32>
    %434 = vector.broadcast %432 : vector<1x256xf32> to vector<32x256xf32>
    %435 = arith.mulf %433, %434 : vector<32x256xf32>
    %436 = arith.addf %430, %435 : vector<32x256xf32>
    %437 = vector.extract_strided_slice %0 {offsets = [0, 2], sizes = [32, 1], strides = [1, 1]} : vector<32x3xf32> to vector<32x1xf32>
    %438 = vector.extract_strided_slice %422 {offsets = [2, 0], sizes = [1, 256], strides = [1, 1]} : vector<3x256xf32> to vector<1x256xf32>
    %439 = vector.broadcast %437 : vector<32x1xf32> to vector<32x256xf32>
    %440 = vector.broadcast %438 : vector<1x256xf32> to vector<32x256xf32>
    %441 = arith.mulf %439, %440 : vector<32x256xf32>
    %442 = arith.addf %436, %441 : vector<32x256xf32>
    %443 = vector.broadcast %1 : vector<32x1xf32> to vector<32x256xf32>
    %444 = arith.addf %442, %443 : vector<32x256xf32>
    %cst_132 = arith.constant 0.000000e+00 : f32
    %445 = vector.broadcast %cst_132 : f32 to vector<32x256xf32>
    %446 = arith.maximumf %444, %445 : vector<32x256xf32>
    %447 = arith.truncf %446 : vector<32x256xf32> to vector<32x256xbf16>
    %cst_133 = arith.constant dense<0.000000e+00> : vector<32x256xf32>
    %448 = tpu.matmul %2, %447, %cst_133 {dimension_numbers = #tpu.dot_dimension_numbers<[1], [0], [0], [1], [0, 0, 1, 1], [], []>} : vector<32x32xbf16>, vector<32x256xbf16>, vector<32x256xf32> -> vector<32x256xf32>
    %449 = vector.broadcast %3 : vector<32x1xf32> to vector<32x256xf32>
    %450 = arith.addf %448, %449 : vector<32x256xf32>
    %451 = arith.mulf %425, %450 : vector<32x256xf32>
    %452 = arith.maximumf %420, %451 : vector<32x256xf32>
    %c0_134 = arith.constant 0 : index
    %c0_135 = arith.constant 0 : index
    %c14 = arith.constant 14 : index
    %c0_136 = arith.constant 0 : index
    %453 = vector.load %arg2[%c0_134, %c0_135, %c14, %c0_136] : memref<1x3x16x256xf32, #tpu.memory_space<vmem>>, vector<1x3x1x256xf32>
    %454 = vector.shape_cast %453 : vector<1x3x1x256xf32> to vector<3x256xf32>
    %c0_137 = arith.constant 0 : index
    %c0_138 = arith.constant 0 : index
    %c14_139 = arith.constant 14 : index
    %c0_140 = arith.constant 0 : index
    %455 = vector.load %arg3[%c0_137, %c0_138, %c14_139, %c0_140] : memref<1x32x16x256xbf16, #tpu.memory_space<vmem>>, vector<1x32x1x256xbf16>
    %456 = vector.shape_cast %455 : vector<1x32x1x256xbf16> to vector<32x256xbf16>
    %457 = arith.extf %456 : vector<32x256xbf16> to vector<32x256xf32>
    %458 = vector.extract_strided_slice %0 {offsets = [0, 0], sizes = [32, 1], strides = [1, 1]} : vector<32x3xf32> to vector<32x1xf32>
    %459 = vector.extract_strided_slice %454 {offsets = [0, 0], sizes = [1, 256], strides = [1, 1]} : vector<3x256xf32> to vector<1x256xf32>
    %460 = vector.broadcast %458 : vector<32x1xf32> to vector<32x256xf32>
    %461 = vector.broadcast %459 : vector<1x256xf32> to vector<32x256xf32>
    %462 = arith.mulf %460, %461 : vector<32x256xf32>
    %463 = vector.extract_strided_slice %0 {offsets = [0, 1], sizes = [32, 1], strides = [1, 1]} : vector<32x3xf32> to vector<32x1xf32>
    %464 = vector.extract_strided_slice %454 {offsets = [1, 0], sizes = [1, 256], strides = [1, 1]} : vector<3x256xf32> to vector<1x256xf32>
    %465 = vector.broadcast %463 : vector<32x1xf32> to vector<32x256xf32>
    %466 = vector.broadcast %464 : vector<1x256xf32> to vector<32x256xf32>
    %467 = arith.mulf %465, %466 : vector<32x256xf32>
    %468 = arith.addf %462, %467 : vector<32x256xf32>
    %469 = vector.extract_strided_slice %0 {offsets = [0, 2], sizes = [32, 1], strides = [1, 1]} : vector<32x3xf32> to vector<32x1xf32>
    %470 = vector.extract_strided_slice %454 {offsets = [2, 0], sizes = [1, 256], strides = [1, 1]} : vector<3x256xf32> to vector<1x256xf32>
    %471 = vector.broadcast %469 : vector<32x1xf32> to vector<32x256xf32>
    %472 = vector.broadcast %470 : vector<1x256xf32> to vector<32x256xf32>
    %473 = arith.mulf %471, %472 : vector<32x256xf32>
    %474 = arith.addf %468, %473 : vector<32x256xf32>
    %475 = vector.broadcast %1 : vector<32x1xf32> to vector<32x256xf32>
    %476 = arith.addf %474, %475 : vector<32x256xf32>
    %cst_141 = arith.constant 0.000000e+00 : f32
    %477 = vector.broadcast %cst_141 : f32 to vector<32x256xf32>
    %478 = arith.maximumf %476, %477 : vector<32x256xf32>
    %479 = arith.truncf %478 : vector<32x256xf32> to vector<32x256xbf16>
    %cst_142 = arith.constant dense<0.000000e+00> : vector<32x256xf32>
    %480 = tpu.matmul %2, %479, %cst_142 {dimension_numbers = #tpu.dot_dimension_numbers<[1], [0], [0], [1], [0, 0, 1, 1], [], []>} : vector<32x32xbf16>, vector<32x256xbf16>, vector<32x256xf32> -> vector<32x256xf32>
    %481 = vector.broadcast %3 : vector<32x1xf32> to vector<32x256xf32>
    %482 = arith.addf %480, %481 : vector<32x256xf32>
    %483 = arith.mulf %457, %482 : vector<32x256xf32>
    %484 = arith.maximumf %452, %483 : vector<32x256xf32>
    %c0_143 = arith.constant 0 : index
    %c0_144 = arith.constant 0 : index
    %c15 = arith.constant 15 : index
    %c0_145 = arith.constant 0 : index
    %485 = vector.load %arg2[%c0_143, %c0_144, %c15, %c0_145] : memref<1x3x16x256xf32, #tpu.memory_space<vmem>>, vector<1x3x1x256xf32>
    %486 = vector.shape_cast %485 : vector<1x3x1x256xf32> to vector<3x256xf32>
    %c0_146 = arith.constant 0 : index
    %c0_147 = arith.constant 0 : index
    %c15_148 = arith.constant 15 : index
    %c0_149 = arith.constant 0 : index
    %487 = vector.load %arg3[%c0_146, %c0_147, %c15_148, %c0_149] : memref<1x32x16x256xbf16, #tpu.memory_space<vmem>>, vector<1x32x1x256xbf16>
    %488 = vector.shape_cast %487 : vector<1x32x1x256xbf16> to vector<32x256xbf16>
    %489 = arith.extf %488 : vector<32x256xbf16> to vector<32x256xf32>
    %490 = vector.extract_strided_slice %0 {offsets = [0, 0], sizes = [32, 1], strides = [1, 1]} : vector<32x3xf32> to vector<32x1xf32>
    %491 = vector.extract_strided_slice %486 {offsets = [0, 0], sizes = [1, 256], strides = [1, 1]} : vector<3x256xf32> to vector<1x256xf32>
    %492 = vector.broadcast %490 : vector<32x1xf32> to vector<32x256xf32>
    %493 = vector.broadcast %491 : vector<1x256xf32> to vector<32x256xf32>
    %494 = arith.mulf %492, %493 : vector<32x256xf32>
    %495 = vector.extract_strided_slice %0 {offsets = [0, 1], sizes = [32, 1], strides = [1, 1]} : vector<32x3xf32> to vector<32x1xf32>
    %496 = vector.extract_strided_slice %486 {offsets = [1, 0], sizes = [1, 256], strides = [1, 1]} : vector<3x256xf32> to vector<1x256xf32>
    %497 = vector.broadcast %495 : vector<32x1xf32> to vector<32x256xf32>
    %498 = vector.broadcast %496 : vector<1x256xf32> to vector<32x256xf32>
    %499 = arith.mulf %497, %498 : vector<32x256xf32>
    %500 = arith.addf %494, %499 : vector<32x256xf32>
    %501 = vector.extract_strided_slice %0 {offsets = [0, 2], sizes = [32, 1], strides = [1, 1]} : vector<32x3xf32> to vector<32x1xf32>
    %502 = vector.extract_strided_slice %486 {offsets = [2, 0], sizes = [1, 256], strides = [1, 1]} : vector<3x256xf32> to vector<1x256xf32>
    %503 = vector.broadcast %501 : vector<32x1xf32> to vector<32x256xf32>
    %504 = vector.broadcast %502 : vector<1x256xf32> to vector<32x256xf32>
    %505 = arith.mulf %503, %504 : vector<32x256xf32>
    %506 = arith.addf %500, %505 : vector<32x256xf32>
    %507 = vector.broadcast %1 : vector<32x1xf32> to vector<32x256xf32>
    %508 = arith.addf %506, %507 : vector<32x256xf32>
    %cst_150 = arith.constant 0.000000e+00 : f32
    %509 = vector.broadcast %cst_150 : f32 to vector<32x256xf32>
    %510 = arith.maximumf %508, %509 : vector<32x256xf32>
    %511 = arith.truncf %510 : vector<32x256xf32> to vector<32x256xbf16>
    %cst_151 = arith.constant dense<0.000000e+00> : vector<32x256xf32>
    %512 = tpu.matmul %2, %511, %cst_151 {dimension_numbers = #tpu.dot_dimension_numbers<[1], [0], [0], [1], [0, 0, 1, 1], [], []>} : vector<32x32xbf16>, vector<32x256xbf16>, vector<32x256xf32> -> vector<32x256xf32>
    %513 = vector.broadcast %3 : vector<32x1xf32> to vector<32x256xf32>
    %514 = arith.addf %512, %513 : vector<32x256xf32>
    %515 = arith.mulf %489, %514 : vector<32x256xf32>
    %516 = arith.maximumf %484, %515 : vector<32x256xf32>
    %c0_152 = arith.constant 0 : index
    %c0_153 = arith.constant 0 : index
    %517 = vector.load %arg8[%c0_152, %c0_153] : memref<64x32xbf16, #tpu.memory_space<vmem>>, vector<64x32xbf16>
    %518 = arith.truncf %516 : vector<32x256xf32> to vector<32x256xbf16>
    %cst_154 = arith.constant dense<0.000000e+00> : vector<64x256xf32>
    %519 = tpu.matmul %517, %518, %cst_154 {dimension_numbers = #tpu.dot_dimension_numbers<[1], [0], [0], [1], [0, 0, 1, 1], [], []>} : vector<64x32xbf16>, vector<32x256xbf16>, vector<64x256xf32> -> vector<64x256xf32>
    %c0_155 = arith.constant 0 : index
    %c0_156 = arith.constant 0 : index
    %520 = vector.load %arg9[%c0_155, %c0_156] : memref<64x1xf32, #tpu.memory_space<vmem>>, vector<64x1xf32>
    %521 = vector.broadcast %520 : vector<64x1xf32> to vector<64x256xf32>
    %522 = arith.mulf %519, %521 : vector<64x256xf32>
    %c0_157 = arith.constant 0 : index
    %c0_158 = arith.constant 0 : index
    %523 = vector.load %arg10[%c0_157, %c0_158] : memref<64x1xf32, #tpu.memory_space<vmem>>, vector<64x1xf32>
    %524 = vector.broadcast %523 : vector<64x1xf32> to vector<64x256xf32>
    %525 = arith.addf %522, %524 : vector<64x256xf32>
    %cst_159 = arith.constant 0.000000e+00 : f32
    %526 = vector.broadcast %cst_159 : f32 to vector<64x256xf32>
    %527 = arith.maximumf %525, %526 : vector<64x256xf32>
    %c0_160 = arith.constant 0 : index
    %c0_161 = arith.constant 0 : index
    %c0_162 = arith.constant 0 : index
    %528 = vector.load %arg11[%c0_160, %c0_161, %c0_162] : memref<1x64x256xf32, #tpu.memory_space<vmem>>, vector<1x64x256xf32>
    %529 = vector.shape_cast %528 : vector<1x64x256xf32> to vector<64x256xf32>
    %530 = vector.shape_cast %527 : vector<64x256xf32> to vector<1x64x256xf32>
    tpu.vector_store %arg11[%c0_160, %c0_161, %c0_162], %530 {strides = array<i32>} : memref<1x64x256xf32, #tpu.memory_space<vmem>>, vector<1x64x256xf32>,
    return
  }
  func.func @transform_0(%arg0: i32, %arg1: i32) -> (i32, i32, i32, i32) {
    %c0_i32 = arith.constant 0 : i32
    %c0_i32_0 = arith.constant 0 : i32
    %c0_i32_1 = arith.constant 0 : i32
    return %arg0, %c0_i32, %c0_i32_0, %arg1 : i32, i32, i32, i32
  }
  func.func @transform_1(%arg0: i32, %arg1: i32) -> (i32, i32, i32, i32) {
    %c0_i32 = arith.constant 0 : i32
    %c0_i32_0 = arith.constant 0 : i32
    %c0_i32_1 = arith.constant 0 : i32
    return %arg0, %c0_i32, %c0_i32_0, %arg1 : i32, i32, i32, i32
  }
  func.func @transform_2(%arg0: i32, %arg1: i32) -> (i32, i32) {
    %c0_i32 = arith.constant 0 : i32
    %c0_i32_0 = arith.constant 0 : i32
    %c0_i32_1 = arith.constant 0 : i32
    return %c0_i32, %c0_i32_0 : i32, i32
  }
  func.func @transform_3(%arg0: i32, %arg1: i32) -> (i32, i32) {
    %c0_i32 = arith.constant 0 : i32
    %c0_i32_0 = arith.constant 0 : i32
    %c0_i32_1 = arith.constant 0 : i32
    return %c0_i32, %c0_i32_0 : i32, i32
  }
  func.func @transform_4(%arg0: i32, %arg1: i32) -> (i32, i32) {
    %c0_i32 = arith.constant 0 : i32
    %c0_i32_0 = arith.constant 0 : i32
    %c0_i32_1 = arith.constant 0 : i32
    return %c0_i32, %c0_i32_0 : i32, i32
  }
  func.func @transform_5(%arg0: i32, %arg1: i32) -> (i32, i32) {
    %c0_i32 = arith.constant 0 : i32
    %c0_i32_0 = arith.constant 0 : i32
    %c0_i32_1 = arith.constant 0 : i32
    return %c0_i32, %c0_i32_0 : i32, i32
  }
  func.func @transform_6(%arg0: i32, %arg1: i32) -> (i32, i32) {
    %c0_i32 = arith.constant 0 : i32
    %c0_i32_0 = arith.constant 0 : i32
    %c0_i32_1 = arith.constant 0 : i32
    return %c0_i32, %c0_i32_0 : i32, i32
  }
  func.func @transform_7(%arg0: i32, %arg1: i32) -> (i32, i32) {
    %c0_i32 = arith.constant 0 : i32
    %c0_i32_0 = arith.constant 0 : i32
    %c0_i32_1 = arith.constant 0 : i32
    return %c0_i32, %c0_i32_0 : i32, i32
  }
  func.func @transform_8(%arg0: i32, %arg1: i32) -> (i32, i32) {
    %c0_i32 = arith.constant 0 : i32
    %c0_i32_0 = arith.constant 0 : i32
    %c0_i32_1 = arith.constant 0 : i32
    return %c0_i32, %c0_i32_0 : i32, i32
  }
  func.func @transform_9(%arg0: i32, %arg1: i32) -> (i32, i32, i32) {
    %c0_i32 = arith.constant 0 : i32
    %c0_i32_0 = arith.constant 0 : i32
    return %arg0, %c0_i32, %arg1 : i32, i32, i32
  }
}

</mosaic_0001>

<llo_original>
// kernel: tpu_custom_call.1
$region0: #{tpu_custom_call.1}
  #allocation0 [shape = 'u32[]', space=smem, size = 0x4, offset = 0x4, fixed_abs, tag = 'smem constant byte address 0x4 - core index']
  #allocation1 [shape = 'u32[144,128]{1,0:T(1,128)}', space=vmem, size = 0x12000, scoped, tag = 'internal scratch']
  %s0 = inlined_call_operand.hbm [shape: f32[2,3,16,512], index: 0, kind: input, shape index: {}]
  %s1 = inlined_call_operand.hbm [shape: bf16[2,32,16,512], index: 1, kind: input, shape index: {}]
  %s2 = inlined_call_operand.vmem [shape: f32[32,3], index: 2, kind: input, shape index: {}]
  %s3 = inlined_call_operand.vmem [shape: f32[32,1], index: 3, kind: input, shape index: {}]
  %s4 = inlined_call_operand.vmem [shape: bf16[32,32], index: 4, kind: input, shape index: {}]
  %s5 = inlined_call_operand.vmem [shape: f32[32,1], index: 5, kind: input, shape index: {}]
  %s6 = inlined_call_operand.vmem [shape: bf16[64,32], index: 6, kind: input, shape index: {}]
  %s7 = inlined_call_operand.vmem [shape: f32[64,1], index: 7, kind: input, shape index: {}]
  %s8 = inlined_call_operand.vmem [shape: f32[64,1], index: 8, kind: input, shape index: {}]
  %s9 = inlined_call_operand.hbm [shape: f32[2,64,512], index: 9, kind: output, shape index: {}]
  %s10 = sld [smem:[#allocation0]]
  $region77: #{tpu_custom_call.1} parent=0
    _
  %s12 = ssub.s32 1, %s10
  %s13 = scalar_select 0, %s12, %s10
  $region1: #{tpu_custom_call.1} parent=0
    #allocation2 [shape = 'u8[98304]{0}', space=vmem, size = 0x18000, scoped, tag = 'input window, operand 0']
    #allocation3 [shape = 's32[2]{0}', space=sflag, size = 0x8, scoped, tag = 'scoped memory for tpu_custom_call.1']
    #allocation4 [shape = 's32[2]{0}', space=sflag, size = 0x8, scoped, tag = 'scoped memory for tpu_custom_call.1']
    #allocation5 [shape = 'u8[524288]{0}', space=vmem, size = 0x80000, scoped, tag = 'input window, operand 1']
    #allocation6 [shape = 's32[2]{0}', space=sflag, size = 0x8, scoped, tag = 'scoped memory for tpu_custom_call.1']
    #allocation7 [shape = 'u8[131072]{0}', space=vmem, size = 0x20000, scoped, tag = 'output window, operand 0']
    %14 = vsyncpa [#allocation3], 0
    %s15 = scalar_lea.sflag [#allocation3], 1
    %16 = vsyncpa %s15, 0
    %17 = vsyncpa [#allocation6], 0
    %s18 = scalar_lea.sflag [#allocation6], 1
    %19 = vsyncpa %s18, 0
    %20 = vsyncpa [#allocation4], 0
    %s21 = scalar_lea.sflag [#allocation4], 1
    %22 = vsyncpa %s21, 0
    loop: start=0, step=1, limit=6
    $region2: #{tpu_custom_call.1} parent=1 // loop_pre_header
      _
    $region3: #{tpu_custom_call.1} parent=1 // loop_header
      %s24 = sphi 0, %s28
      %p25 = scmp.ge.s32.totalorder %s24, 6
      %s31 = sphi 0, %s43
      %s32 = sphi 0, %s39
      %s33 = sphi 0, %s31
      %s34 = sphi 0, %s32
      %s35 = sphi 0, %s33
      %s36 = sphi 0, %s34
      %s48 = sphi 0, %s50
      %s51 = sphi 0, %s48
      %s52 = sphi 0, %s51
      %s68 = sphi 0, %s52
      %s76 = sphi 0, %s78
      %s79 = sphi 0, %s76
      %s80 = sphi 0, %s79
      %s96 = sphi 0, %s80
      %s100 = sphi 0, %s100
      %s102 = sphi 0, %s100
      %s103 = sphi 0, %s102
      %s117 = sphi 0, %s103
      %s121 = sphi 0, %s121
      %s123 = sphi 0, %s121
      %s124 = sphi 0, %s123
      %s138 = sphi 0, %s124
      %s142 = sphi 0, %s142
      %s144 = sphi 0, %s142
      %s145 = sphi 0, %s144
      %s159 = sphi 0, %s145
      %s163 = sphi 0, %s163
      %s165 = sphi 0, %s163
      %s166 = sphi 0, %s165
      %s180 = sphi 0, %s166
      %s184 = sphi 0, %s184
      %s186 = sphi 0, %s184
      %s187 = sphi 0, %s186
      %s201 = sphi 0, %s187
      %s205 = sphi 0, %s205
      %s207 = sphi 0, %s205
      %s208 = sphi 0, %s207
      %s222 = sphi 0, %s208
      %s226 = sphi 0, %s226
      %s228 = sphi 0, %s226
      %s229 = sphi 0, %s228
      %s243 = sphi 0, %s229
      %s251 = sphi 0, %s253
      %s254 = sphi 0, %s251
      %s255 = sphi 0, %s254
      %s271 = sphi 0, %s255
    $region4: #{tpu_custom_call.1} parent=1 // loop_header_branch
      %27 = sbr.rel (%p25) target = $region8
    $region5: #{tpu_custom_call.1} parent=1 // loop_body
      %s29 = ssub.s32 %s24, 1
      %s30 = ssub.s32 %s24, 2
      %s37 = sadd.s32 1, %s32
      %p38 = scmp.ge.s32.totalorder %s37, 2
      %s39 = scalar_select %p38, 0, %s37
      %s40 = sadd.s32 1, %s31
      %s41 = scalar_select %p38, %s40, %s31
      %p42 = scmp.ge.s32.totalorder %s41, 2
      %s43 = scalar_select %p42, 0, %s41
      %s44 = ssub.s32 %s31, %s43
      %s45 = ssub.s32 %s32, %s39
      %s46 = sor.u32 %s44, %s45
      %p47 = scmp.eq.s32.totalorder %s46, 0
      %s49 = sadd.s32 %s48, 1
      %s50 = scalar_select %p47, %s48, %s49
      %p53 = pneg %p47
      %p54 = scmp.eq.s32.totalorder %s24, 3
      %p55 = por %p53, %p54
      %p56 = scmp.ne.s32.totalorder %s48, %s51
      %p57 = scmp.eq.s32.totalorder %s24, 0
      %p58 = por %p56, %p57
      %p59 = scmp.ne.s32.totalorder %s48, %s51
      %p60 = scmp.eq.s32.totalorder %s29, 3
      %p61 = por %p59, %p60
      %p62 = scmp.ne.s32.totalorder %s51, %s52
      %p63 = scmp.eq.s32.totalorder %s29, 0
      %p64 = por %p62, %p63
      %p65 = scmp.ne.s32.totalorder %s51, %s52
      %p66 = scmp.eq.s32.totalorder %s30, 3
      %p67 = por %p65, %p66
      %p69 = scmp.ne.s32.totalorder %s52, %s68
      %p70 = scmp.eq.s32.totalorder %s30, 0
      %p71 = por %p69, %p70
      %s72 = ssub.s32 %s31, %s43
      %s73 = ssub.s32 %s32, %s39
      %s74 = sor.u32 %s72, %s73
      %p75 = scmp.eq.s32.totalorder %s74, 0
      %s77 = sadd.s32 %s76, 1
      %s78 = scalar_select %p75, %s76, %s77
      %p81 = pneg %p75
      %p82 = scmp.eq.s32.totalorder %s24, 3
      %p83 = por %p81, %p82
      %p84 = scmp.ne.s32.totalorder %s76, %s79
      %p85 = scmp.eq.s32.totalorder %s24, 0
      %p86 = por %p84, %p85
      %p87 = scmp.ne.s32.totalorder %s76, %s79
      %p88 = scmp.eq.s32.totalorder %s29, 3
      %p89 = por %p87, %p88
      %p90 = scmp.ne.s32.totalorder %s79, %s80
      %p91 = scmp.eq.s32.totalorder %s29, 0
      %p92 = por %p90, %p91
      %p93 = scmp.ne.s32.totalorder %s79, %s80
      %p94 = scmp.eq.s32.totalorder %s30, 3
      %p95 = por %p93, %p94
      %p97 = scmp.ne.s32.totalorder %s80, %s96
      %p98 = scmp.eq.s32.totalorder %s30, 0
      %p99 = por %p97, %p98
      %s101 = sadd.s32 %s100, 1
      %p104 = scmp.eq.s32.totalorder %s24, 3
      %p105 = scmp.ne.s32.totalorder %s100, %s102
      %p106 = scmp.eq.s32.totalorder %s24, 0
      %p107 = por %p105, %p106
      %p108 = scmp.ne.s32.totalorder %s100, %s102
      %p109 = scmp.eq.s32.totalorder %s29, 3
      %p110 = por %p108, %p109
      %p111 = scmp.ne.s32.totalorder %s102, %s103
      %p112 = scmp.eq.s32.totalorder %s29, 0
      %p113 = por %p111, %p112
      %p114 = scmp.ne.s32.totalorder %s102, %s103
      %p115 = scmp.eq.s32.totalorder %s30, 3
      %p116 = por %p114, %p115
      %p118 = scmp.ne.s32.totalorder %s103, %s117
      %p119 = scmp.eq.s32.totalorder %s30, 0
      %p120 = por %p118, %p119
      %s122 = sadd.s32 %s121, 1
      %p125 = scmp.eq.s32.totalorder %s24, 3
      %p126 = scmp.ne.s32.totalorder %s121, %s123
      %p127 = scmp.eq.s32.totalorder %s24, 0
      %p128 = por %p126, %p127
      %p129 = scmp.ne.s32.totalorder %s121, %s123
      %p130 = scmp.eq.s32.totalorder %s29, 3
      %p131 = por %p129, %p130
      %p132 = scmp.ne.s32.totalorder %s123, %s124
      %p133 = scmp.eq.s32.totalorder %s29, 0
      %p134 = por %p132, %p133
      %p135 = scmp.ne.s32.totalorder %s123, %s124
      %p136 = scmp.eq.s32.totalorder %s30, 3
      %p137 = por %p135, %p136
      %p139 = scmp.ne.s32.totalorder %s124, %s138
      %p140 = scmp.eq.s32.totalorder %s30, 0
      %p141 = por %p139, %p140
      %s143 = sadd.s32 %s142, 1
      %p146 = scmp.eq.s32.totalorder %s24, 3
      %p147 = scmp.ne.s32.totalorder %s142, %s144
      %p148 = scmp.eq.s32.totalorder %s24, 0
      %p149 = por %p147, %p148
      %p150 = scmp.ne.s32.totalorder %s142, %s144
      %p151 = scmp.eq.s32.totalorder %s29, 3
      %p152 = por %p150, %p151
      %p153 = scmp.ne.s32.totalorder %s144, %s145
      %p154 = scmp.eq.s32.totalorder %s29, 0
      %p155 = por %p153, %p154
      %p156 = scmp.ne.s32.totalorder %s144, %s145
      %p157 = scmp.eq.s32.totalorder %s30, 3
      %p158 = por %p156, %p157
      %p160 = scmp.ne.s32.totalorder %s145, %s159
      %p161 = scmp.eq.s32.totalorder %s30, 0
      %p162 = por %p160, %p161
      %s164 = sadd.s32 %s163, 1
      %p167 = scmp.eq.s32.totalorder %s24, 3
      %p168 = scmp.ne.s32.totalorder %s163, %s165
      %p169 = scmp.eq.s32.totalorder %s24, 0
      %p170 = por %p168, %p169
      %p171 = scmp.ne.s32.totalorder %s163, %s165
      %p172 = scmp.eq.s32.totalorder %s29, 3
      %p173 = por %p171, %p172
      %p174 = scmp.ne.s32.totalorder %s165, %s166
      %p175 = scmp.eq.s32.totalorder %s29, 0
      %p176 = por %p174, %p175
      %p177 = scmp.ne.s32.totalorder %s165, %s166
      %p178 = scmp.eq.s32.totalorder %s30, 3
      %p179 = por %p177, %p178
      %p181 = scmp.ne.s32.totalorder %s166, %s180
      %p182 = scmp.eq.s32.totalorder %s30, 0
      %p183 = por %p181, %p182
      %s185 = sadd.s32 %s184, 1
      %p188 = scmp.eq.s32.totalorder %s24, 3
      %p189 = scmp.ne.s32.totalorder %s184, %s186
      %p190 = scmp.eq.s32.totalorder %s24, 0
      %p191 = por %p189, %p190
      %p192 = scmp.ne.s32.totalorder %s184, %s186
      %p193 = scmp.eq.s32.totalorder %s29, 3
      %p194 = por %p192, %p193
      %p195 = scmp.ne.s32.totalorder %s186, %s187
      %p196 = scmp.eq.s32.totalorder %s29, 0
      %p197 = por %p195, %p196
      %p198 = scmp.ne.s32.totalorder %s186, %s187
      %p199 = scmp.eq.s32.totalorder %s30, 3
      %p200 = por %p198, %p199
      %p202 = scmp.ne.s32.totalorder %s187, %s201
      %p203 = scmp.eq.s32.totalorder %s30, 0
      %p204 = por %p202, %p203
      %s206 = sadd.s32 %s205, 1
      %p209 = scmp.eq.s32.totalorder %s24, 3
      %p210 = scmp.ne.s32.totalorder %s205, %s207
      %p211 = scmp.eq.s32.totalorder %s24, 0
      %p212 = por %p210, %p211
      %p213 = scmp.ne.s32.totalorder %s205, %s207
      %p214 = scmp.eq.s32.totalorder %s29, 3
      %p215 = por %p213, %p214
      %p216 = scmp.ne.s32.totalorder %s207, %s208
      %p217 = scmp.eq.s32.totalorder %s29, 0
      %p218 = por %p216, %p217
      %p219 = scmp.ne.s32.totalorder %s207, %s208
      %p220 = scmp.eq.s32.totalorder %s30, 3
      %p221 = por %p219, %p220
      %p223 = scmp.ne.s32.totalorder %s208, %s222
      %p224 = scmp.eq.s32.totalorder %s30, 0
      %p225 = por %p223, %p224
      %s227 = sadd.s32 %s226, 1
      %p230 = scmp.eq.s32.totalorder %s24, 3
      %p231 = scmp.ne.s32.totalorder %s226, %s228
      %p232 = scmp.eq.s32.totalorder %s24, 0
      %p233 = por %p231, %p232
      %p234 = scmp.ne.s32.totalorder %s226, %s228
      %p235 = scmp.eq.s32.totalorder %s29, 3
      %p236 = por %p234, %p235
      %p237 = scmp.ne.s32.totalorder %s228, %s229
      %p238 = scmp.eq.s32.totalorder %s29, 0
      %p239 = por %p237, %p238
      %p240 = scmp.ne.s32.totalorder %s228, %s229
      %p241 = scmp.eq.s32.totalorder %s30, 3
      %p242 = por %p240, %p241
      %p244 = scmp.ne.s32.totalorder %s229, %s243
      %p245 = scmp.eq.s32.totalorder %s30, 0
      %p246 = por %p244, %p245
      %s247 = ssub.s32 %s31, %s43
      %s248 = ssub.s32 %s32, %s39
      %s249 = sor.u32 %s247, %s248
      %p250 = scmp.eq.s32.totalorder %s249, 0
      %s252 = sadd.s32 %s251, 1
      %s253 = scalar_select %p250, %s251, %s252
      %p256 = pneg %p250
      %p257 = scmp.eq.s32.totalorder %s24, 3
      %p258 = por %p256, %p257
      %p259 = scmp.ne.s32.totalorder %s251, %s254
      %p260 = scmp.eq.s32.totalorder %s24, 0
      %p261 = por %p259, %p260
      %p262 = scmp.ne.s32.totalorder %s251, %s254
      %p263 = scmp.eq.s32.totalorder %s29, 3
      %p264 = por %p262, %p263
      %p265 = scmp.ne.s32.totalorder %s254, %s255
      %p266 = scmp.eq.s32.totalorder %s29, 0
      %p267 = por %p265, %p266
      %p268 = scmp.ne.s32.totalorder %s254, %s255
      %p269 = scmp.eq.s32.totalorder %s30, 3
      %p270 = por %p268, %p269
      %p272 = scmp.ne.s32.totalorder %s255, %s271
      %p273 = scmp.eq.s32.totalorder %s30, 0
      %p274 = por %p272, %p273
      %p275 = scmp.le.s32.totalorder 1, %s24
      %p276 = scmp.lt.s32.totalorder %s24, 5
      %p277 = pnand %p275, %p276
      %p278 = pneg %p277
      // Predicated region
      $region9: #{tpu_custom_call.1} parent=5 // pred_check
        _
      $region10: #{tpu_custom_call.1} parent=5 // pred_check_branch
        %280 = sbr.rel (%p277) target = $region12
      $region11: #{tpu_custom_call.1} parent=5 // pred_region
        %s281 = ssub.s32 %s24, 1
        // Predicated region
        $region13: #{tpu_custom_call.1} parent=11 // pred_check
          %p282 = pneg %p113
        $region14: #{tpu_custom_call.1} parent=11 // pred_check_branch
          %284 = sbr.rel (%p282) target = $region16
        $region15: #{tpu_custom_call.1} parent=11 // pred_region
          _
        $region16: #{tpu_custom_call.1} parent=11 // pred_fallthru
          _
        // Predicated region
        $region17: #{tpu_custom_call.1} parent=11 // pred_check
          %p285 = pneg %p134
        $region18: #{tpu_custom_call.1} parent=11 // pred_check_branch
          %287 = sbr.rel (%p285) target = $region20
        $region19: #{tpu_custom_call.1} parent=11 // pred_region
          _
        $region20: #{tpu_custom_call.1} parent=11 // pred_fallthru
          _
        // Predicated region
        $region21: #{tpu_custom_call.1} parent=11 // pred_check
          %p288 = pneg %p155
        $region22: #{tpu_custom_call.1} parent=11 // pred_check_branch
          %290 = sbr.rel (%p288) target = $region24
        $region23: #{tpu_custom_call.1} parent=11 // pred_region
          _
        $region24: #{tpu_custom_call.1} parent=11 // pred_fallthru
          _
        // Predicated region
        $region25: #{tpu_custom_call.1} parent=11 // pred_check
          %p291 = pneg %p176
        $region26: #{tpu_custom_call.1} parent=11 // pred_check_branch
          %293 = sbr.rel (%p291) target = $region28
        $region27: #{tpu_custom_call.1} parent=11 // pred_region
          _
        $region28: #{tpu_custom_call.1} parent=11 // pred_fallthru
          _
        // Predicated region
        $region29: #{tpu_custom_call.1} parent=11 // pred_check
          %p294 = pneg %p197
        $region30: #{tpu_custom_call.1} parent=11 // pred_check_branch
          %296 = sbr.rel (%p294) target = $region32
        $region31: #{tpu_custom_call.1} parent=11 // pred_region
          _
        $region32: #{tpu_custom_call.1} parent=11 // pred_fallthru
          _
        // Predicated region
        $region33: #{tpu_custom_call.1} parent=11 // pred_check
          %p297 = pneg %p218
        $region34: #{tpu_custom_call.1} parent=11 // pred_check_branch
          %299 = sbr.rel (%p297) target = $region36
        $region35: #{tpu_custom_call.1} parent=11 // pred_region
          _
        $region36: #{tpu_custom_call.1} parent=11 // pred_fallthru
          _
        // Predicated region
        $region37: #{tpu_custom_call.1} parent=11 // pred_check
          %p300 = pneg %p239
        $region38: #{tpu_custom_call.1} parent=11 // pred_check_branch
          %302 = sbr.rel (%p300) target = $region40
        $region39: #{tpu_custom_call.1} parent=11 // pred_region
          _
        $region40: #{tpu_custom_call.1} parent=11 // pred_fallthru
          _
      $region12: #{tpu_custom_call.1} parent=5 // pred_fallthru
        _
      %p303 = scmp.lt.s32.totalorder %s24, 4
      // Predicated region
      $region41: #{tpu_custom_call.1} parent=5 // pred_check
        %p304 = pneg %p303
      $region42: #{tpu_custom_call.1} parent=5 // pred_check_branch
        %306 = sbr.rel (%p304) target = $region44
      $region43: #{tpu_custom_call.1} parent=5 // pred_region
        // Predicated region
        $region45: #{tpu_custom_call.1} parent=43 // pred_check
          %p307 = pneg %p58
        $region46: #{tpu_custom_call.1} parent=43 // pred_check_branch
          %309 = sbr.rel (%p307) target = $region48
        $region47: #{tpu_custom_call.1} parent=43 // pred_region
          %s310 = sand.u32 %s48, 1
          %s311 = scalar_lea.sflag [#allocation3], %s310
          %s312 = sand.u32 %s48, 1
          %s313 = smul.addr %s312, 96
          %s314 = scalar_lea.vmem [#allocation2], %s313
          %s315 = smul.u32 2, %s32
          %s317 = ssub.s32 1536, 1536
          %318 = vsyncadd %s311, %s317
          %s319 = smul.addr %s31, 24
          %s320 = sadd.s32 %s315, %s319
          %s321 = smul.addr %s320, 128
          %s322 = scalar_lea.hbm %s0, %s321
          %s323 = sshll.u32 %s314, 4
          %s324 = int_to_ptr.vmem [resolvable:$true] %s323
          %329 = dma.hbm_to_vmem [thread:$0]  %s322, 1536, %s324, %s311, 512, 256, 16
        $region48: #{tpu_custom_call.1} parent=43 // pred_fallthru
          _
        // Predicated region
        $region49: #{tpu_custom_call.1} parent=43 // pred_check
          %p330 = pneg %p86
        $region50: #{tpu_custom_call.1} parent=43 // pred_check_branch
          %332 = sbr.rel (%p330) target = $region52
        $region51: #{tpu_custom_call.1} parent=43 // pred_region
          %s333 = sand.u32 %s76, 1
          %s334 = scalar_lea.sflag [#allocation6], %s333
          %s335 = sand.u32 %s76, 1
          %s336 = smul.addr %s335, 512
          %s337 = scalar_lea.vmem [#allocation5], %s336
          %s338 = smul.u32 2, %s32
          %s340 = ssub.s32 8192, 8192
          %341 = vsyncadd %s334, %s340
          %s342 = smul.addr %s31, 256
          %s343 = sadd.s32 %s338, %s342
          %s344 = smul.addr %s343, 64
          %s345 = scalar_lea.hbm %s1, %s344
          %s346 = sshll.u32 %s337, 4
          %s347 = int_to_ptr.vmem [resolvable:$true] %s346
          %352 = dma.hbm_to_vmem [thread:$0]  %s345, 8192, %s347, %s334, 256, 128, 8
        $region52: #{tpu_custom_call.1} parent=43 // pred_fallthru
          _
      $region44: #{tpu_custom_call.1} parent=5 // pred_fallthru
        _
      %p353 = scmp.le.s32.totalorder 1, %s24
      %p354 = scmp.lt.s32.totalorder %s24, 5
      %p355 = pnand %p353, %p354
      %p356 = pneg %p355
      // Predicated region
      $region53: #{tpu_custom_call.1} parent=5 // pred_check
        _
      $region54: #{tpu_custom_call.1} parent=5 // pred_check_branch
        %358 = sbr.rel (%p355) target = $region56
      $region55: #{tpu_custom_call.1} parent=5 // pred_region
        %s359 = ssub.s32 %s24, 1
        %s360 = sand.u32 %s51, 1
        %s361 = scalar_lea.sflag [#allocation3], %s360
        %s362 = sand.u32 %s51, 1
        %s363 = smul.addr %s362, 96
        %s364 = scalar_lea.vmem [#allocation2], %s363
        // Predicated region
        $region57: #{tpu_custom_call.1} parent=55 // pred_check
          %p365 = pneg %p64
        $region58: #{tpu_custom_call.1} parent=55 // pred_check_branch
          %367 = sbr.rel (%p365) target = $region60
        $region59: #{tpu_custom_call.1} parent=55 // pred_region
          %368 = dma.done %s361, 1536
        $region60: #{tpu_custom_call.1} parent=55 // pred_fallthru
          _
        %s369 = sand.u32 %s79, 1
        %s370 = scalar_lea.sflag [#allocation6], %s369
        %s371 = sand.u32 %s79, 1
        %s372 = smul.addr %s371, 512
        %s373 = scalar_lea.vmem [#allocation5], %s372
        // Predicated region
        $region61: #{tpu_custom_call.1} parent=55 // pred_check
          %p374 = pneg %p92
        $region62: #{tpu_custom_call.1} parent=55 // pred_check_branch
          %376 = sbr.rel (%p374) target = $region64
        $region63: #{tpu_custom_call.1} parent=55 // pred_region
          %377 = dma.done %s370, 8192
        $region64: #{tpu_custom_call.1} parent=55 // pred_fallthru
          _
        %s378 = sand.u32 %s51, 1
        %s379 = scalar_lea.sflag [#allocation3], %s378
        %s380 = sand.u32 %s51, 1
        %s381 = smul.addr %s380, 96
        %s382 = scalar_lea.vmem [#allocation2], %s381
        %p383 = pneg %p64
        %p384 = pneg %p61
        %s385 = sand.u32 %s79, 1
        %s386 = scalar_lea.sflag [#allocation6], %s385
        %s387 = sand.u32 %s79, 1
        %s388 = smul.addr %s387, 512
        %s389 = scalar_lea.vmem [#allocation5], %s388
        %p390 = pneg %p92
        %p391 = pneg %p89
        %p392 = pneg %p113
        %p393 = pneg %p110
        %p394 = pneg %p134
        %p395 = pneg %p131
        %p396 = pneg %p155
        %p397 = pneg %p152
        %p398 = pneg %p176
        %p399 = pneg %p173
        %p400 = pneg %p197
        %p401 = pneg %p194
        %p402 = pneg %p218
        %p403 = pneg %p215
        %p404 = pneg %p239
        %p405 = pneg %p236
        %p406 = pneg %p267
        %p407 = pneg %p264
        %s408 = sand.u32 %s254, 1
        %s409 = scalar_lea.sflag [#allocation4], %s408
        %s410 = sand.u32 %s254, 1
        %s411 = smul.addr %s410, 128
        %s412 = scalar_lea.vmem [#allocation7], %s411
        %s413 = smul.u32 2, %s34
        %s414 = smul.u32 2, %s34
        %s415 = smul.u32 2, %s34
        %v417 = vld [vmem:[%s2] sm:$0xff]
        %v418 = vld [vmem:[%s2 + $0x8] sm:$0xff]
        %v419 = vld [vmem:[%s2 + $0x10] sm:$0xff]
        %v420 = vld [vmem:[%s2 + $0x18] sm:$0xff]
        %v421 = vld [vmem:[%s3] sm:$0xff]
        %v422 = vld [vmem:[%s3 + $0x8] sm:$0xff]
        %v423 = vld [vmem:[%s3 + $0x10] sm:$0xff]
        %v424 = vld [vmem:[%s3 + $0x18] sm:$0xff]
        %v425 = vld [vmem:[%s4] sm:$0xf]
        %v426 = vld [vmem:[%s4 + $0x4] sm:$0xf]
        %v427 = vld [vmem:[%s4 + $0x8] sm:$0xf]
        %v428 = vld [vmem:[%s4 + $0xc] sm:$0xf]
        %v429 = vld [vmem:[%s5] sm:$0xff]
        %v430 = vld [vmem:[%s5 + $0x8] sm:$0xff]
        %v431 = vld [vmem:[%s5 + $0x10] sm:$0xff]
        %v432 = vld [vmem:[%s5 + $0x18] sm:$0xff]
        %v433 = vld [vmem:[%s364] ss:$8 sm:$0x3]
        %s434 = scalar_lea.vmem %s364, 32 [#allocation2]
        %v435 = vld [vmem:[%s434] ss:$8 sm:$0x3]
        %s436 = scalar_lea.vmem %s364, 64 [#allocation2]
        %v437 = vld [vmem:[%s436] ss:$8 sm:$0x3]
        %v438 = vld [vmem:[%s373] sm:$0x11]
        %v439 = vld [vmem:[%s373 + $0x10] sm:$0x11]
        %v440 = vld [vmem:[%s373 + $0x20] sm:$0x11]
        %v441 = vld [vmem:[%s373 + $0x30] sm:$0x11]
        %v442 = vld [vmem:[%s373 + $0x40] sm:$0x11]
        %v443 = vld [vmem:[%s373 + $0x50] sm:$0x11]
        %v444 = vld [vmem:[%s373 + $0x60] sm:$0x11]
        %v445 = vld [vmem:[%s373 + $0x70] sm:$0x11]
        %v446 = vld [vmem:[%s373 + $0x80] sm:$0x11]
        %v447 = vld [vmem:[%s373 + $0x90] sm:$0x11]
        %v448 = vld [vmem:[%s373 + $0xa0] sm:$0x11]
        %v449 = vld [vmem:[%s373 + $0xb0] sm:$0x11]
        %v450 = vld [vmem:[%s373 + $0xc0] sm:$0x11]
        %v451 = vld [vmem:[%s373 + $0xd0] sm:$0x11]
        %v452 = vld [vmem:[%s373 + $0xe0] sm:$0x11]
        %v453 = vld [vmem:[%s373 + $0xf0] sm:$0x11]
        %v454 = vld [vmem:[%s373 + $0x100] sm:$0x11]
        %v455 = vld [vmem:[%s373 + $0x110] sm:$0x11]
        %v456 = vld [vmem:[%s373 + $0x120] sm:$0x11]
        %v457 = vld [vmem:[%s373 + $0x130] sm:$0x11]
        %v458 = vld [vmem:[%s373 + $0x140] sm:$0x11]
        %v459 = vld [vmem:[%s373 + $0x150] sm:$0x11]
        %v460 = vld [vmem:[%s373 + $0x160] sm:$0x11]
        %v461 = vld [vmem:[%s373 + $0x170] sm:$0x11]
        %v462 = vld [vmem:[%s373 + $0x180] sm:$0x11]
        %v463 = vld [vmem:[%s373 + $0x190] sm:$0x11]
        %v464 = vld [vmem:[%s373 + $0x1a0] sm:$0x11]
        %v465 = vld [vmem:[%s373 + $0x1b0] sm:$0x11]
        %v466 = vld [vmem:[%s373 + $0x1c0] sm:$0x11]
        %v467 = vld [vmem:[%s373 + $0x1d0] sm:$0x11]
        %v468 = vld [vmem:[%s373 + $0x1e0] sm:$0x11]
        %v469 = vld [vmem:[%s373 + $0x1f0] sm:$0x11]
        %v470 = vunpack.c.l.bf16 %v438
        %v471 = vunpack.c.h.bf16 %v438
        %v472 = vunpack.c.l.bf16 %v439
        %v473 = vunpack.c.h.bf16 %v439
        %v474 = vunpack.c.l.bf16 %v440
        %v475 = vunpack.c.h.bf16 %v440
        %v476 = vunpack.c.l.bf16 %v441
        %v477 = vunpack.c.h.bf16 %v441
        %v478 = vunpack.c.l.bf16 %v442
        %v479 = vunpack.c.h.bf16 %v442
        %v480 = vunpack.c.l.bf16 %v443
        %v481 = vunpack.c.h.bf16 %v443
        %v482 = vunpack.c.l.bf16 %v444
        %v483 = vunpack.c.h.bf16 %v444
        %v484 = vunpack.c.l.bf16 %v445
        %v485 = vunpack.c.h.bf16 %v445
        %v486 = vunpack.c.l.bf16 %v446
        %v487 = vunpack.c.h.bf16 %v446
        %v488 = vunpack.c.l.bf16 %v447
        %v489 = vunpack.c.h.bf16 %v447
        %v490 = vunpack.c.l.bf16 %v448
        %v491 = vunpack.c.h.bf16 %v448
        %v492 = vunpack.c.l.bf16 %v449
        %v493 = vunpack.c.h.bf16 %v449
        %v494 = vunpack.c.l.bf16 %v450
        %v495 = vunpack.c.h.bf16 %v450
        %v496 = vunpack.c.l.bf16 %v451
        %v497 = vunpack.c.h.bf16 %v451
        %v498 = vunpack.c.l.bf16 %v452
        %v499 = vunpack.c.h.bf16 %v452
        %v500 = vunpack.c.l.bf16 %v453
        %v501 = vunpack.c.h.bf16 %v453
        %v502 = vunpack.c.l.bf16 %v454
        %v503 = vunpack.c.h.bf16 %v454
        %v504 = vunpack.c.l.bf16 %v455
        %v505 = vunpack.c.h.bf16 %v455
        %v506 = vunpack.c.l.bf16 %v456
        %v507 = vunpack.c.h.bf16 %v456
        %v508 = vunpack.c.l.bf16 %v457
        %v509 = vunpack.c.h.bf16 %v457
        %v510 = vunpack.c.l.bf16 %v458
        %v511 = vunpack.c.h.bf16 %v458
        %v512 = vunpack.c.l.bf16 %v459
        %v513 = vunpack.c.h.bf16 %v459
        %v514 = vunpack.c.l.bf16 %v460
        %v515 = vunpack.c.h.bf16 %v460
        %v516 = vunpack.c.l.bf16 %v461
        %v517 = vunpack.c.h.bf16 %v461
        %v518 = vunpack.c.l.bf16 %v462
        %v519 = vunpack.c.h.bf16 %v462
        %v520 = vunpack.c.l.bf16 %v463
        %v521 = vunpack.c.h.bf16 %v463
        %v522 = vunpack.c.l.bf16 %v464
        %v523 = vunpack.c.h.bf16 %v464
        %v524 = vunpack.c.l.bf16 %v465
        %v525 = vunpack.c.h.bf16 %v465
        %v526 = vunpack.c.l.bf16 %v466
        %v527 = vunpack.c.h.bf16 %v466
        %v528 = vunpack.c.l.bf16 %v467
        %v529 = vunpack.c.h.bf16 %v467
        %v530 = vunpack.c.l.bf16 %v468
        %v531 = vunpack.c.h.bf16 %v468
        %v532 = vunpack.c.l.bf16 %v469
        %v533 = vunpack.c.h.bf16 %v469
        %535 = vset.pattern.permute.xlu0 0
        %536 = vperm.xlu0 %535, %v417
        %v537 = vpop.permute.xlu0 %536
        %540 = vset.pattern.permute.xlu0 0
        %541 = vperm.xlu0 %540, %v418
        %v542 = vpop.permute.xlu0 %541
        %545 = vset.pattern.permute.xlu0 0
        %546 = vperm.xlu0 %545, %v419
        %v547 = vpop.permute.xlu0 %546
        %550 = vset.pattern.permute.xlu0 0
        %551 = vperm.xlu0 %550, %v420
        %v552 = vpop.permute.xlu0 %551
        %v555 = vlaneseq
        %v556 = vshrl.u32 %v555, 7
        %v557 = vsub.s32 0, %v556
        %v558 = vrot.slane %v433, %v557
        %v559 = vlaneseq
        %v560 = vshrl.u32 %v559, 7
        %v561 = vsub.s32 1, %v560
        %v562 = vrot.slane %v433, %v561
        %v565 = vmul.f32 %v537, %v558
        %v566 = vmul.f32 %v537, %v562
        %v567 = vmul.f32 %v542, %v558
        %v568 = vmul.f32 %v542, %v562
        %v569 = vmul.f32 %v547, %v558
        %v570 = vmul.f32 %v547, %v562
        %v571 = vmul.f32 %v552, %v558
        %v572 = vmul.f32 %v552, %v562
        %573 = vset.pattern.permute.xlu0 1
        %574 = vperm.xlu0 %573, %v417
        %v575 = vpop.permute.xlu0 %574
        %577 = vset.pattern.permute.xlu0 1
        %578 = vperm.xlu0 %577, %v418
        %v579 = vpop.permute.xlu0 %578
        %581 = vset.pattern.permute.xlu0 1
        %582 = vperm.xlu0 %581, %v419
        %v583 = vpop.permute.xlu0 %582
        %585 = vset.pattern.permute.xlu0 1
        %586 = vperm.xlu0 %585, %v420
        %v587 = vpop.permute.xlu0 %586
        %v590 = vlaneseq
        %v591 = vshrl.u32 %v590, 7
        %v592 = vsub.s32 0, %v591
        %v593 = vrot.slane %v435, %v592
        %v594 = vlaneseq
        %v595 = vshrl.u32 %v594, 7
        %v596 = vsub.s32 1, %v595
        %v597 = vrot.slane %v435, %v596
        %v600 = vmul.f32 %v575, %v593
        %v601 = vmul.f32 %v575, %v597
        %v602 = vmul.f32 %v579, %v593
        %v603 = vmul.f32 %v579, %v597
        %v604 = vmul.f32 %v583, %v593
        %v605 = vmul.f32 %v583, %v597
        %v606 = vmul.f32 %v587, %v593
        %v607 = vmul.f32 %v587, %v597
        %v608 = vadd.f32 %v565, %v600
        %v609 = vadd.f32 %v566, %v601
        %v610 = vadd.f32 %v567, %v602
        %v611 = vadd.f32 %v568, %v603
        %v612 = vadd.f32 %v569, %v604
        %v613 = vadd.f32 %v570, %v605
        %v614 = vadd.f32 %v571, %v606
        %v615 = vadd.f32 %v572, %v607
        %616 = vset.pattern.permute.xlu0 2
        %617 = vperm.xlu0 %616, %v417
        %v618 = vpop.permute.xlu0 %617
        %620 = vset.pattern.permute.xlu0 2
        %621 = vperm.xlu0 %620, %v418
        %v622 = vpop.permute.xlu0 %621
        %624 = vset.pattern.permute.xlu0 2
        %625 = vperm.xlu0 %624, %v419
        %v626 = vpop.permute.xlu0 %625
        %628 = vset.pattern.permute.xlu0 2
        %629 = vperm.xlu0 %628, %v420
        %v630 = vpop.permute.xlu0 %629
        %v633 = vlaneseq
        %v634 = vshrl.u32 %v633, 7
        %v635 = vsub.s32 0, %v634
        %v636 = vrot.slane %v437, %v635
        %v637 = vlaneseq
        %v638 = vshrl.u32 %v637, 7
        %v639 = vsub.s32 1, %v638
        %v640 = vrot.slane %v437, %v639
        %v643 = vmul.f32 %v618, %v636
        %v644 = vmul.f32 %v618, %v640
        %v645 = vmul.f32 %v622, %v636
        %v646 = vmul.f32 %v622, %v640
        %v647 = vmul.f32 %v626, %v636
        %v648 = vmul.f32 %v626, %v640
        %v649 = vmul.f32 %v630, %v636
        %v650 = vmul.f32 %v630, %v640
        %v651 = vadd.f32 %v608, %v643
        %v652 = vadd.f32 %v609, %v644
        %v653 = vadd.f32 %v610, %v645
        %v654 = vadd.f32 %v611, %v646
        %v655 = vadd.f32 %v612, %v647
        %v656 = vadd.f32 %v613, %v648
        %v657 = vadd.f32 %v614, %v649
        %v658 = vadd.f32 %v615, %v650
        %660 = vset.pattern.permute.xlu0 0
        %661 = vperm.xlu0 %660, %v421
        %v662 = vpop.permute.xlu0 %661
        %665 = vset.pattern.permute.xlu0 0
        %666 = vperm.xlu0 %665, %v422
        %v667 = vpop.permute.xlu0 %666
        %670 = vset.pattern.permute.xlu0 0
        %671 = vperm.xlu0 %670, %v423
        %v672 = vpop.permute.xlu0 %671
        %675 = vset.pattern.permute.xlu0 0
        %676 = vperm.xlu0 %675, %v424
        %v677 = vpop.permute.xlu0 %676
        %v679 = vadd.f32 %v651, %v662
        %v680 = vadd.f32 %v652, %v662
        %v681 = vadd.f32 %v653, %v667
        %v682 = vadd.f32 %v654, %v667
        %v683 = vadd.f32 %v655, %v672
        %v684 = vadd.f32 %v656, %v672
        %v685 = vadd.f32 %v657, %v677
        %v686 = vadd.f32 %v658, %v677
        %v687 = vmax.f32 %v679, 0.0
        %v688 = vmax.f32 %v680, 0.0
        %v689 = vmax.f32 %v681, 0.0
        %v690 = vmax.f32 %v682, 0.0
        %v691 = vmax.f32 %v683, 0.0
        %v692 = vmax.f32 %v684, 0.0
        %v693 = vmax.f32 %v685, 0.0
        %v694 = vmax.f32 %v686, 0.0
        %v695 = vpack.c.bf16 %v689, %v687
        %v696 = vpack.c.bf16 %v690, %v688
        %v697 = vpack.c.bf16 %v693, %v691
        %v698 = vpack.c.bf16 %v694, %v692
        %700 = vset.pattern.permute.xlu0 0
        %701 = vperm.xlu0 %700, %v429
        %v702 = vpop.permute.xlu0 %701
        %705 = vset.pattern.permute.xlu0 0
        %706 = vperm.xlu0 %705, %v430
        %v707 = vpop.permute.xlu0 %706
        %710 = vset.pattern.permute.xlu0 0
        %711 = vperm.xlu0 %710, %v431
        %v712 = vpop.permute.xlu0 %711
        %715 = vset.pattern.permute.xlu0 0
        %716 = vperm.xlu0 %715, %v432
        %v717 = vpop.permute.xlu0 %716
        %v723 = vunpack.c.l.b16 %v425
        %v724 = vunpack.c.l.b16 %v426
        %v725 = vunpack.c.l.b16 %v427
        %v726 = vunpack.c.l.b16 %v428
        %v727 = vpack.c.b16 %v724, %v723
        %v728 = vpack.c.b16 %v726, %v725
        %vm729 = vcmask 261120
        %v731 = vsel %vm729, %v727, 0
        %v734 = vsel %vm729, %v728, 0
        %736 = vmatprep.subr.bf16.mxu0 %v696
        %737 = vmatpush1.bf16.msra.mxu0 %v695
        %738 = vmatprep.subr.bf16.mxu0 %v698
        %739 = vmatpush1.bf16.msra.mxu0 %v697
        %740 = vmatprep.subr.bf16.mxu0 0
        %741 = vmatpush1.bf16.msra.mxu0 0
        %742 = vmatprep.subr.bf16.mxu0 0
        %743 = vmatpush1.bf16.msra.mxu0 0
        %744 = vmatprep.subr.bf16.mxu0 0
        %745 = vmatpush1.bf16.msra.mxu0 0
        %746 = vmatprep.subr.bf16.mxu0 0
        %747 = vmatpush1.bf16.msra.mxu0 0
        %748 = vmatprep.subr.bf16.mxu0 0
        %749 = vmatpush1.bf16.msra.mxu0 0
        %750 = vmatprep.subr.bf16.mxu0 0
        %751 = vmatpush1.bf16.msra.mxu0 0
        %752 = vmatprep.subr.bf16.mxu0 0
        %753 = vmatpush1.bf16.msra.mxu0 0
        %754 = vmatprep.subr.bf16.mxu0 0
        %755 = vmatpush1.bf16.msra.mxu0 0
        %756 = vmatprep.subr.bf16.mxu0 0
        %757 = vmatpush1.bf16.msra.mxu0 0
        %758 = vmatprep.subr.bf16.mxu0 0
        %759 = vmatpush1.bf16.msra.mxu0 0
        %760 = vmatprep.subr.bf16.mxu0 0
        %761 = vmatpush1.bf16.msra.mxu0 0
        %762 = vmatprep.subr.bf16.mxu0 0
        %763 = vmatpush1.bf16.msra.mxu0 0
        %764 = vmatprep.subr.bf16.mxu0 0
        %765 = vmatpush1.bf16.msra.mxu0 0
        %766 = vmatprep.subr.bf16.mxu0 0
        %767 = vmatpush1.bf16.msra.mxu0 0
        %768 = vmatprep.mubr.bf16.mxu0 0
        %769 = vmatmul.mubr.bf16.gmra.mrb[0].mxu0 %v731
        %v770 = vpop.f32.mrb[0].mxu0
        %v771 = vadd.f32 %v702, %v770
        %v772 = vpop.f32.mrb[0].mxu0
        %v773 = vadd.f32 %v702, %v772
        %v774 = vpop.f32.mrb[0].mxu0
        %v775 = vadd.f32 %v707, %v774
        %v776 = vpop.f32.mrb[0].mxu0
        %v777 = vadd.f32 %v707, %v776
        %778 = vmatprep.mubr.bf16.mxu0 0
        %779 = vmatmul.mubr.bf16.gmra.mrb[0].mxu0 %v734
        %v780 = vpop.f32.mrb[0].mxu0
        %v781 = vadd.f32 %v712, %v780
        %v782 = vpop.f32.mrb[0].mxu0
        %v783 = vadd.f32 %v712, %v782
        %v784 = vpop.f32.mrb[0].mxu0
        %v785 = vadd.f32 %v717, %v784
        %v786 = vpop.f32.mrb[0].mxu0
        %v787 = vadd.f32 %v717, %v786
        %788 = vdwg.mxu0
        %v797 = vrot.slane %v771, 1
        %v798 = vrot.slane %v773, 1
        %v799 = vrot.slane %v771, 2
        %v800 = vrot.slane %v773, 2
        %v801 = vrot.slane %v771, 3
        %v802 = vrot.slane %v773, 3
        %v803 = vrot.slane %v771, 4
        %v804 = vrot.slane %v773, 4
        %v805 = vrot.slane %v771, 5
        %v806 = vrot.slane %v773, 5
        %v807 = vrot.slane %v771, 6
        %v808 = vrot.slane %v773, 6
        %v809 = vrot.slane %v771, 7
        %v810 = vrot.slane %v773, 7
        %v811 = vrot.slane %v775, 1
        %v812 = vrot.slane %v777, 1
        %v813 = vrot.slane %v775, 2
        %v814 = vrot.slane %v777, 2
        %v815 = vrot.slane %v775, 3
        %v816 = vrot.slane %v777, 3
        %v817 = vrot.slane %v775, 4
        %v818 = vrot.slane %v777, 4
        %v819 = vrot.slane %v775, 5
        %v820 = vrot.slane %v777, 5
        %v821 = vrot.slane %v775, 6
        %v822 = vrot.slane %v777, 6
        %v823 = vrot.slane %v775, 7
        %v824 = vrot.slane %v777, 7
        %v825 = vrot.slane %v781, 1
        %v826 = vrot.slane %v783, 1
        %v827 = vrot.slane %v781, 2
        %v828 = vrot.slane %v783, 2
        %v829 = vrot.slane %v781, 3
        %v830 = vrot.slane %v783, 3
        %v831 = vrot.slane %v781, 4
        %v832 = vrot.slane %v783, 4
        %v833 = vrot.slane %v781, 5
        %v834 = vrot.slane %v783, 5
        %v835 = vrot.slane %v781, 6
        %v836 = vrot.slane %v783, 6
        %v837 = vrot.slane %v781, 7
        %v838 = vrot.slane %v783, 7
        %v839 = vrot.slane %v785, 1
        %v840 = vrot.slane %v787, 1
        %v841 = vrot.slane %v785, 2
        %v842 = vrot.slane %v787, 2
        %v843 = vrot.slane %v785, 3
        %v844 = vrot.slane %v787, 3
        %v845 = vrot.slane %v785, 4
        %v846 = vrot.slane %v787, 4
        %v847 = vrot.slane %v785, 5
        %v848 = vrot.slane %v787, 5
        %v849 = vrot.slane %v785, 6
        %v850 = vrot.slane %v787, 6
        %v851 = vrot.slane %v785, 7
        %v852 = vrot.slane %v787, 7
        %v917 = vmul.f32 %v470, %v771
        %v918 = vmul.f32 %v471, %v773
        %v919 = vmul.f32 %v472, %v797
        %v920 = vmul.f32 %v473, %v798
        %v921 = vmul.f32 %v474, %v799
        %v922 = vmul.f32 %v475, %v800
        %v923 = vmul.f32 %v476, %v801
        %v924 = vmul.f32 %v477, %v802
        %v925 = vmul.f32 %v478, %v803
        %v926 = vmul.f32 %v479, %v804
        %v927 = vmul.f32 %v480, %v805
        %v928 = vmul.f32 %v481, %v806
        %v929 = vmul.f32 %v482, %v807
        %v930 = vmul.f32 %v483, %v808
        %v931 = vmul.f32 %v484, %v809
        %v932 = vmul.f32 %v485, %v810
        %v933 = vmul.f32 %v486, %v775
        %v934 = vmul.f32 %v487, %v777
        %v935 = vmul.f32 %v488, %v811
        %v936 = vmul.f32 %v489, %v812
        %v937 = vmul.f32 %v490, %v813
        %v938 = vmul.f32 %v491, %v814
        %v939 = vmul.f32 %v492, %v815
        %v940 = vmul.f32 %v493, %v816
        %v941 = vmul.f32 %v494, %v817
        %v942 = vmul.f32 %v495, %v818
        %v943 = vmul.f32 %v496, %v819
        %v944 = vmul.f32 %v497, %v820
        %v945 = vmul.f32 %v498, %v821
        %v946 = vmul.f32 %v499, %v822
        %v947 = vmul.f32 %v500, %v823
        %v948 = vmul.f32 %v501, %v824
        %v949 = vmul.f32 %v502, %v781
        %v950 = vmul.f32 %v503, %v783
        %v951 = vmul.f32 %v504, %v825
        %v952 = vmul.f32 %v505, %v826
        %v953 = vmul.f32 %v506, %v827
        %v954 = vmul.f32 %v507, %v828
        %v955 = vmul.f32 %v508, %v829
        %v956 = vmul.f32 %v509, %v830
        %v957 = vmul.f32 %v510, %v831
        %v958 = vmul.f32 %v511, %v832
        %v959 = vmul.f32 %v512, %v833
        %v960 = vmul.f32 %v513, %v834
        %v961 = vmul.f32 %v514, %v835
        %v962 = vmul.f32 %v515, %v836
        %v963 = vmul.f32 %v516, %v837
        %v964 = vmul.f32 %v517, %v838
        %v965 = vmul.f32 %v518, %v785
        %v966 = vmul.f32 %v519, %v787
        %v967 = vmul.f32 %v520, %v839
        %v968 = vmul.f32 %v521, %v840
        %v969 = vmul.f32 %v522, %v841
        %v970 = vmul.f32 %v523, %v842
        %v971 = vmul.f32 %v524, %v843
        %v972 = vmul.f32 %v525, %v844
        %v973 = vmul.f32 %v526, %v845
        %v974 = vmul.f32 %v527, %v846
        %v975 = vmul.f32 %v528, %v847
        %v976 = vmul.f32 %v529, %v848
        %v977 = vmul.f32 %v530, %v849
        %v978 = vmul.f32 %v531, %v850
        %v979 = vmul.f32 %v532, %v851
        %v980 = vmul.f32 %v533, %v852
        %s981 = scalar_lea.vmem %s364, 1 [#allocation2]
        %v982 = vld [vmem:[%s981] ss:$8 sm:$0x3]
        %s983 = scalar_lea.vmem %s364, 33 [#allocation2]
        %v984 = vld [vmem:[%s983] ss:$8 sm:$0x3]
        %s985 = scalar_lea.vmem %s364, 65 [#allocation2]
        %v986 = vld [vmem:[%s985] ss:$8 sm:$0x3]
        %v988 = vlaneseq
        %v989 = vshrl.u32 %v988, 7
        %v990 = vsub.s32 0, %v989
        %v991 = vrot.slane %v982, %v990
        %v992 = vlaneseq
        %v993 = vshrl.u32 %v992, 7
        %v994 = vsub.s32 1, %v993
        %v995 = vrot.slane %v982, %v994
        %v998 = vmul.f32 %v537, %v991
        %v999 = vmul.f32 %v537, %v995
        %v1000 = vmul.f32 %v542, %v991
        %v1001 = vmul.f32 %v542, %v995
        %v1002 = vmul.f32 %v547, %v991
        %v1003 = vmul.f32 %v547, %v995
        %v1004 = vmul.f32 %v552, %v991
        %v1005 = vmul.f32 %v552, %v995
        %v1007 = vlaneseq
        %v1008 = vshrl.u32 %v1007, 7
        %v1009 = vsub.s32 0, %v1008
        %v1010 = vrot.slane %v984, %v1009
        %v1011 = vlaneseq
        %v1012 = vshrl.u32 %v1011, 7
        %v1013 = vsub.s32 1, %v1012
        %v1014 = vrot.slane %v984, %v1013
        %v1017 = vmul.f32 %v575, %v1010
        %v1018 = vmul.f32 %v575, %v1014
        %v1019 = vmul.f32 %v579, %v1010
        %v1020 = vmul.f32 %v579, %v1014
        %v1021 = vmul.f32 %v583, %v1010
        %v1022 = vmul.f32 %v583, %v1014
        %v1023 = vmul.f32 %v587, %v1010
        %v1024 = vmul.f32 %v587, %v1014
        %v1025 = vadd.f32 %v998, %v1017
        %v1026 = vadd.f32 %v999, %v1018
        %v1027 = vadd.f32 %v1000, %v1019
        %v1028 = vadd.f32 %v1001, %v1020
        %v1029 = vadd.f32 %v1002, %v1021
        %v1030 = vadd.f32 %v1003, %v1022
        %v1031 = vadd.f32 %v1004, %v1023
        %v1032 = vadd.f32 %v1005, %v1024
        %v1034 = vlaneseq
        %v1035 = vshrl.u32 %v1034, 7
        %v1036 = vsub.s32 0, %v1035
        %v1037 = vrot.slane %v986, %v1036
        %v1038 = vlaneseq
        %v1039 = vshrl.u32 %v1038, 7
        %v1040 = vsub.s32 1, %v1039
        %v1041 = vrot.slane %v986, %v1040
        %v1044 = vmul.f32 %v618, %v1037
        %v1045 = vmul.f32 %v618, %v1041
        %v1046 = vmul.f32 %v622, %v1037
        %v1047 = vmul.f32 %v622, %v1041
        %v1048 = vmul.f32 %v626, %v1037
        %v1049 = vmul.f32 %v626, %v1041
        %v1050 = vmul.f32 %v630, %v1037
        %v1051 = vmul.f32 %v630, %v1041
        %v1052 = vadd.f32 %v1025, %v1044
        %v1053 = vadd.f32 %v1026, %v1045
        %v1054 = vadd.f32 %v1027, %v1046
        %v1055 = vadd.f32 %v1028, %v1047
        %v1056 = vadd.f32 %v1029, %v1048
        %v1057 = vadd.f32 %v1030, %v1049
        %v1058 = vadd.f32 %v1031, %v1050
        %v1059 = vadd.f32 %v1032, %v1051
        %v1060 = vadd.f32 %v1052, %v662
        %v1061 = vadd.f32 %v1053, %v662
        %v1062 = vadd.f32 %v1054, %v667
        %v1063 = vadd.f32 %v1055, %v667
        %v1064 = vadd.f32 %v1056, %v672
        %v1065 = vadd.f32 %v1057, %v672
        %v1066 = vadd.f32 %v1058, %v677
        %v1067 = vadd.f32 %v1059, %v677
        %v1068 = vmax.f32 %v1060, 0.0
        %v1069 = vmax.f32 %v1061, 0.0
        %v1070 = vmax.f32 %v1062, 0.0
        %v1071 = vmax.f32 %v1063, 0.0
        %v1072 = vmax.f32 %v1064, 0.0
        %v1073 = vmax.f32 %v1065, 0.0
        %v1074 = vmax.f32 %v1066, 0.0
        %v1075 = vmax.f32 %v1067, 0.0
        %v1076 = vpack.c.bf16 %v1070, %v1068
        %v1077 = vpack.c.bf16 %v1071, %v1069
        %v1078 = vpack.c.bf16 %v1074, %v1072
        %v1079 = vpack.c.bf16 %v1075, %v1073
        %1080 = vmatprep.subr.bf16.mxu0 %v1077
        %1081 = vmatpush1.bf16.msra.mxu0 %v1076
        %1082 = vmatprep.subr.bf16.mxu0 %v1079
        %1083 = vmatpush1.bf16.msra.mxu0 %v1078
        %1084 = vmatprep.subr.bf16.mxu0 0
        %1085 = vmatpush1.bf16.msra.mxu0 0
        %1086 = vmatprep.subr.bf16.mxu0 0
        %1087 = vmatpush1.bf16.msra.mxu0 0
        %1088 = vmatprep.subr.bf16.mxu0 0
        %1089 = vmatpush1.bf16.msra.mxu0 0
        %1090 = vmatprep.subr.bf16.mxu0 0
        %1091 = vmatpush1.bf16.msra.mxu0 0
        %1092 = vmatprep.subr.bf16.mxu0 0
        %1093 = vmatpush1.bf16.msra.mxu0 0
        %1094 = vmatprep.subr.bf16.mxu0 0
        %1095 = vmatpush1.bf16.msra.mxu0 0
        %1096 = vmatprep.subr.bf16.mxu0 0
        %1097 = vmatpush1.bf16.msra.mxu0 0
        %1098 = vmatprep.subr.bf16.mxu0 0
        %1099 = vmatpush1.bf16.msra.mxu0 0
        %1100 = vmatprep.subr.bf16.mxu0 0
        %1101 = vmatpush1.bf16.msra.mxu0 0
        %1102 = vmatprep.subr.bf16.mxu0 0
        %1103 = vmatpush1.bf16.msra.mxu0 0
        %1104 = vmatprep.subr.bf16.mxu0 0
        %1105 = vmatpush1.bf16.msra.mxu0 0
        %1106 = vmatprep.subr.bf16.mxu0 0
        %1107 = vmatpush1.bf16.msra.mxu0 0
        %1108 = vmatprep.subr.bf16.mxu0 0
        %1109 = vmatpush1.bf16.msra.mxu0 0
        %1110 = vmatprep.subr.bf16.mxu0 0
        %1111 = vmatpush1.bf16.msra.mxu0 0
        %1112 = vmatprep.mubr.bf16.mxu0 0
        %1113 = vmatmul.mubr.bf16.gmra.mrb[0].mxu0 %v731
        %v1114 = vpop.f32.mrb[0].mxu0
        %v1115 = vadd.f32 %v702, %v1114
        %v1116 = vpop.f32.mrb[0].mxu0
        %v1117 = vadd.f32 %v702, %v1116
        %v1118 = vpop.f32.mrb[0].mxu0
        %v1119 = vadd.f32 %v707, %v1118
        %v1120 = vpop.f32.mrb[0].mxu0
        %v1121 = vadd.f32 %v707, %v1120
        %1122 = vmatprep.mubr.bf16.mxu0 0
        %1123 = vmatmul.mubr.bf16.gmra.mrb[0].mxu0 %v734
        %v1124 = vpop.f32.mrb[0].mxu0
        %v1125 = vadd.f32 %v712, %v1124
        %v1126 = vpop.f32.mrb[0].mxu0
        %v1127 = vadd.f32 %v712, %v1126
        %v1128 = vpop.f32.mrb[0].mxu0
        %v1129 = vadd.f32 %v717, %v1128
        %v1130 = vpop.f32.mrb[0].mxu0
        %v1131 = vadd.f32 %v717, %v1130
        %1132 = vdwg.mxu0
        %v1141 = vrot.slane %v1115, 7
        %v1142 = vrot.slane %v1117, 7
        %v1143 = vrot.slane %v1115, 1
        %v1144 = vrot.slane %v1117, 1
        %v1145 = vrot.slane %v1115, 2
        %v1146 = vrot.slane %v1117, 2
        %v1147 = vrot.slane %v1115, 3
        %v1148 = vrot.slane %v1117, 3
        %v1149 = vrot.slane %v1115, 4
        %v1150 = vrot.slane %v1117, 4
        %v1151 = vrot.slane %v1115, 5
        %v1152 = vrot.slane %v1117, 5
        %v1153 = vrot.slane %v1115, 6
        %v1154 = vrot.slane %v1117, 6
        %v1155 = vrot.slane %v1119, 7
        %v1156 = vrot.slane %v1121, 7
        %v1157 = vrot.slane %v1119, 1
        %v1158 = vrot.slane %v1121, 1
        %v1159 = vrot.slane %v1119, 2
        %v1160 = vrot.slane %v1121, 2
        %v1161 = vrot.slane %v1119, 3
        %v1162 = vrot.slane %v1121, 3
        %v1163 = vrot.slane %v1119, 4
        %v1164 = vrot.slane %v1121, 4
        %v1165 = vrot.slane %v1119, 5
        %v1166 = vrot.slane %v1121, 5
        %v1167 = vrot.slane %v1119, 6
        %v1168 = vrot.slane %v1121, 6
        %v1169 = vrot.slane %v1125, 7
        %v1170 = vrot.slane %v1127, 7
        %v1171 = vrot.slane %v1125, 1
        %v1172 = vrot.slane %v1127, 1
        %v1173 = vrot.slane %v1125, 2
        %v1174 = vrot.slane %v1127, 2
        %v1175 = vrot.slane %v1125, 3
        %v1176 = vrot.slane %v1127, 3
        %v1177 = vrot.slane %v1125, 4
        %v1178 = vrot.slane %v1127, 4
        %v1179 = vrot.slane %v1125, 5
        %v1180 = vrot.slane %v1127, 5
        %v1181 = vrot.slane %v1125, 6
        %v1182 = vrot.slane %v1127, 6
        %v1183 = vrot.slane %v1129, 7
        %v1184 = vrot.slane %v1131, 7
        %v1185 = vrot.slane %v1129, 1
        %v1186 = vrot.slane %v1131, 1
        %v1187 = vrot.slane %v1129, 2
        %v1188 = vrot.slane %v1131, 2
        %v1189 = vrot.slane %v1129, 3
        %v1190 = vrot.slane %v1131, 3
        %v1191 = vrot.slane %v1129, 4
        %v1192 = vrot.slane %v1131, 4
        %v1193 = vrot.slane %v1129, 5
        %v1194 = vrot.slane %v1131, 5
        %v1195 = vrot.slane %v1129, 6
        %v1196 = vrot.slane %v1131, 6
        %v1261 = vmul.f32 %v470, %v1141
        %v1262 = vmul.f32 %v471, %v1142
        %v1263 = vmul.f32 %v472, %v1115
        %v1264 = vmul.f32 %v473, %v1117
        %v1265 = vmul.f32 %v474, %v1143
        %v1266 = vmul.f32 %v475, %v1144
        %v1267 = vmul.f32 %v476, %v1145
        %v1268 = vmul.f32 %v477, %v1146
        %v1269 = vmul.f32 %v478, %v1147
        %v1270 = vmul.f32 %v479, %v1148
        %v1271 = vmul.f32 %v480, %v1149
        %v1272 = vmul.f32 %v481, %v1150
        %v1273 = vmul.f32 %v482, %v1151
        %v1274 = vmul.f32 %v483, %v1152
        %v1275 = vmul.f32 %v484, %v1153
        %v1276 = vmul.f32 %v485, %v1154
        %v1277 = vmul.f32 %v486, %v1155
        %v1278 = vmul.f32 %v487, %v1156
        %v1279 = vmul.f32 %v488, %v1119
        %v1280 = vmul.f32 %v489, %v1121
        %v1281 = vmul.f32 %v490, %v1157
        %v1282 = vmul.f32 %v491, %v1158
        %v1283 = vmul.f32 %v492, %v1159
        %v1284 = vmul.f32 %v493, %v1160
        %v1285 = vmul.f32 %v494, %v1161
        %v1286 = vmul.f32 %v495, %v1162
        %v1287 = vmul.f32 %v496, %v1163
        %v1288 = vmul.f32 %v497, %v1164
        %v1289 = vmul.f32 %v498, %v1165
        %v1290 = vmul.f32 %v499, %v1166
        %v1291 = vmul.f32 %v500, %v1167
        %v1292 = vmul.f32 %v501, %v1168
        %v1293 = vmul.f32 %v502, %v1169
        %v1294 = vmul.f32 %v503, %v1170
        %v1295 = vmul.f32 %v504, %v1125
        %v1296 = vmul.f32 %v505, %v1127
        %v1297 = vmul.f32 %v506, %v1171
        %v1298 = vmul.f32 %v507, %v1172
        %v1299 = vmul.f32 %v508, %v1173
        %v1300 = vmul.f32 %v509, %v1174
        %v1301 = vmul.f32 %v510, %v1175
        %v1302 = vmul.f32 %v511, %v1176
        %v1303 = vmul.f32 %v512, %v1177
        %v1304 = vmul.f32 %v513, %v1178
        %v1305 = vmul.f32 %v514, %v1179
        %v1306 = vmul.f32 %v515, %v1180
        %v1307 = vmul.f32 %v516, %v1181
        %v1308 = vmul.f32 %v517, %v1182
        %v1309 = vmul.f32 %v518, %v1183
        %v1310 = vmul.f32 %v519, %v1184
        %v1311 = vmul.f32 %v520, %v1129
        %v1312 = vmul.f32 %v521, %v1131
        %v1313 = vmul.f32 %v522, %v1185
        %v1314 = vmul.f32 %v523, %v1186
        %v1315 = vmul.f32 %v524, %v1187
        %v1316 = vmul.f32 %v525, %v1188
        %v1317 = vmul.f32 %v526, %v1189
        %v1318 = vmul.f32 %v527, %v1190
        %v1319 = vmul.f32 %v528, %v1191
        %v1320 = vmul.f32 %v529, %v1192
        %v1321 = vmul.f32 %v530, %v1193
        %v1322 = vmul.f32 %v531, %v1194
        %v1323 = vmul.f32 %v532, %v1195
        %v1324 = vmul.f32 %v533, %v1196
        %v1389 = vrot.slane %v1261, 1
        %v1390 = vrot.slane %v1262, 1
        %v1391 = vrot.slane %v1263, 1
        %v1392 = vrot.slane %v1264, 1
        %v1393 = vrot.slane %v1265, 1
        %v1394 = vrot.slane %v1266, 1
        %v1395 = vrot.slane %v1267, 1
        %v1396 = vrot.slane %v1268, 1
        %v1397 = vrot.slane %v1269, 1
        %v1398 = vrot.slane %v1270, 1
        %v1399 = vrot.slane %v1271, 1
        %v1400 = vrot.slane %v1272, 1
        %v1401 = vrot.slane %v1273, 1
        %v1402 = vrot.slane %v1274, 1
        %v1403 = vrot.slane %v1275, 1
        %v1404 = vrot.slane %v1276, 1
        %v1405 = vrot.slane %v1277, 1
        %v1406 = vrot.slane %v1278, 1
        %v1407 = vrot.slane %v1279, 1
        %v1408 = vrot.slane %v1280, 1
        %v1409 = vrot.slane %v1281, 1
        %v1410 = vrot.slane %v1282, 1
        %v1411 = vrot.slane %v1283, 1
        %v1412 = vrot.slane %v1284, 1
        %v1413 = vrot.slane %v1285, 1
        %v1414 = vrot.slane %v1286, 1
        %v1415 = vrot.slane %v1287, 1
        %v1416 = vrot.slane %v1288, 1
        %v1417 = vrot.slane %v1289, 1
        %v1418 = vrot.slane %v1290, 1
        %v1419 = vrot.slane %v1291, 1
        %v1420 = vrot.slane %v1292, 1
        %v1421 = vrot.slane %v1293, 1
        %v1422 = vrot.slane %v1294, 1
        %v1423 = vrot.slane %v1295, 1
        %v1424 = vrot.slane %v1296, 1
        %v1425 = vrot.slane %v1297, 1
        %v1426 = vrot.slane %v1298, 1
        %v1427 = vrot.slane %v1299, 1
        %v1428 = vrot.slane %v1300, 1
        %v1429 = vrot.slane %v1301, 1
        %v1430 = vrot.slane %v1302, 1
        %v1431 = vrot.slane %v1303, 1
        %v1432 = vrot.slane %v1304, 1
        %v1433 = vrot.slane %v1305, 1
        %v1434 = vrot.slane %v1306, 1
        %v1435 = vrot.slane %v1307, 1
        %v1436 = vrot.slane %v1308, 1
        %v1437 = vrot.slane %v1309, 1
        %v1438 = vrot.slane %v1310, 1
        %v1439 = vrot.slane %v1311, 1
        %v1440 = vrot.slane %v1312, 1
        %v1441 = vrot.slane %v1313, 1
        %v1442 = vrot.slane %v1314, 1
        %v1443 = vrot.slane %v1315, 1
        %v1444 = vrot.slane %v1316, 1
        %v1445 = vrot.slane %v1317, 1
        %v1446 = vrot.slane %v1318, 1
        %v1447 = vrot.slane %v1319, 1
        %v1448 = vrot.slane %v1320, 1
        %v1449 = vrot.slane %v1321, 1
        %v1450 = vrot.slane %v1322, 1
        %v1451 = vrot.slane %v1323, 1
        %v1452 = vrot.slane %v1324, 1
        %v1517 = vmax.f32 %v917, %v1389
        %v1518 = vmax.f32 %v918, %v1390
        %v1519 = vmax.f32 %v919, %v1391
        %v1520 = vmax.f32 %v920, %v1392
        %v1521 = vmax.f32 %v921, %v1393
        %v1522 = vmax.f32 %v922, %v1394
        %v1523 = vmax.f32 %v923, %v1395
        %v1524 = vmax.f32 %v924, %v1396
        %v1525 = vmax.f32 %v925, %v1397
        %v1526 = vmax.f32 %v926, %v1398
        %v1527 = vmax.f32 %v927, %v1399
        %v1528 = vmax.f32 %v928, %v1400
        %v1529 = vmax.f32 %v929, %v1401
        %v1530 = vmax.f32 %v930, %v1402
        %v1531 = vmax.f32 %v931, %v1403
        %v1532 = vmax.f32 %v932, %v1404
        %v1533 = vmax.f32 %v933, %v1405
        %v1534 = vmax.f32 %v934, %v1406
        %v1535 = vmax.f32 %v935, %v1407
        %v1536 = vmax.f32 %v936, %v1408
        %v1537 = vmax.f32 %v937, %v1409
        %v1538 = vmax.f32 %v938, %v1410
        %v1539 = vmax.f32 %v939, %v1411
        %v1540 = vmax.f32 %v940, %v1412
        %v1541 = vmax.f32 %v941, %v1413
        %v1542 = vmax.f32 %v942, %v1414
        %v1543 = vmax.f32 %v943, %v1415
        %v1544 = vmax.f32 %v944, %v1416
        %v1545 = vmax.f32 %v945, %v1417
        %v1546 = vmax.f32 %v946, %v1418
        %v1547 = vmax.f32 %v947, %v1419
        %v1548 = vmax.f32 %v948, %v1420
        %v1549 = vmax.f32 %v949, %v1421
        %v1550 = vmax.f32 %v950, %v1422
        %v1551 = vmax.f32 %v951, %v1423
        %v1552 = vmax.f32 %v952, %v1424
        %v1553 = vmax.f32 %v953, %v1425
        %v1554 = vmax.f32 %v954, %v1426
        %v1555 = vmax.f32 %v955, %v1427
        %v1556 = vmax.f32 %v956, %v1428
        %v1557 = vmax.f32 %v957, %v1429
        %v1558 = vmax.f32 %v958, %v1430
        %v1559 = vmax.f32 %v959, %v1431
        %v1560 = vmax.f32 %v960, %v1432
        %v1561 = vmax.f32 %v961, %v1433
        %v1562 = vmax.f32 %v962, %v1434
        %v1563 = vmax.f32 %v963, %v1435
        %v1564 = vmax.f32 %v964, %v1436
        %v1565 = vmax.f32 %v965, %v1437
        %v1566 = vmax.f32 %v966, %v1438
        %v1567 = vmax.f32 %v967, %v1439
        %v1568 = vmax.f32 %v968, %v1440
        %v1569 = vmax.f32 %v969, %v1441
        %v1570 = vmax.f32 %v970, %v1442
        %v1571 = vmax.f32 %v971, %v1443
        %v1572 = vmax.f32 %v972, %v1444
        %v1573 = vmax.f32 %v973, %v1445
        %v1574 = vmax.f32 %v974, %v1446
        %v1575 = vmax.f32 %v975, %v1447
        %v1576 = vmax.f32 %v976, %v1448
        %v1577 = vmax.f32 %v977, %v1449
        %v1578 = vmax.f32 %v978, %v1450
        %v1579 = vmax.f32 %v979, %v1451
        %v1580 = vmax.f32 %v980, %v1452
        %s1581 = scalar_lea.vmem %s364, 2 [#allocation2]
        %v1582 = vld [vmem:[%s1581] ss:$8 sm:$0x3]
        %s1583 = scalar_lea.vmem %s364, 34 [#allocation2]
        %v1584 = vld [vmem:[%s1583] ss:$8 sm:$0x3]
        %s1585 = scalar_lea.vmem %s364, 66 [#allocation2]
        %v1586 = vld [vmem:[%s1585] ss:$8 sm:$0x3]
        %v1587 = vld [vmem:[%s373] sm:$0x22]
        %v1588 = vld [vmem:[%s373 + $0x10] sm:$0x22]
        %v1589 = vld [vmem:[%s373 + $0x20] sm:$0x22]
        %v1590 = vld [vmem:[%s373 + $0x30] sm:$0x22]
        %v1591 = vld [vmem:[%s373 + $0x40] sm:$0x22]
        %v1592 = vld [vmem:[%s373 + $0x50] sm:$0x22]
        %v1593 = vld [vmem:[%s373 + $0x60] sm:$0x22]
        %v1594 = vld [vmem:[%s373 + $0x70] sm:$0x22]
        %v1595 = vld [vmem:[%s373 + $0x80] sm:$0x22]
        %v1596 = vld [vmem:[%s373 + $0x90] sm:$0x22]
        %v1597 = vld [vmem:[%s373 + $0xa0] sm:$0x22]
        %v1598 = vld [vmem:[%s373 + $0xb0] sm:$0x22]
        %v1599 = vld [vmem:[%s373 + $0xc0] sm:$0x22]
        %v1600 = vld [vmem:[%s373 + $0xd0] sm:$0x22]
        %v1601 = vld [vmem:[%s373 + $0xe0] sm:$0x22]
        %v1602 = vld [vmem:[%s373 + $0xf0] sm:$0x22]
        %v1603 = vld [vmem:[%s373 + $0x100] sm:$0x22]
        %v1604 = vld [vmem:[%s373 + $0x110] sm:$0x22]
        %v1605 = vld [vmem:[%s373 + $0x120] sm:$0x22]
        %v1606 = vld [vmem:[%s373 + $0x130] sm:$0x22]
        %v1607 = vld [vmem:[%s373 + $0x140] sm:$0x22]
        %v1608 = vld [vmem:[%s373 + $0x150] sm:$0x22]
        %v1609 = vld [vmem:[%s373 + $0x160] sm:$0x22]
        %v1610 = vld [vmem:[%s373 + $0x170] sm:$0x22]
        %v1611 = vld [vmem:[%s373 + $0x180] sm:$0x22]
        %v1612 = vld [vmem:[%s373 + $0x190] sm:$0x22]
        %v1613 = vld [vmem:[%s373 + $0x1a0] sm:$0x22]
        %v1614 = vld [vmem:[%s373 + $0x1b0] sm:$0x22]
        %v1615 = vld [vmem:[%s373 + $0x1c0] sm:$0x22]
        %v1616 = vld [vmem:[%s373 + $0x1d0] sm:$0x22]
        %v1617 = vld [vmem:[%s373 + $0x1e0] sm:$0x22]
        %v1618 = vld [vmem:[%s373 + $0x1f0] sm:$0x22]
        %v1619 = vunpack.c.l.bf16 %v1587
        %v1620 = vunpack.c.h.bf16 %v1587
        %v1621 = vunpack.c.l.bf16 %v1588
        %v1622 = vunpack.c.h.bf16 %v1588
        %v1623 = vunpack.c.l.bf16 %v1589
        %v1624 = vunpack.c.h.bf16 %v1589
        %v1625 = vunpack.c.l.bf16 %v1590
        %v1626 = vunpack.c.h.bf16 %v1590
        %v1627 = vunpack.c.l.bf16 %v1591
        %v1628 = vunpack.c.h.bf16 %v1591
        %v1629 = vunpack.c.l.bf16 %v1592
        %v1630 = vunpack.c.h.bf16 %v1592
        %v1631 = vunpack.c.l.bf16 %v1593
        %v1632 = vunpack.c.h.bf16 %v1593
        %v1633 = vunpack.c.l.bf16 %v1594
        %v1634 = vunpack.c.h.bf16 %v1594
        %v1635 = vunpack.c.l.bf16 %v1595
        %v1636 = vunpack.c.h.bf16 %v1595
        %v1637 = vunpack.c.l.bf16 %v1596
        %v1638 = vunpack.c.h.bf16 %v1596
        %v1639 = vunpack.c.l.bf16 %v1597
        %v1640 = vunpack.c.h.bf16 %v1597
        %v1641 = vunpack.c.l.bf16 %v1598
        %v1642 = vunpack.c.h.bf16 %v1598
        %v1643 = vunpack.c.l.bf16 %v1599
        %v1644 = vunpack.c.h.bf16 %v1599
        %v1645 = vunpack.c.l.bf16 %v1600
        %v1646 = vunpack.c.h.bf16 %v1600
        %v1647 = vunpack.c.l.bf16 %v1601
        %v1648 = vunpack.c.h.bf16 %v1601
        %v1649 = vunpack.c.l.bf16 %v1602
        %v1650 = vunpack.c.h.bf16 %v1602
        %v1651 = vunpack.c.l.bf16 %v1603
        %v1652 = vunpack.c.h.bf16 %v1603
        %v1653 = vunpack.c.l.bf16 %v1604
        %v1654 = vunpack.c.h.bf16 %v1604
        %v1655 = vunpack.c.l.bf16 %v1605
        %v1656 = vunpack.c.h.bf16 %v1605
        %v1657 = vunpack.c.l.bf16 %v1606
        %v1658 = vunpack.c.h.bf16 %v1606
        %v1659 = vunpack.c.l.bf16 %v1607
        %v1660 = vunpack.c.h.bf16 %v1607
        %v1661 = vunpack.c.l.bf16 %v1608
        %v1662 = vunpack.c.h.bf16 %v1608
        %v1663 = vunpack.c.l.bf16 %v1609
        %v1664 = vunpack.c.h.bf16 %v1609
        %v1665 = vunpack.c.l.bf16 %v1610
        %v1666 = vunpack.c.h.bf16 %v1610
        %v1667 = vunpack.c.l.bf16 %v1611
        %v1668 = vunpack.c.h.bf16 %v1611
        %v1669 = vunpack.c.l.bf16 %v1612
        %v1670 = vunpack.c.h.bf16 %v1612
        %v1671 = vunpack.c.l.bf16 %v1613
        %v1672 = vunpack.c.h.bf16 %v1613
        %v1673 = vunpack.c.l.bf16 %v1614
        %v1674 = vunpack.c.h.bf16 %v1614
        %v1675 = vunpack.c.l.bf16 %v1615
        %v1676 = vunpack.c.h.bf16 %v1615
        %v1677 = vunpack.c.l.bf16 %v1616
        %v1678 = vunpack.c.h.bf16 %v1616
        %v1679 = vunpack.c.l.bf16 %v1617
        %v1680 = vunpack.c.h.bf16 %v1617
        %v1681 = vunpack.c.l.bf16 %v1618
        %v1682 = vunpack.c.h.bf16 %v1618
        %v1684 = vlaneseq
        %v1685 = vshrl.u32 %v1684, 7
        %v1686 = vsub.s32 0, %v1685
        %v1687 = vrot.slane %v1582, %v1686
        %v1688 = vlaneseq
        %v1689 = vshrl.u32 %v1688, 7
        %v1690 = vsub.s32 1, %v1689
        %v1691 = vrot.slane %v1582, %v1690
        %v1694 = vmul.f32 %v537, %v1687
        %v1695 = vmul.f32 %v537, %v1691
        %v1696 = vmul.f32 %v542, %v1687
        %v1697 = vmul.f32 %v542, %v1691
        %v1698 = vmul.f32 %v547, %v1687
        %v1699 = vmul.f32 %v547, %v1691
        %v1700 = vmul.f32 %v552, %v1687
        %v1701 = vmul.f32 %v552, %v1691
        %v1703 = vlaneseq
        %v1704 = vshrl.u32 %v1703, 7
        %v1705 = vsub.s32 0, %v1704
        %v1706 = vrot.slane %v1584, %v1705
        %v1707 = vlaneseq
        %v1708 = vshrl.u32 %v1707, 7
        %v1709 = vsub.s32 1, %v1708
        %v1710 = vrot.slane %v1584, %v1709
        %v1713 = vmul.f32 %v575, %v1706
        %v1714 = vmul.f32 %v575, %v1710
        %v1715 = vmul.f32 %v579, %v1706
        %v1716 = vmul.f32 %v579, %v1710
        %v1717 = vmul.f32 %v583, %v1706
        %v1718 = vmul.f32 %v583, %v1710
        %v1719 = vmul.f32 %v587, %v1706
        %v1720 = vmul.f32 %v587, %v1710
        %v1721 = vadd.f32 %v1694, %v1713
        %v1722 = vadd.f32 %v1695, %v1714
        %v1723 = vadd.f32 %v1696, %v1715
        %v1724 = vadd.f32 %v1697, %v1716
        %v1725 = vadd.f32 %v1698, %v1717
        %v1726 = vadd.f32 %v1699, %v1718
        %v1727 = vadd.f32 %v1700, %v1719
        %v1728 = vadd.f32 %v1701, %v1720
        %v1730 = vlaneseq
        %v1731 = vshrl.u32 %v1730, 7
        %v1732 = vsub.s32 0, %v1731
        %v1733 = vrot.slane %v1586, %v1732
        %v1734 = vlaneseq
        %v1735 = vshrl.u32 %v1734, 7
        %v1736 = vsub.s32 1, %v1735
        %v1737 = vrot.slane %v1586, %v1736
        %v1740 = vmul.f32 %v618, %v1733
        %v1741 = vmul.f32 %v618, %v1737
        %v1742 = vmul.f32 %v622, %v1733
        %v1743 = vmul.f32 %v622, %v1737
        %v1744 = vmul.f32 %v626, %v1733
        %v1745 = vmul.f32 %v626, %v1737
        %v1746 = vmul.f32 %v630, %v1733
        %v1747 = vmul.f32 %v630, %v1737
        %v1748 = vadd.f32 %v1721, %v1740
        %v1749 = vadd.f32 %v1722, %v1741
        %v1750 = vadd.f32 %v1723, %v1742
        %v1751 = vadd.f32 %v1724, %v1743
        %v1752 = vadd.f32 %v1725, %v1744
        %v1753 = vadd.f32 %v1726, %v1745
        %v1754 = vadd.f32 %v1727, %v1746
        %v1755 = vadd.f32 %v1728, %v1747
        %v1756 = vadd.f32 %v1748, %v662
        %v1757 = vadd.f32 %v1749, %v662
        %v1758 = vadd.f32 %v1750, %v667
        %v1759 = vadd.f32 %v1751, %v667
        %v1760 = vadd.f32 %v1752, %v672
        %v1761 = vadd.f32 %v1753, %v672
        %v1762 = vadd.f32 %v1754, %v677
        %v1763 = vadd.f32 %v1755, %v677
        %v1764 = vmax.f32 %v1756, 0.0
        %v1765 = vmax.f32 %v1757, 0.0
        %v1766 = vmax.f32 %v1758, 0.0
        %v1767 = vmax.f32 %v1759, 0.0
        %v1768 = vmax.f32 %v1760, 0.0
        %v1769 = vmax.f32 %v1761, 0.0
        %v1770 = vmax.f32 %v1762, 0.0
        %v1771 = vmax.f32 %v1763, 0.0
        %v1772 = vpack.c.bf16 %v1766, %v1764
        %v1773 = vpack.c.bf16 %v1767, %v1765
        %v1774 = vpack.c.bf16 %v1770, %v1768
        %v1775 = vpack.c.bf16 %v1771, %v1769
        %1776 = vmatprep.subr.bf16.mxu0 %v1773
        %1777 = vmatpush1.bf16.msra.mxu0 %v1772
        %1778 = vmatprep.subr.bf16.mxu0 %v1775
        %1779 = vmatpush1.bf16.msra.mxu0 %v1774
        %1780 = vmatprep.subr.bf16.mxu0 0
        %1781 = vmatpush1.bf16.msra.mxu0 0
        %1782 = vmatprep.subr.bf16.mxu0 0
        %1783 = vmatpush1.bf16.msra.mxu0 0
        %1784 = vmatprep.subr.bf16.mxu0 0
        %1785 = vmatpush1.bf16.msra.mxu0 0
        %1786 = vmatprep.subr.bf16.mxu0 0
        %1787 = vmatpush1.bf16.msra.mxu0 0
        %1788 = vmatprep.subr.bf16.mxu0 0
        %1789 = vmatpush1.bf16.msra.mxu0 0
        %1790 = vmatprep.subr.bf16.mxu0 0
        %1791 = vmatpush1.bf16.msra.mxu0 0
        %1792 = vmatprep.subr.bf16.mxu0 0
        %1793 = vmatpush1.bf16.msra.mxu0 0
        %1794 = vmatprep.subr.bf16.mxu0 0
        %1795 = vmatpush1.bf16.msra.mxu0 0
        %1796 = vmatprep.subr.bf16.mxu0 0
        %1797 = vmatpush1.bf16.msra.mxu0 0
        %1798 = vmatprep.subr.bf16.mxu0 0
        %1799 = vmatpush1.bf16.msra.mxu0 0
        %1800 = vmatprep.subr.bf16.mxu0 0
        %1801 = vmatpush1.bf16.msra.mxu0 0
        %1802 = vmatprep.subr.bf16.mxu0 0
        %1803 = vmatpush1.bf16.msra.mxu0 0
        %1804 = vmatprep.subr.bf16.mxu0 0
        %1805 = vmatpush1.bf16.msra.mxu0 0
        %1806 = vmatprep.subr.bf16.mxu0 0
        %1807 = vmatpush1.bf16.msra.mxu0 0
        %1808 = vmatprep.mubr.bf16.mxu0 0
        %1809 = vmatmul.mubr.bf16.gmra.mrb[0].mxu0 %v731
        %v1810 = vpop.f32.mrb[0].mxu0
        %v1811 = vadd.f32 %v702, %v1810
        %v1812 = vpop.f32.mrb[0].mxu0
        %v1813 = vadd.f32 %v702, %v1812
        %v1814 = vpop.f32.mrb[0].mxu0
        %v1815 = vadd.f32 %v707, %v1814
        %v1816 = vpop.f32.mrb[0].mxu0
        %v1817 = vadd.f32 %v707, %v1816
        %1818 = vmatprep.mubr.bf16.mxu0 0
        %1819 = vmatmul.mubr.bf16.gmra.mrb[0].mxu0 %v734
        %v1820 = vpop.f32.mrb[0].mxu0
        %v1821 = vadd.f32 %v712, %v1820
        %v1822 = vpop.f32.mrb[0].mxu0
        %v1823 = vadd.f32 %v712, %v1822
        %v1824 = vpop.f32.mrb[0].mxu0
        %v1825 = vadd.f32 %v717, %v1824
        %v1826 = vpop.f32.mrb[0].mxu0
        %v1827 = vadd.f32 %v717, %v1826
        %1828 = vdwg.mxu0
        %v1837 = vrot.slane %v1811, 6
        %v1838 = vrot.slane %v1813, 6
        %v1839 = vrot.slane %v1811, 7
        %v1840 = vrot.slane %v1813, 7
        %v1841 = vrot.slane %v1811, 1
        %v1842 = vrot.slane %v1813, 1
        %v1843 = vrot.slane %v1811, 2
        %v1844 = vrot.slane %v1813, 2
        %v1845 = vrot.slane %v1811, 3
        %v1846 = vrot.slane %v1813, 3
        %v1847 = vrot.slane %v1811, 4
        %v1848 = vrot.slane %v1813, 4
        %v1849 = vrot.slane %v1811, 5
        %v1850 = vrot.slane %v1813, 5
        %v1851 = vrot.slane %v1815, 6
        %v1852 = vrot.slane %v1817, 6
        %v1853 = vrot.slane %v1815, 7
        %v1854 = vrot.slane %v1817, 7
        %v1855 = vrot.slane %v1815, 1
        %v1856 = vrot.slane %v1817, 1
        %v1857 = vrot.slane %v1815, 2
        %v1858 = vrot.slane %v1817, 2
        %v1859 = vrot.slane %v1815, 3
        %v1860 = vrot.slane %v1817, 3
        %v1861 = vrot.slane %v1815, 4
        %v1862 = vrot.slane %v1817, 4
        %v1863 = vrot.slane %v1815, 5
        %v1864 = vrot.slane %v1817, 5
        %v1865 = vrot.slane %v1821, 6
        %v1866 = vrot.slane %v1823, 6
        %v1867 = vrot.slane %v1821, 7
        %v1868 = vrot.slane %v1823, 7
        %v1869 = vrot.slane %v1821, 1
        %v1870 = vrot.slane %v1823, 1
        %v1871 = vrot.slane %v1821, 2
        %v1872 = vrot.slane %v1823, 2
        %v1873 = vrot.slane %v1821, 3
        %v1874 = vrot.slane %v1823, 3
        %v1875 = vrot.slane %v1821, 4
        %v1876 = vrot.slane %v1823, 4
        %v1877 = vrot.slane %v1821, 5
        %v1878 = vrot.slane %v1823, 5
        %v1879 = vrot.slane %v1825, 6
        %v1880 = vrot.slane %v1827, 6
        %v1881 = vrot.slane %v1825, 7
        %v1882 = vrot.slane %v1827, 7
        %v1883 = vrot.slane %v1825, 1
        %v1884 = vrot.slane %v1827, 1
        %v1885 = vrot.slane %v1825, 2
        %v1886 = vrot.slane %v1827, 2
        %v1887 = vrot.slane %v1825, 3
        %v1888 = vrot.slane %v1827, 3
        %v1889 = vrot.slane %v1825, 4
        %v1890 = vrot.slane %v1827, 4
        %v1891 = vrot.slane %v1825, 5
        %v1892 = vrot.slane %v1827, 5
        %v1957 = vmul.f32 %v1619, %v1837
        %v1958 = vmul.f32 %v1620, %v1838
        %v1959 = vmul.f32 %v1621, %v1839
        %v1960 = vmul.f32 %v1622, %v1840
        %v1961 = vmul.f32 %v1623, %v1811
        %v1962 = vmul.f32 %v1624, %v1813
        %v1963 = vmul.f32 %v1625, %v1841
        %v1964 = vmul.f32 %v1626, %v1842
        %v1965 = vmul.f32 %v1627, %v1843
        %v1966 = vmul.f32 %v1628, %v1844
        %v1967 = vmul.f32 %v1629, %v1845
        %v1968 = vmul.f32 %v1630, %v1846
        %v1969 = vmul.f32 %v1631, %v1847
        %v1970 = vmul.f32 %v1632, %v1848
        %v1971 = vmul.f32 %v1633, %v1849
        %v1972 = vmul.f32 %v1634, %v1850
        %v1973 = vmul.f32 %v1635, %v1851
        %v1974 = vmul.f32 %v1636, %v1852
        %v1975 = vmul.f32 %v1637, %v1853
        %v1976 = vmul.f32 %v1638, %v1854
        %v1977 = vmul.f32 %v1639, %v1815
        %v1978 = vmul.f32 %v1640, %v1817
        %v1979 = vmul.f32 %v1641, %v1855
        %v1980 = vmul.f32 %v1642, %v1856
        %v1981 = vmul.f32 %v1643, %v1857
        %v1982 = vmul.f32 %v1644, %v1858
        %v1983 = vmul.f32 %v1645, %v1859
        %v1984 = vmul.f32 %v1646, %v1860
        %v1985 = vmul.f32 %v1647, %v1861
        %v1986 = vmul.f32 %v1648, %v1862
        %v1987 = vmul.f32 %v1649, %v1863
        %v1988 = vmul.f32 %v1650, %v1864
        %v1989 = vmul.f32 %v1651, %v1865
        %v1990 = vmul.f32 %v1652, %v1866
        %v1991 = vmul.f32 %v1653, %v1867
        %v1992 = vmul.f32 %v1654, %v1868
        %v1993 = vmul.f32 %v1655, %v1821
        %v1994 = vmul.f32 %v1656, %v1823
        %v1995 = vmul.f32 %v1657, %v1869
        %v1996 = vmul.f32 %v1658, %v1870
        %v1997 = vmul.f32 %v1659, %v1871
        %v1998 = vmul.f32 %v1660, %v1872
        %v1999 = vmul.f32 %v1661, %v1873
        %v2000 = vmul.f32 %v1662, %v1874
        %v2001 = vmul.f32 %v1663, %v1875
        %v2002 = vmul.f32 %v1664, %v1876
        %v2003 = vmul.f32 %v1665, %v1877
        %v2004 = vmul.f32 %v1666, %v1878
        %v2005 = vmul.f32 %v1667, %v1879
        %v2006 = vmul.f32 %v1668, %v1880
        %v2007 = vmul.f32 %v1669, %v1881
        %v2008 = vmul.f32 %v1670, %v1882
        %v2009 = vmul.f32 %v1671, %v1825
        %v2010 = vmul.f32 %v1672, %v1827
        %v2011 = vmul.f32 %v1673, %v1883
        %v2012 = vmul.f32 %v1674, %v1884
        %v2013 = vmul.f32 %v1675, %v1885
        %v2014 = vmul.f32 %v1676, %v1886
        %v2015 = vmul.f32 %v1677, %v1887
        %v2016 = vmul.f32 %v1678, %v1888
        %v2017 = vmul.f32 %v1679, %v1889
        %v2018 = vmul.f32 %v1680, %v1890
        %v2019 = vmul.f32 %v1681, %v1891
        %v2020 = vmul.f32 %v1682, %v1892
        %v2085 = vrot.slane %v1957, 2
        %v2086 = vrot.slane %v1958, 2
        %v2087 = vrot.slane %v1959, 2
        %v2088 = vrot.slane %v1960, 2
        %v2089 = vrot.slane %v1961, 2
        %v2090 = vrot.slane %v1962, 2
        %v2091 = vrot.slane %v1963, 2
        %v2092 = vrot.slane %v1964, 2
        %v2093 = vrot.slane %v1965, 2
        %v2094 = vrot.slane %v1966, 2
        %v2095 = vrot.slane %v1967, 2
        %v2096 = vrot.slane %v1968, 2
        %v2097 = vrot.slane %v1969, 2
        %v2098 = vrot.slane %v1970, 2
        %v2099 = vrot.slane %v1971, 2
        %v2100 = vrot.slane %v1972, 2
        %v2101 = vrot.slane %v1973, 2
        %v2102 = vrot.slane %v1974, 2
        %v2103 = vrot.slane %v1975, 2
        %v2104 = vrot.slane %v1976, 2
        %v2105 = vrot.slane %v1977, 2
        %v2106 = vrot.slane %v1978, 2
        %v2107 = vrot.slane %v1979, 2
        %v2108 = vrot.slane %v1980, 2
        %v2109 = vrot.slane %v1981, 2
        %v2110 = vrot.slane %v1982, 2
        %v2111 = vrot.slane %v1983, 2
        %v2112 = vrot.slane %v1984, 2
        %v2113 = vrot.slane %v1985, 2
        %v2114 = vrot.slane %v1986, 2
        %v2115 = vrot.slane %v1987, 2
        %v2116 = vrot.slane %v1988, 2
        %v2117 = vrot.slane %v1989, 2
        %v2118 = vrot.slane %v1990, 2
        %v2119 = vrot.slane %v1991, 2
        %v2120 = vrot.slane %v1992, 2
        %v2121 = vrot.slane %v1993, 2
        %v2122 = vrot.slane %v1994, 2
        %v2123 = vrot.slane %v1995, 2
        %v2124 = vrot.slane %v1996, 2
        %v2125 = vrot.slane %v1997, 2
        %v2126 = vrot.slane %v1998, 2
        %v2127 = vrot.slane %v1999, 2
        %v2128 = vrot.slane %v2000, 2
        %v2129 = vrot.slane %v2001, 2
        %v2130 = vrot.slane %v2002, 2
        %v2131 = vrot.slane %v2003, 2
        %v2132 = vrot.slane %v2004, 2
        %v2133 = vrot.slane %v2005, 2
        %v2134 = vrot.slane %v2006, 2
        %v2135 = vrot.slane %v2007, 2
        %v2136 = vrot.slane %v2008, 2
        %v2137 = vrot.slane %v2009, 2
        %v2138 = vrot.slane %v2010, 2
        %v2139 = vrot.slane %v2011, 2
        %v2140 = vrot.slane %v2012, 2
        %v2141 = vrot.slane %v2013, 2
        %v2142 = vrot.slane %v2014, 2
        %v2143 = vrot.slane %v2015, 2
        %v2144 = vrot.slane %v2016, 2
        %v2145 = vrot.slane %v2017, 2
        %v2146 = vrot.slane %v2018, 2
        %v2147 = vrot.slane %v2019, 2
        %v2148 = vrot.slane %v2020, 2
        %v2213 = vmax.f32 %v1517, %v2085
        %v2214 = vmax.f32 %v1518, %v2086
        %v2215 = vmax.f32 %v1519, %v2087
        %v2216 = vmax.f32 %v1520, %v2088
        %v2217 = vmax.f32 %v1521, %v2089
        %v2218 = vmax.f32 %v1522, %v2090
        %v2219 = vmax.f32 %v1523, %v2091
        %v2220 = vmax.f32 %v1524, %v2092
        %v2221 = vmax.f32 %v1525, %v2093
        %v2222 = vmax.f32 %v1526, %v2094
        %v2223 = vmax.f32 %v1527, %v2095
        %v2224 = vmax.f32 %v1528, %v2096
        %v2225 = vmax.f32 %v1529, %v2097
        %v2226 = vmax.f32 %v1530, %v2098
        %v2227 = vmax.f32 %v1531, %v2099
        %v2228 = vmax.f32 %v1532, %v2100
        %v2229 = vmax.f32 %v1533, %v2101
        %v2230 = vmax.f32 %v1534, %v2102
        %v2231 = vmax.f32 %v1535, %v2103
        %v2232 = vmax.f32 %v1536, %v2104
        %v2233 = vmax.f32 %v1537, %v2105
        %v2234 = vmax.f32 %v1538, %v2106
        %v2235 = vmax.f32 %v1539, %v2107
        %v2236 = vmax.f32 %v1540, %v2108
        %v2237 = vmax.f32 %v1541, %v2109
        %v2238 = vmax.f32 %v1542, %v2110
        %v2239 = vmax.f32 %v1543, %v2111
        %v2240 = vmax.f32 %v1544, %v2112
        %v2241 = vmax.f32 %v1545, %v2113
        %v2242 = vmax.f32 %v1546, %v2114
        %v2243 = vmax.f32 %v1547, %v2115
        %v2244 = vmax.f32 %v1548, %v2116
        %v2245 = vmax.f32 %v1549, %v2117
        %v2246 = vmax.f32 %v1550, %v2118
        %v2247 = vmax.f32 %v1551, %v2119
        %v2248 = vmax.f32 %v1552, %v2120
        %v2249 = vmax.f32 %v1553, %v2121
        %v2250 = vmax.f32 %v1554, %v2122
        %v2251 = vmax.f32 %v1555, %v2123
        %v2252 = vmax.f32 %v1556, %v2124
        %v2253 = vmax.f32 %v1557, %v2125
        %v2254 = vmax.f32 %v1558, %v2126
        %v2255 = vmax.f32 %v1559, %v2127
        %v2256 = vmax.f32 %v1560, %v2128
        %v2257 = vmax.f32 %v1561, %v2129
        %v2258 = vmax.f32 %v1562, %v2130
        %v2259 = vmax.f32 %v1563, %v2131
        %v2260 = vmax.f32 %v1564, %v2132
        %v2261 = vmax.f32 %v1565, %v2133
        %v2262 = vmax.f32 %v1566, %v2134
        %v2263 = vmax.f32 %v1567, %v2135
        %v2264 = vmax.f32 %v1568, %v2136
        %v2265 = vmax.f32 %v1569, %v2137
        %v2266 = vmax.f32 %v1570, %v2138
        %v2267 = vmax.f32 %v1571, %v2139
        %v2268 = vmax.f32 %v1572, %v2140
        %v2269 = vmax.f32 %v1573, %v2141
        %v2270 = vmax.f32 %v1574, %v2142
        %v2271 = vmax.f32 %v1575, %v2143
        %v2272 = vmax.f32 %v1576, %v2144
        %v2273 = vmax.f32 %v1577, %v2145
        %v2274 = vmax.f32 %v1578, %v2146
        %v2275 = vmax.f32 %v1579, %v2147
        %v2276 = vmax.f32 %v1580, %v2148
        %s2277 = scalar_lea.vmem %s364, 3 [#allocation2]
        %v2278 = vld [vmem:[%s2277] ss:$8 sm:$0x3]
        %s2279 = scalar_lea.vmem %s364, 35 [#allocation2]
        %v2280 = vld [vmem:[%s2279] ss:$8 sm:$0x3]
        %s2281 = scalar_lea.vmem %s364, 67 [#allocation2]
        %v2282 = vld [vmem:[%s2281] ss:$8 sm:$0x3]
        %v2284 = vlaneseq
        %v2285 = vshrl.u32 %v2284, 7
        %v2286 = vsub.s32 0, %v2285
        %v2287 = vrot.slane %v2278, %v2286
        %v2288 = vlaneseq
        %v2289 = vshrl.u32 %v2288, 7
        %v2290 = vsub.s32 1, %v2289
        %v2291 = vrot.slane %v2278, %v2290
        %v2294 = vmul.f32 %v537, %v2287
        %v2295 = vmul.f32 %v537, %v2291
        %v2296 = vmul.f32 %v542, %v2287
        %v2297 = vmul.f32 %v542, %v2291
        %v2298 = vmul.f32 %v547, %v2287
        %v2299 = vmul.f32 %v547, %v2291
        %v2300 = vmul.f32 %v552, %v2287
        %v2301 = vmul.f32 %v552, %v2291
        %v2303 = vlaneseq
        %v2304 = vshrl.u32 %v2303, 7
        %v2305 = vsub.s32 0, %v2304
        %v2306 = vrot.slane %v2280, %v2305
        %v2307 = vlaneseq
        %v2308 = vshrl.u32 %v2307, 7
        %v2309 = vsub.s32 1, %v2308
        %v2310 = vrot.slane %v2280, %v2309
        %v2313 = vmul.f32 %v575, %v2306
        %v2314 = vmul.f32 %v575, %v2310
        %v2315 = vmul.f32 %v579, %v2306
        %v2316 = vmul.f32 %v579, %v2310
        %v2317 = vmul.f32 %v583, %v2306
        %v2318 = vmul.f32 %v583, %v2310
        %v2319 = vmul.f32 %v587, %v2306
        %v2320 = vmul.f32 %v587, %v2310
        %v2321 = vadd.f32 %v2294, %v2313
        %v2322 = vadd.f32 %v2295, %v2314
        %v2323 = vadd.f32 %v2296, %v2315
        %v2324 = vadd.f32 %v2297, %v2316
        %v2325 = vadd.f32 %v2298, %v2317
        %v2326 = vadd.f32 %v2299, %v2318
        %v2327 = vadd.f32 %v2300, %v2319
        %v2328 = vadd.f32 %v2301, %v2320
        %v2330 = vlaneseq
        %v2331 = vshrl.u32 %v2330, 7
        %v2332 = vsub.s32 0, %v2331
        %v2333 = vrot.slane %v2282, %v2332
        %v2334 = vlaneseq
        %v2335 = vshrl.u32 %v2334, 7
        %v2336 = vsub.s32 1, %v2335
        %v2337 = vrot.slane %v2282, %v2336
        %v2340 = vmul.f32 %v618, %v2333
        %v2341 = vmul.f32 %v618, %v2337
        %v2342 = vmul.f32 %v622, %v2333
        %v2343 = vmul.f32 %v622, %v2337
        %v2344 = vmul.f32 %v626, %v2333
        %v2345 = vmul.f32 %v626, %v2337
        %v2346 = vmul.f32 %v630, %v2333
        %v2347 = vmul.f32 %v630, %v2337
        %v2348 = vadd.f32 %v2321, %v2340
        %v2349 = vadd.f32 %v2322, %v2341
        %v2350 = vadd.f32 %v2323, %v2342
        %v2351 = vadd.f32 %v2324, %v2343
        %v2352 = vadd.f32 %v2325, %v2344
        %v2353 = vadd.f32 %v2326, %v2345
        %v2354 = vadd.f32 %v2327, %v2346
        %v2355 = vadd.f32 %v2328, %v2347
        %v2356 = vadd.f32 %v2348, %v662
        %v2357 = vadd.f32 %v2349, %v662
        %v2358 = vadd.f32 %v2350, %v667
        %v2359 = vadd.f32 %v2351, %v667
        %v2360 = vadd.f32 %v2352, %v672
        %v2361 = vadd.f32 %v2353, %v672
        %v2362 = vadd.f32 %v2354, %v677
        %v2363 = vadd.f32 %v2355, %v677
        %v2364 = vmax.f32 %v2356, 0.0
        %v2365 = vmax.f32 %v2357, 0.0
        %v2366 = vmax.f32 %v2358, 0.0
        %v2367 = vmax.f32 %v2359, 0.0
        %v2368 = vmax.f32 %v2360, 0.0
        %v2369 = vmax.f32 %v2361, 0.0
        %v2370 = vmax.f32 %v2362, 0.0
        %v2371 = vmax.f32 %v2363, 0.0
        %v2372 = vpack.c.bf16 %v2366, %v2364
        %v2373 = vpack.c.bf16 %v2367, %v2365
        %v2374 = vpack.c.bf16 %v2370, %v2368
        %v2375 = vpack.c.bf16 %v2371, %v2369
        %2376 = vmatprep.subr.bf16.mxu0 %v2373
        %2377 = vmatpush1.bf16.msra.mxu0 %v2372
        %2378 = vmatprep.subr.bf16.mxu0 %v2375
        %2379 = vmatpush1.bf16.msra.mxu0 %v2374
        %2380 = vmatprep.subr.bf16.mxu0 0
        %2381 = vmatpush1.bf16.msra.mxu0 0
        %2382 = vmatprep.subr.bf16.mxu0 0
        %2383 = vmatpush1.bf16.msra.mxu0 0
        %2384 = vmatprep.subr.bf16.mxu0 0
        %2385 = vmatpush1.bf16.msra.mxu0 0
        %2386 = vmatprep.subr.bf16.mxu0 0
        %2387 = vmatpush1.bf16.msra.mxu0 0
        %2388 = vmatprep.subr.bf16.mxu0 0
        %2389 = vmatpush1.bf16.msra.mxu0 0
        %2390 = vmatprep.subr.bf16.mxu0 0
        %2391 = vmatpush1.bf16.msra.mxu0 0
        %2392 = vmatprep.subr.bf16.mxu0 0
        %2393 = vmatpush1.bf16.msra.mxu0 0
        %2394 = vmatprep.subr.bf16.mxu0 0
        %2395 = vmatpush1.bf16.msra.mxu0 0
        %2396 = vmatprep.subr.bf16.mxu0 0
        %2397 = vmatpush1.bf16.msra.mxu0 0
        %2398 = vmatprep.subr.bf16.mxu0 0
        %2399 = vmatpush1.bf16.msra.mxu0 0
        %2400 = vmatprep.subr.bf16.mxu0 0
        %2401 = vmatpush1.bf16.msra.mxu0 0
        %2402 = vmatprep.subr.bf16.mxu0 0
        %2403 = vmatpush1.bf16.msra.mxu0 0
        %2404 = vmatprep.subr.bf16.mxu0 0
        %2405 = vmatpush1.bf16.msra.mxu0 0
        %2406 = vmatprep.subr.bf16.mxu0 0
        %2407 = vmatpush1.bf16.msra.mxu0 0
        %2408 = vmatprep.mubr.bf16.mxu0 0
        %2409 = vmatmul.mubr.bf16.gmra.mrb[0].mxu0 %v731
        %v2410 = vpop.f32.mrb[0].mxu0
        %v2411 = vadd.f32 %v702, %v2410
        %v2412 = vpop.f32.mrb[0].mxu0
        %v2413 = vadd.f32 %v702, %v2412
        %v2414 = vpop.f32.mrb[0].mxu0
        %v2415 = vadd.f32 %v707, %v2414
        %v2416 = vpop.f32.mrb[0].mxu0
        %v2417 = vadd.f32 %v707, %v2416
        %2418 = vmatprep.mubr.bf16.mxu0 0
        %2419 = vmatmul.mubr.bf16.gmra.mrb[0].mxu0 %v734
        %v2420 = vpop.f32.mrb[0].mxu0
        %v2421 = vadd.f32 %v712, %v2420
        %v2422 = vpop.f32.mrb[0].mxu0
        %v2423 = vadd.f32 %v712, %v2422
        %v2424 = vpop.f32.mrb[0].mxu0
        %v2425 = vadd.f32 %v717, %v2424
        %v2426 = vpop.f32.mrb[0].mxu0
        %v2427 = vadd.f32 %v717, %v2426
        %2428 = vdwg.mxu0
        %v2437 = vrot.slane %v2411, 5
        %v2438 = vrot.slane %v2413, 5
        %v2439 = vrot.slane %v2411, 6
        %v2440 = vrot.slane %v2413, 6
        %v2441 = vrot.slane %v2411, 7
        %v2442 = vrot.slane %v2413, 7
        %v2443 = vrot.slane %v2411, 1
        %v2444 = vrot.slane %v2413, 1
        %v2445 = vrot.slane %v2411, 2
        %v2446 = vrot.slane %v2413, 2
        %v2447 = vrot.slane %v2411, 3
        %v2448 = vrot.slane %v2413, 3
        %v2449 = vrot.slane %v2411, 4
        %v2450 = vrot.slane %v2413, 4
        %v2451 = vrot.slane %v2415, 5
        %v2452 = vrot.slane %v2417, 5
        %v2453 = vrot.slane %v2415, 6
        %v2454 = vrot.slane %v2417, 6
        %v2455 = vrot.slane %v2415, 7
        %v2456 = vrot.slane %v2417, 7
        %v2457 = vrot.slane %v2415, 1
        %v2458 = vrot.slane %v2417, 1
        %v2459 = vrot.slane %v2415, 2
        %v2460 = vrot.slane %v2417, 2
        %v2461 = vrot.slane %v2415, 3
        %v2462 = vrot.slane %v2417, 3
        %v2463 = vrot.slane %v2415, 4
        %v2464 = vrot.slane %v2417, 4
        %v2465 = vrot.slane %v2421, 5
        %v2466 = vrot.slane %v2423, 5
        %v2467 = vrot.slane %v2421, 6
        %v2468 = vrot.slane %v2423, 6
        %v2469 = vrot.slane %v2421, 7
        %v2470 = vrot.slane %v2423, 7
        %v2471 = vrot.slane %v2421, 1
        %v2472 = vrot.slane %v2423, 1
        %v2473 = vrot.slane %v2421, 2
        %v2474 = vrot.slane %v2423, 2
        %v2475 = vrot.slane %v2421, 3
        %v2476 = vrot.slane %v2423, 3
        %v2477 = vrot.slane %v2421, 4
        %v2478 = vrot.slane %v2423, 4
        %v2479 = vrot.slane %v2425, 5
        %v2480 = vrot.slane %v2427, 5
        %v2481 = vrot.slane %v2425, 6
        %v2482 = vrot.slane %v2427, 6
        %v2483 = vrot.slane %v2425, 7
        %v2484 = vrot.slane %v2427, 7
        %v2485 = vrot.slane %v2425, 1
        %v2486 = vrot.slane %v2427, 1
        %v2487 = vrot.slane %v2425, 2
        %v2488 = vrot.slane %v2427, 2
        %v2489 = vrot.slane %v2425, 3
        %v2490 = vrot.slane %v2427, 3
        %v2491 = vrot.slane %v2425, 4
        %v2492 = vrot.slane %v2427, 4
        %v2557 = vmul.f32 %v1619, %v2437
        %v2558 = vmul.f32 %v1620, %v2438
        %v2559 = vmul.f32 %v1621, %v2439
        %v2560 = vmul.f32 %v1622, %v2440
        %v2561 = vmul.f32 %v1623, %v2441
        %v2562 = vmul.f32 %v1624, %v2442
        %v2563 = vmul.f32 %v1625, %v2411
        %v2564 = vmul.f32 %v1626, %v2413
        %v2565 = vmul.f32 %v1627, %v2443
        %v2566 = vmul.f32 %v1628, %v2444
        %v2567 = vmul.f32 %v1629, %v2445
        %v2568 = vmul.f32 %v1630, %v2446
        %v2569 = vmul.f32 %v1631, %v2447
        %v2570 = vmul.f32 %v1632, %v2448
        %v2571 = vmul.f32 %v1633, %v2449
        %v2572 = vmul.f32 %v1634, %v2450
        %v2573 = vmul.f32 %v1635, %v2451
        %v2574 = vmul.f32 %v1636, %v2452
        %v2575 = vmul.f32 %v1637, %v2453
        %v2576 = vmul.f32 %v1638, %v2454
        %v2577 = vmul.f32 %v1639, %v2455
        %v2578 = vmul.f32 %v1640, %v2456
        %v2579 = vmul.f32 %v1641, %v2415
        %v2580 = vmul.f32 %v1642, %v2417
        %v2581 = vmul.f32 %v1643, %v2457
        %v2582 = vmul.f32 %v1644, %v2458
        %v2583 = vmul.f32 %v1645, %v2459
        %v2584 = vmul.f32 %v1646, %v2460
        %v2585 = vmul.f32 %v1647, %v2461
        %v2586 = vmul.f32 %v1648, %v2462
        %v2587 = vmul.f32 %v1649, %v2463
        %v2588 = vmul.f32 %v1650, %v2464
        %v2589 = vmul.f32 %v1651, %v2465
        %v2590 = vmul.f32 %v1652, %v2466
        %v2591 = vmul.f32 %v1653, %v2467
        %v2592 = vmul.f32 %v1654, %v2468
        %v2593 = vmul.f32 %v1655, %v2469
        %v2594 = vmul.f32 %v1656, %v2470
        %v2595 = vmul.f32 %v1657, %v2421
        %v2596 = vmul.f32 %v1658, %v2423
        %v2597 = vmul.f32 %v1659, %v2471
        %v2598 = vmul.f32 %v1660, %v2472
        %v2599 = vmul.f32 %v1661, %v2473
        %v2600 = vmul.f32 %v1662, %v2474
        %v2601 = vmul.f32 %v1663, %v2475
        %v2602 = vmul.f32 %v1664, %v2476
        %v2603 = vmul.f32 %v1665, %v2477
        %v2604 = vmul.f32 %v1666, %v2478
        %v2605 = vmul.f32 %v1667, %v2479
        %v2606 = vmul.f32 %v1668, %v2480
        %v2607 = vmul.f32 %v1669, %v2481
        %v2608 = vmul.f32 %v1670, %v2482
        %v2609 = vmul.f32 %v1671, %v2483
        %v2610 = vmul.f32 %v1672, %v2484
        %v2611 = vmul.f32 %v1673, %v2425
        %v2612 = vmul.f32 %v1674, %v2427
        %v2613 = vmul.f32 %v1675, %v2485
        %v2614 = vmul.f32 %v1676, %v2486
        %v2615 = vmul.f32 %v1677, %v2487
        %v2616 = vmul.f32 %v1678, %v2488
        %v2617 = vmul.f32 %v1679, %v2489
        %v2618 = vmul.f32 %v1680, %v2490
        %v2619 = vmul.f32 %v1681, %v2491
        %v2620 = vmul.f32 %v1682, %v2492
        %v2685 = vrot.slane %v2557, 3
        %v2686 = vrot.slane %v2558, 3
        %v2687 = vrot.slane %v2559, 3
        %v2688 = vrot.slane %v2560, 3
        %v2689 = vrot.slane %v2561, 3
        %v2690 = vrot.slane %v2562, 3
        %v2691 = vrot.slane %v2563, 3
        %v2692 = vrot.slane %v2564, 3
        %v2693 = vrot.slane %v2565, 3
        %v2694 = vrot.slane %v2566, 3
        %v2695 = vrot.slane %v2567, 3
        %v2696 = vrot.slane %v2568, 3
        %v2697 = vrot.slane %v2569, 3
        %v2698 = vrot.slane %v2570, 3
        %v2699 = vrot.slane %v2571, 3
        %v2700 = vrot.slane %v2572, 3
        %v2701 = vrot.slane %v2573, 3
        %v2702 = vrot.slane %v2574, 3
        %v2703 = vrot.slane %v2575, 3
        %v2704 = vrot.slane %v2576, 3
        %v2705 = vrot.slane %v2577, 3
        %v2706 = vrot.slane %v2578, 3
        %v2707 = vrot.slane %v2579, 3
        %v2708 = vrot.slane %v2580, 3
        %v2709 = vrot.slane %v2581, 3
        %v2710 = vrot.slane %v2582, 3
        %v2711 = vrot.slane %v2583, 3
        %v2712 = vrot.slane %v2584, 3
        %v2713 = vrot.slane %v2585, 3
        %v2714 = vrot.slane %v2586, 3
        %v2715 = vrot.slane %v2587, 3
        %v2716 = vrot.slane %v2588, 3
        %v2717 = vrot.slane %v2589, 3
        %v2718 = vrot.slane %v2590, 3
        %v2719 = vrot.slane %v2591, 3
        %v2720 = vrot.slane %v2592, 3
        %v2721 = vrot.slane %v2593, 3
        %v2722 = vrot.slane %v2594, 3
        %v2723 = vrot.slane %v2595, 3
        %v2724 = vrot.slane %v2596, 3
        %v2725 = vrot.slane %v2597, 3
        %v2726 = vrot.slane %v2598, 3
        %v2727 = vrot.slane %v2599, 3
        %v2728 = vrot.slane %v2600, 3
        %v2729 = vrot.slane %v2601, 3
        %v2730 = vrot.slane %v2602, 3
        %v2731 = vrot.slane %v2603, 3
        %v2732 = vrot.slane %v2604, 3
        %v2733 = vrot.slane %v2605, 3
        %v2734 = vrot.slane %v2606, 3
        %v2735 = vrot.slane %v2607, 3
        %v2736 = vrot.slane %v2608, 3
        %v2737 = vrot.slane %v2609, 3
        %v2738 = vrot.slane %v2610, 3
        %v2739 = vrot.slane %v2611, 3
        %v2740 = vrot.slane %v2612, 3
        %v2741 = vrot.slane %v2613, 3
        %v2742 = vrot.slane %v2614, 3
        %v2743 = vrot.slane %v2615, 3
        %v2744 = vrot.slane %v2616, 3
        %v2745 = vrot.slane %v2617, 3
        %v2746 = vrot.slane %v2618, 3
        %v2747 = vrot.slane %v2619, 3
        %v2748 = vrot.slane %v2620, 3
        %v2813 = vmax.f32 %v2213, %v2685
        %v2814 = vmax.f32 %v2214, %v2686
        %v2815 = vmax.f32 %v2215, %v2687
        %v2816 = vmax.f32 %v2216, %v2688
        %v2817 = vmax.f32 %v2217, %v2689
        %v2818 = vmax.f32 %v2218, %v2690
        %v2819 = vmax.f32 %v2219, %v2691
        %v2820 = vmax.f32 %v2220, %v2692
        %v2821 = vmax.f32 %v2221, %v2693
        %v2822 = vmax.f32 %v2222, %v2694
        %v2823 = vmax.f32 %v2223, %v2695
        %v2824 = vmax.f32 %v2224, %v2696
        %v2825 = vmax.f32 %v2225, %v2697
        %v2826 = vmax.f32 %v2226, %v2698
        %v2827 = vmax.f32 %v2227, %v2699
        %v2828 = vmax.f32 %v2228, %v2700
        %v2829 = vmax.f32 %v2229, %v2701
        %v2830 = vmax.f32 %v2230, %v2702
        %v2831 = vmax.f32 %v2231, %v2703
        %v2832 = vmax.f32 %v2232, %v2704
        %v2833 = vmax.f32 %v2233, %v2705
        %v2834 = vmax.f32 %v2234, %v2706
        %v2835 = vmax.f32 %v2235, %v2707
        %v2836 = vmax.f32 %v2236, %v2708
        %v2837 = vmax.f32 %v2237, %v2709
        %v2838 = vmax.f32 %v2238, %v2710
        %v2839 = vmax.f32 %v2239, %v2711
        %v2840 = vmax.f32 %v2240, %v2712
        %v2841 = vmax.f32 %v2241, %v2713
        %v2842 = vmax.f32 %v2242, %v2714
        %v2843 = vmax.f32 %v2243, %v2715
        %v2844 = vmax.f32 %v2244, %v2716
        %v2845 = vmax.f32 %v2245, %v2717
        %v2846 = vmax.f32 %v2246, %v2718
        %v2847 = vmax.f32 %v2247, %v2719
        %v2848 = vmax.f32 %v2248, %v2720
        %v2849 = vmax.f32 %v2249, %v2721
        %v2850 = vmax.f32 %v2250, %v2722
        %v2851 = vmax.f32 %v2251, %v2723
        %v2852 = vmax.f32 %v2252, %v2724
        %v2853 = vmax.f32 %v2253, %v2725
        %v2854 = vmax.f32 %v2254, %v2726
        %v2855 = vmax.f32 %v2255, %v2727
        %v2856 = vmax.f32 %v2256, %v2728
        %v2857 = vmax.f32 %v2257, %v2729
        %v2858 = vmax.f32 %v2258, %v2730
        %v2859 = vmax.f32 %v2259, %v2731
        %v2860 = vmax.f32 %v2260, %v2732
        %v2861 = vmax.f32 %v2261, %v2733
        %v2862 = vmax.f32 %v2262, %v2734
        %v2863 = vmax.f32 %v2263, %v2735
        %v2864 = vmax.f32 %v2264, %v2736
        %v2865 = vmax.f32 %v2265, %v2737
        %v2866 = vmax.f32 %v2266, %v2738
        %v2867 = vmax.f32 %v2267, %v2739
        %v2868 = vmax.f32 %v2268, %v2740
        %v2869 = vmax.f32 %v2269, %v2741
        %v2870 = vmax.f32 %v2270, %v2742
        %v2871 = vmax.f32 %v2271, %v2743
        %v2872 = vmax.f32 %v2272, %v2744
        %v2873 = vmax.f32 %v2273, %v2745
        %v2874 = vmax.f32 %v2274, %v2746
        %v2875 = vmax.f32 %v2275, %v2747
        %v2876 = vmax.f32 %v2276, %v2748
        %s2877 = scalar_lea.vmem %s364, 4 [#allocation2]
        %v2878 = vld [vmem:[%s2877] ss:$8 sm:$0x3]
        %s2879 = scalar_lea.vmem %s364, 36 [#allocation2]
        %v2880 = vld [vmem:[%s2879] ss:$8 sm:$0x3]
        %s2881 = scalar_lea.vmem %s364, 68 [#allocation2]
        %v2882 = vld [vmem:[%s2881] ss:$8 sm:$0x3]
        %v2883 = vld [vmem:[%s373] sm:$0x44]
        %v2884 = vld [vmem:[%s373 + $0x10] sm:$0x44]
        %v2885 = vld [vmem:[%s373 + $0x20] sm:$0x44]
        %v2886 = vld [vmem:[%s373 + $0x30] sm:$0x44]
        %v2887 = vld [vmem:[%s373 + $0x40] sm:$0x44]
        %v2888 = vld [vmem:[%s373 + $0x50] sm:$0x44]
        %v2889 = vld [vmem:[%s373 + $0x60] sm:$0x44]
        %v2890 = vld [vmem:[%s373 + $0x70] sm:$0x44]
        %v2891 = vld [vmem:[%s373 + $0x80] sm:$0x44]
        %v2892 = vld [vmem:[%s373 + $0x90] sm:$0x44]
        %v2893 = vld [vmem:[%s373 + $0xa0] sm:$0x44]
        %v2894 = vld [vmem:[%s373 + $0xb0] sm:$0x44]
        %v2895 = vld [vmem:[%s373 + $0xc0] sm:$0x44]
        %v2896 = vld [vmem:[%s373 + $0xd0] sm:$0x44]
        %v2897 = vld [vmem:[%s373 + $0xe0] sm:$0x44]
        %v2898 = vld [vmem:[%s373 + $0xf0] sm:$0x44]
        %v2899 = vld [vmem:[%s373 + $0x100] sm:$0x44]
        %v2900 = vld [vmem:[%s373 + $0x110] sm:$0x44]
        %v2901 = vld [vmem:[%s373 + $0x120] sm:$0x44]
        %v2902 = vld [vmem:[%s373 + $0x130] sm:$0x44]
        %v2903 = vld [vmem:[%s373 + $0x140] sm:$0x44]
        %v2904 = vld [vmem:[%s373 + $0x150] sm:$0x44]
        %v2905 = vld [vmem:[%s373 + $0x160] sm:$0x44]
        %v2906 = vld [vmem:[%s373 + $0x170] sm:$0x44]
        %v2907 = vld [vmem:[%s373 + $0x180] sm:$0x44]
        %v2908 = vld [vmem:[%s373 + $0x190] sm:$0x44]
        %v2909 = vld [vmem:[%s373 + $0x1a0] sm:$0x44]
        %v2910 = vld [vmem:[%s373 + $0x1b0] sm:$0x44]
        %v2911 = vld [vmem:[%s373 + $0x1c0] sm:$0x44]
        %v2912 = vld [vmem:[%s373 + $0x1d0] sm:$0x44]
        %v2913 = vld [vmem:[%s373 + $0x1e0] sm:$0x44]
        %v2914 = vld [vmem:[%s373 + $0x1f0] sm:$0x44]
        %v2915 = vunpack.c.l.bf16 %v2883
        %v2916 = vunpack.c.h.bf16 %v2883
        %v2917 = vunpack.c.l.bf16 %v2884
        %v2918 = vunpack.c.h.bf16 %v2884
        %v2919 = vunpack.c.l.bf16 %v2885
        %v2920 = vunpack.c.h.bf16 %v2885
        %v2921 = vunpack.c.l.bf16 %v2886
        %v2922 = vunpack.c.h.bf16 %v2886
        %v2923 = vunpack.c.l.bf16 %v2887
        %v2924 = vunpack.c.h.bf16 %v2887
        %v2925 = vunpack.c.l.bf16 %v2888
        %v2926 = vunpack.c.h.bf16 %v2888
        %v2927 = vunpack.c.l.bf16 %v2889
        %v2928 = vunpack.c.h.bf16 %v2889
        %v2929 = vunpack.c.l.bf16 %v2890
        %v2930 = vunpack.c.h.bf16 %v2890
        %v2931 = vunpack.c.l.bf16 %v2891
        %v2932 = vunpack.c.h.bf16 %v2891
        %v2933 = vunpack.c.l.bf16 %v2892
        %v2934 = vunpack.c.h.bf16 %v2892
        %v2935 = vunpack.c.l.bf16 %v2893
        %v2936 = vunpack.c.h.bf16 %v2893
        %v2937 = vunpack.c.l.bf16 %v2894
        %v2938 = vunpack.c.h.bf16 %v2894
        %v2939 = vunpack.c.l.bf16 %v2895
        %v2940 = vunpack.c.h.bf16 %v2895
        %v2941 = vunpack.c.l.bf16 %v2896
        %v2942 = vunpack.c.h.bf16 %v2896
        %v2943 = vunpack.c.l.bf16 %v2897
        %v2944 = vunpack.c.h.bf16 %v2897
        %v2945 = vunpack.c.l.bf16 %v2898
        %v2946 = vunpack.c.h.bf16 %v2898
        %v2947 = vunpack.c.l.bf16 %v2899
        %v2948 = vunpack.c.h.bf16 %v2899
        %v2949 = vunpack.c.l.bf16 %v2900
        %v2950 = vunpack.c.h.bf16 %v2900
        %v2951 = vunpack.c.l.bf16 %v2901
        %v2952 = vunpack.c.h.bf16 %v2901
        %v2953 = vunpack.c.l.bf16 %v2902
        %v2954 = vunpack.c.h.bf16 %v2902
        %v2955 = vunpack.c.l.bf16 %v2903
        %v2956 = vunpack.c.h.bf16 %v2903
        %v2957 = vunpack.c.l.bf16 %v2904
        %v2958 = vunpack.c.h.bf16 %v2904
        %v2959 = vunpack.c.l.bf16 %v2905
        %v2960 = vunpack.c.h.bf16 %v2905
        %v2961 = vunpack.c.l.bf16 %v2906
        %v2962 = vunpack.c.h.bf16 %v2906
        %v2963 = vunpack.c.l.bf16 %v2907
        %v2964 = vunpack.c.h.bf16 %v2907
        %v2965 = vunpack.c.l.bf16 %v2908
        %v2966 = vunpack.c.h.bf16 %v2908
        %v2967 = vunpack.c.l.bf16 %v2909
        %v2968 = vunpack.c.h.bf16 %v2909
        %v2969 = vunpack.c.l.bf16 %v2910
        %v2970 = vunpack.c.h.bf16 %v2910
        %v2971 = vunpack.c.l.bf16 %v2911
        %v2972 = vunpack.c.h.bf16 %v2911
        %v2973 = vunpack.c.l.bf16 %v2912
        %v2974 = vunpack.c.h.bf16 %v2912
        %v2975 = vunpack.c.l.bf16 %v2913
        %v2976 = vunpack.c.h.bf16 %v2913
        %v2977 = vunpack.c.l.bf16 %v2914
        %v2978 = vunpack.c.h.bf16 %v2914
        %v2980 = vlaneseq
        %v2981 = vshrl.u32 %v2980, 7
        %v2982 = vsub.s32 0, %v2981
        %v2983 = vrot.slane %v2878, %v2982
        %v2984 = vlaneseq
        %v2985 = vshrl.u32 %v2984, 7
        %v2986 = vsub.s32 1, %v2985
        %v2987 = vrot.slane %v2878, %v2986
        %v2990 = vmul.f32 %v537, %v2983
        %v2991 = vmul.f32 %v537, %v2987
        %v2992 = vmul.f32 %v542, %v2983
        %v2993 = vmul.f32 %v542, %v2987
        %v2994 = vmul.f32 %v547, %v2983
        %v2995 = vmul.f32 %v547, %v2987
        %v2996 = vmul.f32 %v552, %v2983
        %v2997 = vmul.f32 %v552, %v2987
        %v2999 = vlaneseq
        %v3000 = vshrl.u32 %v2999, 7
        %v3001 = vsub.s32 0, %v3000
        %v3002 = vrot.slane %v2880, %v3001
        %v3003 = vlaneseq
        %v3004 = vshrl.u32 %v3003, 7
        %v3005 = vsub.s32 1, %v3004
        %v3006 = vrot.slane %v2880, %v3005
        %v3009 = vmul.f32 %v575, %v3002
        %v3010 = vmul.f32 %v575, %v3006
        %v3011 = vmul.f32 %v579, %v3002
        %v3012 = vmul.f32 %v579, %v3006
        %v3013 = vmul.f32 %v583, %v3002
        %v3014 = vmul.f32 %v583, %v3006
        %v3015 = vmul.f32 %v587, %v3002
        %v3016 = vmul.f32 %v587, %v3006
        %v3017 = vadd.f32 %v2990, %v3009
        %v3018 = vadd.f32 %v2991, %v3010
        %v3019 = vadd.f32 %v2992, %v3011
        %v3020 = vadd.f32 %v2993, %v3012
        %v3021 = vadd.f32 %v2994, %v3013
        %v3022 = vadd.f32 %v2995, %v3014
        %v3023 = vadd.f32 %v2996, %v3015
        %v3024 = vadd.f32 %v2997, %v3016
        %v3026 = vlaneseq
        %v3027 = vshrl.u32 %v3026, 7
        %v3028 = vsub.s32 0, %v3027
        %v3029 = vrot.slane %v2882, %v3028
        %v3030 = vlaneseq
        %v3031 = vshrl.u32 %v3030, 7
        %v3032 = vsub.s32 1, %v3031
        %v3033 = vrot.slane %v2882, %v3032
        %v3036 = vmul.f32 %v618, %v3029
        %v3037 = vmul.f32 %v618, %v3033
        %v3038 = vmul.f32 %v622, %v3029
        %v3039 = vmul.f32 %v622, %v3033
        %v3040 = vmul.f32 %v626, %v3029
        %v3041 = vmul.f32 %v626, %v3033
        %v3042 = vmul.f32 %v630, %v3029
        %v3043 = vmul.f32 %v630, %v3033
        %v3044 = vadd.f32 %v3017, %v3036
        %v3045 = vadd.f32 %v3018, %v3037
        %v3046 = vadd.f32 %v3019, %v3038
        %v3047 = vadd.f32 %v3020, %v3039
        %v3048 = vadd.f32 %v3021, %v3040
        %v3049 = vadd.f32 %v3022, %v3041
        %v3050 = vadd.f32 %v3023, %v3042
        %v3051 = vadd.f32 %v3024, %v3043
        %v3052 = vadd.f32 %v3044, %v662
        %v3053 = vadd.f32 %v3045, %v662
        %v3054 = vadd.f32 %v3046, %v667
        %v3055 = vadd.f32 %v3047, %v667
        %v3056 = vadd.f32 %v3048, %v672
        %v3057 = vadd.f32 %v3049, %v672
        %v3058 = vadd.f32 %v3050, %v677
        %v3059 = vadd.f32 %v3051, %v677
        %v3060 = vmax.f32 %v3052, 0.0
        %v3061 = vmax.f32 %v3053, 0.0
        %v3062 = vmax.f32 %v3054, 0.0
        %v3063 = vmax.f32 %v3055, 0.0
        %v3064 = vmax.f32 %v3056, 0.0
        %v3065 = vmax.f32 %v3057, 0.0
        %v3066 = vmax.f32 %v3058, 0.0
        %v3067 = vmax.f32 %v3059, 0.0
        %v3068 = vpack.c.bf16 %v3062, %v3060
        %v3069 = vpack.c.bf16 %v3063, %v3061
        %v3070 = vpack.c.bf16 %v3066, %v3064
        %v3071 = vpack.c.bf16 %v3067, %v3065
        %3072 = vmatprep.subr.bf16.mxu0 %v3069
        %3073 = vmatpush1.bf16.msra.mxu0 %v3068
        %3074 = vmatprep.subr.bf16.mxu0 %v3071
        %3075 = vmatpush1.bf16.msra.mxu0 %v3070
        %3076 = vmatprep.subr.bf16.mxu0 0
        %3077 = vmatpush1.bf16.msra.mxu0 0
        %3078 = vmatprep.subr.bf16.mxu0 0
        %3079 = vmatpush1.bf16.msra.mxu0 0
        %3080 = vmatprep.subr.bf16.mxu0 0
        %3081 = vmatpush1.bf16.msra.mxu0 0
        %3082 = vmatprep.subr.bf16.mxu0 0
        %3083 = vmatpush1.bf16.msra.mxu0 0
        %3084 = vmatprep.subr.bf16.mxu0 0
        %3085 = vmatpush1.bf16.msra.mxu0 0
        %3086 = vmatprep.subr.bf16.mxu0 0
        %3087 = vmatpush1.bf16.msra.mxu0 0
        %3088 = vmatprep.subr.bf16.mxu0 0
        %3089 = vmatpush1.bf16.msra.mxu0 0
        %3090 = vmatprep.subr.bf16.mxu0 0
        %3091 = vmatpush1.bf16.msra.mxu0 0
        %3092 = vmatprep.subr.bf16.mxu0 0
        %3093 = vmatpush1.bf16.msra.mxu0 0
        %3094 = vmatprep.subr.bf16.mxu0 0
        %3095 = vmatpush1.bf16.msra.mxu0 0
        %3096 = vmatprep.subr.bf16.mxu0 0
        %3097 = vmatpush1.bf16.msra.mxu0 0
        %3098 = vmatprep.subr.bf16.mxu0 0
        %3099 = vmatpush1.bf16.msra.mxu0 0
        %3100 = vmatprep.subr.bf16.mxu0 0
        %3101 = vmatpush1.bf16.msra.mxu0 0
        %3102 = vmatprep.subr.bf16.mxu0 0
        %3103 = vmatpush1.bf16.msra.mxu0 0
        %3104 = vmatprep.mubr.bf16.mxu0 0
        %3105 = vmatmul.mubr.bf16.gmra.mrb[0].mxu0 %v731
        %v3106 = vpop.f32.mrb[0].mxu0
        %v3107 = vadd.f32 %v702, %v3106
        %v3108 = vpop.f32.mrb[0].mxu0
        %v3109 = vadd.f32 %v702, %v3108
        %v3110 = vpop.f32.mrb[0].mxu0
        %v3111 = vadd.f32 %v707, %v3110
        %v3112 = vpop.f32.mrb[0].mxu0
        %v3113 = vadd.f32 %v707, %v3112
        %3114 = vmatprep.mubr.bf16.mxu0 0
        %3115 = vmatmul.mubr.bf16.gmra.mrb[0].mxu0 %v734
        %v3116 = vpop.f32.mrb[0].mxu0
        %v3117 = vadd.f32 %v712, %v3116
        %v3118 = vpop.f32.mrb[0].mxu0
        %v3119 = vadd.f32 %v712, %v3118
        %v3120 = vpop.f32.mrb[0].mxu0
        %v3121 = vadd.f32 %v717, %v3120
        %v3122 = vpop.f32.mrb[0].mxu0
        %v3123 = vadd.f32 %v717, %v3122
        %3124 = vdwg.mxu0
        %v3133 = vrot.slane %v3107, 4
        %v3134 = vrot.slane %v3109, 4
        %v3135 = vrot.slane %v3107, 5
        %v3136 = vrot.slane %v3109, 5
        %v3137 = vrot.slane %v3107, 6
        %v3138 = vrot.slane %v3109, 6
        %v3139 = vrot.slane %v3107, 7
        %v3140 = vrot.slane %v3109, 7
        %v3141 = vrot.slane %v3107, 1
        %v3142 = vrot.slane %v3109, 1
        %v3143 = vrot.slane %v3107, 2
        %v3144 = vrot.slane %v3109, 2
        %v3145 = vrot.slane %v3107, 3
        %v3146 = vrot.slane %v3109, 3
        %v3147 = vrot.slane %v3111, 4
        %v3148 = vrot.slane %v3113, 4
        %v3149 = vrot.slane %v3111, 5
        %v3150 = vrot.slane %v3113, 5
        %v3151 = vrot.slane %v3111, 6
        %v3152 = vrot.slane %v3113, 6
        %v3153 = vrot.slane %v3111, 7
        %v3154 = vrot.slane %v3113, 7
        %v3155 = vrot.slane %v3111, 1
        %v3156 = vrot.slane %v3113, 1
        %v3157 = vrot.slane %v3111, 2
        %v3158 = vrot.slane %v3113, 2
        %v3159 = vrot.slane %v3111, 3
        %v3160 = vrot.slane %v3113, 3
        %v3161 = vrot.slane %v3117, 4
        %v3162 = vrot.slane %v3119, 4
        %v3163 = vrot.slane %v3117, 5
        %v3164 = vrot.slane %v3119, 5
        %v3165 = vrot.slane %v3117, 6
        %v3166 = vrot.slane %v3119, 6
        %v3167 = vrot.slane %v3117, 7
        %v3168 = vrot.slane %v3119, 7
        %v3169 = vrot.slane %v3117, 1
        %v3170 = vrot.slane %v3119, 1
        %v3171 = vrot.slane %v3117, 2
        %v3172 = vrot.slane %v3119, 2
        %v3173 = vrot.slane %v3117, 3
        %v3174 = vrot.slane %v3119, 3
        %v3175 = vrot.slane %v3121, 4
        %v3176 = vrot.slane %v3123, 4
        %v3177 = vrot.slane %v3121, 5
        %v3178 = vrot.slane %v3123, 5
        %v3179 = vrot.slane %v3121, 6
        %v3180 = vrot.slane %v3123, 6
        %v3181 = vrot.slane %v3121, 7
        %v3182 = vrot.slane %v3123, 7
        %v3183 = vrot.slane %v3121, 1
        %v3184 = vrot.slane %v3123, 1
        %v3185 = vrot.slane %v3121, 2
        %v3186 = vrot.slane %v3123, 2
        %v3187 = vrot.slane %v3121, 3
        %v3188 = vrot.slane %v3123, 3
        %v3253 = vmul.f32 %v2915, %v3133
        %v3254 = vmul.f32 %v2916, %v3134
        %v3255 = vmul.f32 %v2917, %v3135
        %v3256 = vmul.f32 %v2918, %v3136
        %v3257 = vmul.f32 %v2919, %v3137
        %v3258 = vmul.f32 %v2920, %v3138
        %v3259 = vmul.f32 %v2921, %v3139
        %v3260 = vmul.f32 %v2922, %v3140
        %v3261 = vmul.f32 %v2923, %v3107
        %v3262 = vmul.f32 %v2924, %v3109
        %v3263 = vmul.f32 %v2925, %v3141
        %v3264 = vmul.f32 %v2926, %v3142
        %v3265 = vmul.f32 %v2927, %v3143
        %v3266 = vmul.f32 %v2928, %v3144
        %v3267 = vmul.f32 %v2929, %v3145
        %v3268 = vmul.f32 %v2930, %v3146
        %v3269 = vmul.f32 %v2931, %v3147
        %v3270 = vmul.f32 %v2932, %v3148
        %v3271 = vmul.f32 %v2933, %v3149
        %v3272 = vmul.f32 %v2934, %v3150
        %v3273 = vmul.f32 %v2935, %v3151
        %v3274 = vmul.f32 %v2936, %v3152
        %v3275 = vmul.f32 %v2937, %v3153
        %v3276 = vmul.f32 %v2938, %v3154
        %v3277 = vmul.f32 %v2939, %v3111
        %v3278 = vmul.f32 %v2940, %v3113
        %v3279 = vmul.f32 %v2941, %v3155
        %v3280 = vmul.f32 %v2942, %v3156
        %v3281 = vmul.f32 %v2943, %v3157
        %v3282 = vmul.f32 %v2944, %v3158
        %v3283 = vmul.f32 %v2945, %v3159
        %v3284 = vmul.f32 %v2946, %v3160
        %v3285 = vmul.f32 %v2947, %v3161
        %v3286 = vmul.f32 %v2948, %v3162
        %v3287 = vmul.f32 %v2949, %v3163
        %v3288 = vmul.f32 %v2950, %v3164
        %v3289 = vmul.f32 %v2951, %v3165
        %v3290 = vmul.f32 %v2952, %v3166
        %v3291 = vmul.f32 %v2953, %v3167
        %v3292 = vmul.f32 %v2954, %v3168
        %v3293 = vmul.f32 %v2955, %v3117
        %v3294 = vmul.f32 %v2956, %v3119
        %v3295 = vmul.f32 %v2957, %v3169
        %v3296 = vmul.f32 %v2958, %v3170
        %v3297 = vmul.f32 %v2959, %v3171
        %v3298 = vmul.f32 %v2960, %v3172
        %v3299 = vmul.f32 %v2961, %v3173
        %v3300 = vmul.f32 %v2962, %v3174
        %v3301 = vmul.f32 %v2963, %v3175
        %v3302 = vmul.f32 %v2964, %v3176
        %v3303 = vmul.f32 %v2965, %v3177
        %v3304 = vmul.f32 %v2966, %v3178
        %v3305 = vmul.f32 %v2967, %v3179
        %v3306 = vmul.f32 %v2968, %v3180
        %v3307 = vmul.f32 %v2969, %v3181
        %v3308 = vmul.f32 %v2970, %v3182
        %v3309 = vmul.f32 %v2971, %v3121
        %v3310 = vmul.f32 %v2972, %v3123
        %v3311 = vmul.f32 %v2973, %v3183
        %v3312 = vmul.f32 %v2974, %v3184
        %v3313 = vmul.f32 %v2975, %v3185
        %v3314 = vmul.f32 %v2976, %v3186
        %v3315 = vmul.f32 %v2977, %v3187
        %v3316 = vmul.f32 %v2978, %v3188
        %v3381 = vrot.slane %v3253, 4
        %v3382 = vrot.slane %v3254, 4
        %v3383 = vrot.slane %v3255, 4
        %v3384 = vrot.slane %v3256, 4
        %v3385 = vrot.slane %v3257, 4
        %v3386 = vrot.slane %v3258, 4
        %v3387 = vrot.slane %v3259, 4
        %v3388 = vrot.slane %v3260, 4
        %v3389 = vrot.slane %v3261, 4
        %v3390 = vrot.slane %v3262, 4
        %v3391 = vrot.slane %v3263, 4
        %v3392 = vrot.slane %v3264, 4
        %v3393 = vrot.slane %v3265, 4
        %v3394 = vrot.slane %v3266, 4
        %v3395 = vrot.slane %v3267, 4
        %v3396 = vrot.slane %v3268, 4
        %v3397 = vrot.slane %v3269, 4
        %v3398 = vrot.slane %v3270, 4
        %v3399 = vrot.slane %v3271, 4
        %v3400 = vrot.slane %v3272, 4
        %v3401 = vrot.slane %v3273, 4
        %v3402 = vrot.slane %v3274, 4
        %v3403 = vrot.slane %v3275, 4
        %v3404 = vrot.slane %v3276, 4
        %v3405 = vrot.slane %v3277, 4
        %v3406 = vrot.slane %v3278, 4
        %v3407 = vrot.slane %v3279, 4
        %v3408 = vrot.slane %v3280, 4
        %v3409 = vrot.slane %v3281, 4
        %v3410 = vrot.slane %v3282, 4
        %v3411 = vrot.slane %v3283, 4
        %v3412 = vrot.slane %v3284, 4
        %v3413 = vrot.slane %v3285, 4
        %v3414 = vrot.slane %v3286, 4
        %v3415 = vrot.slane %v3287, 4
        %v3416 = vrot.slane %v3288, 4
        %v3417 = vrot.slane %v3289, 4
        %v3418 = vrot.slane %v3290, 4
        %v3419 = vrot.slane %v3291, 4
        %v3420 = vrot.slane %v3292, 4
        %v3421 = vrot.slane %v3293, 4
        %v3422 = vrot.slane %v3294, 4
        %v3423 = vrot.slane %v3295, 4
        %v3424 = vrot.slane %v3296, 4
        %v3425 = vrot.slane %v3297, 4
        %v3426 = vrot.slane %v3298, 4
        %v3427 = vrot.slane %v3299, 4
        %v3428 = vrot.slane %v3300, 4
        %v3429 = vrot.slane %v3301, 4
        %v3430 = vrot.slane %v3302, 4
        %v3431 = vrot.slane %v3303, 4
        %v3432 = vrot.slane %v3304, 4
        %v3433 = vrot.slane %v3305, 4
        %v3434 = vrot.slane %v3306, 4
        %v3435 = vrot.slane %v3307, 4
        %v3436 = vrot.slane %v3308, 4
        %v3437 = vrot.slane %v3309, 4
        %v3438 = vrot.slane %v3310, 4
        %v3439 = vrot.slane %v3311, 4
        %v3440 = vrot.slane %v3312, 4
        %v3441 = vrot.slane %v3313, 4
        %v3442 = vrot.slane %v3314, 4
        %v3443 = vrot.slane %v3315, 4
        %v3444 = vrot.slane %v3316, 4
        %v3509 = vmax.f32 %v2813, %v3381
        %v3510 = vmax.f32 %v2814, %v3382
        %v3511 = vmax.f32 %v2815, %v3383
        %v3512 = vmax.f32 %v2816, %v3384
        %v3513 = vmax.f32 %v2817, %v3385
        %v3514 = vmax.f32 %v2818, %v3386
        %v3515 = vmax.f32 %v2819, %v3387
        %v3516 = vmax.f32 %v2820, %v3388
        %v3517 = vmax.f32 %v2821, %v3389
        %v3518 = vmax.f32 %v2822, %v3390
        %v3519 = vmax.f32 %v2823, %v3391
        %v3520 = vmax.f32 %v2824, %v3392
        %v3521 = vmax.f32 %v2825, %v3393
        %v3522 = vmax.f32 %v2826, %v3394
        %v3523 = vmax.f32 %v2827, %v3395
        %v3524 = vmax.f32 %v2828, %v3396
        %v3525 = vmax.f32 %v2829, %v3397
        %v3526 = vmax.f32 %v2830, %v3398
        %v3527 = vmax.f32 %v2831, %v3399
        %v3528 = vmax.f32 %v2832, %v3400
        %v3529 = vmax.f32 %v2833, %v3401
        %v3530 = vmax.f32 %v2834, %v3402
        %v3531 = vmax.f32 %v2835, %v3403
        %v3532 = vmax.f32 %v2836, %v3404
        %v3533 = vmax.f32 %v2837, %v3405
        %v3534 = vmax.f32 %v2838, %v3406
        %v3535 = vmax.f32 %v2839, %v3407
        %v3536 = vmax.f32 %v2840, %v3408
        %v3537 = vmax.f32 %v2841, %v3409
        %v3538 = vmax.f32 %v2842, %v3410
        %v3539 = vmax.f32 %v2843, %v3411
        %v3540 = vmax.f32 %v2844, %v3412
        %v3541 = vmax.f32 %v2845, %v3413
        %v3542 = vmax.f32 %v2846, %v3414
        %v3543 = vmax.f32 %v2847, %v3415
        %v3544 = vmax.f32 %v2848, %v3416
        %v3545 = vmax.f32 %v2849, %v3417
        %v3546 = vmax.f32 %v2850, %v3418
        %v3547 = vmax.f32 %v2851, %v3419
        %v3548 = vmax.f32 %v2852, %v3420
        %v3549 = vmax.f32 %v2853, %v3421
        %v3550 = vmax.f32 %v2854, %v3422
        %v3551 = vmax.f32 %v2855, %v3423
        %v3552 = vmax.f32 %v2856, %v3424
        %v3553 = vmax.f32 %v2857, %v3425
        %v3554 = vmax.f32 %v2858, %v3426
        %v3555 = vmax.f32 %v2859, %v3427
        %v3556 = vmax.f32 %v2860, %v3428
        %v3557 = vmax.f32 %v2861, %v3429
        %v3558 = vmax.f32 %v2862, %v3430
        %v3559 = vmax.f32 %v2863, %v3431
        %v3560 = vmax.f32 %v2864, %v3432
        %v3561 = vmax.f32 %v2865, %v3433
        %v3562 = vmax.f32 %v2866, %v3434
        %v3563 = vmax.f32 %v2867, %v3435
        %v3564 = vmax.f32 %v2868, %v3436
        %v3565 = vmax.f32 %v2869, %v3437
        %v3566 = vmax.f32 %v2870, %v3438
        %v3567 = vmax.f32 %v2871, %v3439
        %v3568 = vmax.f32 %v2872, %v3440
        %v3569 = vmax.f32 %v2873, %v3441
        %v3570 = vmax.f32 %v2874, %v3442
        %v3571 = vmax.f32 %v2875, %v3443
        %v3572 = vmax.f32 %v2876, %v3444
        %s3573 = scalar_lea.vmem %s364, 5 [#allocation2]
        %v3574 = vld [vmem:[%s3573] ss:$8 sm:$0x3]
        %s3575 = scalar_lea.vmem %s364, 37 [#allocation2]
        %v3576 = vld [vmem:[%s3575] ss:$8 sm:$0x3]
        %s3577 = scalar_lea.vmem %s364, 69 [#allocation2]
        %v3578 = vld [vmem:[%s3577] ss:$8 sm:$0x3]
        %v3580 = vlaneseq
        %v3581 = vshrl.u32 %v3580, 7
        %v3582 = vsub.s32 0, %v3581
        %v3583 = vrot.slane %v3574, %v3582
        %v3584 = vlaneseq
        %v3585 = vshrl.u32 %v3584, 7
        %v3586 = vsub.s32 1, %v3585
        %v3587 = vrot.slane %v3574, %v3586
        %v3590 = vmul.f32 %v537, %v3583
        %v3591 = vmul.f32 %v537, %v3587
        %v3592 = vmul.f32 %v542, %v3583
        %v3593 = vmul.f32 %v542, %v3587
        %v3594 = vmul.f32 %v547, %v3583
        %v3595 = vmul.f32 %v547, %v3587
        %v3596 = vmul.f32 %v552, %v3583
        %v3597 = vmul.f32 %v552, %v3587
        %v3599 = vlaneseq
        %v3600 = vshrl.u32 %v3599, 7
        %v3601 = vsub.s32 0, %v3600
        %v3602 = vrot.slane %v3576, %v3601
        %v3603 = vlaneseq
        %v3604 = vshrl.u32 %v3603, 7
        %v3605 = vsub.s32 1, %v3604
        %v3606 = vrot.slane %v3576, %v3605
        %v3609 = vmul.f32 %v575, %v3602
        %v3610 = vmul.f32 %v575, %v3606
        %v3611 = vmul.f32 %v579, %v3602
        %v3612 = vmul.f32 %v579, %v3606
        %v3613 = vmul.f32 %v583, %v3602
        %v3614 = vmul.f32 %v583, %v3606
        %v3615 = vmul.f32 %v587, %v3602
        %v3616 = vmul.f32 %v587, %v3606
        %v3617 = vadd.f32 %v3590, %v3609
        %v3618 = vadd.f32 %v3591, %v3610
        %v3619 = vadd.f32 %v3592, %v3611
        %v3620 = vadd.f32 %v3593, %v3612
        %v3621 = vadd.f32 %v3594, %v3613
        %v3622 = vadd.f32 %v3595, %v3614
        %v3623 = vadd.f32 %v3596, %v3615
        %v3624 = vadd.f32 %v3597, %v3616
        %v3626 = vlaneseq
        %v3627 = vshrl.u32 %v3626, 7
        %v3628 = vsub.s32 0, %v3627
        %v3629 = vrot.slane %v3578, %v3628
        %v3630 = vlaneseq
        %v3631 = vshrl.u32 %v3630, 7
        %v3632 = vsub.s32 1, %v3631
        %v3633 = vrot.slane %v3578, %v3632
        %v3636 = vmul.f32 %v618, %v3629
        %v3637 = vmul.f32 %v618, %v3633
        %v3638 = vmul.f32 %v622, %v3629
        %v3639 = vmul.f32 %v622, %v3633
        %v3640 = vmul.f32 %v626, %v3629
        %v3641 = vmul.f32 %v626, %v3633
        %v3642 = vmul.f32 %v630, %v3629
        %v3643 = vmul.f32 %v630, %v3633
        %v3644 = vadd.f32 %v3617, %v3636
        %v3645 = vadd.f32 %v3618, %v3637
        %v3646 = vadd.f32 %v3619, %v3638
        %v3647 = vadd.f32 %v3620, %v3639
        %v3648 = vadd.f32 %v3621, %v3640
        %v3649 = vadd.f32 %v3622, %v3641
        %v3650 = vadd.f32 %v3623, %v3642
        %v3651 = vadd.f32 %v3624, %v3643
        %v3652 = vadd.f32 %v3644, %v662
        %v3653 = vadd.f32 %v3645, %v662
        %v3654 = vadd.f32 %v3646, %v667
        %v3655 = vadd.f32 %v3647, %v667
        %v3656 = vadd.f32 %v3648, %v672
        %v3657 = vadd.f32 %v3649, %v672
        %v3658 = vadd.f32 %v3650, %v677
        %v3659 = vadd.f32 %v3651, %v677
        %v3660 = vmax.f32 %v3652, 0.0
        %v3661 = vmax.f32 %v3653, 0.0
        %v3662 = vmax.f32 %v3654, 0.0
        %v3663 = vmax.f32 %v3655, 0.0
        %v3664 = vmax.f32 %v3656, 0.0
        %v3665 = vmax.f32 %v3657, 0.0
        %v3666 = vmax.f32 %v3658, 0.0
        %v3667 = vmax.f32 %v3659, 0.0
        %v3668 = vpack.c.bf16 %v3662, %v3660
        %v3669 = vpack.c.bf16 %v3663, %v3661
        %v3670 = vpack.c.bf16 %v3666, %v3664
        %v3671 = vpack.c.bf16 %v3667, %v3665
        %3672 = vmatprep.subr.bf16.mxu0 %v3669
        %3673 = vmatpush1.bf16.msra.mxu0 %v3668
        %3674 = vmatprep.subr.bf16.mxu0 %v3671
        %3675 = vmatpush1.bf16.msra.mxu0 %v3670
        %3676 = vmatprep.subr.bf16.mxu0 0
        %3677 = vmatpush1.bf16.msra.mxu0 0
        %3678 = vmatprep.subr.bf16.mxu0 0
        %3679 = vmatpush1.bf16.msra.mxu0 0
        %3680 = vmatprep.subr.bf16.mxu0 0
        %3681 = vmatpush1.bf16.msra.mxu0 0
        %3682 = vmatprep.subr.bf16.mxu0 0
        %3683 = vmatpush1.bf16.msra.mxu0 0
        %3684 = vmatprep.subr.bf16.mxu0 0
        %3685 = vmatpush1.bf16.msra.mxu0 0
        %3686 = vmatprep.subr.bf16.mxu0 0
        %3687 = vmatpush1.bf16.msra.mxu0 0
        %3688 = vmatprep.subr.bf16.mxu0 0
        %3689 = vmatpush1.bf16.msra.mxu0 0
        %3690 = vmatprep.subr.bf16.mxu0 0
        %3691 = vmatpush1.bf16.msra.mxu0 0
        %3692 = vmatprep.subr.bf16.mxu0 0
        %3693 = vmatpush1.bf16.msra.mxu0 0
        %3694 = vmatprep.subr.bf16.mxu0 0
        %3695 = vmatpush1.bf16.msra.mxu0 0
        %3696 = vmatprep.subr.bf16.mxu0 0
        %3697 = vmatpush1.bf16.msra.mxu0 0
        %3698 = vmatprep.subr.bf16.mxu0 0
        %3699 = vmatpush1.bf16.msra.mxu0 0
        %3700 = vmatprep.subr.bf16.mxu0 0
        %3701 = vmatpush1.bf16.msra.mxu0 0
        %3702 = vmatprep.subr.bf16.mxu0 0
        %3703 = vmatpush1.bf16.msra.mxu0 0
        %3704 = vmatprep.mubr.bf16.mxu0 0
        %3705 = vmatmul.mubr.bf16.gmra.mrb[0].mxu0 %v731
        %v3706 = vpop.f32.mrb[0].mxu0
        %v3707 = vadd.f32 %v702, %v3706
        %v3708 = vpop.f32.mrb[0].mxu0
        %v3709 = vadd.f32 %v702, %v3708
        %v3710 = vpop.f32.mrb[0].mxu0
        %v3711 = vadd.f32 %v707, %v3710
        %v3712 = vpop.f32.mrb[0].mxu0
        %v3713 = vadd.f32 %v707, %v3712
        %3714 = vmatprep.mubr.bf16.mxu0 0
        %3715 = vmatmul.mubr.bf16.gmra.mrb[0].mxu0 %v734
        %v3716 = vpop.f32.mrb[0].mxu0
        %v3717 = vadd.f32 %v712, %v3716
        %v3718 = vpop.f32.mrb[0].mxu0
        %v3719 = vadd.f32 %v712, %v3718
        %v3720 = vpop.f32.mrb[0].mxu0
        %v3721 = vadd.f32 %v717, %v3720
        %v3722 = vpop.f32.mrb[0].mxu0
        %v3723 = vadd.f32 %v717, %v3722
        %3724 = vdwg.mxu0
        %v3733 = vrot.slane %v3707, 3
        %v3734 = vrot.slane %v3709, 3
        %v3735 = vrot.slane %v3707, 4
        %v3736 = vrot.slane %v3709, 4
        %v3737 = vrot.slane %v3707, 5
        %v3738 = vrot.slane %v3709, 5
        %v3739 = vrot.slane %v3707, 6
        %v3740 = vrot.slane %v3709, 6
        %v3741 = vrot.slane %v3707, 7
        %v3742 = vrot.slane %v3709, 7
        %v3743 = vrot.slane %v3707, 1
        %v3744 = vrot.slane %v3709, 1
        %v3745 = vrot.slane %v3707, 2
        %v3746 = vrot.slane %v3709, 2
        %v3747 = vrot.slane %v3711, 3
        %v3748 = vrot.slane %v3713, 3
        %v3749 = vrot.slane %v3711, 4
        %v3750 = vrot.slane %v3713, 4
        %v3751 = vrot.slane %v3711, 5
        %v3752 = vrot.slane %v3713, 5
        %v3753 = vrot.slane %v3711, 6
        %v3754 = vrot.slane %v3713, 6
        %v3755 = vrot.slane %v3711, 7
        %v3756 = vrot.slane %v3713, 7
        %v3757 = vrot.slane %v3711, 1
        %v3758 = vrot.slane %v3713, 1
        %v3759 = vrot.slane %v3711, 2
        %v3760 = vrot.slane %v3713, 2
        %v3761 = vrot.slane %v3717, 3
        %v3762 = vrot.slane %v3719, 3
        %v3763 = vrot.slane %v3717, 4
        %v3764 = vrot.slane %v3719, 4
        %v3765 = vrot.slane %v3717, 5
        %v3766 = vrot.slane %v3719, 5
        %v3767 = vrot.slane %v3717, 6
        %v3768 = vrot.slane %v3719, 6
        %v3769 = vrot.slane %v3717, 7
        %v3770 = vrot.slane %v3719, 7
        %v3771 = vrot.slane %v3717, 1
        %v3772 = vrot.slane %v3719, 1
        %v3773 = vrot.slane %v3717, 2
        %v3774 = vrot.slane %v3719, 2
        %v3775 = vrot.slane %v3721, 3
        %v3776 = vrot.slane %v3723, 3
        %v3777 = vrot.slane %v3721, 4
        %v3778 = vrot.slane %v3723, 4
        %v3779 = vrot.slane %v3721, 5
        %v3780 = vrot.slane %v3723, 5
        %v3781 = vrot.slane %v3721, 6
        %v3782 = vrot.slane %v3723, 6
        %v3783 = vrot.slane %v3721, 7
        %v3784 = vrot.slane %v3723, 7
        %v3785 = vrot.slane %v3721, 1
        %v3786 = vrot.slane %v3723, 1
        %v3787 = vrot.slane %v3721, 2
        %v3788 = vrot.slane %v3723, 2
        %v3853 = vmul.f32 %v2915, %v3733
        %v3854 = vmul.f32 %v2916, %v3734
        %v3855 = vmul.f32 %v2917, %v3735
        %v3856 = vmul.f32 %v2918, %v3736
        %v3857 = vmul.f32 %v2919, %v3737
        %v3858 = vmul.f32 %v2920, %v3738
        %v3859 = vmul.f32 %v2921, %v3739
        %v3860 = vmul.f32 %v2922, %v3740
        %v3861 = vmul.f32 %v2923, %v3741
        %v3862 = vmul.f32 %v2924, %v3742
        %v3863 = vmul.f32 %v2925, %v3707
        %v3864 = vmul.f32 %v2926, %v3709
        %v3865 = vmul.f32 %v2927, %v3743
        %v3866 = vmul.f32 %v2928, %v3744
        %v3867 = vmul.f32 %v2929, %v3745
        %v3868 = vmul.f32 %v2930, %v3746
        %v3869 = vmul.f32 %v2931, %v3747
        %v3870 = vmul.f32 %v2932, %v3748
        %v3871 = vmul.f32 %v2933, %v3749
        %v3872 = vmul.f32 %v2934, %v3750
        %v3873 = vmul.f32 %v2935, %v3751
        %v3874 = vmul.f32 %v2936, %v3752
        %v3875 = vmul.f32 %v2937, %v3753
        %v3876 = vmul.f32 %v2938, %v3754
        %v3877 = vmul.f32 %v2939, %v3755
        %v3878 = vmul.f32 %v2940, %v3756
        %v3879 = vmul.f32 %v2941, %v3711
        %v3880 = vmul.f32 %v2942, %v3713
        %v3881 = vmul.f32 %v2943, %v3757
        %v3882 = vmul.f32 %v2944, %v3758
        %v3883 = vmul.f32 %v2945, %v3759
        %v3884 = vmul.f32 %v2946, %v3760
        %v3885 = vmul.f32 %v2947, %v3761
        %v3886 = vmul.f32 %v2948, %v3762
        %v3887 = vmul.f32 %v2949, %v3763
        %v3888 = vmul.f32 %v2950, %v3764
        %v3889 = vmul.f32 %v2951, %v3765
        %v3890 = vmul.f32 %v2952, %v3766
        %v3891 = vmul.f32 %v2953, %v3767
        %v3892 = vmul.f32 %v2954, %v3768
        %v3893 = vmul.f32 %v2955, %v3769
        %v3894 = vmul.f32 %v2956, %v3770
        %v3895 = vmul.f32 %v2957, %v3717
        %v3896 = vmul.f32 %v2958, %v3719
        %v3897 = vmul.f32 %v2959, %v3771
        %v3898 = vmul.f32 %v2960, %v3772
        %v3899 = vmul.f32 %v2961, %v3773
        %v3900 = vmul.f32 %v2962, %v3774
        %v3901 = vmul.f32 %v2963, %v3775
        %v3902 = vmul.f32 %v2964, %v3776
        %v3903 = vmul.f32 %v2965, %v3777
        %v3904 = vmul.f32 %v2966, %v3778
        %v3905 = vmul.f32 %v2967, %v3779
        %v3906 = vmul.f32 %v2968, %v3780
        %v3907 = vmul.f32 %v2969, %v3781
        %v3908 = vmul.f32 %v2970, %v3782
        %v3909 = vmul.f32 %v2971, %v3783
        %v3910 = vmul.f32 %v2972, %v3784
        %v3911 = vmul.f32 %v2973, %v3721
        %v3912 = vmul.f32 %v2974, %v3723
        %v3913 = vmul.f32 %v2975, %v3785
        %v3914 = vmul.f32 %v2976, %v3786
        %v3915 = vmul.f32 %v2977, %v3787
        %v3916 = vmul.f32 %v2978, %v3788
        %v3981 = vrot.slane %v3853, 5
        %v3982 = vrot.slane %v3854, 5
        %v3983 = vrot.slane %v3855, 5
        %v3984 = vrot.slane %v3856, 5
        %v3985 = vrot.slane %v3857, 5
        %v3986 = vrot.slane %v3858, 5
        %v3987 = vrot.slane %v3859, 5
        %v3988 = vrot.slane %v3860, 5
        %v3989 = vrot.slane %v3861, 5
        %v3990 = vrot.slane %v3862, 5
        %v3991 = vrot.slane %v3863, 5
        %v3992 = vrot.slane %v3864, 5
        %v3993 = vrot.slane %v3865, 5
        %v3994 = vrot.slane %v3866, 5
        %v3995 = vrot.slane %v3867, 5
        %v3996 = vrot.slane %v3868, 5
        %v3997 = vrot.slane %v3869, 5
        %v3998 = vrot.slane %v3870, 5
        %v3999 = vrot.slane %v3871, 5
        %v4000 = vrot.slane %v3872, 5
        %v4001 = vrot.slane %v3873, 5
        %v4002 = vrot.slane %v3874, 5
        %v4003 = vrot.slane %v3875, 5
        %v4004 = vrot.slane %v3876, 5
        %v4005 = vrot.slane %v3877, 5
        %v4006 = vrot.slane %v3878, 5
        %v4007 = vrot.slane %v3879, 5
        %v4008 = vrot.slane %v3880, 5
        %v4009 = vrot.slane %v3881, 5
        %v4010 = vrot.slane %v3882, 5
        %v4011 = vrot.slane %v3883, 5
        %v4012 = vrot.slane %v3884, 5
        %v4013 = vrot.slane %v3885, 5
        %v4014 = vrot.slane %v3886, 5
        %v4015 = vrot.slane %v3887, 5
        %v4016 = vrot.slane %v3888, 5
        %v4017 = vrot.slane %v3889, 5
        %v4018 = vrot.slane %v3890, 5
        %v4019 = vrot.slane %v3891, 5
        %v4020 = vrot.slane %v3892, 5
        %v4021 = vrot.slane %v3893, 5
        %v4022 = vrot.slane %v3894, 5
        %v4023 = vrot.slane %v3895, 5
        %v4024 = vrot.slane %v3896, 5
        %v4025 = vrot.slane %v3897, 5
        %v4026 = vrot.slane %v3898, 5
        %v4027 = vrot.slane %v3899, 5
        %v4028 = vrot.slane %v3900, 5
        %v4029 = vrot.slane %v3901, 5
        %v4030 = vrot.slane %v3902, 5
        %v4031 = vrot.slane %v3903, 5
        %v4032 = vrot.slane %v3904, 5
        %v4033 = vrot.slane %v3905, 5
        %v4034 = vrot.slane %v3906, 5
        %v4035 = vrot.slane %v3907, 5
        %v4036 = vrot.slane %v3908, 5
        %v4037 = vrot.slane %v3909, 5
        %v4038 = vrot.slane %v3910, 5
        %v4039 = vrot.slane %v3911, 5
        %v4040 = vrot.slane %v3912, 5
        %v4041 = vrot.slane %v3913, 5
        %v4042 = vrot.slane %v3914, 5
        %v4043 = vrot.slane %v3915, 5
        %v4044 = vrot.slane %v3916, 5
        %v4109 = vmax.f32 %v3509, %v3981
        %v4110 = vmax.f32 %v3510, %v3982
        %v4111 = vmax.f32 %v3511, %v3983
        %v4112 = vmax.f32 %v3512, %v3984
        %v4113 = vmax.f32 %v3513, %v3985
        %v4114 = vmax.f32 %v3514, %v3986
        %v4115 = vmax.f32 %v3515, %v3987
        %v4116 = vmax.f32 %v3516, %v3988
        %v4117 = vmax.f32 %v3517, %v3989
        %v4118 = vmax.f32 %v3518, %v3990
        %v4119 = vmax.f32 %v3519, %v3991
        %v4120 = vmax.f32 %v3520, %v3992
        %v4121 = vmax.f32 %v3521, %v3993
        %v4122 = vmax.f32 %v3522, %v3994
        %v4123 = vmax.f32 %v3523, %v3995
        %v4124 = vmax.f32 %v3524, %v3996
        %v4125 = vmax.f32 %v3525, %v3997
        %v4126 = vmax.f32 %v3526, %v3998
        %v4127 = vmax.f32 %v3527, %v3999
        %v4128 = vmax.f32 %v3528, %v4000
        %v4129 = vmax.f32 %v3529, %v4001
        %v4130 = vmax.f32 %v3530, %v4002
        %v4131 = vmax.f32 %v3531, %v4003
        %v4132 = vmax.f32 %v3532, %v4004
        %v4133 = vmax.f32 %v3533, %v4005
        %v4134 = vmax.f32 %v3534, %v4006
        %v4135 = vmax.f32 %v3535, %v4007
        %v4136 = vmax.f32 %v3536, %v4008
        %v4137 = vmax.f32 %v3537, %v4009
        %v4138 = vmax.f32 %v3538, %v4010
        %v4139 = vmax.f32 %v3539, %v4011
        %v4140 = vmax.f32 %v3540, %v4012
        %v4141 = vmax.f32 %v3541, %v4013
        %v4142 = vmax.f32 %v3542, %v4014
        %v4143 = vmax.f32 %v3543, %v4015
        %v4144 = vmax.f32 %v3544, %v4016
        %v4145 = vmax.f32 %v3545, %v4017
        %v4146 = vmax.f32 %v3546, %v4018
        %v4147 = vmax.f32 %v3547, %v4019
        %v4148 = vmax.f32 %v3548, %v4020
        %v4149 = vmax.f32 %v3549, %v4021
        %v4150 = vmax.f32 %v3550, %v4022
        %v4151 = vmax.f32 %v3551, %v4023
        %v4152 = vmax.f32 %v3552, %v4024
        %v4153 = vmax.f32 %v3553, %v4025
        %v4154 = vmax.f32 %v3554, %v4026
        %v4155 = vmax.f32 %v3555, %v4027
        %v4156 = vmax.f32 %v3556, %v4028
        %v4157 = vmax.f32 %v3557, %v4029
        %v4158 = vmax.f32 %v3558, %v4030
        %v4159 = vmax.f32 %v3559, %v4031
        %v4160 = vmax.f32 %v3560, %v4032
        %v4161 = vmax.f32 %v3561, %v4033
        %v4162 = vmax.f32 %v3562, %v4034
        %v4163 = vmax.f32 %v3563, %v4035
        %v4164 = vmax.f32 %v3564, %v4036
        %v4165 = vmax.f32 %v3565, %v4037
        %v4166 = vmax.f32 %v3566, %v4038
        %v4167 = vmax.f32 %v3567, %v4039
        %v4168 = vmax.f32 %v3568, %v4040
        %v4169 = vmax.f32 %v3569, %v4041
        %v4170 = vmax.f32 %v3570, %v4042
        %v4171 = vmax.f32 %v3571, %v4043
        %v4172 = vmax.f32 %v3572, %v4044
        %s4173 = scalar_lea.vmem %s364, 6 [#allocation2]
        %v4174 = vld [vmem:[%s4173] ss:$8 sm:$0x3]
        %s4175 = scalar_lea.vmem %s364, 38 [#allocation2]
        %v4176 = vld [vmem:[%s4175] ss:$8 sm:$0x3]
        %s4177 = scalar_lea.vmem %s364, 70 [#allocation2]
        %v4178 = vld [vmem:[%s4177] ss:$8 sm:$0x3]
        %v4179 = vld [vmem:[%s373] sm:$0x88]
        %v4180 = vld [vmem:[%s373 + $0x10] sm:$0x88]
        %v4181 = vld [vmem:[%s373 + $0x20] sm:$0x88]
        %v4182 = vld [vmem:[%s373 + $0x30] sm:$0x88]
        %v4183 = vld [vmem:[%s373 + $0x40] sm:$0x88]
        %v4184 = vld [vmem:[%s373 + $0x50] sm:$0x88]
        %v4185 = vld [vmem:[%s373 + $0x60] sm:$0x88]
        %v4186 = vld [vmem:[%s373 + $0x70] sm:$0x88]
        %v4187 = vld [vmem:[%s373 + $0x80] sm:$0x88]
        %v4188 = vld [vmem:[%s373 + $0x90] sm:$0x88]
        %v4189 = vld [vmem:[%s373 + $0xa0] sm:$0x88]
        %v4190 = vld [vmem:[%s373 + $0xb0] sm:$0x88]
        %v4191 = vld [vmem:[%s373 + $0xc0] sm:$0x88]
        %v4192 = vld [vmem:[%s373 + $0xd0] sm:$0x88]
        %v4193 = vld [vmem:[%s373 + $0xe0] sm:$0x88]
        %v4194 = vld [vmem:[%s373 + $0xf0] sm:$0x88]
        %v4195 = vld [vmem:[%s373 + $0x100] sm:$0x88]
        %v4196 = vld [vmem:[%s373 + $0x110] sm:$0x88]
        %v4197 = vld [vmem:[%s373 + $0x120] sm:$0x88]
        %v4198 = vld [vmem:[%s373 + $0x130] sm:$0x88]
        %v4199 = vld [vmem:[%s373 + $0x140] sm:$0x88]
        %v4200 = vld [vmem:[%s373 + $0x150] sm:$0x88]
        %v4201 = vld [vmem:[%s373 + $0x160] sm:$0x88]
        %v4202 = vld [vmem:[%s373 + $0x170] sm:$0x88]
        %v4203 = vld [vmem:[%s373 + $0x180] sm:$0x88]
        %v4204 = vld [vmem:[%s373 + $0x190] sm:$0x88]
        %v4205 = vld [vmem:[%s373 + $0x1a0] sm:$0x88]
        %v4206 = vld [vmem:[%s373 + $0x1b0] sm:$0x88]
        %v4207 = vld [vmem:[%s373 + $0x1c0] sm:$0x88]
        %v4208 = vld [vmem:[%s373 + $0x1d0] sm:$0x88]
        %v4209 = vld [vmem:[%s373 + $0x1e0] sm:$0x88]
        %v4210 = vld [vmem:[%s373 + $0x1f0] sm:$0x88]
        %v4211 = vunpack.c.l.bf16 %v4179
        %v4212 = vunpack.c.h.bf16 %v4179
        %v4213 = vunpack.c.l.bf16 %v4180
        %v4214 = vunpack.c.h.bf16 %v4180
        %v4215 = vunpack.c.l.bf16 %v4181
        %v4216 = vunpack.c.h.bf16 %v4181
        %v4217 = vunpack.c.l.bf16 %v4182
        %v4218 = vunpack.c.h.bf16 %v4182
        %v4219 = vunpack.c.l.bf16 %v4183
        %v4220 = vunpack.c.h.bf16 %v4183
        %v4221 = vunpack.c.l.bf16 %v4184
        %v4222 = vunpack.c.h.bf16 %v4184
        %v4223 = vunpack.c.l.bf16 %v4185
        %v4224 = vunpack.c.h.bf16 %v4185
        %v4225 = vunpack.c.l.bf16 %v4186
        %v4226 = vunpack.c.h.bf16 %v4186
        %v4227 = vunpack.c.l.bf16 %v4187
        %v4228 = vunpack.c.h.bf16 %v4187
        %v4229 = vunpack.c.l.bf16 %v4188
        %v4230 = vunpack.c.h.bf16 %v4188
        %v4231 = vunpack.c.l.bf16 %v4189
        %v4232 = vunpack.c.h.bf16 %v4189
        %v4233 = vunpack.c.l.bf16 %v4190
        %v4234 = vunpack.c.h.bf16 %v4190
        %v4235 = vunpack.c.l.bf16 %v4191
        %v4236 = vunpack.c.h.bf16 %v4191
        %v4237 = vunpack.c.l.bf16 %v4192
        %v4238 = vunpack.c.h.bf16 %v4192
        %v4239 = vunpack.c.l.bf16 %v4193
        %v4240 = vunpack.c.h.bf16 %v4193
        %v4241 = vunpack.c.l.bf16 %v4194
        %v4242 = vunpack.c.h.bf16 %v4194
        %v4243 = vunpack.c.l.bf16 %v4195
        %v4244 = vunpack.c.h.bf16 %v4195
        %v4245 = vunpack.c.l.bf16 %v4196
        %v4246 = vunpack.c.h.bf16 %v4196
        %v4247 = vunpack.c.l.bf16 %v4197
        %v4248 = vunpack.c.h.bf16 %v4197
        %v4249 = vunpack.c.l.bf16 %v4198
        %v4250 = vunpack.c.h.bf16 %v4198
        %v4251 = vunpack.c.l.bf16 %v4199
        %v4252 = vunpack.c.h.bf16 %v4199
        %v4253 = vunpack.c.l.bf16 %v4200
        %v4254 = vunpack.c.h.bf16 %v4200
        %v4255 = vunpack.c.l.bf16 %v4201
        %v4256 = vunpack.c.h.bf16 %v4201
        %v4257 = vunpack.c.l.bf16 %v4202
        %v4258 = vunpack.c.h.bf16 %v4202
        %v4259 = vunpack.c.l.bf16 %v4203
        %v4260 = vunpack.c.h.bf16 %v4203
        %v4261 = vunpack.c.l.bf16 %v4204
        %v4262 = vunpack.c.h.bf16 %v4204
        %v4263 = vunpack.c.l.bf16 %v4205
        %v4264 = vunpack.c.h.bf16 %v4205
        %v4265 = vunpack.c.l.bf16 %v4206
        %v4266 = vunpack.c.h.bf16 %v4206
        %v4267 = vunpack.c.l.bf16 %v4207
        %v4268 = vunpack.c.h.bf16 %v4207
        %v4269 = vunpack.c.l.bf16 %v4208
        %v4270 = vunpack.c.h.bf16 %v4208
        %v4271 = vunpack.c.l.bf16 %v4209
        %v4272 = vunpack.c.h.bf16 %v4209
        %v4273 = vunpack.c.l.bf16 %v4210
        %v4274 = vunpack.c.h.bf16 %v4210
        %v4276 = vlaneseq
        %v4277 = vshrl.u32 %v4276, 7
        %v4278 = vsub.s32 0, %v4277
        %v4279 = vrot.slane %v4174, %v4278
        %v4280 = vlaneseq
        %v4281 = vshrl.u32 %v4280, 7
        %v4282 = vsub.s32 1, %v4281
        %v4283 = vrot.slane %v4174, %v4282
        %v4286 = vmul.f32 %v537, %v4279
        %v4287 = vmul.f32 %v537, %v4283
        %v4288 = vmul.f32 %v542, %v4279
        %v4289 = vmul.f32 %v542, %v4283
        %v4290 = vmul.f32 %v547, %v4279
        %v4291 = vmul.f32 %v547, %v4283
        %v4292 = vmul.f32 %v552, %v4279
        %v4293 = vmul.f32 %v552, %v4283
        %v4295 = vlaneseq
        %v4296 = vshrl.u32 %v4295, 7
        %v4297 = vsub.s32 0, %v4296
        %v4298 = vrot.slane %v4176, %v4297
        %v4299 = vlaneseq
        %v4300 = vshrl.u32 %v4299, 7
        %v4301 = vsub.s32 1, %v4300
        %v4302 = vrot.slane %v4176, %v4301
        %v4305 = vmul.f32 %v575, %v4298
        %v4306 = vmul.f32 %v575, %v4302
        %v4307 = vmul.f32 %v579, %v4298
        %v4308 = vmul.f32 %v579, %v4302
        %v4309 = vmul.f32 %v583, %v4298
        %v4310 = vmul.f32 %v583, %v4302
        %v4311 = vmul.f32 %v587, %v4298
        %v4312 = vmul.f32 %v587, %v4302
        %v4313 = vadd.f32 %v4286, %v4305
        %v4314 = vadd.f32 %v4287, %v4306
        %v4315 = vadd.f32 %v4288, %v4307
        %v4316 = vadd.f32 %v4289, %v4308
        %v4317 = vadd.f32 %v4290, %v4309
        %v4318 = vadd.f32 %v4291, %v4310
        %v4319 = vadd.f32 %v4292, %v4311
        %v4320 = vadd.f32 %v4293, %v4312
        %v4322 = vlaneseq
        %v4323 = vshrl.u32 %v4322, 7
        %v4324 = vsub.s32 0, %v4323
        %v4325 = vrot.slane %v4178, %v4324
        %v4326 = vlaneseq
        %v4327 = vshrl.u32 %v4326, 7
        %v4328 = vsub.s32 1, %v4327
        %v4329 = vrot.slane %v4178, %v4328
        %v4332 = vmul.f32 %v618, %v4325
        %v4333 = vmul.f32 %v618, %v4329
        %v4334 = vmul.f32 %v622, %v4325
        %v4335 = vmul.f32 %v622, %v4329
        %v4336 = vmul.f32 %v626, %v4325
        %v4337 = vmul.f32 %v626, %v4329
        %v4338 = vmul.f32 %v630, %v4325
        %v4339 = vmul.f32 %v630, %v4329
        %v4340 = vadd.f32 %v4313, %v4332
        %v4341 = vadd.f32 %v4314, %v4333
        %v4342 = vadd.f32 %v4315, %v4334
        %v4343 = vadd.f32 %v4316, %v4335
        %v4344 = vadd.f32 %v4317, %v4336
        %v4345 = vadd.f32 %v4318, %v4337
        %v4346 = vadd.f32 %v4319, %v4338
        %v4347 = vadd.f32 %v4320, %v4339
        %v4348 = vadd.f32 %v4340, %v662
        %v4349 = vadd.f32 %v4341, %v662
        %v4350 = vadd.f32 %v4342, %v667
        %v4351 = vadd.f32 %v4343, %v667
        %v4352 = vadd.f32 %v4344, %v672
        %v4353 = vadd.f32 %v4345, %v672
        %v4354 = vadd.f32 %v4346, %v677
        %v4355 = vadd.f32 %v4347, %v677
        %v4356 = vmax.f32 %v4348, 0.0
        %v4357 = vmax.f32 %v4349, 0.0
        %v4358 = vmax.f32 %v4350, 0.0
        %v4359 = vmax.f32 %v4351, 0.0
        %v4360 = vmax.f32 %v4352, 0.0
        %v4361 = vmax.f32 %v4353, 0.0
        %v4362 = vmax.f32 %v4354, 0.0
        %v4363 = vmax.f32 %v4355, 0.0
        %v4364 = vpack.c.bf16 %v4358, %v4356
        %v4365 = vpack.c.bf16 %v4359, %v4357
        %v4366 = vpack.c.bf16 %v4362, %v4360
        %v4367 = vpack.c.bf16 %v4363, %v4361
        %4368 = vmatprep.subr.bf16.mxu0 %v4365
        %4369 = vmatpush1.bf16.msra.mxu0 %v4364
        %4370 = vmatprep.subr.bf16.mxu0 %v4367
        %4371 = vmatpush1.bf16.msra.mxu0 %v4366
        %4372 = vmatprep.subr.bf16.mxu0 0
        %4373 = vmatpush1.bf16.msra.mxu0 0
        %4374 = vmatprep.subr.bf16.mxu0 0
        %4375 = vmatpush1.bf16.msra.mxu0 0
        %4376 = vmatprep.subr.bf16.mxu0 0
        %4377 = vmatpush1.bf16.msra.mxu0 0
        %4378 = vmatprep.subr.bf16.mxu0 0
        %4379 = vmatpush1.bf16.msra.mxu0 0
        %4380 = vmatprep.subr.bf16.mxu0 0
        %4381 = vmatpush1.bf16.msra.mxu0 0
        %4382 = vmatprep.subr.bf16.mxu0 0
        %4383 = vmatpush1.bf16.msra.mxu0 0
        %4384 = vmatprep.subr.bf16.mxu0 0
        %4385 = vmatpush1.bf16.msra.mxu0 0
        %4386 = vmatprep.subr.bf16.mxu0 0
        %4387 = vmatpush1.bf16.msra.mxu0 0
        %4388 = vmatprep.subr.bf16.mxu0 0
        %4389 = vmatpush1.bf16.msra.mxu0 0
        %4390 = vmatprep.subr.bf16.mxu0 0
        %4391 = vmatpush1.bf16.msra.mxu0 0
        %4392 = vmatprep.subr.bf16.mxu0 0
        %4393 = vmatpush1.bf16.msra.mxu0 0
        %4394 = vmatprep.subr.bf16.mxu0 0
        %4395 = vmatpush1.bf16.msra.mxu0 0
        %4396 = vmatprep.subr.bf16.mxu0 0
        %4397 = vmatpush1.bf16.msra.mxu0 0
        %4398 = vmatprep.subr.bf16.mxu0 0
        %4399 = vmatpush1.bf16.msra.mxu0 0
        %4400 = vmatprep.mubr.bf16.mxu0 0
        %4401 = vmatmul.mubr.bf16.gmra.mrb[0].mxu0 %v731
        %v4402 = vpop.f32.mrb[0].mxu0
        %v4403 = vadd.f32 %v702, %v4402
        %v4404 = vpop.f32.mrb[0].mxu0
        %v4405 = vadd.f32 %v702, %v4404
        %v4406 = vpop.f32.mrb[0].mxu0
        %v4407 = vadd.f32 %v707, %v4406
        %v4408 = vpop.f32.mrb[0].mxu0
        %v4409 = vadd.f32 %v707, %v4408
        %4410 = vmatprep.mubr.bf16.mxu0 0
        %4411 = vmatmul.mubr.bf16.gmra.mrb[0].mxu0 %v734
        %v4412 = vpop.f32.mrb[0].mxu0
        %v4413 = vadd.f32 %v712, %v4412
        %v4414 = vpop.f32.mrb[0].mxu0
        %v4415 = vadd.f32 %v712, %v4414
        %v4416 = vpop.f32.mrb[0].mxu0
        %v4417 = vadd.f32 %v717, %v4416
        %v4418 = vpop.f32.mrb[0].mxu0
        %v4419 = vadd.f32 %v717, %v4418
        %4420 = vdwg.mxu0
        %v4429 = vrot.slane %v4403, 2
        %v4430 = vrot.slane %v4405, 2
        %v4431 = vrot.slane %v4403, 3
        %v4432 = vrot.slane %v4405, 3
        %v4433 = vrot.slane %v4403, 4
        %v4434 = vrot.slane %v4405, 4
        %v4435 = vrot.slane %v4403, 5
        %v4436 = vrot.slane %v4405, 5
        %v4437 = vrot.slane %v4403, 6
        %v4438 = vrot.slane %v4405, 6
        %v4439 = vrot.slane %v4403, 7
        %v4440 = vrot.slane %v4405, 7
        %v4441 = vrot.slane %v4403, 1
        %v4442 = vrot.slane %v4405, 1
        %v4443 = vrot.slane %v4407, 2
        %v4444 = vrot.slane %v4409, 2
        %v4445 = vrot.slane %v4407, 3
        %v4446 = vrot.slane %v4409, 3
        %v4447 = vrot.slane %v4407, 4
        %v4448 = vrot.slane %v4409, 4
        %v4449 = vrot.slane %v4407, 5
        %v4450 = vrot.slane %v4409, 5
        %v4451 = vrot.slane %v4407, 6
        %v4452 = vrot.slane %v4409, 6
        %v4453 = vrot.slane %v4407, 7
        %v4454 = vrot.slane %v4409, 7
        %v4455 = vrot.slane %v4407, 1
        %v4456 = vrot.slane %v4409, 1
        %v4457 = vrot.slane %v4413, 2
        %v4458 = vrot.slane %v4415, 2
        %v4459 = vrot.slane %v4413, 3
        %v4460 = vrot.slane %v4415, 3
        %v4461 = vrot.slane %v4413, 4
        %v4462 = vrot.slane %v4415, 4
        %v4463 = vrot.slane %v4413, 5
        %v4464 = vrot.slane %v4415, 5
        %v4465 = vrot.slane %v4413, 6
        %v4466 = vrot.slane %v4415, 6
        %v4467 = vrot.slane %v4413, 7
        %v4468 = vrot.slane %v4415, 7
        %v4469 = vrot.slane %v4413, 1
        %v4470 = vrot.slane %v4415, 1
        %v4471 = vrot.slane %v4417, 2
        %v4472 = vrot.slane %v4419, 2
        %v4473 = vrot.slane %v4417, 3
        %v4474 = vrot.slane %v4419, 3
        %v4475 = vrot.slane %v4417, 4
        %v4476 = vrot.slane %v4419, 4
        %v4477 = vrot.slane %v4417, 5
        %v4478 = vrot.slane %v4419, 5
        %v4479 = vrot.slane %v4417, 6
        %v4480 = vrot.slane %v4419, 6
        %v4481 = vrot.slane %v4417, 7
        %v4482 = vrot.slane %v4419, 7
        %v4483 = vrot.slane %v4417, 1
        %v4484 = vrot.slane %v4419, 1
        %v4549 = vmul.f32 %v4211, %v4429
        %v4550 = vmul.f32 %v4212, %v4430
        %v4551 = vmul.f32 %v4213, %v4431
        %v4552 = vmul.f32 %v4214, %v4432
        %v4553 = vmul.f32 %v4215, %v4433
        %v4554 = vmul.f32 %v4216, %v4434
        %v4555 = vmul.f32 %v4217, %v4435
        %v4556 = vmul.f32 %v4218, %v4436
        %v4557 = vmul.f32 %v4219, %v4437
        %v4558 = vmul.f32 %v4220, %v4438
        %v4559 = vmul.f32 %v4221, %v4439
        %v4560 = vmul.f32 %v4222, %v4440
        %v4561 = vmul.f32 %v4223, %v4403
        %v4562 = vmul.f32 %v4224, %v4405
        %v4563 = vmul.f32 %v4225, %v4441
        %v4564 = vmul.f32 %v4226, %v4442
        %v4565 = vmul.f32 %v4227, %v4443
        %v4566 = vmul.f32 %v4228, %v4444
        %v4567 = vmul.f32 %v4229, %v4445
        %v4568 = vmul.f32 %v4230, %v4446
        %v4569 = vmul.f32 %v4231, %v4447
        %v4570 = vmul.f32 %v4232, %v4448
        %v4571 = vmul.f32 %v4233, %v4449
        %v4572 = vmul.f32 %v4234, %v4450
        %v4573 = vmul.f32 %v4235, %v4451
        %v4574 = vmul.f32 %v4236, %v4452
        %v4575 = vmul.f32 %v4237, %v4453
        %v4576 = vmul.f32 %v4238, %v4454
        %v4577 = vmul.f32 %v4239, %v4407
        %v4578 = vmul.f32 %v4240, %v4409
        %v4579 = vmul.f32 %v4241, %v4455
        %v4580 = vmul.f32 %v4242, %v4456
        %v4581 = vmul.f32 %v4243, %v4457
        %v4582 = vmul.f32 %v4244, %v4458
        %v4583 = vmul.f32 %v4245, %v4459
        %v4584 = vmul.f32 %v4246, %v4460
        %v4585 = vmul.f32 %v4247, %v4461
        %v4586 = vmul.f32 %v4248, %v4462
        %v4587 = vmul.f32 %v4249, %v4463
        %v4588 = vmul.f32 %v4250, %v4464
        %v4589 = vmul.f32 %v4251, %v4465
        %v4590 = vmul.f32 %v4252, %v4466
        %v4591 = vmul.f32 %v4253, %v4467
        %v4592 = vmul.f32 %v4254, %v4468
        %v4593 = vmul.f32 %v4255, %v4413
        %v4594 = vmul.f32 %v4256, %v4415
        %v4595 = vmul.f32 %v4257, %v4469
        %v4596 = vmul.f32 %v4258, %v4470
        %v4597 = vmul.f32 %v4259, %v4471
        %v4598 = vmul.f32 %v4260, %v4472
        %v4599 = vmul.f32 %v4261, %v4473
        %v4600 = vmul.f32 %v4262, %v4474
        %v4601 = vmul.f32 %v4263, %v4475
        %v4602 = vmul.f32 %v4264, %v4476
        %v4603 = vmul.f32 %v4265, %v4477
        %v4604 = vmul.f32 %v4266, %v4478
        %v4605 = vmul.f32 %v4267, %v4479
        %v4606 = vmul.f32 %v4268, %v4480
        %v4607 = vmul.f32 %v4269, %v4481
        %v4608 = vmul.f32 %v4270, %v4482
        %v4609 = vmul.f32 %v4271, %v4417
        %v4610 = vmul.f32 %v4272, %v4419
        %v4611 = vmul.f32 %v4273, %v4483
        %v4612 = vmul.f32 %v4274, %v4484
        %v4677 = vrot.slane %v4549, 6
        %v4678 = vrot.slane %v4550, 6
        %v4679 = vrot.slane %v4551, 6
        %v4680 = vrot.slane %v4552, 6
        %v4681 = vrot.slane %v4553, 6
        %v4682 = vrot.slane %v4554, 6
        %v4683 = vrot.slane %v4555, 6
        %v4684 = vrot.slane %v4556, 6
        %v4685 = vrot.slane %v4557, 6
        %v4686 = vrot.slane %v4558, 6
        %v4687 = vrot.slane %v4559, 6
        %v4688 = vrot.slane %v4560, 6
        %v4689 = vrot.slane %v4561, 6
        %v4690 = vrot.slane %v4562, 6
        %v4691 = vrot.slane %v4563, 6
        %v4692 = vrot.slane %v4564, 6
        %v4693 = vrot.slane %v4565, 6
        %v4694 = vrot.slane %v4566, 6
        %v4695 = vrot.slane %v4567, 6
        %v4696 = vrot.slane %v4568, 6
        %v4697 = vrot.slane %v4569, 6
        %v4698 = vrot.slane %v4570, 6
        %v4699 = vrot.slane %v4571, 6
        %v4700 = vrot.slane %v4572, 6
        %v4701 = vrot.slane %v4573, 6
        %v4702 = vrot.slane %v4574, 6
        %v4703 = vrot.slane %v4575, 6
        %v4704 = vrot.slane %v4576, 6
        %v4705 = vrot.slane %v4577, 6
        %v4706 = vrot.slane %v4578, 6
        %v4707 = vrot.slane %v4579, 6
        %v4708 = vrot.slane %v4580, 6
        %v4709 = vrot.slane %v4581, 6
        %v4710 = vrot.slane %v4582, 6
        %v4711 = vrot.slane %v4583, 6
        %v4712 = vrot.slane %v4584, 6
        %v4713 = vrot.slane %v4585, 6
        %v4714 = vrot.slane %v4586, 6
        %v4715 = vrot.slane %v4587, 6
        %v4716 = vrot.slane %v4588, 6
        %v4717 = vrot.slane %v4589, 6
        %v4718 = vrot.slane %v4590, 6
        %v4719 = vrot.slane %v4591, 6
        %v4720 = vrot.slane %v4592, 6
        %v4721 = vrot.slane %v4593, 6
        %v4722 = vrot.slane %v4594, 6
        %v4723 = vrot.slane %v4595, 6
        %v4724 = vrot.slane %v4596, 6
        %v4725 = vrot.slane %v4597, 6
        %v4726 = vrot.slane %v4598, 6
        %v4727 = vrot.slane %v4599, 6
        %v4728 = vrot.slane %v4600, 6
        %v4729 = vrot.slane %v4601, 6
        %v4730 = vrot.slane %v4602, 6
        %v4731 = vrot.slane %v4603, 6
        %v4732 = vrot.slane %v4604, 6
        %v4733 = vrot.slane %v4605, 6
        %v4734 = vrot.slane %v4606, 6
        %v4735 = vrot.slane %v4607, 6
        %v4736 = vrot.slane %v4608, 6
        %v4737 = vrot.slane %v4609, 6
        %v4738 = vrot.slane %v4610, 6
        %v4739 = vrot.slane %v4611, 6
        %v4740 = vrot.slane %v4612, 6
        %v4805 = vmax.f32 %v4109, %v4677
        %v4806 = vmax.f32 %v4110, %v4678
        %v4807 = vmax.f32 %v4111, %v4679
        %v4808 = vmax.f32 %v4112, %v4680
        %v4809 = vmax.f32 %v4113, %v4681
        %v4810 = vmax.f32 %v4114, %v4682
        %v4811 = vmax.f32 %v4115, %v4683
        %v4812 = vmax.f32 %v4116, %v4684
        %v4813 = vmax.f32 %v4117, %v4685
        %v4814 = vmax.f32 %v4118, %v4686
        %v4815 = vmax.f32 %v4119, %v4687
        %v4816 = vmax.f32 %v4120, %v4688
        %v4817 = vmax.f32 %v4121, %v4689
        %v4818 = vmax.f32 %v4122, %v4690
        %v4819 = vmax.f32 %v4123, %v4691
        %v4820 = vmax.f32 %v4124, %v4692
        %v4821 = vmax.f32 %v4125, %v4693
        %v4822 = vmax.f32 %v4126, %v4694
        %v4823 = vmax.f32 %v4127, %v4695
        %v4824 = vmax.f32 %v4128, %v4696
        %v4825 = vmax.f32 %v4129, %v4697
        %v4826 = vmax.f32 %v4130, %v4698
        %v4827 = vmax.f32 %v4131, %v4699
        %v4828 = vmax.f32 %v4132, %v4700
        %v4829 = vmax.f32 %v4133, %v4701
        %v4830 = vmax.f32 %v4134, %v4702
        %v4831 = vmax.f32 %v4135, %v4703
        %v4832 = vmax.f32 %v4136, %v4704
        %v4833 = vmax.f32 %v4137, %v4705
        %v4834 = vmax.f32 %v4138, %v4706
        %v4835 = vmax.f32 %v4139, %v4707
        %v4836 = vmax.f32 %v4140, %v4708
        %v4837 = vmax.f32 %v4141, %v4709
        %v4838 = vmax.f32 %v4142, %v4710
        %v4839 = vmax.f32 %v4143, %v4711
        %v4840 = vmax.f32 %v4144, %v4712
        %v4841 = vmax.f32 %v4145, %v4713
        %v4842 = vmax.f32 %v4146, %v4714
        %v4843 = vmax.f32 %v4147, %v4715
        %v4844 = vmax.f32 %v4148, %v4716
        %v4845 = vmax.f32 %v4149, %v4717
        %v4846 = vmax.f32 %v4150, %v4718
        %v4847 = vmax.f32 %v4151, %v4719
        %v4848 = vmax.f32 %v4152, %v4720
        %v4849 = vmax.f32 %v4153, %v4721
        %v4850 = vmax.f32 %v4154, %v4722
        %v4851 = vmax.f32 %v4155, %v4723
        %v4852 = vmax.f32 %v4156, %v4724
        %v4853 = vmax.f32 %v4157, %v4725
        %v4854 = vmax.f32 %v4158, %v4726
        %v4855 = vmax.f32 %v4159, %v4727
        %v4856 = vmax.f32 %v4160, %v4728
        %v4857 = vmax.f32 %v4161, %v4729
        %v4858 = vmax.f32 %v4162, %v4730
        %v4859 = vmax.f32 %v4163, %v4731
        %v4860 = vmax.f32 %v4164, %v4732
        %v4861 = vmax.f32 %v4165, %v4733
        %v4862 = vmax.f32 %v4166, %v4734
        %v4863 = vmax.f32 %v4167, %v4735
        %v4864 = vmax.f32 %v4168, %v4736
        %v4865 = vmax.f32 %v4169, %v4737
        %v4866 = vmax.f32 %v4170, %v4738
        %v4867 = vmax.f32 %v4171, %v4739
        %v4868 = vmax.f32 %v4172, %v4740
        %s4869 = scalar_lea.vmem %s364, 7 [#allocation2]
        %v4870 = vld [vmem:[%s4869] ss:$8 sm:$0x3]
        %s4871 = scalar_lea.vmem %s364, 39 [#allocation2]
        %v4872 = vld [vmem:[%s4871] ss:$8 sm:$0x3]
        %s4873 = scalar_lea.vmem %s364, 71 [#allocation2]
        %v4874 = vld [vmem:[%s4873] ss:$8 sm:$0x3]
        %v4876 = vlaneseq
        %v4877 = vshrl.u32 %v4876, 7
        %v4878 = vsub.s32 0, %v4877
        %v4879 = vrot.slane %v4870, %v4878
        %v4880 = vlaneseq
        %v4881 = vshrl.u32 %v4880, 7
        %v4882 = vsub.s32 1, %v4881
        %v4883 = vrot.slane %v4870, %v4882
        %v4886 = vmul.f32 %v537, %v4879
        %v4887 = vmul.f32 %v537, %v4883
        %v4888 = vmul.f32 %v542, %v4879
        %v4889 = vmul.f32 %v542, %v4883
        %v4890 = vmul.f32 %v547, %v4879
        %v4891 = vmul.f32 %v547, %v4883
        %v4892 = vmul.f32 %v552, %v4879
        %v4893 = vmul.f32 %v552, %v4883
        %v4895 = vlaneseq
        %v4896 = vshrl.u32 %v4895, 7
        %v4897 = vsub.s32 0, %v4896
        %v4898 = vrot.slane %v4872, %v4897
        %v4899 = vlaneseq
        %v4900 = vshrl.u32 %v4899, 7
        %v4901 = vsub.s32 1, %v4900
        %v4902 = vrot.slane %v4872, %v4901
        %v4905 = vmul.f32 %v575, %v4898
        %v4906 = vmul.f32 %v575, %v4902
        %v4907 = vmul.f32 %v579, %v4898
        %v4908 = vmul.f32 %v579, %v4902
        %v4909 = vmul.f32 %v583, %v4898
        %v4910 = vmul.f32 %v583, %v4902
        %v4911 = vmul.f32 %v587, %v4898
        %v4912 = vmul.f32 %v587, %v4902
        %v4913 = vadd.f32 %v4886, %v4905
        %v4914 = vadd.f32 %v4887, %v4906
        %v4915 = vadd.f32 %v4888, %v4907
        %v4916 = vadd.f32 %v4889, %v4908
        %v4917 = vadd.f32 %v4890, %v4909
        %v4918 = vadd.f32 %v4891, %v4910
        %v4919 = vadd.f32 %v4892, %v4911
        %v4920 = vadd.f32 %v4893, %v4912
        %v4922 = vlaneseq
        %v4923 = vshrl.u32 %v4922, 7
        %v4924 = vsub.s32 0, %v4923
        %v4925 = vrot.slane %v4874, %v4924
        %v4926 = vlaneseq
        %v4927 = vshrl.u32 %v4926, 7
        %v4928 = vsub.s32 1, %v4927
        %v4929 = vrot.slane %v4874, %v4928
        %v4932 = vmul.f32 %v618, %v4925
        %v4933 = vmul.f32 %v618, %v4929
        %v4934 = vmul.f32 %v622, %v4925
        %v4935 = vmul.f32 %v622, %v4929
        %v4936 = vmul.f32 %v626, %v4925
        %v4937 = vmul.f32 %v626, %v4929
        %v4938 = vmul.f32 %v630, %v4925
        %v4939 = vmul.f32 %v630, %v4929
        %v4940 = vadd.f32 %v4913, %v4932
        %v4941 = vadd.f32 %v4914, %v4933
        %v4942 = vadd.f32 %v4915, %v4934
        %v4943 = vadd.f32 %v4916, %v4935
        %v4944 = vadd.f32 %v4917, %v4936
        %v4945 = vadd.f32 %v4918, %v4937
        %v4946 = vadd.f32 %v4919, %v4938
        %v4947 = vadd.f32 %v4920, %v4939
        %v4948 = vadd.f32 %v4940, %v662
        %v4949 = vadd.f32 %v4941, %v662
        %v4950 = vadd.f32 %v4942, %v667
        %v4951 = vadd.f32 %v4943, %v667
        %v4952 = vadd.f32 %v4944, %v672
        %v4953 = vadd.f32 %v4945, %v672
        %v4954 = vadd.f32 %v4946, %v677
        %v4955 = vadd.f32 %v4947, %v677
        %v4956 = vmax.f32 %v4948, 0.0
        %v4957 = vmax.f32 %v4949, 0.0
        %v4958 = vmax.f32 %v4950, 0.0
        %v4959 = vmax.f32 %v4951, 0.0
        %v4960 = vmax.f32 %v4952, 0.0
        %v4961 = vmax.f32 %v4953, 0.0
        %v4962 = vmax.f32 %v4954, 0.0
        %v4963 = vmax.f32 %v4955, 0.0
        %v4964 = vpack.c.bf16 %v4958, %v4956
        %v4965 = vpack.c.bf16 %v4959, %v4957
        %v4966 = vpack.c.bf16 %v4962, %v4960
        %v4967 = vpack.c.bf16 %v4963, %v4961
        %4968 = vmatprep.subr.bf16.mxu0 %v4965
        %4969 = vmatpush1.bf16.msra.mxu0 %v4964
        %4970 = vmatprep.subr.bf16.mxu0 %v4967
        %4971 = vmatpush1.bf16.msra.mxu0 %v4966
        %4972 = vmatprep.subr.bf16.mxu0 0
        %4973 = vmatpush1.bf16.msra.mxu0 0
        %4974 = vmatprep.subr.bf16.mxu0 0
        %4975 = vmatpush1.bf16.msra.mxu0 0
        %4976 = vmatprep.subr.bf16.mxu0 0
        %4977 = vmatpush1.bf16.msra.mxu0 0
        %4978 = vmatprep.subr.bf16.mxu0 0
        %4979 = vmatpush1.bf16.msra.mxu0 0
        %4980 = vmatprep.subr.bf16.mxu0 0
        %4981 = vmatpush1.bf16.msra.mxu0 0
        %4982 = vmatprep.subr.bf16.mxu0 0
        %4983 = vmatpush1.bf16.msra.mxu0 0
        %4984 = vmatprep.subr.bf16.mxu0 0
        %4985 = vmatpush1.bf16.msra.mxu0 0
        %4986 = vmatprep.subr.bf16.mxu0 0
        %4987 = vmatpush1.bf16.msra.mxu0 0
        %4988 = vmatprep.subr.bf16.mxu0 0
        %4989 = vmatpush1.bf16.msra.mxu0 0
        %4990 = vmatprep.subr.bf16.mxu0 0
        %4991 = vmatpush1.bf16.msra.mxu0 0
        %4992 = vmatprep.subr.bf16.mxu0 0
        %4993 = vmatpush1.bf16.msra.mxu0 0
        %4994 = vmatprep.subr.bf16.mxu0 0
        %4995 = vmatpush1.bf16.msra.mxu0 0
        %4996 = vmatprep.subr.bf16.mxu0 0
        %4997 = vmatpush1.bf16.msra.mxu0 0
        %4998 = vmatprep.subr.bf16.mxu0 0
        %4999 = vmatpush1.bf16.msra.mxu0 0
        %5000 = vmatprep.mubr.bf16.mxu0 0
        %5001 = vmatmul.mubr.bf16.gmra.mrb[0].mxu0 %v731
        %v5002 = vpop.f32.mrb[0].mxu0
        %v5003 = vadd.f32 %v702, %v5002
        %v5004 = vpop.f32.mrb[0].mxu0
        %v5005 = vadd.f32 %v702, %v5004
        %v5006 = vpop.f32.mrb[0].mxu0
        %v5007 = vadd.f32 %v707, %v5006
        %v5008 = vpop.f32.mrb[0].mxu0
        %v5009 = vadd.f32 %v707, %v5008
        %5010 = vmatprep.mubr.bf16.mxu0 0
        %5011 = vmatmul.mubr.bf16.gmra.mrb[0].mxu0 %v734
        %v5012 = vpop.f32.mrb[0].mxu0
        %v5013 = vadd.f32 %v712, %v5012
        %v5014 = vpop.f32.mrb[0].mxu0
        %v5015 = vadd.f32 %v712, %v5014
        %v5016 = vpop.f32.mrb[0].mxu0
        %v5017 = vadd.f32 %v717, %v5016
        %v5018 = vpop.f32.mrb[0].mxu0
        %v5019 = vadd.f32 %v717, %v5018
        %5020 = vdwg.mxu0
        %v5029 = vrot.slane %v5003, 1
        %v5030 = vrot.slane %v5005, 1
        %v5031 = vrot.slane %v5003, 2
        %v5032 = vrot.slane %v5005, 2
        %v5033 = vrot.slane %v5003, 3
        %v5034 = vrot.slane %v5005, 3
        %v5035 = vrot.slane %v5003, 4
        %v5036 = vrot.slane %v5005, 4
        %v5037 = vrot.slane %v5003, 5
        %v5038 = vrot.slane %v5005, 5
        %v5039 = vrot.slane %v5003, 6
        %v5040 = vrot.slane %v5005, 6
        %v5041 = vrot.slane %v5003, 7
        %v5042 = vrot.slane %v5005, 7
        %v5043 = vrot.slane %v5007, 1
        %v5044 = vrot.slane %v5009, 1
        %v5045 = vrot.slane %v5007, 2
        %v5046 = vrot.slane %v5009, 2
        %v5047 = vrot.slane %v5007, 3
        %v5048 = vrot.slane %v5009, 3
        %v5049 = vrot.slane %v5007, 4
        %v5050 = vrot.slane %v5009, 4
        %v5051 = vrot.slane %v5007, 5
        %v5052 = vrot.slane %v5009, 5
        %v5053 = vrot.slane %v5007, 6
        %v5054 = vrot.slane %v5009, 6
        %v5055 = vrot.slane %v5007, 7
        %v5056 = vrot.slane %v5009, 7
        %v5057 = vrot.slane %v5013, 1
        %v5058 = vrot.slane %v5015, 1
        %v5059 = vrot.slane %v5013, 2
        %v5060 = vrot.slane %v5015, 2
        %v5061 = vrot.slane %v5013, 3
        %v5062 = vrot.slane %v5015, 3
        %v5063 = vrot.slane %v5013, 4
        %v5064 = vrot.slane %v5015, 4
        %v5065 = vrot.slane %v5013, 5
        %v5066 = vrot.slane %v5015, 5
        %v5067 = vrot.slane %v5013, 6
        %v5068 = vrot.slane %v5015, 6
        %v5069 = vrot.slane %v5013, 7
        %v5070 = vrot.slane %v5015, 7
        %v5071 = vrot.slane %v5017, 1
        %v5072 = vrot.slane %v5019, 1
        %v5073 = vrot.slane %v5017, 2
        %v5074 = vrot.slane %v5019, 2
        %v5075 = vrot.slane %v5017, 3
        %v5076 = vrot.slane %v5019, 3
        %v5077 = vrot.slane %v5017, 4
        %v5078 = vrot.slane %v5019, 4
        %v5079 = vrot.slane %v5017, 5
        %v5080 = vrot.slane %v5019, 5
        %v5081 = vrot.slane %v5017, 6
        %v5082 = vrot.slane %v5019, 6
        %v5083 = vrot.slane %v5017, 7
        %v5084 = vrot.slane %v5019, 7
        %v5149 = vmul.f32 %v4211, %v5029
        %v5150 = vmul.f32 %v4212, %v5030
        %v5151 = vmul.f32 %v4213, %v5031
        %v5152 = vmul.f32 %v4214, %v5032
        %v5153 = vmul.f32 %v4215, %v5033
        %v5154 = vmul.f32 %v4216, %v5034
        %v5155 = vmul.f32 %v4217, %v5035
        %v5156 = vmul.f32 %v4218, %v5036
        %v5157 = vmul.f32 %v4219, %v5037
        %v5158 = vmul.f32 %v4220, %v5038
        %v5159 = vmul.f32 %v4221, %v5039
        %v5160 = vmul.f32 %v4222, %v5040
        %v5161 = vmul.f32 %v4223, %v5041
        %v5162 = vmul.f32 %v4224, %v5042
        %v5163 = vmul.f32 %v4225, %v5003
        %v5164 = vmul.f32 %v4226, %v5005
        %v5165 = vmul.f32 %v4227, %v5043
        %v5166 = vmul.f32 %v4228, %v5044
        %v5167 = vmul.f32 %v4229, %v5045
        %v5168 = vmul.f32 %v4230, %v5046
        %v5169 = vmul.f32 %v4231, %v5047
        %v5170 = vmul.f32 %v4232, %v5048
        %v5171 = vmul.f32 %v4233, %v5049
        %v5172 = vmul.f32 %v4234, %v5050
        %v5173 = vmul.f32 %v4235, %v5051
        %v5174 = vmul.f32 %v4236, %v5052
        %v5175 = vmul.f32 %v4237, %v5053
        %v5176 = vmul.f32 %v4238, %v5054
        %v5177 = vmul.f32 %v4239, %v5055
        %v5178 = vmul.f32 %v4240, %v5056
        %v5179 = vmul.f32 %v4241, %v5007
        %v5180 = vmul.f32 %v4242, %v5009
        %v5181 = vmul.f32 %v4243, %v5057
        %v5182 = vmul.f32 %v4244, %v5058
        %v5183 = vmul.f32 %v4245, %v5059
        %v5184 = vmul.f32 %v4246, %v5060
        %v5185 = vmul.f32 %v4247, %v5061
        %v5186 = vmul.f32 %v4248, %v5062
        %v5187 = vmul.f32 %v4249, %v5063
        %v5188 = vmul.f32 %v4250, %v5064
        %v5189 = vmul.f32 %v4251, %v5065
        %v5190 = vmul.f32 %v4252, %v5066
        %v5191 = vmul.f32 %v4253, %v5067
        %v5192 = vmul.f32 %v4254, %v5068
        %v5193 = vmul.f32 %v4255, %v5069
        %v5194 = vmul.f32 %v4256, %v5070
        %v5195 = vmul.f32 %v4257, %v5013
        %v5196 = vmul.f32 %v4258, %v5015
        %v5197 = vmul.f32 %v4259, %v5071
        %v5198 = vmul.f32 %v4260, %v5072
        %v5199 = vmul.f32 %v4261, %v5073
        %v5200 = vmul.f32 %v4262, %v5074
        %v5201 = vmul.f32 %v4263, %v5075
        %v5202 = vmul.f32 %v4264, %v5076
        %v5203 = vmul.f32 %v4265, %v5077
        %v5204 = vmul.f32 %v4266, %v5078
        %v5205 = vmul.f32 %v4267, %v5079
        %v5206 = vmul.f32 %v4268, %v5080
        %v5207 = vmul.f32 %v4269, %v5081
        %v5208 = vmul.f32 %v4270, %v5082
        %v5209 = vmul.f32 %v4271, %v5083
        %v5210 = vmul.f32 %v4272, %v5084
        %v5211 = vmul.f32 %v4273, %v5017
        %v5212 = vmul.f32 %v4274, %v5019
        %v5277 = vrot.slane %v5149, 7
        %v5278 = vrot.slane %v5150, 7
        %v5279 = vrot.slane %v5151, 7
        %v5280 = vrot.slane %v5152, 7
        %v5281 = vrot.slane %v5153, 7
        %v5282 = vrot.slane %v5154, 7
        %v5283 = vrot.slane %v5155, 7
        %v5284 = vrot.slane %v5156, 7
        %v5285 = vrot.slane %v5157, 7
        %v5286 = vrot.slane %v5158, 7
        %v5287 = vrot.slane %v5159, 7
        %v5288 = vrot.slane %v5160, 7
        %v5289 = vrot.slane %v5161, 7
        %v5290 = vrot.slane %v5162, 7
        %v5291 = vrot.slane %v5163, 7
        %v5292 = vrot.slane %v5164, 7
        %v5293 = vrot.slane %v5165, 7
        %v5294 = vrot.slane %v5166, 7
        %v5295 = vrot.slane %v5167, 7
        %v5296 = vrot.slane %v5168, 7
        %v5297 = vrot.slane %v5169, 7
        %v5298 = vrot.slane %v5170, 7
        %v5299 = vrot.slane %v5171, 7
        %v5300 = vrot.slane %v5172, 7
        %v5301 = vrot.slane %v5173, 7
        %v5302 = vrot.slane %v5174, 7
        %v5303 = vrot.slane %v5175, 7
        %v5304 = vrot.slane %v5176, 7
        %v5305 = vrot.slane %v5177, 7
        %v5306 = vrot.slane %v5178, 7
        %v5307 = vrot.slane %v5179, 7
        %v5308 = vrot.slane %v5180, 7
        %v5309 = vrot.slane %v5181, 7
        %v5310 = vrot.slane %v5182, 7
        %v5311 = vrot.slane %v5183, 7
        %v5312 = vrot.slane %v5184, 7
        %v5313 = vrot.slane %v5185, 7
        %v5314 = vrot.slane %v5186, 7
        %v5315 = vrot.slane %v5187, 7
        %v5316 = vrot.slane %v5188, 7
        %v5317 = vrot.slane %v5189, 7
        %v5318 = vrot.slane %v5190, 7
        %v5319 = vrot.slane %v5191, 7
        %v5320 = vrot.slane %v5192, 7
        %v5321 = vrot.slane %v5193, 7
        %v5322 = vrot.slane %v5194, 7
        %v5323 = vrot.slane %v5195, 7
        %v5324 = vrot.slane %v5196, 7
        %v5325 = vrot.slane %v5197, 7
        %v5326 = vrot.slane %v5198, 7
        %v5327 = vrot.slane %v5199, 7
        %v5328 = vrot.slane %v5200, 7
        %v5329 = vrot.slane %v5201, 7
        %v5330 = vrot.slane %v5202, 7
        %v5331 = vrot.slane %v5203, 7
        %v5332 = vrot.slane %v5204, 7
        %v5333 = vrot.slane %v5205, 7
        %v5334 = vrot.slane %v5206, 7
        %v5335 = vrot.slane %v5207, 7
        %v5336 = vrot.slane %v5208, 7
        %v5337 = vrot.slane %v5209, 7
        %v5338 = vrot.slane %v5210, 7
        %v5339 = vrot.slane %v5211, 7
        %v5340 = vrot.slane %v5212, 7
        %v5405 = vmax.f32 %v4805, %v5277
        %v5406 = vmax.f32 %v4806, %v5278
        %v5407 = vmax.f32 %v4807, %v5279
        %v5408 = vmax.f32 %v4808, %v5280
        %v5409 = vmax.f32 %v4809, %v5281
        %v5410 = vmax.f32 %v4810, %v5282
        %v5411 = vmax.f32 %v4811, %v5283
        %v5412 = vmax.f32 %v4812, %v5284
        %v5413 = vmax.f32 %v4813, %v5285
        %v5414 = vmax.f32 %v4814, %v5286
        %v5415 = vmax.f32 %v4815, %v5287
        %v5416 = vmax.f32 %v4816, %v5288
        %v5417 = vmax.f32 %v4817, %v5289
        %v5418 = vmax.f32 %v4818, %v5290
        %v5419 = vmax.f32 %v4819, %v5291
        %v5420 = vmax.f32 %v4820, %v5292
        %v5421 = vmax.f32 %v4821, %v5293
        %v5422 = vmax.f32 %v4822, %v5294
        %v5423 = vmax.f32 %v4823, %v5295
        %v5424 = vmax.f32 %v4824, %v5296
        %v5425 = vmax.f32 %v4825, %v5297
        %v5426 = vmax.f32 %v4826, %v5298
        %v5427 = vmax.f32 %v4827, %v5299
        %v5428 = vmax.f32 %v4828, %v5300
        %v5429 = vmax.f32 %v4829, %v5301
        %v5430 = vmax.f32 %v4830, %v5302
        %v5431 = vmax.f32 %v4831, %v5303
        %v5432 = vmax.f32 %v4832, %v5304
        %v5433 = vmax.f32 %v4833, %v5305
        %v5434 = vmax.f32 %v4834, %v5306
        %v5435 = vmax.f32 %v4835, %v5307
        %v5436 = vmax.f32 %v4836, %v5308
        %v5437 = vmax.f32 %v4837, %v5309
        %v5438 = vmax.f32 %v4838, %v5310
        %v5439 = vmax.f32 %v4839, %v5311
        %v5440 = vmax.f32 %v4840, %v5312
        %v5441 = vmax.f32 %v4841, %v5313
        %v5442 = vmax.f32 %v4842, %v5314
        %v5443 = vmax.f32 %v4843, %v5315
        %v5444 = vmax.f32 %v4844, %v5316
        %v5445 = vmax.f32 %v4845, %v5317
        %v5446 = vmax.f32 %v4846, %v5318
        %v5447 = vmax.f32 %v4847, %v5319
        %v5448 = vmax.f32 %v4848, %v5320
        %v5449 = vmax.f32 %v4849, %v5321
        %v5450 = vmax.f32 %v4850, %v5322
        %v5451 = vmax.f32 %v4851, %v5323
        %v5452 = vmax.f32 %v4852, %v5324
        %v5453 = vmax.f32 %v4853, %v5325
        %v5454 = vmax.f32 %v4854, %v5326
        %v5455 = vmax.f32 %v4855, %v5327
        %v5456 = vmax.f32 %v4856, %v5328
        %v5457 = vmax.f32 %v4857, %v5329
        %v5458 = vmax.f32 %v4858, %v5330
        %v5459 = vmax.f32 %v4859, %v5331
        %v5460 = vmax.f32 %v4860, %v5332
        %v5461 = vmax.f32 %v4861, %v5333
        %v5462 = vmax.f32 %v4862, %v5334
        %v5463 = vmax.f32 %v4863, %v5335
        %v5464 = vmax.f32 %v4864, %v5336
        %v5465 = vmax.f32 %v4865, %v5337
        %v5466 = vmax.f32 %v4866, %v5338
        %v5467 = vmax.f32 %v4867, %v5339
        %v5468 = vmax.f32 %v4868, %v5340
        %s5469 = scalar_lea.vmem %s364, 16 [#allocation2]
        %v5470 = vld [vmem:[%s5469] ss:$8 sm:$0x3]
        %s5471 = scalar_lea.vmem %s364, 48 [#allocation2]
        %v5472 = vld [vmem:[%s5471] ss:$8 sm:$0x3]
        %s5473 = scalar_lea.vmem %s364, 80 [#allocation2]
        %v5474 = vld [vmem:[%s5473] ss:$8 sm:$0x3]
        %v5475 = vld [vmem:[%s373 + $0x8] sm:$0x11]
        %v5476 = vld [vmem:[%s373 + $0x18] sm:$0x11]
        %v5477 = vld [vmem:[%s373 + $0x28] sm:$0x11]
        %v5478 = vld [vmem:[%s373 + $0x38] sm:$0x11]
        %v5479 = vld [vmem:[%s373 + $0x48] sm:$0x11]
        %v5480 = vld [vmem:[%s373 + $0x58] sm:$0x11]
        %v5481 = vld [vmem:[%s373 + $0x68] sm:$0x11]
        %v5482 = vld [vmem:[%s373 + $0x78] sm:$0x11]
        %v5483 = vld [vmem:[%s373 + $0x88] sm:$0x11]
        %v5484 = vld [vmem:[%s373 + $0x98] sm:$0x11]
        %v5485 = vld [vmem:[%s373 + $0xa8] sm:$0x11]
        %v5486 = vld [vmem:[%s373 + $0xb8] sm:$0x11]
        %v5487 = vld [vmem:[%s373 + $0xc8] sm:$0x11]
        %v5488 = vld [vmem:[%s373 + $0xd8] sm:$0x11]
        %v5489 = vld [vmem:[%s373 + $0xe8] sm:$0x11]
        %v5490 = vld [vmem:[%s373 + $0xf8] sm:$0x11]
        %v5491 = vld [vmem:[%s373 + $0x108] sm:$0x11]
        %v5492 = vld [vmem:[%s373 + $0x118] sm:$0x11]
        %v5493 = vld [vmem:[%s373 + $0x128] sm:$0x11]
        %v5494 = vld [vmem:[%s373 + $0x138] sm:$0x11]
        %v5495 = vld [vmem:[%s373 + $0x148] sm:$0x11]
        %v5496 = vld [vmem:[%s373 + $0x158] sm:$0x11]
        %v5497 = vld [vmem:[%s373 + $0x168] sm:$0x11]
        %v5498 = vld [vmem:[%s373 + $0x178] sm:$0x11]
        %v5499 = vld [vmem:[%s373 + $0x188] sm:$0x11]
        %v5500 = vld [vmem:[%s373 + $0x198] sm:$0x11]
        %v5501 = vld [vmem:[%s373 + $0x1a8] sm:$0x11]
        %v5502 = vld [vmem:[%s373 + $0x1b8] sm:$0x11]
        %v5503 = vld [vmem:[%s373 + $0x1c8] sm:$0x11]
        %v5504 = vld [vmem:[%s373 + $0x1d8] sm:$0x11]
        %v5505 = vld [vmem:[%s373 + $0x1e8] sm:$0x11]
        %v5506 = vld [vmem:[%s373 + $0x1f8] sm:$0x11]
        %v5507 = vunpack.c.l.bf16 %v5475
        %v5508 = vunpack.c.h.bf16 %v5475
        %v5509 = vunpack.c.l.bf16 %v5476
        %v5510 = vunpack.c.h.bf16 %v5476
        %v5511 = vunpack.c.l.bf16 %v5477
        %v5512 = vunpack.c.h.bf16 %v5477
        %v5513 = vunpack.c.l.bf16 %v5478
        %v5514 = vunpack.c.h.bf16 %v5478
        %v5515 = vunpack.c.l.bf16 %v5479
        %v5516 = vunpack.c.h.bf16 %v5479
        %v5517 = vunpack.c.l.bf16 %v5480
        %v5518 = vunpack.c.h.bf16 %v5480
        %v5519 = vunpack.c.l.bf16 %v5481
        %v5520 = vunpack.c.h.bf16 %v5481
        %v5521 = vunpack.c.l.bf16 %v5482
        %v5522 = vunpack.c.h.bf16 %v5482
        %v5523 = vunpack.c.l.bf16 %v5483
        %v5524 = vunpack.c.h.bf16 %v5483
        %v5525 = vunpack.c.l.bf16 %v5484
        %v5526 = vunpack.c.h.bf16 %v5484
        %v5527 = vunpack.c.l.bf16 %v5485
        %v5528 = vunpack.c.h.bf16 %v5485
        %v5529 = vunpack.c.l.bf16 %v5486
        %v5530 = vunpack.c.h.bf16 %v5486
        %v5531 = vunpack.c.l.bf16 %v5487
        %v5532 = vunpack.c.h.bf16 %v5487
        %v5533 = vunpack.c.l.bf16 %v5488
        %v5534 = vunpack.c.h.bf16 %v5488
        %v5535 = vunpack.c.l.bf16 %v5489
        %v5536 = vunpack.c.h.bf16 %v5489
        %v5537 = vunpack.c.l.bf16 %v5490
        %v5538 = vunpack.c.h.bf16 %v5490
        %v5539 = vunpack.c.l.bf16 %v5491
        %v5540 = vunpack.c.h.bf16 %v5491
        %v5541 = vunpack.c.l.bf16 %v5492
        %v5542 = vunpack.c.h.bf16 %v5492
        %v5543 = vunpack.c.l.bf16 %v5493
        %v5544 = vunpack.c.h.bf16 %v5493
        %v5545 = vunpack.c.l.bf16 %v5494
        %v5546 = vunpack.c.h.bf16 %v5494
        %v5547 = vunpack.c.l.bf16 %v5495
        %v5548 = vunpack.c.h.bf16 %v5495
        %v5549 = vunpack.c.l.bf16 %v5496
        %v5550 = vunpack.c.h.bf16 %v5496
        %v5551 = vunpack.c.l.bf16 %v5497
        %v5552 = vunpack.c.h.bf16 %v5497
        %v5553 = vunpack.c.l.bf16 %v5498
        %v5554 = vunpack.c.h.bf16 %v5498
        %v5555 = vunpack.c.l.bf16 %v5499
        %v5556 = vunpack.c.h.bf16 %v5499
        %v5557 = vunpack.c.l.bf16 %v5500
        %v5558 = vunpack.c.h.bf16 %v5500
        %v5559 = vunpack.c.l.bf16 %v5501
        %v5560 = vunpack.c.h.bf16 %v5501
        %v5561 = vunpack.c.l.bf16 %v5502
        %v5562 = vunpack.c.h.bf16 %v5502
        %v5563 = vunpack.c.l.bf16 %v5503
        %v5564 = vunpack.c.h.bf16 %v5503
        %v5565 = vunpack.c.l.bf16 %v5504
        %v5566 = vunpack.c.h.bf16 %v5504
        %v5567 = vunpack.c.l.bf16 %v5505
        %v5568 = vunpack.c.h.bf16 %v5505
        %v5569 = vunpack.c.l.bf16 %v5506
        %v5570 = vunpack.c.h.bf16 %v5506
        %v5572 = vlaneseq
        %v5573 = vshrl.u32 %v5572, 7
        %v5574 = vsub.s32 0, %v5573
        %v5575 = vrot.slane %v5470, %v5574
        %v5576 = vlaneseq
        %v5577 = vshrl.u32 %v5576, 7
        %v5578 = vsub.s32 1, %v5577
        %v5579 = vrot.slane %v5470, %v5578
        %v5582 = vmul.f32 %v537, %v5575
        %v5583 = vmul.f32 %v537, %v5579
        %v5584 = vmul.f32 %v542, %v5575
        %v5585 = vmul.f32 %v542, %v5579
        %v5586 = vmul.f32 %v547, %v5575
        %v5587 = vmul.f32 %v547, %v5579
        %v5588 = vmul.f32 %v552, %v5575
        %v5589 = vmul.f32 %v552, %v5579
        %v5591 = vlaneseq
        %v5592 = vshrl.u32 %v5591, 7
        %v5593 = vsub.s32 0, %v5592
        %v5594 = vrot.slane %v5472, %v5593
        %v5595 = vlaneseq
        %v5596 = vshrl.u32 %v5595, 7
        %v5597 = vsub.s32 1, %v5596
        %v5598 = vrot.slane %v5472, %v5597
        %v5601 = vmul.f32 %v575, %v5594
        %v5602 = vmul.f32 %v575, %v5598
        %v5603 = vmul.f32 %v579, %v5594
        %v5604 = vmul.f32 %v579, %v5598
        %v5605 = vmul.f32 %v583, %v5594
        %v5606 = vmul.f32 %v583, %v5598
        %v5607 = vmul.f32 %v587, %v5594
        %v5608 = vmul.f32 %v587, %v5598
        %v5609 = vadd.f32 %v5582, %v5601
        %v5610 = vadd.f32 %v5583, %v5602
        %v5611 = vadd.f32 %v5584, %v5603
        %v5612 = vadd.f32 %v5585, %v5604
        %v5613 = vadd.f32 %v5586, %v5605
        %v5614 = vadd.f32 %v5587, %v5606
        %v5615 = vadd.f32 %v5588, %v5607
        %v5616 = vadd.f32 %v5589, %v5608
        %v5618 = vlaneseq
        %v5619 = vshrl.u32 %v5618, 7
        %v5620 = vsub.s32 0, %v5619
        %v5621 = vrot.slane %v5474, %v5620
        %v5622 = vlaneseq
        %v5623 = vshrl.u32 %v5622, 7
        %v5624 = vsub.s32 1, %v5623
        %v5625 = vrot.slane %v5474, %v5624
        %v5628 = vmul.f32 %v618, %v5621
        %v5629 = vmul.f32 %v618, %v5625
        %v5630 = vmul.f32 %v622, %v5621
        %v5631 = vmul.f32 %v622, %v5625
        %v5632 = vmul.f32 %v626, %v5621
        %v5633 = vmul.f32 %v626, %v5625
        %v5634 = vmul.f32 %v630, %v5621
        %v5635 = vmul.f32 %v630, %v5625
        %v5636 = vadd.f32 %v5609, %v5628
        %v5637 = vadd.f32 %v5610, %v5629
        %v5638 = vadd.f32 %v5611, %v5630
        %v5639 = vadd.f32 %v5612, %v5631
        %v5640 = vadd.f32 %v5613, %v5632
        %v5641 = vadd.f32 %v5614, %v5633
        %v5642 = vadd.f32 %v5615, %v5634
        %v5643 = vadd.f32 %v5616, %v5635
        %v5644 = vadd.f32 %v5636, %v662
        %v5645 = vadd.f32 %v5637, %v662
        %v5646 = vadd.f32 %v5638, %v667
        %v5647 = vadd.f32 %v5639, %v667
        %v5648 = vadd.f32 %v5640, %v672
        %v5649 = vadd.f32 %v5641, %v672
        %v5650 = vadd.f32 %v5642, %v677
        %v5651 = vadd.f32 %v5643, %v677
        %v5652 = vmax.f32 %v5644, 0.0
        %v5653 = vmax.f32 %v5645, 0.0
        %v5654 = vmax.f32 %v5646, 0.0
        %v5655 = vmax.f32 %v5647, 0.0
        %v5656 = vmax.f32 %v5648, 0.0
        %v5657 = vmax.f32 %v5649, 0.0
        %v5658 = vmax.f32 %v5650, 0.0
        %v5659 = vmax.f32 %v5651, 0.0
        %v5660 = vpack.c.bf16 %v5654, %v5652
        %v5661 = vpack.c.bf16 %v5655, %v5653
        %v5662 = vpack.c.bf16 %v5658, %v5656
        %v5663 = vpack.c.bf16 %v5659, %v5657
        %5664 = vmatprep.subr.bf16.mxu0 %v5661
        %5665 = vmatpush1.bf16.msra.mxu0 %v5660
        %5666 = vmatprep.subr.bf16.mxu0 %v5663
        %5667 = vmatpush1.bf16.msra.mxu0 %v5662
        %5668 = vmatprep.subr.bf16.mxu0 0
        %5669 = vmatpush1.bf16.msra.mxu0 0
        %5670 = vmatprep.subr.bf16.mxu0 0
        %5671 = vmatpush1.bf16.msra.mxu0 0
        %5672 = vmatprep.subr.bf16.mxu0 0
        %5673 = vmatpush1.bf16.msra.mxu0 0
        %5674 = vmatprep.subr.bf16.mxu0 0
        %5675 = vmatpush1.bf16.msra.mxu0 0
        %5676 = vmatprep.subr.bf16.mxu0 0
        %5677 = vmatpush1.bf16.msra.mxu0 0
        %5678 = vmatprep.subr.bf16.mxu0 0
        %5679 = vmatpush1.bf16.msra.mxu0 0
        %5680 = vmatprep.subr.bf16.mxu0 0
        %5681 = vmatpush1.bf16.msra.mxu0 0
        %5682 = vmatprep.subr.bf16.mxu0 0
        %5683 = vmatpush1.bf16.msra.mxu0 0
        %5684 = vmatprep.subr.bf16.mxu0 0
        %5685 = vmatpush1.bf16.msra.mxu0 0
        %5686 = vmatprep.subr.bf16.mxu0 0
        %5687 = vmatpush1.bf16.msra.mxu0 0
        %5688 = vmatprep.subr.bf16.mxu0 0
        %5689 = vmatpush1.bf16.msra.mxu0 0
        %5690 = vmatprep.subr.bf16.mxu0 0
        %5691 = vmatpush1.bf16.msra.mxu0 0
        %5692 = vmatprep.subr.bf16.mxu0 0
        %5693 = vmatpush1.bf16.msra.mxu0 0
        %5694 = vmatprep.subr.bf16.mxu0 0
        %5695 = vmatpush1.bf16.msra.mxu0 0
        %5696 = vmatprep.mubr.bf16.mxu0 0
        %5697 = vmatmul.mubr.bf16.gmra.mrb[0].mxu0 %v731
        %v5698 = vpop.f32.mrb[0].mxu0
        %v5699 = vadd.f32 %v702, %v5698
        %v5700 = vpop.f32.mrb[0].mxu0
        %v5701 = vadd.f32 %v702, %v5700
        %v5702 = vpop.f32.mrb[0].mxu0
        %v5703 = vadd.f32 %v707, %v5702
        %v5704 = vpop.f32.mrb[0].mxu0
        %v5705 = vadd.f32 %v707, %v5704
        %5706 = vmatprep.mubr.bf16.mxu0 0
        %5707 = vmatmul.mubr.bf16.gmra.mrb[0].mxu0 %v734
        %v5708 = vpop.f32.mrb[0].mxu0
        %v5709 = vadd.f32 %v712, %v5708
        %v5710 = vpop.f32.mrb[0].mxu0
        %v5711 = vadd.f32 %v712, %v5710
        %v5712 = vpop.f32.mrb[0].mxu0
        %v5713 = vadd.f32 %v717, %v5712
        %v5714 = vpop.f32.mrb[0].mxu0
        %v5715 = vadd.f32 %v717, %v5714
        %5716 = vdwg.mxu0
        %v5725 = vrot.slane %v5699, 1
        %v5726 = vrot.slane %v5701, 1
        %v5727 = vrot.slane %v5699, 2
        %v5728 = vrot.slane %v5701, 2
        %v5729 = vrot.slane %v5699, 3
        %v5730 = vrot.slane %v5701, 3
        %v5731 = vrot.slane %v5699, 4
        %v5732 = vrot.slane %v5701, 4
        %v5733 = vrot.slane %v5699, 5
        %v5734 = vrot.slane %v5701, 5
        %v5735 = vrot.slane %v5699, 6
        %v5736 = vrot.slane %v5701, 6
        %v5737 = vrot.slane %v5699, 7
        %v5738 = vrot.slane %v5701, 7
        %v5739 = vrot.slane %v5703, 1
        %v5740 = vrot.slane %v5705, 1
        %v5741 = vrot.slane %v5703, 2
        %v5742 = vrot.slane %v5705, 2
        %v5743 = vrot.slane %v5703, 3
        %v5744 = vrot.slane %v5705, 3
        %v5745 = vrot.slane %v5703, 4
        %v5746 = vrot.slane %v5705, 4
        %v5747 = vrot.slane %v5703, 5
        %v5748 = vrot.slane %v5705, 5
        %v5749 = vrot.slane %v5703, 6
        %v5750 = vrot.slane %v5705, 6
        %v5751 = vrot.slane %v5703, 7
        %v5752 = vrot.slane %v5705, 7
        %v5753 = vrot.slane %v5709, 1
        %v5754 = vrot.slane %v5711, 1
        %v5755 = vrot.slane %v5709, 2
        %v5756 = vrot.slane %v5711, 2
        %v5757 = vrot.slane %v5709, 3
        %v5758 = vrot.slane %v5711, 3
        %v5759 = vrot.slane %v5709, 4
        %v5760 = vrot.slane %v5711, 4
        %v5761 = vrot.slane %v5709, 5
        %v5762 = vrot.slane %v5711, 5
        %v5763 = vrot.slane %v5709, 6
        %v5764 = vrot.slane %v5711, 6
        %v5765 = vrot.slane %v5709, 7
        %v5766 = vrot.slane %v5711, 7
        %v5767 = vrot.slane %v5713, 1
        %v5768 = vrot.slane %v5715, 1
        %v5769 = vrot.slane %v5713, 2
        %v5770 = vrot.slane %v5715, 2
        %v5771 = vrot.slane %v5713, 3
        %v5772 = vrot.slane %v5715, 3
        %v5773 = vrot.slane %v5713, 4
        %v5774 = vrot.slane %v5715, 4
        %v5775 = vrot.slane %v5713, 5
        %v5776 = vrot.slane %v5715, 5
        %v5777 = vrot.slane %v5713, 6
        %v5778 = vrot.slane %v5715, 6
        %v5779 = vrot.slane %v5713, 7
        %v5780 = vrot.slane %v5715, 7
        %v5845 = vmul.f32 %v5507, %v5699
        %v5846 = vmul.f32 %v5508, %v5701
        %v5847 = vmul.f32 %v5509, %v5725
        %v5848 = vmul.f32 %v5510, %v5726
        %v5849 = vmul.f32 %v5511, %v5727
        %v5850 = vmul.f32 %v5512, %v5728
        %v5851 = vmul.f32 %v5513, %v5729
        %v5852 = vmul.f32 %v5514, %v5730
        %v5853 = vmul.f32 %v5515, %v5731
        %v5854 = vmul.f32 %v5516, %v5732
        %v5855 = vmul.f32 %v5517, %v5733
        %v5856 = vmul.f32 %v5518, %v5734
        %v5857 = vmul.f32 %v5519, %v5735
        %v5858 = vmul.f32 %v5520, %v5736
        %v5859 = vmul.f32 %v5521, %v5737
        %v5860 = vmul.f32 %v5522, %v5738
        %v5861 = vmul.f32 %v5523, %v5703
        %v5862 = vmul.f32 %v5524, %v5705
        %v5863 = vmul.f32 %v5525, %v5739
        %v5864 = vmul.f32 %v5526, %v5740
        %v5865 = vmul.f32 %v5527, %v5741
        %v5866 = vmul.f32 %v5528, %v5742
        %v5867 = vmul.f32 %v5529, %v5743
        %v5868 = vmul.f32 %v5530, %v5744
        %v5869 = vmul.f32 %v5531, %v5745
        %v5870 = vmul.f32 %v5532, %v5746
        %v5871 = vmul.f32 %v5533, %v5747
        %v5872 = vmul.f32 %v5534, %v5748
        %v5873 = vmul.f32 %v5535, %v5749
        %v5874 = vmul.f32 %v5536, %v5750
        %v5875 = vmul.f32 %v5537, %v5751
        %v5876 = vmul.f32 %v5538, %v5752
        %v5877 = vmul.f32 %v5539, %v5709
        %v5878 = vmul.f32 %v5540, %v5711
        %v5879 = vmul.f32 %v5541, %v5753
        %v5880 = vmul.f32 %v5542, %v5754
        %v5881 = vmul.f32 %v5543, %v5755
        %v5882 = vmul.f32 %v5544, %v5756
        %v5883 = vmul.f32 %v5545, %v5757
        %v5884 = vmul.f32 %v5546, %v5758
        %v5885 = vmul.f32 %v5547, %v5759
        %v5886 = vmul.f32 %v5548, %v5760
        %v5887 = vmul.f32 %v5549, %v5761
        %v5888 = vmul.f32 %v5550, %v5762
        %v5889 = vmul.f32 %v5551, %v5763
        %v5890 = vmul.f32 %v5552, %v5764
        %v5891 = vmul.f32 %v5553, %v5765
        %v5892 = vmul.f32 %v5554, %v5766
        %v5893 = vmul.f32 %v5555, %v5713
        %v5894 = vmul.f32 %v5556, %v5715
        %v5895 = vmul.f32 %v5557, %v5767
        %v5896 = vmul.f32 %v5558, %v5768
        %v5897 = vmul.f32 %v5559, %v5769
        %v5898 = vmul.f32 %v5560, %v5770
        %v5899 = vmul.f32 %v5561, %v5771
        %v5900 = vmul.f32 %v5562, %v5772
        %v5901 = vmul.f32 %v5563, %v5773
        %v5902 = vmul.f32 %v5564, %v5774
        %v5903 = vmul.f32 %v5565, %v5775
        %v5904 = vmul.f32 %v5566, %v5776
        %v5905 = vmul.f32 %v5567, %v5777
        %v5906 = vmul.f32 %v5568, %v5778
        %v5907 = vmul.f32 %v5569, %v5779
        %v5908 = vmul.f32 %v5570, %v5780
        %v5909 = vmax.f32 %v5405, %v5845
        %v5910 = vmax.f32 %v5406, %v5846
        %v5911 = vmax.f32 %v5407, %v5847
        %v5912 = vmax.f32 %v5408, %v5848
        %v5913 = vmax.f32 %v5409, %v5849
        %v5914 = vmax.f32 %v5410, %v5850
        %v5915 = vmax.f32 %v5411, %v5851
        %v5916 = vmax.f32 %v5412, %v5852
        %v5917 = vmax.f32 %v5413, %v5853
        %v5918 = vmax.f32 %v5414, %v5854
        %v5919 = vmax.f32 %v5415, %v5855
        %v5920 = vmax.f32 %v5416, %v5856
        %v5921 = vmax.f32 %v5417, %v5857
        %v5922 = vmax.f32 %v5418, %v5858
        %v5923 = vmax.f32 %v5419, %v5859
        %v5924 = vmax.f32 %v5420, %v5860
        %v5925 = vmax.f32 %v5421, %v5861
        %v5926 = vmax.f32 %v5422, %v5862
        %v5927 = vmax.f32 %v5423, %v5863
        %v5928 = vmax.f32 %v5424, %v5864
        %v5929 = vmax.f32 %v5425, %v5865
        %v5930 = vmax.f32 %v5426, %v5866
        %v5931 = vmax.f32 %v5427, %v5867
        %v5932 = vmax.f32 %v5428, %v5868
        %v5933 = vmax.f32 %v5429, %v5869
        %v5934 = vmax.f32 %v5430, %v5870
        %v5935 = vmax.f32 %v5431, %v5871
        %v5936 = vmax.f32 %v5432, %v5872
        %v5937 = vmax.f32 %v5433, %v5873
        %v5938 = vmax.f32 %v5434, %v5874
        %v5939 = vmax.f32 %v5435, %v5875
        %v5940 = vmax.f32 %v5436, %v5876
        %v5941 = vmax.f32 %v5437, %v5877
        %v5942 = vmax.f32 %v5438, %v5878
        %v5943 = vmax.f32 %v5439, %v5879
        %v5944 = vmax.f32 %v5440, %v5880
        %v5945 = vmax.f32 %v5441, %v5881
        %v5946 = vmax.f32 %v5442, %v5882
        %v5947 = vmax.f32 %v5443, %v5883
        %v5948 = vmax.f32 %v5444, %v5884
        %v5949 = vmax.f32 %v5445, %v5885
        %v5950 = vmax.f32 %v5446, %v5886
        %v5951 = vmax.f32 %v5447, %v5887
        %v5952 = vmax.f32 %v5448, %v5888
        %v5953 = vmax.f32 %v5449, %v5889
        %v5954 = vmax.f32 %v5450, %v5890
        %v5955 = vmax.f32 %v5451, %v5891
        %v5956 = vmax.f32 %v5452, %v5892
        %v5957 = vmax.f32 %v5453, %v5893
        %v5958 = vmax.f32 %v5454, %v5894
        %v5959 = vmax.f32 %v5455, %v5895
        %v5960 = vmax.f32 %v5456, %v5896
        %v5961 = vmax.f32 %v5457, %v5897
        %v5962 = vmax.f32 %v5458, %v5898
        %v5963 = vmax.f32 %v5459, %v5899
        %v5964 = vmax.f32 %v5460, %v5900
        %v5965 = vmax.f32 %v5461, %v5901
        %v5966 = vmax.f32 %v5462, %v5902
        %v5967 = vmax.f32 %v5463, %v5903
        %v5968 = vmax.f32 %v5464, %v5904
        %v5969 = vmax.f32 %v5465, %v5905
        %v5970 = vmax.f32 %v5466, %v5906
        %v5971 = vmax.f32 %v5467, %v5907
        %v5972 = vmax.f32 %v5468, %v5908
        %s5973 = scalar_lea.vmem %s364, 17 [#allocation2]
        %v5974 = vld [vmem:[%s5973] ss:$8 sm:$0x3]
        %s5975 = scalar_lea.vmem %s364, 49 [#allocation2]
        %v5976 = vld [vmem:[%s5975] ss:$8 sm:$0x3]
        %s5977 = scalar_lea.vmem %s364, 81 [#allocation2]
        %v5978 = vld [vmem:[%s5977] ss:$8 sm:$0x3]
        %v5980 = vlaneseq
        %v5981 = vshrl.u32 %v5980, 7
        %v5982 = vsub.s32 0, %v5981
        %v5983 = vrot.slane %v5974, %v5982
        %v5984 = vlaneseq
        %v5985 = vshrl.u32 %v5984, 7
        %v5986 = vsub.s32 1, %v5985
        %v5987 = vrot.slane %v5974, %v5986
        %v5990 = vmul.f32 %v537, %v5983
        %v5991 = vmul.f32 %v537, %v5987
        %v5992 = vmul.f32 %v542, %v5983
        %v5993 = vmul.f32 %v542, %v5987
        %v5994 = vmul.f32 %v547, %v5983
        %v5995 = vmul.f32 %v547, %v5987
        %v5996 = vmul.f32 %v552, %v5983
        %v5997 = vmul.f32 %v552, %v5987
        %v5999 = vlaneseq
        %v6000 = vshrl.u32 %v5999, 7
        %v6001 = vsub.s32 0, %v6000
        %v6002 = vrot.slane %v5976, %v6001
        %v6003 = vlaneseq
        %v6004 = vshrl.u32 %v6003, 7
        %v6005 = vsub.s32 1, %v6004
        %v6006 = vrot.slane %v5976, %v6005
        %v6009 = vmul.f32 %v575, %v6002
        %v6010 = vmul.f32 %v575, %v6006
        %v6011 = vmul.f32 %v579, %v6002
        %v6012 = vmul.f32 %v579, %v6006
        %v6013 = vmul.f32 %v583, %v6002
        %v6014 = vmul.f32 %v583, %v6006
        %v6015 = vmul.f32 %v587, %v6002
        %v6016 = vmul.f32 %v587, %v6006
        %v6017 = vadd.f32 %v5990, %v6009
        %v6018 = vadd.f32 %v5991, %v6010
        %v6019 = vadd.f32 %v5992, %v6011
        %v6020 = vadd.f32 %v5993, %v6012
        %v6021 = vadd.f32 %v5994, %v6013
        %v6022 = vadd.f32 %v5995, %v6014
        %v6023 = vadd.f32 %v5996, %v6015
        %v6024 = vadd.f32 %v5997, %v6016
        %v6026 = vlaneseq
        %v6027 = vshrl.u32 %v6026, 7
        %v6028 = vsub.s32 0, %v6027
        %v6029 = vrot.slane %v5978, %v6028
        %v6030 = vlaneseq
        %v6031 = vshrl.u32 %v6030, 7
        %v6032 = vsub.s32 1, %v6031
        %v6033 = vrot.slane %v5978, %v6032
        %v6036 = vmul.f32 %v618, %v6029
        %v6037 = vmul.f32 %v618, %v6033
        %v6038 = vmul.f32 %v622, %v6029
        %v6039 = vmul.f32 %v622, %v6033
        %v6040 = vmul.f32 %v626, %v6029
        %v6041 = vmul.f32 %v626, %v6033
        %v6042 = vmul.f32 %v630, %v6029
        %v6043 = vmul.f32 %v630, %v6033
        %v6044 = vadd.f32 %v6017, %v6036
        %v6045 = vadd.f32 %v6018, %v6037
        %v6046 = vadd.f32 %v6019, %v6038
        %v6047 = vadd.f32 %v6020, %v6039
        %v6048 = vadd.f32 %v6021, %v6040
        %v6049 = vadd.f32 %v6022, %v6041
        %v6050 = vadd.f32 %v6023, %v6042
        %v6051 = vadd.f32 %v6024, %v6043
        %v6052 = vadd.f32 %v6044, %v662
        %v6053 = vadd.f32 %v6045, %v662
        %v6054 = vadd.f32 %v6046, %v667
        %v6055 = vadd.f32 %v6047, %v667
        %v6056 = vadd.f32 %v6048, %v672
        %v6057 = vadd.f32 %v6049, %v672
        %v6058 = vadd.f32 %v6050, %v677
        %v6059 = vadd.f32 %v6051, %v677
        %v6060 = vmax.f32 %v6052, 0.0
        %v6061 = vmax.f32 %v6053, 0.0
        %v6062 = vmax.f32 %v6054, 0.0
        %v6063 = vmax.f32 %v6055, 0.0
        %v6064 = vmax.f32 %v6056, 0.0
        %v6065 = vmax.f32 %v6057, 0.0
        %v6066 = vmax.f32 %v6058, 0.0
        %v6067 = vmax.f32 %v6059, 0.0
        %v6068 = vpack.c.bf16 %v6062, %v6060
        %v6069 = vpack.c.bf16 %v6063, %v6061
        %v6070 = vpack.c.bf16 %v6066, %v6064
        %v6071 = vpack.c.bf16 %v6067, %v6065
        %6072 = vmatprep.subr.bf16.mxu0 %v6069
        %6073 = vmatpush1.bf16.msra.mxu0 %v6068
        %6074 = vmatprep.subr.bf16.mxu0 %v6071
        %6075 = vmatpush1.bf16.msra.mxu0 %v6070
        %6076 = vmatprep.subr.bf16.mxu0 0
        %6077 = vmatpush1.bf16.msra.mxu0 0
        %6078 = vmatprep.subr.bf16.mxu0 0
        %6079 = vmatpush1.bf16.msra.mxu0 0
        %6080 = vmatprep.subr.bf16.mxu0 0
        %6081 = vmatpush1.bf16.msra.mxu0 0
        %6082 = vmatprep.subr.bf16.mxu0 0
        %6083 = vmatpush1.bf16.msra.mxu0 0
        %6084 = vmatprep.subr.bf16.mxu0 0
        %6085 = vmatpush1.bf16.msra.mxu0 0
        %6086 = vmatprep.subr.bf16.mxu0 0
        %6087 = vmatpush1.bf16.msra.mxu0 0
        %6088 = vmatprep.subr.bf16.mxu0 0
        %6089 = vmatpush1.bf16.msra.mxu0 0
        %6090 = vmatprep.subr.bf16.mxu0 0
        %6091 = vmatpush1.bf16.msra.mxu0 0
        %6092 = vmatprep.subr.bf16.mxu0 0
        %6093 = vmatpush1.bf16.msra.mxu0 0
        %6094 = vmatprep.subr.bf16.mxu0 0
        %6095 = vmatpush1.bf16.msra.mxu0 0
        %6096 = vmatprep.subr.bf16.mxu0 0
        %6097 = vmatpush1.bf16.msra.mxu0 0
        %6098 = vmatprep.subr.bf16.mxu0 0
        %6099 = vmatpush1.bf16.msra.mxu0 0
        %6100 = vmatprep.subr.bf16.mxu0 0
        %6101 = vmatpush1.bf16.msra.mxu0 0
        %6102 = vmatprep.subr.bf16.mxu0 0
        %6103 = vmatpush1.bf16.msra.mxu0 0
        %6104 = vmatprep.mubr.bf16.mxu0 0
        %6105 = vmatmul.mubr.bf16.gmra.mrb[0].mxu0 %v731
        %v6106 = vpop.f32.mrb[0].mxu0
        %v6107 = vadd.f32 %v702, %v6106
        %v6108 = vpop.f32.mrb[0].mxu0
        %v6109 = vadd.f32 %v702, %v6108
        %v6110 = vpop.f32.mrb[0].mxu0
        %v6111 = vadd.f32 %v707, %v6110
        %v6112 = vpop.f32.mrb[0].mxu0
        %v6113 = vadd.f32 %v707, %v6112
        %6114 = vmatprep.mubr.bf16.mxu0 0
        %6115 = vmatmul.mubr.bf16.gmra.mrb[0].mxu0 %v734
        %v6116 = vpop.f32.mrb[0].mxu0
        %v6117 = vadd.f32 %v712, %v6116
        %v6118 = vpop.f32.mrb[0].mxu0
        %v6119 = vadd.f32 %v712, %v6118
        %v6120 = vpop.f32.mrb[0].mxu0
        %v6121 = vadd.f32 %v717, %v6120
        %v6122 = vpop.f32.mrb[0].mxu0
        %v6123 = vadd.f32 %v717, %v6122
        %6124 = vdwg.mxu0
        %v6133 = vrot.slane %v6107, 7
        %v6134 = vrot.slane %v6109, 7
        %v6135 = vrot.slane %v6107, 1
        %v6136 = vrot.slane %v6109, 1
        %v6137 = vrot.slane %v6107, 2
        %v6138 = vrot.slane %v6109, 2
        %v6139 = vrot.slane %v6107, 3
        %v6140 = vrot.slane %v6109, 3
        %v6141 = vrot.slane %v6107, 4
        %v6142 = vrot.slane %v6109, 4
        %v6143 = vrot.slane %v6107, 5
        %v6144 = vrot.slane %v6109, 5
        %v6145 = vrot.slane %v6107, 6
        %v6146 = vrot.slane %v6109, 6
        %v6147 = vrot.slane %v6111, 7
        %v6148 = vrot.slane %v6113, 7
        %v6149 = vrot.slane %v6111, 1
        %v6150 = vrot.slane %v6113, 1
        %v6151 = vrot.slane %v6111, 2
        %v6152 = vrot.slane %v6113, 2
        %v6153 = vrot.slane %v6111, 3
        %v6154 = vrot.slane %v6113, 3
        %v6155 = vrot.slane %v6111, 4
        %v6156 = vrot.slane %v6113, 4
        %v6157 = vrot.slane %v6111, 5
        %v6158 = vrot.slane %v6113, 5
        %v6159 = vrot.slane %v6111, 6
        %v6160 = vrot.slane %v6113, 6
        %v6161 = vrot.slane %v6117, 7
        %v6162 = vrot.slane %v6119, 7
        %v6163 = vrot.slane %v6117, 1
        %v6164 = vrot.slane %v6119, 1
        %v6165 = vrot.slane %v6117, 2
        %v6166 = vrot.slane %v6119, 2
        %v6167 = vrot.slane %v6117, 3
        %v6168 = vrot.slane %v6119, 3
        %v6169 = vrot.slane %v6117, 4
        %v6170 = vrot.slane %v6119, 4
        %v6171 = vrot.slane %v6117, 5
        %v6172 = vrot.slane %v6119, 5
        %v6173 = vrot.slane %v6117, 6
        %v6174 = vrot.slane %v6119, 6
        %v6175 = vrot.slane %v6121, 7
        %v6176 = vrot.slane %v6123, 7
        %v6177 = vrot.slane %v6121, 1
        %v6178 = vrot.slane %v6123, 1
        %v6179 = vrot.slane %v6121, 2
        %v6180 = vrot.slane %v6123, 2
        %v6181 = vrot.slane %v6121, 3
        %v6182 = vrot.slane %v6123, 3
        %v6183 = vrot.slane %v6121, 4
        %v6184 = vrot.slane %v6123, 4
        %v6185 = vrot.slane %v6121, 5
        %v6186 = vrot.slane %v6123, 5
        %v6187 = vrot.slane %v6121, 6
        %v6188 = vrot.slane %v6123, 6
        %v6253 = vmul.f32 %v5507, %v6133
        %v6254 = vmul.f32 %v5508, %v6134
        %v6255 = vmul.f32 %v5509, %v6107
        %v6256 = vmul.f32 %v5510, %v6109
        %v6257 = vmul.f32 %v5511, %v6135
        %v6258 = vmul.f32 %v5512, %v6136
        %v6259 = vmul.f32 %v5513, %v6137
        %v6260 = vmul.f32 %v5514, %v6138
        %v6261 = vmul.f32 %v5515, %v6139
        %v6262 = vmul.f32 %v5516, %v6140
        %v6263 = vmul.f32 %v5517, %v6141
        %v6264 = vmul.f32 %v5518, %v6142
        %v6265 = vmul.f32 %v5519, %v6143
        %v6266 = vmul.f32 %v5520, %v6144
        %v6267 = vmul.f32 %v5521, %v6145
        %v6268 = vmul.f32 %v5522, %v6146
        %v6269 = vmul.f32 %v5523, %v6147
        %v6270 = vmul.f32 %v5524, %v6148
        %v6271 = vmul.f32 %v5525, %v6111
        %v6272 = vmul.f32 %v5526, %v6113
        %v6273 = vmul.f32 %v5527, %v6149
        %v6274 = vmul.f32 %v5528, %v6150
        %v6275 = vmul.f32 %v5529, %v6151
        %v6276 = vmul.f32 %v5530, %v6152
        %v6277 = vmul.f32 %v5531, %v6153
        %v6278 = vmul.f32 %v5532, %v6154
        %v6279 = vmul.f32 %v5533, %v6155
        %v6280 = vmul.f32 %v5534, %v6156
        %v6281 = vmul.f32 %v5535, %v6157
        %v6282 = vmul.f32 %v5536, %v6158
        %v6283 = vmul.f32 %v5537, %v6159
        %v6284 = vmul.f32 %v5538, %v6160
        %v6285 = vmul.f32 %v5539, %v6161
        %v6286 = vmul.f32 %v5540, %v6162
        %v6287 = vmul.f32 %v5541, %v6117
        %v6288 = vmul.f32 %v5542, %v6119
        %v6289 = vmul.f32 %v5543, %v6163
        %v6290 = vmul.f32 %v5544, %v6164
        %v6291 = vmul.f32 %v5545, %v6165
        %v6292 = vmul.f32 %v5546, %v6166
        %v6293 = vmul.f32 %v5547, %v6167
        %v6294 = vmul.f32 %v5548, %v6168
        %v6295 = vmul.f32 %v5549, %v6169
        %v6296 = vmul.f32 %v5550, %v6170
        %v6297 = vmul.f32 %v5551, %v6171
        %v6298 = vmul.f32 %v5552, %v6172
        %v6299 = vmul.f32 %v5553, %v6173
        %v6300 = vmul.f32 %v5554, %v6174
        %v6301 = vmul.f32 %v5555, %v6175
        %v6302 = vmul.f32 %v5556, %v6176
        %v6303 = vmul.f32 %v5557, %v6121
        %v6304 = vmul.f32 %v5558, %v6123
        %v6305 = vmul.f32 %v5559, %v6177
        %v6306 = vmul.f32 %v5560, %v6178
        %v6307 = vmul.f32 %v5561, %v6179
        %v6308 = vmul.f32 %v5562, %v6180
        %v6309 = vmul.f32 %v5563, %v6181
        %v6310 = vmul.f32 %v5564, %v6182
        %v6311 = vmul.f32 %v5565, %v6183
        %v6312 = vmul.f32 %v5566, %v6184
        %v6313 = vmul.f32 %v5567, %v6185
        %v6314 = vmul.f32 %v5568, %v6186
        %v6315 = vmul.f32 %v5569, %v6187
        %v6316 = vmul.f32 %v5570, %v6188
        %v6381 = vrot.slane %v6253, 1
        %v6382 = vrot.slane %v6254, 1
        %v6383 = vrot.slane %v6255, 1
        %v6384 = vrot.slane %v6256, 1
        %v6385 = vrot.slane %v6257, 1
        %v6386 = vrot.slane %v6258, 1
        %v6387 = vrot.slane %v6259, 1
        %v6388 = vrot.slane %v6260, 1
        %v6389 = vrot.slane %v6261, 1
        %v6390 = vrot.slane %v6262, 1
        %v6391 = vrot.slane %v6263, 1
        %v6392 = vrot.slane %v6264, 1
        %v6393 = vrot.slane %v6265, 1
        %v6394 = vrot.slane %v6266, 1
        %v6395 = vrot.slane %v6267, 1
        %v6396 = vrot.slane %v6268, 1
        %v6397 = vrot.slane %v6269, 1
        %v6398 = vrot.slane %v6270, 1
        %v6399 = vrot.slane %v6271, 1
        %v6400 = vrot.slane %v6272, 1
        %v6401 = vrot.slane %v6273, 1
        %v6402 = vrot.slane %v6274, 1
        %v6403 = vrot.slane %v6275, 1
        %v6404 = vrot.slane %v6276, 1
        %v6405 = vrot.slane %v6277, 1
        %v6406 = vrot.slane %v6278, 1
        %v6407 = vrot.slane %v6279, 1
        %v6408 = vrot.slane %v6280, 1
        %v6409 = vrot.slane %v6281, 1
        %v6410 = vrot.slane %v6282, 1
        %v6411 = vrot.slane %v6283, 1
        %v6412 = vrot.slane %v6284, 1
        %v6413 = vrot.slane %v6285, 1
        %v6414 = vrot.slane %v6286, 1
        %v6415 = vrot.slane %v6287, 1
        %v6416 = vrot.slane %v6288, 1
        %v6417 = vrot.slane %v6289, 1
        %v6418 = vrot.slane %v6290, 1
        %v6419 = vrot.slane %v6291, 1
        %v6420 = vrot.slane %v6292, 1
        %v6421 = vrot.slane %v6293, 1
        %v6422 = vrot.slane %v6294, 1
        %v6423 = vrot.slane %v6295, 1
        %v6424 = vrot.slane %v6296, 1
        %v6425 = vrot.slane %v6297, 1
        %v6426 = vrot.slane %v6298, 1
        %v6427 = vrot.slane %v6299, 1
        %v6428 = vrot.slane %v6300, 1
        %v6429 = vrot.slane %v6301, 1
        %v6430 = vrot.slane %v6302, 1
        %v6431 = vrot.slane %v6303, 1
        %v6432 = vrot.slane %v6304, 1
        %v6433 = vrot.slane %v6305, 1
        %v6434 = vrot.slane %v6306, 1
        %v6435 = vrot.slane %v6307, 1
        %v6436 = vrot.slane %v6308, 1
        %v6437 = vrot.slane %v6309, 1
        %v6438 = vrot.slane %v6310, 1
        %v6439 = vrot.slane %v6311, 1
        %v6440 = vrot.slane %v6312, 1
        %v6441 = vrot.slane %v6313, 1
        %v6442 = vrot.slane %v6314, 1
        %v6443 = vrot.slane %v6315, 1
        %v6444 = vrot.slane %v6316, 1
        %v6509 = vmax.f32 %v5909, %v6381
        %v6510 = vmax.f32 %v5910, %v6382
        %v6511 = vmax.f32 %v5911, %v6383
        %v6512 = vmax.f32 %v5912, %v6384
        %v6513 = vmax.f32 %v5913, %v6385
        %v6514 = vmax.f32 %v5914, %v6386
        %v6515 = vmax.f32 %v5915, %v6387
        %v6516 = vmax.f32 %v5916, %v6388
        %v6517 = vmax.f32 %v5917, %v6389
        %v6518 = vmax.f32 %v5918, %v6390
        %v6519 = vmax.f32 %v5919, %v6391
        %v6520 = vmax.f32 %v5920, %v6392
        %v6521 = vmax.f32 %v5921, %v6393
        %v6522 = vmax.f32 %v5922, %v6394
        %v6523 = vmax.f32 %v5923, %v6395
        %v6524 = vmax.f32 %v5924, %v6396
        %v6525 = vmax.f32 %v5925, %v6397
        %v6526 = vmax.f32 %v5926, %v6398
        %v6527 = vmax.f32 %v5927, %v6399
        %v6528 = vmax.f32 %v5928, %v6400
        %v6529 = vmax.f32 %v5929, %v6401
        %v6530 = vmax.f32 %v5930, %v6402
        %v6531 = vmax.f32 %v5931, %v6403
        %v6532 = vmax.f32 %v5932, %v6404
        %v6533 = vmax.f32 %v5933, %v6405
        %v6534 = vmax.f32 %v5934, %v6406
        %v6535 = vmax.f32 %v5935, %v6407
        %v6536 = vmax.f32 %v5936, %v6408
        %v6537 = vmax.f32 %v5937, %v6409
        %v6538 = vmax.f32 %v5938, %v6410
        %v6539 = vmax.f32 %v5939, %v6411
        %v6540 = vmax.f32 %v5940, %v6412
        %v6541 = vmax.f32 %v5941, %v6413
        %v6542 = vmax.f32 %v5942, %v6414
        %v6543 = vmax.f32 %v5943, %v6415
        %v6544 = vmax.f32 %v5944, %v6416
        %v6545 = vmax.f32 %v5945, %v6417
        %v6546 = vmax.f32 %v5946, %v6418
        %v6547 = vmax.f32 %v5947, %v6419
        %v6548 = vmax.f32 %v5948, %v6420
        %v6549 = vmax.f32 %v5949, %v6421
        %v6550 = vmax.f32 %v5950, %v6422
        %v6551 = vmax.f32 %v5951, %v6423
        %v6552 = vmax.f32 %v5952, %v6424
        %v6553 = vmax.f32 %v5953, %v6425
        %v6554 = vmax.f32 %v5954, %v6426
        %v6555 = vmax.f32 %v5955, %v6427
        %v6556 = vmax.f32 %v5956, %v6428
        %v6557 = vmax.f32 %v5957, %v6429
        %v6558 = vmax.f32 %v5958, %v6430
        %v6559 = vmax.f32 %v5959, %v6431
        %v6560 = vmax.f32 %v5960, %v6432
        %v6561 = vmax.f32 %v5961, %v6433
        %v6562 = vmax.f32 %v5962, %v6434
        %v6563 = vmax.f32 %v5963, %v6435
        %v6564 = vmax.f32 %v5964, %v6436
        %v6565 = vmax.f32 %v5965, %v6437
        %v6566 = vmax.f32 %v5966, %v6438
        %v6567 = vmax.f32 %v5967, %v6439
        %v6568 = vmax.f32 %v5968, %v6440
        %v6569 = vmax.f32 %v5969, %v6441
        %v6570 = vmax.f32 %v5970, %v6442
        %v6571 = vmax.f32 %v5971, %v6443
        %v6572 = vmax.f32 %v5972, %v6444
        %s6573 = scalar_lea.vmem %s364, 18 [#allocation2]
        %v6574 = vld [vmem:[%s6573] ss:$8 sm:$0x3]
        %s6575 = scalar_lea.vmem %s364, 50 [#allocation2]
        %v6576 = vld [vmem:[%s6575] ss:$8 sm:$0x3]
        %s6577 = scalar_lea.vmem %s364, 82 [#allocation2]
        %v6578 = vld [vmem:[%s6577] ss:$8 sm:$0x3]
        %v6579 = vld [vmem:[%s373 + $0x8] sm:$0x22]
        %v6580 = vld [vmem:[%s373 + $0x18] sm:$0x22]
        %v6581 = vld [vmem:[%s373 + $0x28] sm:$0x22]
        %v6582 = vld [vmem:[%s373 + $0x38] sm:$0x22]
        %v6583 = vld [vmem:[%s373 + $0x48] sm:$0x22]
        %v6584 = vld [vmem:[%s373 + $0x58] sm:$0x22]
        %v6585 = vld [vmem:[%s373 + $0x68] sm:$0x22]
        %v6586 = vld [vmem:[%s373 + $0x78] sm:$0x22]
        %v6587 = vld [vmem:[%s373 + $0x88] sm:$0x22]
        %v6588 = vld [vmem:[%s373 + $0x98] sm:$0x22]
        %v6589 = vld [vmem:[%s373 + $0xa8] sm:$0x22]
        %v6590 = vld [vmem:[%s373 + $0xb8] sm:$0x22]
        %v6591 = vld [vmem:[%s373 + $0xc8] sm:$0x22]
        %v6592 = vld [vmem:[%s373 + $0xd8] sm:$0x22]
        %v6593 = vld [vmem:[%s373 + $0xe8] sm:$0x22]
        %v6594 = vld [vmem:[%s373 + $0xf8] sm:$0x22]
        %v6595 = vld [vmem:[%s373 + $0x108] sm:$0x22]
        %v6596 = vld [vmem:[%s373 + $0x118] sm:$0x22]
        %v6597 = vld [vmem:[%s373 + $0x128] sm:$0x22]
        %v6598 = vld [vmem:[%s373 + $0x138] sm:$0x22]
        %v6599 = vld [vmem:[%s373 + $0x148] sm:$0x22]
        %v6600 = vld [vmem:[%s373 + $0x158] sm:$0x22]
        %v6601 = vld [vmem:[%s373 + $0x168] sm:$0x22]
        %v6602 = vld [vmem:[%s373 + $0x178] sm:$0x22]
        %v6603 = vld [vmem:[%s373 + $0x188] sm:$0x22]
        %v6604 = vld [vmem:[%s373 + $0x198] sm:$0x22]
        %v6605 = vld [vmem:[%s373 + $0x1a8] sm:$0x22]
        %v6606 = vld [vmem:[%s373 + $0x1b8] sm:$0x22]
        %v6607 = vld [vmem:[%s373 + $0x1c8] sm:$0x22]
        %v6608 = vld [vmem:[%s373 + $0x1d8] sm:$0x22]
        %v6609 = vld [vmem:[%s373 + $0x1e8] sm:$0x22]
        %v6610 = vld [vmem:[%s373 + $0x1f8] sm:$0x22]
        %v6611 = vunpack.c.l.bf16 %v6579
        %v6612 = vunpack.c.h.bf16 %v6579
        %v6613 = vunpack.c.l.bf16 %v6580
        %v6614 = vunpack.c.h.bf16 %v6580
        %v6615 = vunpack.c.l.bf16 %v6581
        %v6616 = vunpack.c.h.bf16 %v6581
        %v6617 = vunpack.c.l.bf16 %v6582
        %v6618 = vunpack.c.h.bf16 %v6582
        %v6619 = vunpack.c.l.bf16 %v6583
        %v6620 = vunpack.c.h.bf16 %v6583
        %v6621 = vunpack.c.l.bf16 %v6584
        %v6622 = vunpack.c.h.bf16 %v6584
        %v6623 = vunpack.c.l.bf16 %v6585
        %v6624 = vunpack.c.h.bf16 %v6585
        %v6625 = vunpack.c.l.bf16 %v6586
        %v6626 = vunpack.c.h.bf16 %v6586
        %v6627 = vunpack.c.l.bf16 %v6587
        %v6628 = vunpack.c.h.bf16 %v6587
        %v6629 = vunpack.c.l.bf16 %v6588
        %v6630 = vunpack.c.h.bf16 %v6588
        %v6631 = vunpack.c.l.bf16 %v6589
        %v6632 = vunpack.c.h.bf16 %v6589
        %v6633 = vunpack.c.l.bf16 %v6590
        %v6634 = vunpack.c.h.bf16 %v6590
        %v6635 = vunpack.c.l.bf16 %v6591
        %v6636 = vunpack.c.h.bf16 %v6591
        %v6637 = vunpack.c.l.bf16 %v6592
        %v6638 = vunpack.c.h.bf16 %v6592
        %v6639 = vunpack.c.l.bf16 %v6593
        %v6640 = vunpack.c.h.bf16 %v6593
        %v6641 = vunpack.c.l.bf16 %v6594
        %v6642 = vunpack.c.h.bf16 %v6594
        %v6643 = vunpack.c.l.bf16 %v6595
        %v6644 = vunpack.c.h.bf16 %v6595
        %v6645 = vunpack.c.l.bf16 %v6596
        %v6646 = vunpack.c.h.bf16 %v6596
        %v6647 = vunpack.c.l.bf16 %v6597
        %v6648 = vunpack.c.h.bf16 %v6597
        %v6649 = vunpack.c.l.bf16 %v6598
        %v6650 = vunpack.c.h.bf16 %v6598
        %v6651 = vunpack.c.l.bf16 %v6599
        %v6652 = vunpack.c.h.bf16 %v6599
        %v6653 = vunpack.c.l.bf16 %v6600
        %v6654 = vunpack.c.h.bf16 %v6600
        %v6655 = vunpack.c.l.bf16 %v6601
        %v6656 = vunpack.c.h.bf16 %v6601
        %v6657 = vunpack.c.l.bf16 %v6602
        %v6658 = vunpack.c.h.bf16 %v6602
        %v6659 = vunpack.c.l.bf16 %v6603
        %v6660 = vunpack.c.h.bf16 %v6603
        %v6661 = vunpack.c.l.bf16 %v6604
        %v6662 = vunpack.c.h.bf16 %v6604
        %v6663 = vunpack.c.l.bf16 %v6605
        %v6664 = vunpack.c.h.bf16 %v6605
        %v6665 = vunpack.c.l.bf16 %v6606
        %v6666 = vunpack.c.h.bf16 %v6606
        %v6667 = vunpack.c.l.bf16 %v6607
        %v6668 = vunpack.c.h.bf16 %v6607
        %v6669 = vunpack.c.l.bf16 %v6608
        %v6670 = vunpack.c.h.bf16 %v6608
        %v6671 = vunpack.c.l.bf16 %v6609
        %v6672 = vunpack.c.h.bf16 %v6609
        %v6673 = vunpack.c.l.bf16 %v6610
        %v6674 = vunpack.c.h.bf16 %v6610
        %v6676 = vlaneseq
        %v6677 = vshrl.u32 %v6676, 7
        %v6678 = vsub.s32 0, %v6677
        %v6679 = vrot.slane %v6574, %v6678
        %v6680 = vlaneseq
        %v6681 = vshrl.u32 %v6680, 7
        %v6682 = vsub.s32 1, %v6681
        %v6683 = vrot.slane %v6574, %v6682
        %v6686 = vmul.f32 %v537, %v6679
        %v6687 = vmul.f32 %v537, %v6683
        %v6688 = vmul.f32 %v542, %v6679
        %v6689 = vmul.f32 %v542, %v6683
        %v6690 = vmul.f32 %v547, %v6679
        %v6691 = vmul.f32 %v547, %v6683
        %v6692 = vmul.f32 %v552, %v6679
        %v6693 = vmul.f32 %v552, %v6683
        %v6695 = vlaneseq
        %v6696 = vshrl.u32 %v6695, 7
        %v6697 = vsub.s32 0, %v6696
        %v6698 = vrot.slane %v6576, %v6697
        %v6699 = vlaneseq
        %v6700 = vshrl.u32 %v6699, 7
        %v6701 = vsub.s32 1, %v6700
        %v6702 = vrot.slane %v6576, %v6701
        %v6705 = vmul.f32 %v575, %v6698
        %v6706 = vmul.f32 %v575, %v6702
        %v6707 = vmul.f32 %v579, %v6698
        %v6708 = vmul.f32 %v579, %v6702
        %v6709 = vmul.f32 %v583, %v6698
        %v6710 = vmul.f32 %v583, %v6702
        %v6711 = vmul.f32 %v587, %v6698
        %v6712 = vmul.f32 %v587, %v6702
        %v6713 = vadd.f32 %v6686, %v6705
        %v6714 = vadd.f32 %v6687, %v6706
        %v6715 = vadd.f32 %v6688, %v6707
        %v6716 = vadd.f32 %v6689, %v6708
        %v6717 = vadd.f32 %v6690, %v6709
        %v6718 = vadd.f32 %v6691, %v6710
        %v6719 = vadd.f32 %v6692, %v6711
        %v6720 = vadd.f32 %v6693, %v6712
        %v6722 = vlaneseq
        %v6723 = vshrl.u32 %v6722, 7
        %v6724 = vsub.s32 0, %v6723
        %v6725 = vrot.slane %v6578, %v6724
        %v6726 = vlaneseq
        %v6727 = vshrl.u32 %v6726, 7
        %v6728 = vsub.s32 1, %v6727
        %v6729 = vrot.slane %v6578, %v6728
        %v6732 = vmul.f32 %v618, %v6725
        %v6733 = vmul.f32 %v618, %v6729
        %v6734 = vmul.f32 %v622, %v6725
        %v6735 = vmul.f32 %v622, %v6729
        %v6736 = vmul.f32 %v626, %v6725
        %v6737 = vmul.f32 %v626, %v6729
        %v6738 = vmul.f32 %v630, %v6725
        %v6739 = vmul.f32 %v630, %v6729
        %v6740 = vadd.f32 %v6713, %v6732
        %v6741 = vadd.f32 %v6714, %v6733
        %v6742 = vadd.f32 %v6715, %v6734
        %v6743 = vadd.f32 %v6716, %v6735
        %v6744 = vadd.f32 %v6717, %v6736
        %v6745 = vadd.f32 %v6718, %v6737
        %v6746 = vadd.f32 %v6719, %v6738
        %v6747 = vadd.f32 %v6720, %v6739
        %v6748 = vadd.f32 %v6740, %v662
        %v6749 = vadd.f32 %v6741, %v662
        %v6750 = vadd.f32 %v6742, %v667
        %v6751 = vadd.f32 %v6743, %v667
        %v6752 = vadd.f32 %v6744, %v672
        %v6753 = vadd.f32 %v6745, %v672
        %v6754 = vadd.f32 %v6746, %v677
        %v6755 = vadd.f32 %v6747, %v677
        %v6756 = vmax.f32 %v6748, 0.0
        %v6757 = vmax.f32 %v6749, 0.0
        %v6758 = vmax.f32 %v6750, 0.0
        %v6759 = vmax.f32 %v6751, 0.0
        %v6760 = vmax.f32 %v6752, 0.0
        %v6761 = vmax.f32 %v6753, 0.0
        %v6762 = vmax.f32 %v6754, 0.0
        %v6763 = vmax.f32 %v6755, 0.0
        %v6764 = vpack.c.bf16 %v6758, %v6756
        %v6765 = vpack.c.bf16 %v6759, %v6757
        %v6766 = vpack.c.bf16 %v6762, %v6760
        %v6767 = vpack.c.bf16 %v6763, %v6761
        %6768 = vmatprep.subr.bf16.mxu0 %v6765
        %6769 = vmatpush1.bf16.msra.mxu0 %v6764
        %6770 = vmatprep.subr.bf16.mxu0 %v6767
        %6771 = vmatpush1.bf16.msra.mxu0 %v6766
        %6772 = vmatprep.subr.bf16.mxu0 0
        %6773 = vmatpush1.bf16.msra.mxu0 0
        %6774 = vmatprep.subr.bf16.mxu0 0
        %6775 = vmatpush1.bf16.msra.mxu0 0
        %6776 = vmatprep.subr.bf16.mxu0 0
        %6777 = vmatpush1.bf16.msra.mxu0 0
        %6778 = vmatprep.subr.bf16.mxu0 0
        %6779 = vmatpush1.bf16.msra.mxu0 0
        %6780 = vmatprep.subr.bf16.mxu0 0
        %6781 = vmatpush1.bf16.msra.mxu0 0
        %6782 = vmatprep.subr.bf16.mxu0 0
        %6783 = vmatpush1.bf16.msra.mxu0 0
        %6784 = vmatprep.subr.bf16.mxu0 0
        %6785 = vmatpush1.bf16.msra.mxu0 0
        %6786 = vmatprep.subr.bf16.mxu0 0
        %6787 = vmatpush1.bf16.msra.mxu0 0
        %6788 = vmatprep.subr.bf16.mxu0 0
        %6789 = vmatpush1.bf16.msra.mxu0 0
        %6790 = vmatprep.subr.bf16.mxu0 0
        %6791 = vmatpush1.bf16.msra.mxu0 0
        %6792 = vmatprep.subr.bf16.mxu0 0
        %6793 = vmatpush1.bf16.msra.mxu0 0
        %6794 = vmatprep.subr.bf16.mxu0 0
        %6795 = vmatpush1.bf16.msra.mxu0 0
        %6796 = vmatprep.subr.bf16.mxu0 0
        %6797 = vmatpush1.bf16.msra.mxu0 0
        %6798 = vmatprep.subr.bf16.mxu0 0
        %6799 = vmatpush1.bf16.msra.mxu0 0
        %6800 = vmatprep.mubr.bf16.mxu0 0
        %6801 = vmatmul.mubr.bf16.gmra.mrb[0].mxu0 %v731
        %v6802 = vpop.f32.mrb[0].mxu0
        %v6803 = vadd.f32 %v702, %v6802
        %v6804 = vpop.f32.mrb[0].mxu0
        %v6805 = vadd.f32 %v702, %v6804
        %v6806 = vpop.f32.mrb[0].mxu0
        %v6807 = vadd.f32 %v707, %v6806
        %v6808 = vpop.f32.mrb[0].mxu0
        %v6809 = vadd.f32 %v707, %v6808
        %6810 = vmatprep.mubr.bf16.mxu0 0
        %6811 = vmatmul.mubr.bf16.gmra.mrb[0].mxu0 %v734
        %v6812 = vpop.f32.mrb[0].mxu0
        %v6813 = vadd.f32 %v712, %v6812
        %v6814 = vpop.f32.mrb[0].mxu0
        %v6815 = vadd.f32 %v712, %v6814
        %v6816 = vpop.f32.mrb[0].mxu0
        %v6817 = vadd.f32 %v717, %v6816
        %v6818 = vpop.f32.mrb[0].mxu0
        %v6819 = vadd.f32 %v717, %v6818
        %6820 = vdwg.mxu0
        %v6829 = vrot.slane %v6803, 6
        %v6830 = vrot.slane %v6805, 6
        %v6831 = vrot.slane %v6803, 7
        %v6832 = vrot.slane %v6805, 7
        %v6833 = vrot.slane %v6803, 1
        %v6834 = vrot.slane %v6805, 1
        %v6835 = vrot.slane %v6803, 2
        %v6836 = vrot.slane %v6805, 2
        %v6837 = vrot.slane %v6803, 3
        %v6838 = vrot.slane %v6805, 3
        %v6839 = vrot.slane %v6803, 4
        %v6840 = vrot.slane %v6805, 4
        %v6841 = vrot.slane %v6803, 5
        %v6842 = vrot.slane %v6805, 5
        %v6843 = vrot.slane %v6807, 6
        %v6844 = vrot.slane %v6809, 6
        %v6845 = vrot.slane %v6807, 7
        %v6846 = vrot.slane %v6809, 7
        %v6847 = vrot.slane %v6807, 1
        %v6848 = vrot.slane %v6809, 1
        %v6849 = vrot.slane %v6807, 2
        %v6850 = vrot.slane %v6809, 2
        %v6851 = vrot.slane %v6807, 3
        %v6852 = vrot.slane %v6809, 3
        %v6853 = vrot.slane %v6807, 4
        %v6854 = vrot.slane %v6809, 4
        %v6855 = vrot.slane %v6807, 5
        %v6856 = vrot.slane %v6809, 5
        %v6857 = vrot.slane %v6813, 6
        %v6858 = vrot.slane %v6815, 6
        %v6859 = vrot.slane %v6813, 7
        %v6860 = vrot.slane %v6815, 7
        %v6861 = vrot.slane %v6813, 1
        %v6862 = vrot.slane %v6815, 1
        %v6863 = vrot.slane %v6813, 2
        %v6864 = vrot.slane %v6815, 2
        %v6865 = vrot.slane %v6813, 3
        %v6866 = vrot.slane %v6815, 3
        %v6867 = vrot.slane %v6813, 4
        %v6868 = vrot.slane %v6815, 4
        %v6869 = vrot.slane %v6813, 5
        %v6870 = vrot.slane %v6815, 5
        %v6871 = vrot.slane %v6817, 6
        %v6872 = vrot.slane %v6819, 6
        %v6873 = vrot.slane %v6817, 7
        %v6874 = vrot.slane %v6819, 7
        %v6875 = vrot.slane %v6817, 1
        %v6876 = vrot.slane %v6819, 1
        %v6877 = vrot.slane %v6817, 2
        %v6878 = vrot.slane %v6819, 2
        %v6879 = vrot.slane %v6817, 3
        %v6880 = vrot.slane %v6819, 3
        %v6881 = vrot.slane %v6817, 4
        %v6882 = vrot.slane %v6819, 4
        %v6883 = vrot.slane %v6817, 5
        %v6884 = vrot.slane %v6819, 5
        %v6949 = vmul.f32 %v6611, %v6829
        %v6950 = vmul.f32 %v6612, %v6830
        %v6951 = vmul.f32 %v6613, %v6831
        %v6952 = vmul.f32 %v6614, %v6832
        %v6953 = vmul.f32 %v6615, %v6803
        %v6954 = vmul.f32 %v6616, %v6805
        %v6955 = vmul.f32 %v6617, %v6833
        %v6956 = vmul.f32 %v6618, %v6834
        %v6957 = vmul.f32 %v6619, %v6835
        %v6958 = vmul.f32 %v6620, %v6836
        %v6959 = vmul.f32 %v6621, %v6837
        %v6960 = vmul.f32 %v6622, %v6838
        %v6961 = vmul.f32 %v6623, %v6839
        %v6962 = vmul.f32 %v6624, %v6840
        %v6963 = vmul.f32 %v6625, %v6841
        %v6964 = vmul.f32 %v6626, %v6842
        %v6965 = vmul.f32 %v6627, %v6843
        %v6966 = vmul.f32 %v6628, %v6844
        %v6967 = vmul.f32 %v6629, %v6845
        %v6968 = vmul.f32 %v6630, %v6846
        %v6969 = vmul.f32 %v6631, %v6807
        %v6970 = vmul.f32 %v6632, %v6809
        %v6971 = vmul.f32 %v6633, %v6847
        %v6972 = vmul.f32 %v6634, %v6848
        %v6973 = vmul.f32 %v6635, %v6849
        %v6974 = vmul.f32 %v6636, %v6850
        %v6975 = vmul.f32 %v6637, %v6851
        %v6976 = vmul.f32 %v6638, %v6852
        %v6977 = vmul.f32 %v6639, %v6853
        %v6978 = vmul.f32 %v6640, %v6854
        %v6979 = vmul.f32 %v6641, %v6855
        %v6980 = vmul.f32 %v6642, %v6856
        %v6981 = vmul.f32 %v6643, %v6857
        %v6982 = vmul.f32 %v6644, %v6858
        %v6983 = vmul.f32 %v6645, %v6859
        %v6984 = vmul.f32 %v6646, %v6860
        %v6985 = vmul.f32 %v6647, %v6813
        %v6986 = vmul.f32 %v6648, %v6815
        %v6987 = vmul.f32 %v6649, %v6861
        %v6988 = vmul.f32 %v6650, %v6862
        %v6989 = vmul.f32 %v6651, %v6863
        %v6990 = vmul.f32 %v6652, %v6864
        %v6991 = vmul.f32 %v6653, %v6865
        %v6992 = vmul.f32 %v6654, %v6866
        %v6993 = vmul.f32 %v6655, %v6867
        %v6994 = vmul.f32 %v6656, %v6868
        %v6995 = vmul.f32 %v6657, %v6869
        %v6996 = vmul.f32 %v6658, %v6870
        %v6997 = vmul.f32 %v6659, %v6871
        %v6998 = vmul.f32 %v6660, %v6872
        %v6999 = vmul.f32 %v6661, %v6873
        %v7000 = vmul.f32 %v6662, %v6874
        %v7001 = vmul.f32 %v6663, %v6817
        %v7002 = vmul.f32 %v6664, %v6819
        %v7003 = vmul.f32 %v6665, %v6875
        %v7004 = vmul.f32 %v6666, %v6876
        %v7005 = vmul.f32 %v6667, %v6877
        %v7006 = vmul.f32 %v6668, %v6878
        %v7007 = vmul.f32 %v6669, %v6879
        %v7008 = vmul.f32 %v6670, %v6880
        %v7009 = vmul.f32 %v6671, %v6881
        %v7010 = vmul.f32 %v6672, %v6882
        %v7011 = vmul.f32 %v6673, %v6883
        %v7012 = vmul.f32 %v6674, %v6884
        %v7077 = vrot.slane %v6949, 2
        %v7078 = vrot.slane %v6950, 2
        %v7079 = vrot.slane %v6951, 2
        %v7080 = vrot.slane %v6952, 2
        %v7081 = vrot.slane %v6953, 2
        %v7082 = vrot.slane %v6954, 2
        %v7083 = vrot.slane %v6955, 2
        %v7084 = vrot.slane %v6956, 2
        %v7085 = vrot.slane %v6957, 2
        %v7086 = vrot.slane %v6958, 2
        %v7087 = vrot.slane %v6959, 2
        %v7088 = vrot.slane %v6960, 2
        %v7089 = vrot.slane %v6961, 2
        %v7090 = vrot.slane %v6962, 2
        %v7091 = vrot.slane %v6963, 2
        %v7092 = vrot.slane %v6964, 2
        %v7093 = vrot.slane %v6965, 2
        %v7094 = vrot.slane %v6966, 2
        %v7095 = vrot.slane %v6967, 2
        %v7096 = vrot.slane %v6968, 2
        %v7097 = vrot.slane %v6969, 2
        %v7098 = vrot.slane %v6970, 2
        %v7099 = vrot.slane %v6971, 2
        %v7100 = vrot.slane %v6972, 2
        %v7101 = vrot.slane %v6973, 2
        %v7102 = vrot.slane %v6974, 2
        %v7103 = vrot.slane %v6975, 2
        %v7104 = vrot.slane %v6976, 2
        %v7105 = vrot.slane %v6977, 2
        %v7106 = vrot.slane %v6978, 2
        %v7107 = vrot.slane %v6979, 2
        %v7108 = vrot.slane %v6980, 2
        %v7109 = vrot.slane %v6981, 2
        %v7110 = vrot.slane %v6982, 2
        %v7111 = vrot.slane %v6983, 2
        %v7112 = vrot.slane %v6984, 2
        %v7113 = vrot.slane %v6985, 2
        %v7114 = vrot.slane %v6986, 2
        %v7115 = vrot.slane %v6987, 2
        %v7116 = vrot.slane %v6988, 2
        %v7117 = vrot.slane %v6989, 2
        %v7118 = vrot.slane %v6990, 2
        %v7119 = vrot.slane %v6991, 2
        %v7120 = vrot.slane %v6992, 2
        %v7121 = vrot.slane %v6993, 2
        %v7122 = vrot.slane %v6994, 2
        %v7123 = vrot.slane %v6995, 2
        %v7124 = vrot.slane %v6996, 2
        %v7125 = vrot.slane %v6997, 2
        %v7126 = vrot.slane %v6998, 2
        %v7127 = vrot.slane %v6999, 2
        %v7128 = vrot.slane %v7000, 2
        %v7129 = vrot.slane %v7001, 2
        %v7130 = vrot.slane %v7002, 2
        %v7131 = vrot.slane %v7003, 2
        %v7132 = vrot.slane %v7004, 2
        %v7133 = vrot.slane %v7005, 2
        %v7134 = vrot.slane %v7006, 2
        %v7135 = vrot.slane %v7007, 2
        %v7136 = vrot.slane %v7008, 2
        %v7137 = vrot.slane %v7009, 2
        %v7138 = vrot.slane %v7010, 2
        %v7139 = vrot.slane %v7011, 2
        %v7140 = vrot.slane %v7012, 2
        %v7205 = vmax.f32 %v6509, %v7077
        %v7206 = vmax.f32 %v6510, %v7078
        %v7207 = vmax.f32 %v6511, %v7079
        %v7208 = vmax.f32 %v6512, %v7080
        %v7209 = vmax.f32 %v6513, %v7081
        %v7210 = vmax.f32 %v6514, %v7082
        %v7211 = vmax.f32 %v6515, %v7083
        %v7212 = vmax.f32 %v6516, %v7084
        %v7213 = vmax.f32 %v6517, %v7085
        %v7214 = vmax.f32 %v6518, %v7086
        %v7215 = vmax.f32 %v6519, %v7087
        %v7216 = vmax.f32 %v6520, %v7088
        %v7217 = vmax.f32 %v6521, %v7089
        %v7218 = vmax.f32 %v6522, %v7090
        %v7219 = vmax.f32 %v6523, %v7091
        %v7220 = vmax.f32 %v6524, %v7092
        %v7221 = vmax.f32 %v6525, %v7093
        %v7222 = vmax.f32 %v6526, %v7094
        %v7223 = vmax.f32 %v6527, %v7095
        %v7224 = vmax.f32 %v6528, %v7096
        %v7225 = vmax.f32 %v6529, %v7097
        %v7226 = vmax.f32 %v6530, %v7098
        %v7227 = vmax.f32 %v6531, %v7099
        %v7228 = vmax.f32 %v6532, %v7100
        %v7229 = vmax.f32 %v6533, %v7101
        %v7230 = vmax.f32 %v6534, %v7102
        %v7231 = vmax.f32 %v6535, %v7103
        %v7232 = vmax.f32 %v6536, %v7104
        %v7233 = vmax.f32 %v6537, %v7105
        %v7234 = vmax.f32 %v6538, %v7106
        %v7235 = vmax.f32 %v6539, %v7107
        %v7236 = vmax.f32 %v6540, %v7108
        %v7237 = vmax.f32 %v6541, %v7109
        %v7238 = vmax.f32 %v6542, %v7110
        %v7239 = vmax.f32 %v6543, %v7111
        %v7240 = vmax.f32 %v6544, %v7112
        %v7241 = vmax.f32 %v6545, %v7113
        %v7242 = vmax.f32 %v6546, %v7114
        %v7243 = vmax.f32 %v6547, %v7115
        %v7244 = vmax.f32 %v6548, %v7116
        %v7245 = vmax.f32 %v6549, %v7117
        %v7246 = vmax.f32 %v6550, %v7118
        %v7247 = vmax.f32 %v6551, %v7119
        %v7248 = vmax.f32 %v6552, %v7120
        %v7249 = vmax.f32 %v6553, %v7121
        %v7250 = vmax.f32 %v6554, %v7122
        %v7251 = vmax.f32 %v6555, %v7123
        %v7252 = vmax.f32 %v6556, %v7124
        %v7253 = vmax.f32 %v6557, %v7125
        %v7254 = vmax.f32 %v6558, %v7126
        %v7255 = vmax.f32 %v6559, %v7127
        %v7256 = vmax.f32 %v6560, %v7128
        %v7257 = vmax.f32 %v6561, %v7129
        %v7258 = vmax.f32 %v6562, %v7130
        %v7259 = vmax.f32 %v6563, %v7131
        %v7260 = vmax.f32 %v6564, %v7132
        %v7261 = vmax.f32 %v6565, %v7133
        %v7262 = vmax.f32 %v6566, %v7134
        %v7263 = vmax.f32 %v6567, %v7135
        %v7264 = vmax.f32 %v6568, %v7136
        %v7265 = vmax.f32 %v6569, %v7137
        %v7266 = vmax.f32 %v6570, %v7138
        %v7267 = vmax.f32 %v6571, %v7139
        %v7268 = vmax.f32 %v6572, %v7140
        %s7269 = scalar_lea.vmem %s364, 19 [#allocation2]
        %v7270 = vld [vmem:[%s7269] ss:$8 sm:$0x3]
        %s7271 = scalar_lea.vmem %s364, 51 [#allocation2]
        %v7272 = vld [vmem:[%s7271] ss:$8 sm:$0x3]
        %s7273 = scalar_lea.vmem %s364, 83 [#allocation2]
        %v7274 = vld [vmem:[%s7273] ss:$8 sm:$0x3]
        %v7276 = vlaneseq
        %v7277 = vshrl.u32 %v7276, 7
        %v7278 = vsub.s32 0, %v7277
        %v7279 = vrot.slane %v7270, %v7278
        %v7280 = vlaneseq
        %v7281 = vshrl.u32 %v7280, 7
        %v7282 = vsub.s32 1, %v7281
        %v7283 = vrot.slane %v7270, %v7282
        %v7286 = vmul.f32 %v537, %v7279
        %v7287 = vmul.f32 %v537, %v7283
        %v7288 = vmul.f32 %v542, %v7279
        %v7289 = vmul.f32 %v542, %v7283
        %v7290 = vmul.f32 %v547, %v7279
        %v7291 = vmul.f32 %v547, %v7283
        %v7292 = vmul.f32 %v552, %v7279
        %v7293 = vmul.f32 %v552, %v7283
        %v7295 = vlaneseq
        %v7296 = vshrl.u32 %v7295, 7
        %v7297 = vsub.s32 0, %v7296
        %v7298 = vrot.slane %v7272, %v7297
        %v7299 = vlaneseq
        %v7300 = vshrl.u32 %v7299, 7
        %v7301 = vsub.s32 1, %v7300
        %v7302 = vrot.slane %v7272, %v7301
        %v7305 = vmul.f32 %v575, %v7298
        %v7306 = vmul.f32 %v575, %v7302
        %v7307 = vmul.f32 %v579, %v7298
        %v7308 = vmul.f32 %v579, %v7302
        %v7309 = vmul.f32 %v583, %v7298
        %v7310 = vmul.f32 %v583, %v7302
        %v7311 = vmul.f32 %v587, %v7298
        %v7312 = vmul.f32 %v587, %v7302
        %v7313 = vadd.f32 %v7286, %v7305
        %v7314 = vadd.f32 %v7287, %v7306
        %v7315 = vadd.f32 %v7288, %v7307
        %v7316 = vadd.f32 %v7289, %v7308
        %v7317 = vadd.f32 %v7290, %v7309
        %v7318 = vadd.f32 %v7291, %v7310
        %v7319 = vadd.f32 %v7292, %v7311
        %v7320 = vadd.f32 %v7293, %v7312
        %v7322 = vlaneseq
        %v7323 = vshrl.u32 %v7322, 7
        %v7324 = vsub.s32 0, %v7323
        %v7325 = vrot.slane %v7274, %v7324
        %v7326 = vlaneseq
        %v7327 = vshrl.u32 %v7326, 7
        %v7328 = vsub.s32 1, %v7327
        %v7329 = vrot.slane %v7274, %v7328
        %v7332 = vmul.f32 %v618, %v7325
        %v7333 = vmul.f32 %v618, %v7329
        %v7334 = vmul.f32 %v622, %v7325
        %v7335 = vmul.f32 %v622, %v7329
        %v7336 = vmul.f32 %v626, %v7325
        %v7337 = vmul.f32 %v626, %v7329
        %v7338 = vmul.f32 %v630, %v7325
        %v7339 = vmul.f32 %v630, %v7329
        %v7340 = vadd.f32 %v7313, %v7332
        %v7341 = vadd.f32 %v7314, %v7333
        %v7342 = vadd.f32 %v7315, %v7334
        %v7343 = vadd.f32 %v7316, %v7335
        %v7344 = vadd.f32 %v7317, %v7336
        %v7345 = vadd.f32 %v7318, %v7337
        %v7346 = vadd.f32 %v7319, %v7338
        %v7347 = vadd.f32 %v7320, %v7339
        %v7348 = vadd.f32 %v7340, %v662
        %v7349 = vadd.f32 %v7341, %v662
        %v7350 = vadd.f32 %v7342, %v667
        %v7351 = vadd.f32 %v7343, %v667
        %v7352 = vadd.f32 %v7344, %v672
        %v7353 = vadd.f32 %v7345, %v672
        %v7354 = vadd.f32 %v7346, %v677
        %v7355 = vadd.f32 %v7347, %v677
        %v7356 = vmax.f32 %v7348, 0.0
        %v7357 = vmax.f32 %v7349, 0.0
        %v7358 = vmax.f32 %v7350, 0.0
        %v7359 = vmax.f32 %v7351, 0.0
        %v7360 = vmax.f32 %v7352, 0.0
        %v7361 = vmax.f32 %v7353, 0.0
        %v7362 = vmax.f32 %v7354, 0.0
        %v7363 = vmax.f32 %v7355, 0.0
        %v7364 = vpack.c.bf16 %v7358, %v7356
        %v7365 = vpack.c.bf16 %v7359, %v7357
        %v7366 = vpack.c.bf16 %v7362, %v7360
        %v7367 = vpack.c.bf16 %v7363, %v7361
        %7368 = vmatprep.subr.bf16.mxu0 %v7365
        %7369 = vmatpush1.bf16.msra.mxu0 %v7364
        %7370 = vmatprep.subr.bf16.mxu0 %v7367
        %7371 = vmatpush1.bf16.msra.mxu0 %v7366
        %7372 = vmatprep.subr.bf16.mxu0 0
        %7373 = vmatpush1.bf16.msra.mxu0 0
        %7374 = vmatprep.subr.bf16.mxu0 0
        %7375 = vmatpush1.bf16.msra.mxu0 0
        %7376 = vmatprep.subr.bf16.mxu0 0
        %7377 = vmatpush1.bf16.msra.mxu0 0
        %7378 = vmatprep.subr.bf16.mxu0 0
        %7379 = vmatpush1.bf16.msra.mxu0 0
        %7380 = vmatprep.subr.bf16.mxu0 0
        %7381 = vmatpush1.bf16.msra.mxu0 0
        %7382 = vmatprep.subr.bf16.mxu0 0
        %7383 = vmatpush1.bf16.msra.mxu0 0
        %7384 = vmatprep.subr.bf16.mxu0 0
        %7385 = vmatpush1.bf16.msra.mxu0 0
        %7386 = vmatprep.subr.bf16.mxu0 0
        %7387 = vmatpush1.bf16.msra.mxu0 0
        %7388 = vmatprep.subr.bf16.mxu0 0
        %7389 = vmatpush1.bf16.msra.mxu0 0
        %7390 = vmatprep.subr.bf16.mxu0 0
        %7391 = vmatpush1.bf16.msra.mxu0 0
        %7392 = vmatprep.subr.bf16.mxu0 0
        %7393 = vmatpush1.bf16.msra.mxu0 0
        %7394 = vmatprep.subr.bf16.mxu0 0
        %7395 = vmatpush1.bf16.msra.mxu0 0
        %7396 = vmatprep.subr.bf16.mxu0 0
        %7397 = vmatpush1.bf16.msra.mxu0 0
        %7398 = vmatprep.subr.bf16.mxu0 0
        %7399 = vmatpush1.bf16.msra.mxu0 0
        %7400 = vmatprep.mubr.bf16.mxu0 0
        %7401 = vmatmul.mubr.bf16.gmra.mrb[0].mxu0 %v731
        %v7402 = vpop.f32.mrb[0].mxu0
        %v7403 = vadd.f32 %v702, %v7402
        %v7404 = vpop.f32.mrb[0].mxu0
        %v7405 = vadd.f32 %v702, %v7404
        %v7406 = vpop.f32.mrb[0].mxu0
        %v7407 = vadd.f32 %v707, %v7406
        %v7408 = vpop.f32.mrb[0].mxu0
        %v7409 = vadd.f32 %v707, %v7408
        %7410 = vmatprep.mubr.bf16.mxu0 0
        %7411 = vmatmul.mubr.bf16.gmra.mrb[0].mxu0 %v734
        %v7412 = vpop.f32.mrb[0].mxu0
        %v7413 = vadd.f32 %v712, %v7412
        %v7414 = vpop.f32.mrb[0].mxu0
        %v7415 = vadd.f32 %v712, %v7414
        %v7416 = vpop.f32.mrb[0].mxu0
        %v7417 = vadd.f32 %v717, %v7416
        %v7418 = vpop.f32.mrb[0].mxu0
        %v7419 = vadd.f32 %v717, %v7418
        %7420 = vdwg.mxu0
        %v7429 = vrot.slane %v7403, 5
        %v7430 = vrot.slane %v7405, 5
        %v7431 = vrot.slane %v7403, 6
        %v7432 = vrot.slane %v7405, 6
        %v7433 = vrot.slane %v7403, 7
        %v7434 = vrot.slane %v7405, 7
        %v7435 = vrot.slane %v7403, 1
        %v7436 = vrot.slane %v7405, 1
        %v7437 = vrot.slane %v7403, 2
        %v7438 = vrot.slane %v7405, 2
        %v7439 = vrot.slane %v7403, 3
        %v7440 = vrot.slane %v7405, 3
        %v7441 = vrot.slane %v7403, 4
        %v7442 = vrot.slane %v7405, 4
        %v7443 = vrot.slane %v7407, 5
        %v7444 = vrot.slane %v7409, 5
        %v7445 = vrot.slane %v7407, 6
        %v7446 = vrot.slane %v7409, 6
        %v7447 = vrot.slane %v7407, 7
        %v7448 = vrot.slane %v7409, 7
        %v7449 = vrot.slane %v7407, 1
        %v7450 = vrot.slane %v7409, 1
        %v7451 = vrot.slane %v7407, 2
        %v7452 = vrot.slane %v7409, 2
        %v7453 = vrot.slane %v7407, 3
        %v7454 = vrot.slane %v7409, 3
        %v7455 = vrot.slane %v7407, 4
        %v7456 = vrot.slane %v7409, 4
        %v7457 = vrot.slane %v7413, 5
        %v7458 = vrot.slane %v7415, 5
        %v7459 = vrot.slane %v7413, 6
        %v7460 = vrot.slane %v7415, 6
        %v7461 = vrot.slane %v7413, 7
        %v7462 = vrot.slane %v7415, 7
        %v7463 = vrot.slane %v7413, 1
        %v7464 = vrot.slane %v7415, 1
        %v7465 = vrot.slane %v7413, 2
        %v7466 = vrot.slane %v7415, 2
        %v7467 = vrot.slane %v7413, 3
        %v7468 = vrot.slane %v7415, 3
        %v7469 = vrot.slane %v7413, 4
        %v7470 = vrot.slane %v7415, 4
        %v7471 = vrot.slane %v7417, 5
        %v7472 = vrot.slane %v7419, 5
        %v7473 = vrot.slane %v7417, 6
        %v7474 = vrot.slane %v7419, 6
        %v7475 = vrot.slane %v7417, 7
        %v7476 = vrot.slane %v7419, 7
        %v7477 = vrot.slane %v7417, 1
        %v7478 = vrot.slane %v7419, 1
        %v7479 = vrot.slane %v7417, 2
        %v7480 = vrot.slane %v7419, 2
        %v7481 = vrot.slane %v7417, 3
        %v7482 = vrot.slane %v7419, 3
        %v7483 = vrot.slane %v7417, 4
        %v7484 = vrot.slane %v7419, 4
        %v7549 = vmul.f32 %v6611, %v7429
        %v7550 = vmul.f32 %v6612, %v7430
        %v7551 = vmul.f32 %v6613, %v7431
        %v7552 = vmul.f32 %v6614, %v7432
        %v7553 = vmul.f32 %v6615, %v7433
        %v7554 = vmul.f32 %v6616, %v7434
        %v7555 = vmul.f32 %v6617, %v7403
        %v7556 = vmul.f32 %v6618, %v7405
        %v7557 = vmul.f32 %v6619, %v7435
        %v7558 = vmul.f32 %v6620, %v7436
        %v7559 = vmul.f32 %v6621, %v7437
        %v7560 = vmul.f32 %v6622, %v7438
        %v7561 = vmul.f32 %v6623, %v7439
        %v7562 = vmul.f32 %v6624, %v7440
        %v7563 = vmul.f32 %v6625, %v7441
        %v7564 = vmul.f32 %v6626, %v7442
        %v7565 = vmul.f32 %v6627, %v7443
        %v7566 = vmul.f32 %v6628, %v7444
        %v7567 = vmul.f32 %v6629, %v7445
        %v7568 = vmul.f32 %v6630, %v7446
        %v7569 = vmul.f32 %v6631, %v7447
        %v7570 = vmul.f32 %v6632, %v7448
        %v7571 = vmul.f32 %v6633, %v7407
        %v7572 = vmul.f32 %v6634, %v7409
        %v7573 = vmul.f32 %v6635, %v7449
        %v7574 = vmul.f32 %v6636, %v7450
        %v7575 = vmul.f32 %v6637, %v7451
        %v7576 = vmul.f32 %v6638, %v7452
        %v7577 = vmul.f32 %v6639, %v7453
        %v7578 = vmul.f32 %v6640, %v7454
        %v7579 = vmul.f32 %v6641, %v7455
        %v7580 = vmul.f32 %v6642, %v7456
        %v7581 = vmul.f32 %v6643, %v7457
        %v7582 = vmul.f32 %v6644, %v7458
        %v7583 = vmul.f32 %v6645, %v7459
        %v7584 = vmul.f32 %v6646, %v7460
        %v7585 = vmul.f32 %v6647, %v7461
        %v7586 = vmul.f32 %v6648, %v7462
        %v7587 = vmul.f32 %v6649, %v7413
        %v7588 = vmul.f32 %v6650, %v7415
        %v7589 = vmul.f32 %v6651, %v7463
        %v7590 = vmul.f32 %v6652, %v7464
        %v7591 = vmul.f32 %v6653, %v7465
        %v7592 = vmul.f32 %v6654, %v7466
        %v7593 = vmul.f32 %v6655, %v7467
        %v7594 = vmul.f32 %v6656, %v7468
        %v7595 = vmul.f32 %v6657, %v7469
        %v7596 = vmul.f32 %v6658, %v7470
        %v7597 = vmul.f32 %v6659, %v7471
        %v7598 = vmul.f32 %v6660, %v7472
        %v7599 = vmul.f32 %v6661, %v7473
        %v7600 = vmul.f32 %v6662, %v7474
        %v7601 = vmul.f32 %v6663, %v7475
        %v7602 = vmul.f32 %v6664, %v7476
        %v7603 = vmul.f32 %v6665, %v7417
        %v7604 = vmul.f32 %v6666, %v7419
        %v7605 = vmul.f32 %v6667, %v7477
        %v7606 = vmul.f32 %v6668, %v7478
        %v7607 = vmul.f32 %v6669, %v7479
        %v7608 = vmul.f32 %v6670, %v7480
        %v7609 = vmul.f32 %v6671, %v7481
        %v7610 = vmul.f32 %v6672, %v7482
        %v7611 = vmul.f32 %v6673, %v7483
        %v7612 = vmul.f32 %v6674, %v7484
        %v7677 = vrot.slane %v7549, 3
        %v7678 = vrot.slane %v7550, 3
        %v7679 = vrot.slane %v7551, 3
        %v7680 = vrot.slane %v7552, 3
        %v7681 = vrot.slane %v7553, 3
        %v7682 = vrot.slane %v7554, 3
        %v7683 = vrot.slane %v7555, 3
        %v7684 = vrot.slane %v7556, 3
        %v7685 = vrot.slane %v7557, 3
        %v7686 = vrot.slane %v7558, 3
        %v7687 = vrot.slane %v7559, 3
        %v7688 = vrot.slane %v7560, 3
        %v7689 = vrot.slane %v7561, 3
        %v7690 = vrot.slane %v7562, 3
        %v7691 = vrot.slane %v7563, 3
        %v7692 = vrot.slane %v7564, 3
        %v7693 = vrot.slane %v7565, 3
        %v7694 = vrot.slane %v7566, 3
        %v7695 = vrot.slane %v7567, 3
        %v7696 = vrot.slane %v7568, 3
        %v7697 = vrot.slane %v7569, 3
        %v7698 = vrot.slane %v7570, 3
        %v7699 = vrot.slane %v7571, 3
        %v7700 = vrot.slane %v7572, 3
        %v7701 = vrot.slane %v7573, 3
        %v7702 = vrot.slane %v7574, 3
        %v7703 = vrot.slane %v7575, 3
        %v7704 = vrot.slane %v7576, 3
        %v7705 = vrot.slane %v7577, 3
        %v7706 = vrot.slane %v7578, 3
        %v7707 = vrot.slane %v7579, 3
        %v7708 = vrot.slane %v7580, 3
        %v7709 = vrot.slane %v7581, 3
        %v7710 = vrot.slane %v7582, 3
        %v7711 = vrot.slane %v7583, 3
        %v7712 = vrot.slane %v7584, 3
        %v7713 = vrot.slane %v7585, 3
        %v7714 = vrot.slane %v7586, 3
        %v7715 = vrot.slane %v7587, 3
        %v7716 = vrot.slane %v7588, 3
        %v7717 = vrot.slane %v7589, 3
        %v7718 = vrot.slane %v7590, 3
        %v7719 = vrot.slane %v7591, 3
        %v7720 = vrot.slane %v7592, 3
        %v7721 = vrot.slane %v7593, 3
        %v7722 = vrot.slane %v7594, 3
        %v7723 = vrot.slane %v7595, 3
        %v7724 = vrot.slane %v7596, 3
        %v7725 = vrot.slane %v7597, 3
        %v7726 = vrot.slane %v7598, 3
        %v7727 = vrot.slane %v7599, 3
        %v7728 = vrot.slane %v7600, 3
        %v7729 = vrot.slane %v7601, 3
        %v7730 = vrot.slane %v7602, 3
        %v7731 = vrot.slane %v7603, 3
        %v7732 = vrot.slane %v7604, 3
        %v7733 = vrot.slane %v7605, 3
        %v7734 = vrot.slane %v7606, 3
        %v7735 = vrot.slane %v7607, 3
        %v7736 = vrot.slane %v7608, 3
        %v7737 = vrot.slane %v7609, 3
        %v7738 = vrot.slane %v7610, 3
        %v7739 = vrot.slane %v7611, 3
        %v7740 = vrot.slane %v7612, 3
        %v7805 = vmax.f32 %v7205, %v7677
        %v7806 = vmax.f32 %v7206, %v7678
        %v7807 = vmax.f32 %v7207, %v7679
        %v7808 = vmax.f32 %v7208, %v7680
        %v7809 = vmax.f32 %v7209, %v7681
        %v7810 = vmax.f32 %v7210, %v7682
        %v7811 = vmax.f32 %v7211, %v7683
        %v7812 = vmax.f32 %v7212, %v7684
        %v7813 = vmax.f32 %v7213, %v7685
        %v7814 = vmax.f32 %v7214, %v7686
        %v7815 = vmax.f32 %v7215, %v7687
        %v7816 = vmax.f32 %v7216, %v7688
        %v7817 = vmax.f32 %v7217, %v7689
        %v7818 = vmax.f32 %v7218, %v7690
        %v7819 = vmax.f32 %v7219, %v7691
        %v7820 = vmax.f32 %v7220, %v7692
        %v7821 = vmax.f32 %v7221, %v7693
        %v7822 = vmax.f32 %v7222, %v7694
        %v7823 = vmax.f32 %v7223, %v7695
        %v7824 = vmax.f32 %v7224, %v7696
        %v7825 = vmax.f32 %v7225, %v7697
        %v7826 = vmax.f32 %v7226, %v7698
        %v7827 = vmax.f32 %v7227, %v7699
        %v7828 = vmax.f32 %v7228, %v7700
        %v7829 = vmax.f32 %v7229, %v7701
        %v7830 = vmax.f32 %v7230, %v7702
        %v7831 = vmax.f32 %v7231, %v7703
        %v7832 = vmax.f32 %v7232, %v7704
        %v7833 = vmax.f32 %v7233, %v7705
        %v7834 = vmax.f32 %v7234, %v7706
        %v7835 = vmax.f32 %v7235, %v7707
        %v7836 = vmax.f32 %v7236, %v7708
        %v7837 = vmax.f32 %v7237, %v7709
        %v7838 = vmax.f32 %v7238, %v7710
        %v7839 = vmax.f32 %v7239, %v7711
        %v7840 = vmax.f32 %v7240, %v7712
        %v7841 = vmax.f32 %v7241, %v7713
        %v7842 = vmax.f32 %v7242, %v7714
        %v7843 = vmax.f32 %v7243, %v7715
        %v7844 = vmax.f32 %v7244, %v7716
        %v7845 = vmax.f32 %v7245, %v7717
        %v7846 = vmax.f32 %v7246, %v7718
        %v7847 = vmax.f32 %v7247, %v7719
        %v7848 = vmax.f32 %v7248, %v7720
        %v7849 = vmax.f32 %v7249, %v7721
        %v7850 = vmax.f32 %v7250, %v7722
        %v7851 = vmax.f32 %v7251, %v7723
        %v7852 = vmax.f32 %v7252, %v7724
        %v7853 = vmax.f32 %v7253, %v7725
        %v7854 = vmax.f32 %v7254, %v7726
        %v7855 = vmax.f32 %v7255, %v7727
        %v7856 = vmax.f32 %v7256, %v7728
        %v7857 = vmax.f32 %v7257, %v7729
        %v7858 = vmax.f32 %v7258, %v7730
        %v7859 = vmax.f32 %v7259, %v7731
        %v7860 = vmax.f32 %v7260, %v7732
        %v7861 = vmax.f32 %v7261, %v7733
        %v7862 = vmax.f32 %v7262, %v7734
        %v7863 = vmax.f32 %v7263, %v7735
        %v7864 = vmax.f32 %v7264, %v7736
        %v7865 = vmax.f32 %v7265, %v7737
        %v7866 = vmax.f32 %v7266, %v7738
        %v7867 = vmax.f32 %v7267, %v7739
        %v7868 = vmax.f32 %v7268, %v7740
        %s7869 = scalar_lea.vmem %s364, 20 [#allocation2]
        %v7870 = vld [vmem:[%s7869] ss:$8 sm:$0x3]
        %s7871 = scalar_lea.vmem %s364, 52 [#allocation2]
        %v7872 = vld [vmem:[%s7871] ss:$8 sm:$0x3]
        %s7873 = scalar_lea.vmem %s364, 84 [#allocation2]
        %v7874 = vld [vmem:[%s7873] ss:$8 sm:$0x3]
        %v7875 = vld [vmem:[%s373 + $0x8] sm:$0x44]
        %v7876 = vld [vmem:[%s373 + $0x18] sm:$0x44]
        %v7877 = vld [vmem:[%s373 + $0x28] sm:$0x44]
        %v7878 = vld [vmem:[%s373 + $0x38] sm:$0x44]
        %v7879 = vld [vmem:[%s373 + $0x48] sm:$0x44]
        %v7880 = vld [vmem:[%s373 + $0x58] sm:$0x44]
        %v7881 = vld [vmem:[%s373 + $0x68] sm:$0x44]
        %v7882 = vld [vmem:[%s373 + $0x78] sm:$0x44]
        %v7883 = vld [vmem:[%s373 + $0x88] sm:$0x44]
        %v7884 = vld [vmem:[%s373 + $0x98] sm:$0x44]
        %v7885 = vld [vmem:[%s373 + $0xa8] sm:$0x44]
        %v7886 = vld [vmem:[%s373 + $0xb8] sm:$0x44]
        %v7887 = vld [vmem:[%s373 + $0xc8] sm:$0x44]
        %v7888 = vld [vmem:[%s373 + $0xd8] sm:$0x44]
        %v7889 = vld [vmem:[%s373 + $0xe8] sm:$0x44]
        %v7890 = vld [vmem:[%s373 + $0xf8] sm:$0x44]
        %v7891 = vld [vmem:[%s373 + $0x108] sm:$0x44]
        %v7892 = vld [vmem:[%s373 + $0x118] sm:$0x44]
        %v7893 = vld [vmem:[%s373 + $0x128] sm:$0x44]
        %v7894 = vld [vmem:[%s373 + $0x138] sm:$0x44]
        %v7895 = vld [vmem:[%s373 + $0x148] sm:$0x44]
        %v7896 = vld [vmem:[%s373 + $0x158] sm:$0x44]
        %v7897 = vld [vmem:[%s373 + $0x168] sm:$0x44]
        %v7898 = vld [vmem:[%s373 + $0x178] sm:$0x44]
        %v7899 = vld [vmem:[%s373 + $0x188] sm:$0x44]
        %v7900 = vld [vmem:[%s373 + $0x198] sm:$0x44]
        %v7901 = vld [vmem:[%s373 + $0x1a8] sm:$0x44]
        %v7902 = vld [vmem:[%s373 + $0x1b8] sm:$0x44]
        %v7903 = vld [vmem:[%s373 + $0x1c8] sm:$0x44]
        %v7904 = vld [vmem:[%s373 + $0x1d8] sm:$0x44]
        %v7905 = vld [vmem:[%s373 + $0x1e8] sm:$0x44]
        %v7906 = vld [vmem:[%s373 + $0x1f8] sm:$0x44]
        %v7907 = vunpack.c.l.bf16 %v7875
        %v7908 = vunpack.c.h.bf16 %v7875
        %v7909 = vunpack.c.l.bf16 %v7876
        %v7910 = vunpack.c.h.bf16 %v7876
        %v7911 = vunpack.c.l.bf16 %v7877
        %v7912 = vunpack.c.h.bf16 %v7877
        %v7913 = vunpack.c.l.bf16 %v7878
        %v7914 = vunpack.c.h.bf16 %v7878
        %v7915 = vunpack.c.l.bf16 %v7879
        %v7916 = vunpack.c.h.bf16 %v7879
        %v7917 = vunpack.c.l.bf16 %v7880
        %v7918 = vunpack.c.h.bf16 %v7880
        %v7919 = vunpack.c.l.bf16 %v7881
        %v7920 = vunpack.c.h.bf16 %v7881
        %v7921 = vunpack.c.l.bf16 %v7882
        %v7922 = vunpack.c.h.bf16 %v7882
        %v7923 = vunpack.c.l.bf16 %v7883
        %v7924 = vunpack.c.h.bf16 %v7883
        %v7925 = vunpack.c.l.bf16 %v7884
        %v7926 = vunpack.c.h.bf16 %v7884
        %v7927 = vunpack.c.l.bf16 %v7885
        %v7928 = vunpack.c.h.bf16 %v7885
        %v7929 = vunpack.c.l.bf16 %v7886
        %v7930 = vunpack.c.h.bf16 %v7886
        %v7931 = vunpack.c.l.bf16 %v7887
        %v7932 = vunpack.c.h.bf16 %v7887
        %v7933 = vunpack.c.l.bf16 %v7888
        %v7934 = vunpack.c.h.bf16 %v7888
        %v7935 = vunpack.c.l.bf16 %v7889
        %v7936 = vunpack.c.h.bf16 %v7889
        %v7937 = vunpack.c.l.bf16 %v7890
        %v7938 = vunpack.c.h.bf16 %v7890
        %v7939 = vunpack.c.l.bf16 %v7891
        %v7940 = vunpack.c.h.bf16 %v7891
        %v7941 = vunpack.c.l.bf16 %v7892
        %v7942 = vunpack.c.h.bf16 %v7892
        %v7943 = vunpack.c.l.bf16 %v7893
        %v7944 = vunpack.c.h.bf16 %v7893
        %v7945 = vunpack.c.l.bf16 %v7894
        %v7946 = vunpack.c.h.bf16 %v7894
        %v7947 = vunpack.c.l.bf16 %v7895
        %v7948 = vunpack.c.h.bf16 %v7895
        %v7949 = vunpack.c.l.bf16 %v7896
        %v7950 = vunpack.c.h.bf16 %v7896
        %v7951 = vunpack.c.l.bf16 %v7897
        %v7952 = vunpack.c.h.bf16 %v7897
        %v7953 = vunpack.c.l.bf16 %v7898
        %v7954 = vunpack.c.h.bf16 %v7898
        %v7955 = vunpack.c.l.bf16 %v7899
        %v7956 = vunpack.c.h.bf16 %v7899
        %v7957 = vunpack.c.l.bf16 %v7900
        %v7958 = vunpack.c.h.bf16 %v7900
        %v7959 = vunpack.c.l.bf16 %v7901
        %v7960 = vunpack.c.h.bf16 %v7901
        %v7961 = vunpack.c.l.bf16 %v7902
        %v7962 = vunpack.c.h.bf16 %v7902
        %v7963 = vunpack.c.l.bf16 %v7903
        %v7964 = vunpack.c.h.bf16 %v7903
        %v7965 = vunpack.c.l.bf16 %v7904
        %v7966 = vunpack.c.h.bf16 %v7904
        %v7967 = vunpack.c.l.bf16 %v7905
        %v7968 = vunpack.c.h.bf16 %v7905
        %v7969 = vunpack.c.l.bf16 %v7906
        %v7970 = vunpack.c.h.bf16 %v7906
        %v7972 = vlaneseq
        %v7973 = vshrl.u32 %v7972, 7
        %v7974 = vsub.s32 0, %v7973
        %v7975 = vrot.slane %v7870, %v7974
        %v7976 = vlaneseq
        %v7977 = vshrl.u32 %v7976, 7
        %v7978 = vsub.s32 1, %v7977
        %v7979 = vrot.slane %v7870, %v7978
        %v7982 = vmul.f32 %v537, %v7975
        %v7983 = vmul.f32 %v537, %v7979
        %v7984 = vmul.f32 %v542, %v7975
        %v7985 = vmul.f32 %v542, %v7979
        %v7986 = vmul.f32 %v547, %v7975
        %v7987 = vmul.f32 %v547, %v7979
        %v7988 = vmul.f32 %v552, %v7975
        %v7989 = vmul.f32 %v552, %v7979
        %v7991 = vlaneseq
        %v7992 = vshrl.u32 %v7991, 7
        %v7993 = vsub.s32 0, %v7992
        %v7994 = vrot.slane %v7872, %v7993
        %v7995 = vlaneseq
        %v7996 = vshrl.u32 %v7995, 7
        %v7997 = vsub.s32 1, %v7996
        %v7998 = vrot.slane %v7872, %v7997
        %v8001 = vmul.f32 %v575, %v7994
        %v8002 = vmul.f32 %v575, %v7998
        %v8003 = vmul.f32 %v579, %v7994
        %v8004 = vmul.f32 %v579, %v7998
        %v8005 = vmul.f32 %v583, %v7994
        %v8006 = vmul.f32 %v583, %v7998
        %v8007 = vmul.f32 %v587, %v7994
        %v8008 = vmul.f32 %v587, %v7998
        %v8009 = vadd.f32 %v7982, %v8001
        %v8010 = vadd.f32 %v7983, %v8002
        %v8011 = vadd.f32 %v7984, %v8003
        %v8012 = vadd.f32 %v7985, %v8004
        %v8013 = vadd.f32 %v7986, %v8005
        %v8014 = vadd.f32 %v7987, %v8006
        %v8015 = vadd.f32 %v7988, %v8007
        %v8016 = vadd.f32 %v7989, %v8008
        %v8018 = vlaneseq
        %v8019 = vshrl.u32 %v8018, 7
        %v8020 = vsub.s32 0, %v8019
        %v8021 = vrot.slane %v7874, %v8020
        %v8022 = vlaneseq
        %v8023 = vshrl.u32 %v8022, 7
        %v8024 = vsub.s32 1, %v8023
        %v8025 = vrot.slane %v7874, %v8024
        %v8028 = vmul.f32 %v618, %v8021
        %v8029 = vmul.f32 %v618, %v8025
        %v8030 = vmul.f32 %v622, %v8021
        %v8031 = vmul.f32 %v622, %v8025
        %v8032 = vmul.f32 %v626, %v8021
        %v8033 = vmul.f32 %v626, %v8025
        %v8034 = vmul.f32 %v630, %v8021
        %v8035 = vmul.f32 %v630, %v8025
        %v8036 = vadd.f32 %v8009, %v8028
        %v8037 = vadd.f32 %v8010, %v8029
        %v8038 = vadd.f32 %v8011, %v8030
        %v8039 = vadd.f32 %v8012, %v8031
        %v8040 = vadd.f32 %v8013, %v8032
        %v8041 = vadd.f32 %v8014, %v8033
        %v8042 = vadd.f32 %v8015, %v8034
        %v8043 = vadd.f32 %v8016, %v8035
        %v8044 = vadd.f32 %v8036, %v662
        %v8045 = vadd.f32 %v8037, %v662
        %v8046 = vadd.f32 %v8038, %v667
        %v8047 = vadd.f32 %v8039, %v667
        %v8048 = vadd.f32 %v8040, %v672
        %v8049 = vadd.f32 %v8041, %v672
        %v8050 = vadd.f32 %v8042, %v677
        %v8051 = vadd.f32 %v8043, %v677
        %v8052 = vmax.f32 %v8044, 0.0
        %v8053 = vmax.f32 %v8045, 0.0
        %v8054 = vmax.f32 %v8046, 0.0
        %v8055 = vmax.f32 %v8047, 0.0
        %v8056 = vmax.f32 %v8048, 0.0
        %v8057 = vmax.f32 %v8049, 0.0
        %v8058 = vmax.f32 %v8050, 0.0
        %v8059 = vmax.f32 %v8051, 0.0
        %v8060 = vpack.c.bf16 %v8054, %v8052
        %v8061 = vpack.c.bf16 %v8055, %v8053
        %v8062 = vpack.c.bf16 %v8058, %v8056
        %v8063 = vpack.c.bf16 %v8059, %v8057
        %8064 = vmatprep.subr.bf16.mxu0 %v8061
        %8065 = vmatpush1.bf16.msra.mxu0 %v8060
        %8066 = vmatprep.subr.bf16.mxu0 %v8063
        %8067 = vmatpush1.bf16.msra.mxu0 %v8062
        %8068 = vmatprep.subr.bf16.mxu0 0
        %8069 = vmatpush1.bf16.msra.mxu0 0
        %8070 = vmatprep.subr.bf16.mxu0 0
        %8071 = vmatpush1.bf16.msra.mxu0 0
        %8072 = vmatprep.subr.bf16.mxu0 0
        %8073 = vmatpush1.bf16.msra.mxu0 0
        %8074 = vmatprep.subr.bf16.mxu0 0
        %8075 = vmatpush1.bf16.msra.mxu0 0
        %8076 = vmatprep.subr.bf16.mxu0 0
        %8077 = vmatpush1.bf16.msra.mxu0 0
        %8078 = vmatprep.subr.bf16.mxu0 0
        %8079 = vmatpush1.bf16.msra.mxu0 0
        %8080 = vmatprep.subr.bf16.mxu0 0
        %8081 = vmatpush1.bf16.msra.mxu0 0
        %8082 = vmatprep.subr.bf16.mxu0 0
        %8083 = vmatpush1.bf16.msra.mxu0 0
        %8084 = vmatprep.subr.bf16.mxu0 0
        %8085 = vmatpush1.bf16.msra.mxu0 0
        %8086 = vmatprep.subr.bf16.mxu0 0
        %8087 = vmatpush1.bf16.msra.mxu0 0
        %8088 = vmatprep.subr.bf16.mxu0 0
        %8089 = vmatpush1.bf16.msra.mxu0 0
        %8090 = vmatprep.subr.bf16.mxu0 0
        %8091 = vmatpush1.bf16.msra.mxu0 0
        %8092 = vmatprep.subr.bf16.mxu0 0
        %8093 = vmatpush1.bf16.msra.mxu0 0
        %8094 = vmatprep.subr.bf16.mxu0 0
        %8095 = vmatpush1.bf16.msra.mxu0 0
        %8096 = vmatprep.mubr.bf16.mxu0 0
        %8097 = vmatmul.mubr.bf16.gmra.mrb[0].mxu0 %v731
        %v8098 = vpop.f32.mrb[0].mxu0
        %v8099 = vadd.f32 %v702, %v8098
        %v8100 = vpop.f32.mrb[0].mxu0
        %v8101 = vadd.f32 %v702, %v8100
        %v8102 = vpop.f32.mrb[0].mxu0
        %v8103 = vadd.f32 %v707, %v8102
        %v8104 = vpop.f32.mrb[0].mxu0
        %v8105 = vadd.f32 %v707, %v8104
        %8106 = vmatprep.mubr.bf16.mxu0 0
        %8107 = vmatmul.mubr.bf16.gmra.mrb[0].mxu0 %v734
        %v8108 = vpop.f32.mrb[0].mxu0
        %v8109 = vadd.f32 %v712, %v8108
        %v8110 = vpop.f32.mrb[0].mxu0
        %v8111 = vadd.f32 %v712, %v8110
        %v8112 = vpop.f32.mrb[0].mxu0
        %v8113 = vadd.f32 %v717, %v8112
        %v8114 = vpop.f32.mrb[0].mxu0
        %v8115 = vadd.f32 %v717, %v8114
        %8116 = vdwg.mxu0
        %v8125 = vrot.slane %v8099, 4
        %v8126 = vrot.slane %v8101, 4
        %v8127 = vrot.slane %v8099, 5
        %v8128 = vrot.slane %v8101, 5
        %v8129 = vrot.slane %v8099, 6
        %v8130 = vrot.slane %v8101, 6
        %v8131 = vrot.slane %v8099, 7
        %v8132 = vrot.slane %v8101, 7
        %v8133 = vrot.slane %v8099, 1
        %v8134 = vrot.slane %v8101, 1
        %v8135 = vrot.slane %v8099, 2
        %v8136 = vrot.slane %v8101, 2
        %v8137 = vrot.slane %v8099, 3
        %v8138 = vrot.slane %v8101, 3
        %v8139 = vrot.slane %v8103, 4
        %v8140 = vrot.slane %v8105, 4
        %v8141 = vrot.slane %v8103, 5
        %v8142 = vrot.slane %v8105, 5
        %v8143 = vrot.slane %v8103, 6
        %v8144 = vrot.slane %v8105, 6
        %v8145 = vrot.slane %v8103, 7
        %v8146 = vrot.slane %v8105, 7
        %v8147 = vrot.slane %v8103, 1
        %v8148 = vrot.slane %v8105, 1
        %v8149 = vrot.slane %v8103, 2
        %v8150 = vrot.slane %v8105, 2
        %v8151 = vrot.slane %v8103, 3
        %v8152 = vrot.slane %v8105, 3
        %v8153 = vrot.slane %v8109, 4
        %v8154 = vrot.slane %v8111, 4
        %v8155 = vrot.slane %v8109, 5
        %v8156 = vrot.slane %v8111, 5
        %v8157 = vrot.slane %v8109, 6
        %v8158 = vrot.slane %v8111, 6
        %v8159 = vrot.slane %v8109, 7
        %v8160 = vrot.slane %v8111, 7
        %v8161 = vrot.slane %v8109, 1
        %v8162 = vrot.slane %v8111, 1
        %v8163 = vrot.slane %v8109, 2
        %v8164 = vrot.slane %v8111, 2
        %v8165 = vrot.slane %v8109, 3
        %v8166 = vrot.slane %v8111, 3
        %v8167 = vrot.slane %v8113, 4
        %v8168 = vrot.slane %v8115, 4
        %v8169 = vrot.slane %v8113, 5
        %v8170 = vrot.slane %v8115, 5
        %v8171 = vrot.slane %v8113, 6
        %v8172 = vrot.slane %v8115, 6
        %v8173 = vrot.slane %v8113, 7
        %v8174 = vrot.slane %v8115, 7
        %v8175 = vrot.slane %v8113, 1
        %v8176 = vrot.slane %v8115, 1
        %v8177 = vrot.slane %v8113, 2
        %v8178 = vrot.slane %v8115, 2
        %v8179 = vrot.slane %v8113, 3
        %v8180 = vrot.slane %v8115, 3
        %v8245 = vmul.f32 %v7907, %v8125
        %v8246 = vmul.f32 %v7908, %v8126
        %v8247 = vmul.f32 %v7909, %v8127
        %v8248 = vmul.f32 %v7910, %v8128
        %v8249 = vmul.f32 %v7911, %v8129
        %v8250 = vmul.f32 %v7912, %v8130
        %v8251 = vmul.f32 %v7913, %v8131
        %v8252 = vmul.f32 %v7914, %v8132
        %v8253 = vmul.f32 %v7915, %v8099
        %v8254 = vmul.f32 %v7916, %v8101
        %v8255 = vmul.f32 %v7917, %v8133
        %v8256 = vmul.f32 %v7918, %v8134
        %v8257 = vmul.f32 %v7919, %v8135
        %v8258 = vmul.f32 %v7920, %v8136
        %v8259 = vmul.f32 %v7921, %v8137
        %v8260 = vmul.f32 %v7922, %v8138
        %v8261 = vmul.f32 %v7923, %v8139
        %v8262 = vmul.f32 %v7924, %v8140
        %v8263 = vmul.f32 %v7925, %v8141
        %v8264 = vmul.f32 %v7926, %v8142
        %v8265 = vmul.f32 %v7927, %v8143
        %v8266 = vmul.f32 %v7928, %v8144
        %v8267 = vmul.f32 %v7929, %v8145
        %v8268 = vmul.f32 %v7930, %v8146
        %v8269 = vmul.f32 %v7931, %v8103
        %v8270 = vmul.f32 %v7932, %v8105
        %v8271 = vmul.f32 %v7933, %v8147
        %v8272 = vmul.f32 %v7934, %v8148
        %v8273 = vmul.f32 %v7935, %v8149
        %v8274 = vmul.f32 %v7936, %v8150
        %v8275 = vmul.f32 %v7937, %v8151
        %v8276 = vmul.f32 %v7938, %v8152
        %v8277 = vmul.f32 %v7939, %v8153
        %v8278 = vmul.f32 %v7940, %v8154
        %v8279 = vmul.f32 %v7941, %v8155
        %v8280 = vmul.f32 %v7942, %v8156
        %v8281 = vmul.f32 %v7943, %v8157
        %v8282 = vmul.f32 %v7944, %v8158
        %v8283 = vmul.f32 %v7945, %v8159
        %v8284 = vmul.f32 %v7946, %v8160
        %v8285 = vmul.f32 %v7947, %v8109
        %v8286 = vmul.f32 %v7948, %v8111
        %v8287 = vmul.f32 %v7949, %v8161
        %v8288 = vmul.f32 %v7950, %v8162
        %v8289 = vmul.f32 %v7951, %v8163
        %v8290 = vmul.f32 %v7952, %v8164
        %v8291 = vmul.f32 %v7953, %v8165
        %v8292 = vmul.f32 %v7954, %v8166
        %v8293 = vmul.f32 %v7955, %v8167
        %v8294 = vmul.f32 %v7956, %v8168
        %v8295 = vmul.f32 %v7957, %v8169
        %v8296 = vmul.f32 %v7958, %v8170
        %v8297 = vmul.f32 %v7959, %v8171
        %v8298 = vmul.f32 %v7960, %v8172
        %v8299 = vmul.f32 %v7961, %v8173
        %v8300 = vmul.f32 %v7962, %v8174
        %v8301 = vmul.f32 %v7963, %v8113
        %v8302 = vmul.f32 %v7964, %v8115
        %v8303 = vmul.f32 %v7965, %v8175
        %v8304 = vmul.f32 %v7966, %v8176
        %v8305 = vmul.f32 %v7967, %v8177
        %v8306 = vmul.f32 %v7968, %v8178
        %v8307 = vmul.f32 %v7969, %v8179
        %v8308 = vmul.f32 %v7970, %v8180
        %v8373 = vrot.slane %v8245, 4
        %v8374 = vrot.slane %v8246, 4
        %v8375 = vrot.slane %v8247, 4
        %v8376 = vrot.slane %v8248, 4
        %v8377 = vrot.slane %v8249, 4
        %v8378 = vrot.slane %v8250, 4
        %v8379 = vrot.slane %v8251, 4
        %v8380 = vrot.slane %v8252, 4
        %v8381 = vrot.slane %v8253, 4
        %v8382 = vrot.slane %v8254, 4
        %v8383 = vrot.slane %v8255, 4
        %v8384 = vrot.slane %v8256, 4
        %v8385 = vrot.slane %v8257, 4
        %v8386 = vrot.slane %v8258, 4
        %v8387 = vrot.slane %v8259, 4
        %v8388 = vrot.slane %v8260, 4
        %v8389 = vrot.slane %v8261, 4
        %v8390 = vrot.slane %v8262, 4
        %v8391 = vrot.slane %v8263, 4
        %v8392 = vrot.slane %v8264, 4
        %v8393 = vrot.slane %v8265, 4
        %v8394 = vrot.slane %v8266, 4
        %v8395 = vrot.slane %v8267, 4
        %v8396 = vrot.slane %v8268, 4
        %v8397 = vrot.slane %v8269, 4
        %v8398 = vrot.slane %v8270, 4
        %v8399 = vrot.slane %v8271, 4
        %v8400 = vrot.slane %v8272, 4
        %v8401 = vrot.slane %v8273, 4
        %v8402 = vrot.slane %v8274, 4
        %v8403 = vrot.slane %v8275, 4
        %v8404 = vrot.slane %v8276, 4
        %v8405 = vrot.slane %v8277, 4
        %v8406 = vrot.slane %v8278, 4
        %v8407 = vrot.slane %v8279, 4
        %v8408 = vrot.slane %v8280, 4
        %v8409 = vrot.slane %v8281, 4
        %v8410 = vrot.slane %v8282, 4
        %v8411 = vrot.slane %v8283, 4
        %v8412 = vrot.slane %v8284, 4
        %v8413 = vrot.slane %v8285, 4
        %v8414 = vrot.slane %v8286, 4
        %v8415 = vrot.slane %v8287, 4
        %v8416 = vrot.slane %v8288, 4
        %v8417 = vrot.slane %v8289, 4
        %v8418 = vrot.slane %v8290, 4
        %v8419 = vrot.slane %v8291, 4
        %v8420 = vrot.slane %v8292, 4
        %v8421 = vrot.slane %v8293, 4
        %v8422 = vrot.slane %v8294, 4
        %v8423 = vrot.slane %v8295, 4
        %v8424 = vrot.slane %v8296, 4
        %v8425 = vrot.slane %v8297, 4
        %v8426 = vrot.slane %v8298, 4
        %v8427 = vrot.slane %v8299, 4
        %v8428 = vrot.slane %v8300, 4
        %v8429 = vrot.slane %v8301, 4
        %v8430 = vrot.slane %v8302, 4
        %v8431 = vrot.slane %v8303, 4
        %v8432 = vrot.slane %v8304, 4
        %v8433 = vrot.slane %v8305, 4
        %v8434 = vrot.slane %v8306, 4
        %v8435 = vrot.slane %v8307, 4
        %v8436 = vrot.slane %v8308, 4
        %v8501 = vmax.f32 %v7805, %v8373
        %v8502 = vmax.f32 %v7806, %v8374
        %v8503 = vmax.f32 %v7807, %v8375
        %v8504 = vmax.f32 %v7808, %v8376
        %v8505 = vmax.f32 %v7809, %v8377
        %v8506 = vmax.f32 %v7810, %v8378
        %v8507 = vmax.f32 %v7811, %v8379
        %v8508 = vmax.f32 %v7812, %v8380
        %v8509 = vmax.f32 %v7813, %v8381
        %v8510 = vmax.f32 %v7814, %v8382
        %v8511 = vmax.f32 %v7815, %v8383
        %v8512 = vmax.f32 %v7816, %v8384
        %v8513 = vmax.f32 %v7817, %v8385
        %v8514 = vmax.f32 %v7818, %v8386
        %v8515 = vmax.f32 %v7819, %v8387
        %v8516 = vmax.f32 %v7820, %v8388
        %v8517 = vmax.f32 %v7821, %v8389
        %v8518 = vmax.f32 %v7822, %v8390
        %v8519 = vmax.f32 %v7823, %v8391
        %v8520 = vmax.f32 %v7824, %v8392
        %v8521 = vmax.f32 %v7825, %v8393
        %v8522 = vmax.f32 %v7826, %v8394
        %v8523 = vmax.f32 %v7827, %v8395
        %v8524 = vmax.f32 %v7828, %v8396
        %v8525 = vmax.f32 %v7829, %v8397
        %v8526 = vmax.f32 %v7830, %v8398
        %v8527 = vmax.f32 %v7831, %v8399
        %v8528 = vmax.f32 %v7832, %v8400
        %v8529 = vmax.f32 %v7833, %v8401
        %v8530 = vmax.f32 %v7834, %v8402
        %v8531 = vmax.f32 %v7835, %v8403
        %v8532 = vmax.f32 %v7836, %v8404
        %v8533 = vmax.f32 %v7837, %v8405
        %v8534 = vmax.f32 %v7838, %v8406
        %v8535 = vmax.f32 %v7839, %v8407
        %v8536 = vmax.f32 %v7840, %v8408
        %v8537 = vmax.f32 %v7841, %v8409
        %v8538 = vmax.f32 %v7842, %v8410
        %v8539 = vmax.f32 %v7843, %v8411
        %v8540 = vmax.f32 %v7844, %v8412
        %v8541 = vmax.f32 %v7845, %v8413
        %v8542 = vmax.f32 %v7846, %v8414
        %v8543 = vmax.f32 %v7847, %v8415
        %v8544 = vmax.f32 %v7848, %v8416
        %v8545 = vmax.f32 %v7849, %v8417
        %v8546 = vmax.f32 %v7850, %v8418
        %v8547 = vmax.f32 %v7851, %v8419
        %v8548 = vmax.f32 %v7852, %v8420
        %v8549 = vmax.f32 %v7853, %v8421
        %v8550 = vmax.f32 %v7854, %v8422
        %v8551 = vmax.f32 %v7855, %v8423
        %v8552 = vmax.f32 %v7856, %v8424
        %v8553 = vmax.f32 %v7857, %v8425
        %v8554 = vmax.f32 %v7858, %v8426
        %v8555 = vmax.f32 %v7859, %v8427
        %v8556 = vmax.f32 %v7860, %v8428
        %v8557 = vmax.f32 %v7861, %v8429
        %v8558 = vmax.f32 %v7862, %v8430
        %v8559 = vmax.f32 %v7863, %v8431
        %v8560 = vmax.f32 %v7864, %v8432
        %v8561 = vmax.f32 %v7865, %v8433
        %v8562 = vmax.f32 %v7866, %v8434
        %v8563 = vmax.f32 %v7867, %v8435
        %v8564 = vmax.f32 %v7868, %v8436
        %s8565 = scalar_lea.vmem %s364, 21 [#allocation2]
        %v8566 = vld [vmem:[%s8565] ss:$8 sm:$0x3]
        %s8567 = scalar_lea.vmem %s364, 53 [#allocation2]
        %v8568 = vld [vmem:[%s8567] ss:$8 sm:$0x3]
        %s8569 = scalar_lea.vmem %s364, 85 [#allocation2]
        %v8570 = vld [vmem:[%s8569] ss:$8 sm:$0x3]
        %v8572 = vlaneseq
        %v8573 = vshrl.u32 %v8572, 7
        %v8574 = vsub.s32 0, %v8573
        %v8575 = vrot.slane %v8566, %v8574
        %v8576 = vlaneseq
        %v8577 = vshrl.u32 %v8576, 7
        %v8578 = vsub.s32 1, %v8577
        %v8579 = vrot.slane %v8566, %v8578
        %v8582 = vmul.f32 %v537, %v8575
        %v8583 = vmul.f32 %v537, %v8579
        %v8584 = vmul.f32 %v542, %v8575
        %v8585 = vmul.f32 %v542, %v8579
        %v8586 = vmul.f32 %v547, %v8575
        %v8587 = vmul.f32 %v547, %v8579
        %v8588 = vmul.f32 %v552, %v8575
        %v8589 = vmul.f32 %v552, %v8579
        %v8591 = vlaneseq
        %v8592 = vshrl.u32 %v8591, 7
        %v8593 = vsub.s32 0, %v8592
        %v8594 = vrot.slane %v8568, %v8593
        %v8595 = vlaneseq
        %v8596 = vshrl.u32 %v8595, 7
        %v8597 = vsub.s32 1, %v8596
        %v8598 = vrot.slane %v8568, %v8597
        %v8601 = vmul.f32 %v575, %v8594
        %v8602 = vmul.f32 %v575, %v8598
        %v8603 = vmul.f32 %v579, %v8594
        %v8604 = vmul.f32 %v579, %v8598
        %v8605 = vmul.f32 %v583, %v8594
        %v8606 = vmul.f32 %v583, %v8598
        %v8607 = vmul.f32 %v587, %v8594
        %v8608 = vmul.f32 %v587, %v8598
        %v8609 = vadd.f32 %v8582, %v8601
        %v8610 = vadd.f32 %v8583, %v8602
        %v8611 = vadd.f32 %v8584, %v8603
        %v8612 = vadd.f32 %v8585, %v8604
        %v8613 = vadd.f32 %v8586, %v8605
        %v8614 = vadd.f32 %v8587, %v8606
        %v8615 = vadd.f32 %v8588, %v8607
        %v8616 = vadd.f32 %v8589, %v8608
        %v8618 = vlaneseq
        %v8619 = vshrl.u32 %v8618, 7
        %v8620 = vsub.s32 0, %v8619
        %v8621 = vrot.slane %v8570, %v8620
        %v8622 = vlaneseq
        %v8623 = vshrl.u32 %v8622, 7
        %v8624 = vsub.s32 1, %v8623
        %v8625 = vrot.slane %v8570, %v8624
        %v8628 = vmul.f32 %v618, %v8621
        %v8629 = vmul.f32 %v618, %v8625
        %v8630 = vmul.f32 %v622, %v8621
        %v8631 = vmul.f32 %v622, %v8625
        %v8632 = vmul.f32 %v626, %v8621
        %v8633 = vmul.f32 %v626, %v8625
        %v8634 = vmul.f32 %v630, %v8621
        %v8635 = vmul.f32 %v630, %v8625
        %v8636 = vadd.f32 %v8609, %v8628
        %v8637 = vadd.f32 %v8610, %v8629
        %v8638 = vadd.f32 %v8611, %v8630
        %v8639 = vadd.f32 %v8612, %v8631
        %v8640 = vadd.f32 %v8613, %v8632
        %v8641 = vadd.f32 %v8614, %v8633
        %v8642 = vadd.f32 %v8615, %v8634
        %v8643 = vadd.f32 %v8616, %v8635
        %v8644 = vadd.f32 %v8636, %v662
        %v8645 = vadd.f32 %v8637, %v662
        %v8646 = vadd.f32 %v8638, %v667
        %v8647 = vadd.f32 %v8639, %v667
        %v8648 = vadd.f32 %v8640, %v672
        %v8649 = vadd.f32 %v8641, %v672
        %v8650 = vadd.f32 %v8642, %v677
        %v8651 = vadd.f32 %v8643, %v677
        %v8652 = vmax.f32 %v8644, 0.0
        %v8653 = vmax.f32 %v8645, 0.0
        %v8654 = vmax.f32 %v8646, 0.0
        %v8655 = vmax.f32 %v8647, 0.0
        %v8656 = vmax.f32 %v8648, 0.0
        %v8657 = vmax.f32 %v8649, 0.0
        %v8658 = vmax.f32 %v8650, 0.0
        %v8659 = vmax.f32 %v8651, 0.0
        %v8660 = vpack.c.bf16 %v8654, %v8652
        %v8661 = vpack.c.bf16 %v8655, %v8653
        %v8662 = vpack.c.bf16 %v8658, %v8656
        %v8663 = vpack.c.bf16 %v8659, %v8657
        %8664 = vmatprep.subr.bf16.mxu0 %v8661
        %8665 = vmatpush1.bf16.msra.mxu0 %v8660
        %8666 = vmatprep.subr.bf16.mxu0 %v8663
        %8667 = vmatpush1.bf16.msra.mxu0 %v8662
        %8668 = vmatprep.subr.bf16.mxu0 0
        %8669 = vmatpush1.bf16.msra.mxu0 0
        %8670 = vmatprep.subr.bf16.mxu0 0
        %8671 = vmatpush1.bf16.msra.mxu0 0
        %8672 = vmatprep.subr.bf16.mxu0 0
        %8673 = vmatpush1.bf16.msra.mxu0 0
        %8674 = vmatprep.subr.bf16.mxu0 0
        %8675 = vmatpush1.bf16.msra.mxu0 0
        %8676 = vmatprep.subr.bf16.mxu0 0
        %8677 = vmatpush1.bf16.msra.mxu0 0
        %8678 = vmatprep.subr.bf16.mxu0 0
        %8679 = vmatpush1.bf16.msra.mxu0 0
        %8680 = vmatprep.subr.bf16.mxu0 0
        %8681 = vmatpush1.bf16.msra.mxu0 0
        %8682 = vmatprep.subr.bf16.mxu0 0
        %8683 = vmatpush1.bf16.msra.mxu0 0
        %8684 = vmatprep.subr.bf16.mxu0 0
        %8685 = vmatpush1.bf16.msra.mxu0 0
        %8686 = vmatprep.subr.bf16.mxu0 0
        %8687 = vmatpush1.bf16.msra.mxu0 0
        %8688 = vmatprep.subr.bf16.mxu0 0
        %8689 = vmatpush1.bf16.msra.mxu0 0
        %8690 = vmatprep.subr.bf16.mxu0 0
        %8691 = vmatpush1.bf16.msra.mxu0 0
        %8692 = vmatprep.subr.bf16.mxu0 0
        %8693 = vmatpush1.bf16.msra.mxu0 0
        %8694 = vmatprep.subr.bf16.mxu0 0
        %8695 = vmatpush1.bf16.msra.mxu0 0
        %8696 = vmatprep.mubr.bf16.mxu0 0
        %8697 = vmatmul.mubr.bf16.gmra.mrb[0].mxu0 %v731
        %v8698 = vpop.f32.mrb[0].mxu0
        %v8699 = vadd.f32 %v702, %v8698
        %v8700 = vpop.f32.mrb[0].mxu0
        %v8701 = vadd.f32 %v702, %v8700
        %v8702 = vpop.f32.mrb[0].mxu0
        %v8703 = vadd.f32 %v707, %v8702
        %v8704 = vpop.f32.mrb[0].mxu0
        %v8705 = vadd.f32 %v707, %v8704
        %8706 = vmatprep.mubr.bf16.mxu0 0
        %8707 = vmatmul.mubr.bf16.gmra.mrb[0].mxu0 %v734
        %v8708 = vpop.f32.mrb[0].mxu0
        %v8709 = vadd.f32 %v712, %v8708
        %v8710 = vpop.f32.mrb[0].mxu0
        %v8711 = vadd.f32 %v712, %v8710
        %v8712 = vpop.f32.mrb[0].mxu0
        %v8713 = vadd.f32 %v717, %v8712
        %v8714 = vpop.f32.mrb[0].mxu0
        %v8715 = vadd.f32 %v717, %v8714
        %8716 = vdwg.mxu0
        %v8725 = vrot.slane %v8699, 3
        %v8726 = vrot.slane %v8701, 3
        %v8727 = vrot.slane %v8699, 4
        %v8728 = vrot.slane %v8701, 4
        %v8729 = vrot.slane %v8699, 5
        %v8730 = vrot.slane %v8701, 5
        %v8731 = vrot.slane %v8699, 6
        %v8732 = vrot.slane %v8701, 6
        %v8733 = vrot.slane %v8699, 7
        %v8734 = vrot.slane %v8701, 7
        %v8735 = vrot.slane %v8699, 1
        %v8736 = vrot.slane %v8701, 1
        %v8737 = vrot.slane %v8699, 2
        %v8738 = vrot.slane %v8701, 2
        %v8739 = vrot.slane %v8703, 3
        %v8740 = vrot.slane %v8705, 3
        %v8741 = vrot.slane %v8703, 4
        %v8742 = vrot.slane %v8705, 4
        %v8743 = vrot.slane %v8703, 5
        %v8744 = vrot.slane %v8705, 5
        %v8745 = vrot.slane %v8703, 6
        %v8746 = vrot.slane %v8705, 6
        %v8747 = vrot.slane %v8703, 7
        %v8748 = vrot.slane %v8705, 7
        %v8749 = vrot.slane %v8703, 1
        %v8750 = vrot.slane %v8705, 1
        %v8751 = vrot.slane %v8703, 2
        %v8752 = vrot.slane %v8705, 2
        %v8753 = vrot.slane %v8709, 3
        %v8754 = vrot.slane %v8711, 3
        %v8755 = vrot.slane %v8709, 4
        %v8756 = vrot.slane %v8711, 4
        %v8757 = vrot.slane %v8709, 5
        %v8758 = vrot.slane %v8711, 5
        %v8759 = vrot.slane %v8709, 6
        %v8760 = vrot.slane %v8711, 6
        %v8761 = vrot.slane %v8709, 7
        %v8762 = vrot.slane %v8711, 7
        %v8763 = vrot.slane %v8709, 1
        %v8764 = vrot.slane %v8711, 1
        %v8765 = vrot.slane %v8709, 2
        %v8766 = vrot.slane %v8711, 2
        %v8767 = vrot.slane %v8713, 3
        %v8768 = vrot.slane %v8715, 3
        %v8769 = vrot.slane %v8713, 4
        %v8770 = vrot.slane %v8715, 4
        %v8771 = vrot.slane %v8713, 5
        %v8772 = vrot.slane %v8715, 5
        %v8773 = vrot.slane %v8713, 6
        %v8774 = vrot.slane %v8715, 6
        %v8775 = vrot.slane %v8713, 7
        %v8776 = vrot.slane %v8715, 7
        %v8777 = vrot.slane %v8713, 1
        %v8778 = vrot.slane %v8715, 1
        %v8779 = vrot.slane %v8713, 2
        %v8780 = vrot.slane %v8715, 2
        %v8845 = vmul.f32 %v7907, %v8725
        %v8846 = vmul.f32 %v7908, %v8726
        %v8847 = vmul.f32 %v7909, %v8727
        %v8848 = vmul.f32 %v7910, %v8728
        %v8849 = vmul.f32 %v7911, %v8729
        %v8850 = vmul.f32 %v7912, %v8730
        %v8851 = vmul.f32 %v7913, %v8731
        %v8852 = vmul.f32 %v7914, %v8732
        %v8853 = vmul.f32 %v7915, %v8733
        %v8854 = vmul.f32 %v7916, %v8734
        %v8855 = vmul.f32 %v7917, %v8699
        %v8856 = vmul.f32 %v7918, %v8701
        %v8857 = vmul.f32 %v7919, %v8735
        %v8858 = vmul.f32 %v7920, %v8736
        %v8859 = vmul.f32 %v7921, %v8737
        %v8860 = vmul.f32 %v7922, %v8738
        %v8861 = vmul.f32 %v7923, %v8739
        %v8862 = vmul.f32 %v7924, %v8740
        %v8863 = vmul.f32 %v7925, %v8741
        %v8864 = vmul.f32 %v7926, %v8742
        %v8865 = vmul.f32 %v7927, %v8743
        %v8866 = vmul.f32 %v7928, %v8744
        %v8867 = vmul.f32 %v7929, %v8745
        %v8868 = vmul.f32 %v7930, %v8746
        %v8869 = vmul.f32 %v7931, %v8747
        %v8870 = vmul.f32 %v7932, %v8748
        %v8871 = vmul.f32 %v7933, %v8703
        %v8872 = vmul.f32 %v7934, %v8705
        %v8873 = vmul.f32 %v7935, %v8749
        %v8874 = vmul.f32 %v7936, %v8750
        %v8875 = vmul.f32 %v7937, %v8751
        %v8876 = vmul.f32 %v7938, %v8752
        %v8877 = vmul.f32 %v7939, %v8753
        %v8878 = vmul.f32 %v7940, %v8754
        %v8879 = vmul.f32 %v7941, %v8755
        %v8880 = vmul.f32 %v7942, %v8756
        %v8881 = vmul.f32 %v7943, %v8757
        %v8882 = vmul.f32 %v7944, %v8758
        %v8883 = vmul.f32 %v7945, %v8759
        %v8884 = vmul.f32 %v7946, %v8760
        %v8885 = vmul.f32 %v7947, %v8761
        %v8886 = vmul.f32 %v7948, %v8762
        %v8887 = vmul.f32 %v7949, %v8709
        %v8888 = vmul.f32 %v7950, %v8711
        %v8889 = vmul.f32 %v7951, %v8763
        %v8890 = vmul.f32 %v7952, %v8764
        %v8891 = vmul.f32 %v7953, %v8765
        %v8892 = vmul.f32 %v7954, %v8766
        %v8893 = vmul.f32 %v7955, %v8767
        %v8894 = vmul.f32 %v7956, %v8768
        %v8895 = vmul.f32 %v7957, %v8769
        %v8896 = vmul.f32 %v7958, %v8770
        %v8897 = vmul.f32 %v7959, %v8771
        %v8898 = vmul.f32 %v7960, %v8772
        %v8899 = vmul.f32 %v7961, %v8773
        %v8900 = vmul.f32 %v7962, %v8774
        %v8901 = vmul.f32 %v7963, %v8775
        %v8902 = vmul.f32 %v7964, %v8776
        %v8903 = vmul.f32 %v7965, %v8713
        %v8904 = vmul.f32 %v7966, %v8715
        %v8905 = vmul.f32 %v7967, %v8777
        %v8906 = vmul.f32 %v7968, %v8778
        %v8907 = vmul.f32 %v7969, %v8779
        %v8908 = vmul.f32 %v7970, %v8780
        %v8973 = vrot.slane %v8845, 5
        %v8974 = vrot.slane %v8846, 5
        %v8975 = vrot.slane %v8847, 5
        %v8976 = vrot.slane %v8848, 5
        %v8977 = vrot.slane %v8849, 5
        %v8978 = vrot.slane %v8850, 5
        %v8979 = vrot.slane %v8851, 5
        %v8980 = vrot.slane %v8852, 5
        %v8981 = vrot.slane %v8853, 5
        %v8982 = vrot.slane %v8854, 5
        %v8983 = vrot.slane %v8855, 5
        %v8984 = vrot.slane %v8856, 5
        %v8985 = vrot.slane %v8857, 5
        %v8986 = vrot.slane %v8858, 5
        %v8987 = vrot.slane %v8859, 5
        %v8988 = vrot.slane %v8860, 5
        %v8989 = vrot.slane %v8861, 5
        %v8990 = vrot.slane %v8862, 5
        %v8991 = vrot.slane %v8863, 5
        %v8992 = vrot.slane %v8864, 5
        %v8993 = vrot.slane %v8865, 5
        %v8994 = vrot.slane %v8866, 5
        %v8995 = vrot.slane %v8867, 5
        %v8996 = vrot.slane %v8868, 5
        %v8997 = vrot.slane %v8869, 5
        %v8998 = vrot.slane %v8870, 5
        %v8999 = vrot.slane %v8871, 5
        %v9000 = vrot.slane %v8872, 5
        %v9001 = vrot.slane %v8873, 5
        %v9002 = vrot.slane %v8874, 5
        %v9003 = vrot.slane %v8875, 5
        %v9004 = vrot.slane %v8876, 5
        %v9005 = vrot.slane %v8877, 5
        %v9006 = vrot.slane %v8878, 5
        %v9007 = vrot.slane %v8879, 5
        %v9008 = vrot.slane %v8880, 5
        %v9009 = vrot.slane %v8881, 5
        %v9010 = vrot.slane %v8882, 5
        %v9011 = vrot.slane %v8883, 5
        %v9012 = vrot.slane %v8884, 5
        %v9013 = vrot.slane %v8885, 5
        %v9014 = vrot.slane %v8886, 5
        %v9015 = vrot.slane %v8887, 5
        %v9016 = vrot.slane %v8888, 5
        %v9017 = vrot.slane %v8889, 5
        %v9018 = vrot.slane %v8890, 5
        %v9019 = vrot.slane %v8891, 5
        %v9020 = vrot.slane %v8892, 5
        %v9021 = vrot.slane %v8893, 5
        %v9022 = vrot.slane %v8894, 5
        %v9023 = vrot.slane %v8895, 5
        %v9024 = vrot.slane %v8896, 5
        %v9025 = vrot.slane %v8897, 5
        %v9026 = vrot.slane %v8898, 5
        %v9027 = vrot.slane %v8899, 5
        %v9028 = vrot.slane %v8900, 5
        %v9029 = vrot.slane %v8901, 5
        %v9030 = vrot.slane %v8902, 5
        %v9031 = vrot.slane %v8903, 5
        %v9032 = vrot.slane %v8904, 5
        %v9033 = vrot.slane %v8905, 5
        %v9034 = vrot.slane %v8906, 5
        %v9035 = vrot.slane %v8907, 5
        %v9036 = vrot.slane %v8908, 5
        %v9101 = vmax.f32 %v8501, %v8973
        %v9102 = vmax.f32 %v8502, %v8974
        %v9103 = vmax.f32 %v8503, %v8975
        %v9104 = vmax.f32 %v8504, %v8976
        %v9105 = vmax.f32 %v8505, %v8977
        %v9106 = vmax.f32 %v8506, %v8978
        %v9107 = vmax.f32 %v8507, %v8979
        %v9108 = vmax.f32 %v8508, %v8980
        %v9109 = vmax.f32 %v8509, %v8981
        %v9110 = vmax.f32 %v8510, %v8982
        %v9111 = vmax.f32 %v8511, %v8983
        %v9112 = vmax.f32 %v8512, %v8984
        %v9113 = vmax.f32 %v8513, %v8985
        %v9114 = vmax.f32 %v8514, %v8986
        %v9115 = vmax.f32 %v8515, %v8987
        %v9116 = vmax.f32 %v8516, %v8988
        %v9117 = vmax.f32 %v8517, %v8989
        %v9118 = vmax.f32 %v8518, %v8990
        %v9119 = vmax.f32 %v8519, %v8991
        %v9120 = vmax.f32 %v8520, %v8992
        %v9121 = vmax.f32 %v8521, %v8993
        %v9122 = vmax.f32 %v8522, %v8994
        %v9123 = vmax.f32 %v8523, %v8995
        %v9124 = vmax.f32 %v8524, %v8996
        %v9125 = vmax.f32 %v8525, %v8997
        %v9126 = vmax.f32 %v8526, %v8998
        %v9127 = vmax.f32 %v8527, %v8999
        %v9128 = vmax.f32 %v8528, %v9000
        %v9129 = vmax.f32 %v8529, %v9001
        %v9130 = vmax.f32 %v8530, %v9002
        %v9131 = vmax.f32 %v8531, %v9003
        %v9132 = vmax.f32 %v8532, %v9004
        %v9133 = vmax.f32 %v8533, %v9005
        %v9134 = vmax.f32 %v8534, %v9006
        %v9135 = vmax.f32 %v8535, %v9007
        %v9136 = vmax.f32 %v8536, %v9008
        %v9137 = vmax.f32 %v8537, %v9009
        %v9138 = vmax.f32 %v8538, %v9010
        %v9139 = vmax.f32 %v8539, %v9011
        %v9140 = vmax.f32 %v8540, %v9012
        %v9141 = vmax.f32 %v8541, %v9013
        %v9142 = vmax.f32 %v8542, %v9014
        %v9143 = vmax.f32 %v8543, %v9015
        %v9144 = vmax.f32 %v8544, %v9016
        %v9145 = vmax.f32 %v8545, %v9017
        %v9146 = vmax.f32 %v8546, %v9018
        %v9147 = vmax.f32 %v8547, %v9019
        %v9148 = vmax.f32 %v8548, %v9020
        %v9149 = vmax.f32 %v8549, %v9021
        %v9150 = vmax.f32 %v8550, %v9022
        %v9151 = vmax.f32 %v8551, %v9023
        %v9152 = vmax.f32 %v8552, %v9024
        %v9153 = vmax.f32 %v8553, %v9025
        %v9154 = vmax.f32 %v8554, %v9026
        %v9155 = vmax.f32 %v8555, %v9027
        %v9156 = vmax.f32 %v8556, %v9028
        %v9157 = vmax.f32 %v8557, %v9029
        %v9158 = vmax.f32 %v8558, %v9030
        %v9159 = vmax.f32 %v8559, %v9031
        %v9160 = vmax.f32 %v8560, %v9032
        %v9161 = vmax.f32 %v8561, %v9033
        %v9162 = vmax.f32 %v8562, %v9034
        %v9163 = vmax.f32 %v8563, %v9035
        %v9164 = vmax.f32 %v8564, %v9036
        %s9165 = scalar_lea.vmem %s364, 22 [#allocation2]
        %v9166 = vld [vmem:[%s9165] ss:$8 sm:$0x3]
        %s9167 = scalar_lea.vmem %s364, 54 [#allocation2]
        %v9168 = vld [vmem:[%s9167] ss:$8 sm:$0x3]
        %s9169 = scalar_lea.vmem %s364, 86 [#allocation2]
        %v9170 = vld [vmem:[%s9169] ss:$8 sm:$0x3]
        %v9171 = vld [vmem:[%s373 + $0x8] sm:$0x88]
        %v9172 = vld [vmem:[%s373 + $0x18] sm:$0x88]
        %v9173 = vld [vmem:[%s373 + $0x28] sm:$0x88]
        %v9174 = vld [vmem:[%s373 + $0x38] sm:$0x88]
        %v9175 = vld [vmem:[%s373 + $0x48] sm:$0x88]
        %v9176 = vld [vmem:[%s373 + $0x58] sm:$0x88]
        %v9177 = vld [vmem:[%s373 + $0x68] sm:$0x88]
        %v9178 = vld [vmem:[%s373 + $0x78] sm:$0x88]
        %v9179 = vld [vmem:[%s373 + $0x88] sm:$0x88]
        %v9180 = vld [vmem:[%s373 + $0x98] sm:$0x88]
        %v9181 = vld [vmem:[%s373 + $0xa8] sm:$0x88]
        %v9182 = vld [vmem:[%s373 + $0xb8] sm:$0x88]
        %v9183 = vld [vmem:[%s373 + $0xc8] sm:$0x88]
        %v9184 = vld [vmem:[%s373 + $0xd8] sm:$0x88]
        %v9185 = vld [vmem:[%s373 + $0xe8] sm:$0x88]
        %v9186 = vld [vmem:[%s373 + $0xf8] sm:$0x88]
        %v9187 = vld [vmem:[%s373 + $0x108] sm:$0x88]
        %v9188 = vld [vmem:[%s373 + $0x118] sm:$0x88]
        %v9189 = vld [vmem:[%s373 + $0x128] sm:$0x88]
        %v9190 = vld [vmem:[%s373 + $0x138] sm:$0x88]
        %v9191 = vld [vmem:[%s373 + $0x148] sm:$0x88]
        %v9192 = vld [vmem:[%s373 + $0x158] sm:$0x88]
        %v9193 = vld [vmem:[%s373 + $0x168] sm:$0x88]
        %v9194 = vld [vmem:[%s373 + $0x178] sm:$0x88]
        %v9195 = vld [vmem:[%s373 + $0x188] sm:$0x88]
        %v9196 = vld [vmem:[%s373 + $0x198] sm:$0x88]
        %v9197 = vld [vmem:[%s373 + $0x1a8] sm:$0x88]
        %v9198 = vld [vmem:[%s373 + $0x1b8] sm:$0x88]
        %v9199 = vld [vmem:[%s373 + $0x1c8] sm:$0x88]
        %v9200 = vld [vmem:[%s373 + $0x1d8] sm:$0x88]
        %v9201 = vld [vmem:[%s373 + $0x1e8] sm:$0x88]
        %v9202 = vld [vmem:[%s373 + $0x1f8] sm:$0x88]
        %v9203 = vunpack.c.l.bf16 %v9171
        %v9204 = vunpack.c.h.bf16 %v9171
        %v9205 = vunpack.c.l.bf16 %v9172
        %v9206 = vunpack.c.h.bf16 %v9172
        %v9207 = vunpack.c.l.bf16 %v9173
        %v9208 = vunpack.c.h.bf16 %v9173
        %v9209 = vunpack.c.l.bf16 %v9174
        %v9210 = vunpack.c.h.bf16 %v9174
        %v9211 = vunpack.c.l.bf16 %v9175
        %v9212 = vunpack.c.h.bf16 %v9175
        %v9213 = vunpack.c.l.bf16 %v9176
        %v9214 = vunpack.c.h.bf16 %v9176
        %v9215 = vunpack.c.l.bf16 %v9177
        %v9216 = vunpack.c.h.bf16 %v9177
        %v9217 = vunpack.c.l.bf16 %v9178
        %v9218 = vunpack.c.h.bf16 %v9178
        %v9219 = vunpack.c.l.bf16 %v9179
        %v9220 = vunpack.c.h.bf16 %v9179
        %v9221 = vunpack.c.l.bf16 %v9180
        %v9222 = vunpack.c.h.bf16 %v9180
        %v9223 = vunpack.c.l.bf16 %v9181
        %v9224 = vunpack.c.h.bf16 %v9181
        %v9225 = vunpack.c.l.bf16 %v9182
        %v9226 = vunpack.c.h.bf16 %v9182
        %v9227 = vunpack.c.l.bf16 %v9183
        %v9228 = vunpack.c.h.bf16 %v9183
        %v9229 = vunpack.c.l.bf16 %v9184
        %v9230 = vunpack.c.h.bf16 %v9184
        %v9231 = vunpack.c.l.bf16 %v9185
        %v9232 = vunpack.c.h.bf16 %v9185
        %v9233 = vunpack.c.l.bf16 %v9186
        %v9234 = vunpack.c.h.bf16 %v9186
        %v9235 = vunpack.c.l.bf16 %v9187
        %v9236 = vunpack.c.h.bf16 %v9187
        %v9237 = vunpack.c.l.bf16 %v9188
        %v9238 = vunpack.c.h.bf16 %v9188
        %v9239 = vunpack.c.l.bf16 %v9189
        %v9240 = vunpack.c.h.bf16 %v9189
        %v9241 = vunpack.c.l.bf16 %v9190
        %v9242 = vunpack.c.h.bf16 %v9190
        %v9243 = vunpack.c.l.bf16 %v9191
        %v9244 = vunpack.c.h.bf16 %v9191
        %v9245 = vunpack.c.l.bf16 %v9192
        %v9246 = vunpack.c.h.bf16 %v9192
        %v9247 = vunpack.c.l.bf16 %v9193
        %v9248 = vunpack.c.h.bf16 %v9193
        %v9249 = vunpack.c.l.bf16 %v9194
        %v9250 = vunpack.c.h.bf16 %v9194
        %v9251 = vunpack.c.l.bf16 %v9195
        %v9252 = vunpack.c.h.bf16 %v9195
        %v9253 = vunpack.c.l.bf16 %v9196
        %v9254 = vunpack.c.h.bf16 %v9196
        %v9255 = vunpack.c.l.bf16 %v9197
        %v9256 = vunpack.c.h.bf16 %v9197
        %v9257 = vunpack.c.l.bf16 %v9198
        %v9258 = vunpack.c.h.bf16 %v9198
        %v9259 = vunpack.c.l.bf16 %v9199
        %v9260 = vunpack.c.h.bf16 %v9199
        %v9261 = vunpack.c.l.bf16 %v9200
        %v9262 = vunpack.c.h.bf16 %v9200
        %v9263 = vunpack.c.l.bf16 %v9201
        %v9264 = vunpack.c.h.bf16 %v9201
        %v9265 = vunpack.c.l.bf16 %v9202
        %v9266 = vunpack.c.h.bf16 %v9202
        %v9268 = vlaneseq
        %v9269 = vshrl.u32 %v9268, 7
        %v9270 = vsub.s32 0, %v9269
        %v9271 = vrot.slane %v9166, %v9270
        %v9272 = vlaneseq
        %v9273 = vshrl.u32 %v9272, 7
        %v9274 = vsub.s32 1, %v9273
        %v9275 = vrot.slane %v9166, %v9274
        %v9278 = vmul.f32 %v537, %v9271
        %v9279 = vmul.f32 %v537, %v9275
        %v9280 = vmul.f32 %v542, %v9271
        %v9281 = vmul.f32 %v542, %v9275
        %v9282 = vmul.f32 %v547, %v9271
        %v9283 = vmul.f32 %v547, %v9275
        %v9284 = vmul.f32 %v552, %v9271
        %v9285 = vmul.f32 %v552, %v9275
        %v9287 = vlaneseq
        %v9288 = vshrl.u32 %v9287, 7
        %v9289 = vsub.s32 0, %v9288
        %v9290 = vrot.slane %v9168, %v9289
        %v9291 = vlaneseq
        %v9292 = vshrl.u32 %v9291, 7
        %v9293 = vsub.s32 1, %v9292
        %v9294 = vrot.slane %v9168, %v9293
        %v9297 = vmul.f32 %v575, %v9290
        %v9298 = vmul.f32 %v575, %v9294
        %v9299 = vmul.f32 %v579, %v9290
        %v9300 = vmul.f32 %v579, %v9294
        %v9301 = vmul.f32 %v583, %v9290
        %v9302 = vmul.f32 %v583, %v9294
        %v9303 = vmul.f32 %v587, %v9290
        %v9304 = vmul.f32 %v587, %v9294
        %v9305 = vadd.f32 %v9278, %v9297
        %v9306 = vadd.f32 %v9279, %v9298
        %v9307 = vadd.f32 %v9280, %v9299
        %v9308 = vadd.f32 %v9281, %v9300
        %v9309 = vadd.f32 %v9282, %v9301
        %v9310 = vadd.f32 %v9283, %v9302
        %v9311 = vadd.f32 %v9284, %v9303
        %v9312 = vadd.f32 %v9285, %v9304
        %v9314 = vlaneseq
        %v9315 = vshrl.u32 %v9314, 7
        %v9316 = vsub.s32 0, %v9315
        %v9317 = vrot.slane %v9170, %v9316
        %v9318 = vlaneseq
        %v9319 = vshrl.u32 %v9318, 7
        %v9320 = vsub.s32 1, %v9319
        %v9321 = vrot.slane %v9170, %v9320
        %v9324 = vmul.f32 %v618, %v9317
        %v9325 = vmul.f32 %v618, %v9321
        %v9326 = vmul.f32 %v622, %v9317
        %v9327 = vmul.f32 %v622, %v9321
        %v9328 = vmul.f32 %v626, %v9317
        %v9329 = vmul.f32 %v626, %v9321
        %v9330 = vmul.f32 %v630, %v9317
        %v9331 = vmul.f32 %v630, %v9321
        %v9332 = vadd.f32 %v9305, %v9324
        %v9333 = vadd.f32 %v9306, %v9325
        %v9334 = vadd.f32 %v9307, %v9326
        %v9335 = vadd.f32 %v9308, %v9327
        %v9336 = vadd.f32 %v9309, %v9328
        %v9337 = vadd.f32 %v9310, %v9329
        %v9338 = vadd.f32 %v9311, %v9330
        %v9339 = vadd.f32 %v9312, %v9331
        %v9340 = vadd.f32 %v9332, %v662
        %v9341 = vadd.f32 %v9333, %v662
        %v9342 = vadd.f32 %v9334, %v667
        %v9343 = vadd.f32 %v9335, %v667
        %v9344 = vadd.f32 %v9336, %v672
        %v9345 = vadd.f32 %v9337, %v672
        %v9346 = vadd.f32 %v9338, %v677
        %v9347 = vadd.f32 %v9339, %v677
        %v9348 = vmax.f32 %v9340, 0.0
        %v9349 = vmax.f32 %v9341, 0.0
        %v9350 = vmax.f32 %v9342, 0.0
        %v9351 = vmax.f32 %v9343, 0.0
        %v9352 = vmax.f32 %v9344, 0.0
        %v9353 = vmax.f32 %v9345, 0.0
        %v9354 = vmax.f32 %v9346, 0.0
        %v9355 = vmax.f32 %v9347, 0.0
        %v9356 = vpack.c.bf16 %v9350, %v9348
        %v9357 = vpack.c.bf16 %v9351, %v9349
        %v9358 = vpack.c.bf16 %v9354, %v9352
        %v9359 = vpack.c.bf16 %v9355, %v9353
        %9360 = vmatprep.subr.bf16.mxu0 %v9357
        %9361 = vmatpush1.bf16.msra.mxu0 %v9356
        %9362 = vmatprep.subr.bf16.mxu0 %v9359
        %9363 = vmatpush1.bf16.msra.mxu0 %v9358
        %9364 = vmatprep.subr.bf16.mxu0 0
        %9365 = vmatpush1.bf16.msra.mxu0 0
        %9366 = vmatprep.subr.bf16.mxu0 0
        %9367 = vmatpush1.bf16.msra.mxu0 0
        %9368 = vmatprep.subr.bf16.mxu0 0
        %9369 = vmatpush1.bf16.msra.mxu0 0
        %9370 = vmatprep.subr.bf16.mxu0 0
        %9371 = vmatpush1.bf16.msra.mxu0 0
        %9372 = vmatprep.subr.bf16.mxu0 0
        %9373 = vmatpush1.bf16.msra.mxu0 0
        %9374 = vmatprep.subr.bf16.mxu0 0
        %9375 = vmatpush1.bf16.msra.mxu0 0
        %9376 = vmatprep.subr.bf16.mxu0 0
        %9377 = vmatpush1.bf16.msra.mxu0 0
        %9378 = vmatprep.subr.bf16.mxu0 0
        %9379 = vmatpush1.bf16.msra.mxu0 0
        %9380 = vmatprep.subr.bf16.mxu0 0
        %9381 = vmatpush1.bf16.msra.mxu0 0
        %9382 = vmatprep.subr.bf16.mxu0 0
        %9383 = vmatpush1.bf16.msra.mxu0 0
        %9384 = vmatprep.subr.bf16.mxu0 0
        %9385 = vmatpush1.bf16.msra.mxu0 0
        %9386 = vmatprep.subr.bf16.mxu0 0
        %9387 = vmatpush1.bf16.msra.mxu0 0
        %9388 = vmatprep.subr.bf16.mxu0 0
        %9389 = vmatpush1.bf16.msra.mxu0 0
        %9390 = vmatprep.subr.bf16.mxu0 0
        %9391 = vmatpush1.bf16.msra.mxu0 0
        %9392 = vmatprep.mubr.bf16.mxu0 0
        %9393 = vmatmul.mubr.bf16.gmra.mrb[0].mxu0 %v731
        %v9394 = vpop.f32.mrb[0].mxu0
        %v9395 = vadd.f32 %v702, %v9394
        %v9396 = vpop.f32.mrb[0].mxu0
        %v9397 = vadd.f32 %v702, %v9396
        %v9398 = vpop.f32.mrb[0].mxu0
        %v9399 = vadd.f32 %v707, %v9398
        %v9400 = vpop.f32.mrb[0].mxu0
        %v9401 = vadd.f32 %v707, %v9400
        %9402 = vmatprep.mubr.bf16.mxu0 0
        %9403 = vmatmul.mubr.bf16.gmra.mrb[0].mxu0 %v734
        %v9404 = vpop.f32.mrb[0].mxu0
        %v9405 = vadd.f32 %v712, %v9404
        %v9406 = vpop.f32.mrb[0].mxu0
        %v9407 = vadd.f32 %v712, %v9406
        %v9408 = vpop.f32.mrb[0].mxu0
        %v9409 = vadd.f32 %v717, %v9408
        %v9410 = vpop.f32.mrb[0].mxu0
        %v9411 = vadd.f32 %v717, %v9410
        %9412 = vdwg.mxu0
        %v9421 = vrot.slane %v9395, 2
        %v9422 = vrot.slane %v9397, 2
        %v9423 = vrot.slane %v9395, 3
        %v9424 = vrot.slane %v9397, 3
        %v9425 = vrot.slane %v9395, 4
        %v9426 = vrot.slane %v9397, 4
        %v9427 = vrot.slane %v9395, 5
        %v9428 = vrot.slane %v9397, 5
        %v9429 = vrot.slane %v9395, 6
        %v9430 = vrot.slane %v9397, 6
        %v9431 = vrot.slane %v9395, 7
        %v9432 = vrot.slane %v9397, 7
        %v9433 = vrot.slane %v9395, 1
        %v9434 = vrot.slane %v9397, 1
        %v9435 = vrot.slane %v9399, 2
        %v9436 = vrot.slane %v9401, 2
        %v9437 = vrot.slane %v9399, 3
        %v9438 = vrot.slane %v9401, 3
        %v9439 = vrot.slane %v9399, 4
        %v9440 = vrot.slane %v9401, 4
        %v9441 = vrot.slane %v9399, 5
        %v9442 = vrot.slane %v9401, 5
        %v9443 = vrot.slane %v9399, 6
        %v9444 = vrot.slane %v9401, 6
        %v9445 = vrot.slane %v9399, 7
        %v9446 = vrot.slane %v9401, 7
        %v9447 = vrot.slane %v9399, 1
        %v9448 = vrot.slane %v9401, 1
        %v9449 = vrot.slane %v9405, 2
        %v9450 = vrot.slane %v9407, 2
        %v9451 = vrot.slane %v9405, 3
        %v9452 = vrot.slane %v9407, 3
        %v9453 = vrot.slane %v9405, 4
        %v9454 = vrot.slane %v9407, 4
        %v9455 = vrot.slane %v9405, 5
        %v9456 = vrot.slane %v9407, 5
        %v9457 = vrot.slane %v9405, 6
        %v9458 = vrot.slane %v9407, 6
        %v9459 = vrot.slane %v9405, 7
        %v9460 = vrot.slane %v9407, 7
        %v9461 = vrot.slane %v9405, 1
        %v9462 = vrot.slane %v9407, 1
        %v9463 = vrot.slane %v9409, 2
        %v9464 = vrot.slane %v9411, 2
        %v9465 = vrot.slane %v9409, 3
        %v9466 = vrot.slane %v9411, 3
        %v9467 = vrot.slane %v9409, 4
        %v9468 = vrot.slane %v9411, 4
        %v9469 = vrot.slane %v9409, 5
        %v9470 = vrot.slane %v9411, 5
        %v9471 = vrot.slane %v9409, 6
        %v9472 = vrot.slane %v9411, 6
        %v9473 = vrot.slane %v9409, 7
        %v9474 = vrot.slane %v9411, 7
        %v9475 = vrot.slane %v9409, 1
        %v9476 = vrot.slane %v9411, 1
        %v9541 = vmul.f32 %v9203, %v9421
        %v9542 = vmul.f32 %v9204, %v9422
        %v9543 = vmul.f32 %v9205, %v9423
        %v9544 = vmul.f32 %v9206, %v9424
        %v9545 = vmul.f32 %v9207, %v9425
        %v9546 = vmul.f32 %v9208, %v9426
        %v9547 = vmul.f32 %v9209, %v9427
        %v9548 = vmul.f32 %v9210, %v9428
        %v9549 = vmul.f32 %v9211, %v9429
        %v9550 = vmul.f32 %v9212, %v9430
        %v9551 = vmul.f32 %v9213, %v9431
        %v9552 = vmul.f32 %v9214, %v9432
        %v9553 = vmul.f32 %v9215, %v9395
        %v9554 = vmul.f32 %v9216, %v9397
        %v9555 = vmul.f32 %v9217, %v9433
        %v9556 = vmul.f32 %v9218, %v9434
        %v9557 = vmul.f32 %v9219, %v9435
        %v9558 = vmul.f32 %v9220, %v9436
        %v9559 = vmul.f32 %v9221, %v9437
        %v9560 = vmul.f32 %v9222, %v9438
        %v9561 = vmul.f32 %v9223, %v9439
        %v9562 = vmul.f32 %v9224, %v9440
        %v9563 = vmul.f32 %v9225, %v9441
        %v9564 = vmul.f32 %v9226, %v9442
        %v9565 = vmul.f32 %v9227, %v9443
        %v9566 = vmul.f32 %v9228, %v9444
        %v9567 = vmul.f32 %v9229, %v9445
        %v9568 = vmul.f32 %v9230, %v9446
        %v9569 = vmul.f32 %v9231, %v9399
        %v9570 = vmul.f32 %v9232, %v9401
        %v9571 = vmul.f32 %v9233, %v9447
        %v9572 = vmul.f32 %v9234, %v9448
        %v9573 = vmul.f32 %v9235, %v9449
        %v9574 = vmul.f32 %v9236, %v9450
        %v9575 = vmul.f32 %v9237, %v9451
        %v9576 = vmul.f32 %v9238, %v9452
        %v9577 = vmul.f32 %v9239, %v9453
        %v9578 = vmul.f32 %v9240, %v9454
        %v9579 = vmul.f32 %v9241, %v9455
        %v9580 = vmul.f32 %v9242, %v9456
        %v9581 = vmul.f32 %v9243, %v9457
        %v9582 = vmul.f32 %v9244, %v9458
        %v9583 = vmul.f32 %v9245, %v9459
        %v9584 = vmul.f32 %v9246, %v9460
        %v9585 = vmul.f32 %v9247, %v9405
        %v9586 = vmul.f32 %v9248, %v9407
        %v9587 = vmul.f32 %v9249, %v9461
        %v9588 = vmul.f32 %v9250, %v9462
        %v9589 = vmul.f32 %v9251, %v9463
        %v9590 = vmul.f32 %v9252, %v9464
        %v9591 = vmul.f32 %v9253, %v9465
        %v9592 = vmul.f32 %v9254, %v9466
        %v9593 = vmul.f32 %v9255, %v9467
        %v9594 = vmul.f32 %v9256, %v9468
        %v9595 = vmul.f32 %v9257, %v9469
        %v9596 = vmul.f32 %v9258, %v9470
        %v9597 = vmul.f32 %v9259, %v9471
        %v9598 = vmul.f32 %v9260, %v9472
        %v9599 = vmul.f32 %v9261, %v9473
        %v9600 = vmul.f32 %v9262, %v9474
        %v9601 = vmul.f32 %v9263, %v9409
        %v9602 = vmul.f32 %v9264, %v9411
        %v9603 = vmul.f32 %v9265, %v9475
        %v9604 = vmul.f32 %v9266, %v9476
        %v9669 = vrot.slane %v9541, 6
        %v9670 = vrot.slane %v9542, 6
        %v9671 = vrot.slane %v9543, 6
        %v9672 = vrot.slane %v9544, 6
        %v9673 = vrot.slane %v9545, 6
        %v9674 = vrot.slane %v9546, 6
        %v9675 = vrot.slane %v9547, 6
        %v9676 = vrot.slane %v9548, 6
        %v9677 = vrot.slane %v9549, 6
        %v9678 = vrot.slane %v9550, 6
        %v9679 = vrot.slane %v9551, 6
        %v9680 = vrot.slane %v9552, 6
        %v9681 = vrot.slane %v9553, 6
        %v9682 = vrot.slane %v9554, 6
        %v9683 = vrot.slane %v9555, 6
        %v9684 = vrot.slane %v9556, 6
        %v9685 = vrot.slane %v9557, 6
        %v9686 = vrot.slane %v9558, 6
        %v9687 = vrot.slane %v9559, 6
        %v9688 = vrot.slane %v9560, 6
        %v9689 = vrot.slane %v9561, 6
        %v9690 = vrot.slane %v9562, 6
        %v9691 = vrot.slane %v9563, 6
        %v9692 = vrot.slane %v9564, 6
        %v9693 = vrot.slane %v9565, 6
        %v9694 = vrot.slane %v9566, 6
        %v9695 = vrot.slane %v9567, 6
        %v9696 = vrot.slane %v9568, 6
        %v9697 = vrot.slane %v9569, 6
        %v9698 = vrot.slane %v9570, 6
        %v9699 = vrot.slane %v9571, 6
        %v9700 = vrot.slane %v9572, 6
        %v9701 = vrot.slane %v9573, 6
        %v9702 = vrot.slane %v9574, 6
        %v9703 = vrot.slane %v9575, 6
        %v9704 = vrot.slane %v9576, 6
        %v9705 = vrot.slane %v9577, 6
        %v9706 = vrot.slane %v9578, 6
        %v9707 = vrot.slane %v9579, 6
        %v9708 = vrot.slane %v9580, 6
        %v9709 = vrot.slane %v9581, 6
        %v9710 = vrot.slane %v9582, 6
        %v9711 = vrot.slane %v9583, 6
        %v9712 = vrot.slane %v9584, 6
        %v9713 = vrot.slane %v9585, 6
        %v9714 = vrot.slane %v9586, 6
        %v9715 = vrot.slane %v9587, 6
        %v9716 = vrot.slane %v9588, 6
        %v9717 = vrot.slane %v9589, 6
        %v9718 = vrot.slane %v9590, 6
        %v9719 = vrot.slane %v9591, 6
        %v9720 = vrot.slane %v9592, 6
        %v9721 = vrot.slane %v9593, 6
        %v9722 = vrot.slane %v9594, 6
        %v9723 = vrot.slane %v9595, 6
        %v9724 = vrot.slane %v9596, 6
        %v9725 = vrot.slane %v9597, 6
        %v9726 = vrot.slane %v9598, 6
        %v9727 = vrot.slane %v9599, 6
        %v9728 = vrot.slane %v9600, 6
        %v9729 = vrot.slane %v9601, 6
        %v9730 = vrot.slane %v9602, 6
        %v9731 = vrot.slane %v9603, 6
        %v9732 = vrot.slane %v9604, 6
        %v9797 = vmax.f32 %v9101, %v9669
        %v9798 = vmax.f32 %v9102, %v9670
        %v9799 = vmax.f32 %v9103, %v9671
        %v9800 = vmax.f32 %v9104, %v9672
        %v9801 = vmax.f32 %v9105, %v9673
        %v9802 = vmax.f32 %v9106, %v9674
        %v9803 = vmax.f32 %v9107, %v9675
        %v9804 = vmax.f32 %v9108, %v9676
        %v9805 = vmax.f32 %v9109, %v9677
        %v9806 = vmax.f32 %v9110, %v9678
        %v9807 = vmax.f32 %v9111, %v9679
        %v9808 = vmax.f32 %v9112, %v9680
        %v9809 = vmax.f32 %v9113, %v9681
        %v9810 = vmax.f32 %v9114, %v9682
        %v9811 = vmax.f32 %v9115, %v9683
        %v9812 = vmax.f32 %v9116, %v9684
        %v9813 = vmax.f32 %v9117, %v9685
        %v9814 = vmax.f32 %v9118, %v9686
        %v9815 = vmax.f32 %v9119, %v9687
        %v9816 = vmax.f32 %v9120, %v9688
        %v9817 = vmax.f32 %v9121, %v9689
        %v9818 = vmax.f32 %v9122, %v9690
        %v9819 = vmax.f32 %v9123, %v9691
        %v9820 = vmax.f32 %v9124, %v9692
        %v9821 = vmax.f32 %v9125, %v9693
        %v9822 = vmax.f32 %v9126, %v9694
        %v9823 = vmax.f32 %v9127, %v9695
        %v9824 = vmax.f32 %v9128, %v9696
        %v9825 = vmax.f32 %v9129, %v9697
        %v9826 = vmax.f32 %v9130, %v9698
        %v9827 = vmax.f32 %v9131, %v9699
        %v9828 = vmax.f32 %v9132, %v9700
        %v9829 = vmax.f32 %v9133, %v9701
        %v9830 = vmax.f32 %v9134, %v9702
        %v9831 = vmax.f32 %v9135, %v9703
        %v9832 = vmax.f32 %v9136, %v9704
        %v9833 = vmax.f32 %v9137, %v9705
        %v9834 = vmax.f32 %v9138, %v9706
        %v9835 = vmax.f32 %v9139, %v9707
        %v9836 = vmax.f32 %v9140, %v9708
        %v9837 = vmax.f32 %v9141, %v9709
        %v9838 = vmax.f32 %v9142, %v9710
        %v9839 = vmax.f32 %v9143, %v9711
        %v9840 = vmax.f32 %v9144, %v9712
        %v9841 = vmax.f32 %v9145, %v9713
        %v9842 = vmax.f32 %v9146, %v9714
        %v9843 = vmax.f32 %v9147, %v9715
        %v9844 = vmax.f32 %v9148, %v9716
        %v9845 = vmax.f32 %v9149, %v9717
        %v9846 = vmax.f32 %v9150, %v9718
        %v9847 = vmax.f32 %v9151, %v9719
        %v9848 = vmax.f32 %v9152, %v9720
        %v9849 = vmax.f32 %v9153, %v9721
        %v9850 = vmax.f32 %v9154, %v9722
        %v9851 = vmax.f32 %v9155, %v9723
        %v9852 = vmax.f32 %v9156, %v9724
        %v9853 = vmax.f32 %v9157, %v9725
        %v9854 = vmax.f32 %v9158, %v9726
        %v9855 = vmax.f32 %v9159, %v9727
        %v9856 = vmax.f32 %v9160, %v9728
        %v9857 = vmax.f32 %v9161, %v9729
        %v9858 = vmax.f32 %v9162, %v9730
        %v9859 = vmax.f32 %v9163, %v9731
        %v9860 = vmax.f32 %v9164, %v9732
        %s9861 = scalar_lea.vmem %s364, 23 [#allocation2]
        %v9862 = vld [vmem:[%s9861] ss:$8 sm:$0x3]
        %s9863 = scalar_lea.vmem %s364, 55 [#allocation2]
        %v9864 = vld [vmem:[%s9863] ss:$8 sm:$0x3]
        %s9865 = scalar_lea.vmem %s364, 87 [#allocation2]
        %v9866 = vld [vmem:[%s9865] ss:$8 sm:$0x3]
        %v9868 = vlaneseq
        %v9869 = vshrl.u32 %v9868, 7
        %v9870 = vsub.s32 0, %v9869
        %v9871 = vrot.slane %v9862, %v9870
        %v9872 = vlaneseq
        %v9873 = vshrl.u32 %v9872, 7
        %v9874 = vsub.s32 1, %v9873
        %v9875 = vrot.slane %v9862, %v9874
        %v9878 = vmul.f32 %v537, %v9871
        %v9879 = vmul.f32 %v537, %v9875
        %v9880 = vmul.f32 %v542, %v9871
        %v9881 = vmul.f32 %v542, %v9875
        %v9882 = vmul.f32 %v547, %v9871
        %v9883 = vmul.f32 %v547, %v9875
        %v9884 = vmul.f32 %v552, %v9871
        %v9885 = vmul.f32 %v552, %v9875
        %v9887 = vlaneseq
        %v9888 = vshrl.u32 %v9887, 7
        %v9889 = vsub.s32 0, %v9888
        %v9890 = vrot.slane %v9864, %v9889
        %v9891 = vlaneseq
        %v9892 = vshrl.u32 %v9891, 7
        %v9893 = vsub.s32 1, %v9892
        %v9894 = vrot.slane %v9864, %v9893
        %v9897 = vmul.f32 %v575, %v9890
        %v9898 = vmul.f32 %v575, %v9894
        %v9899 = vmul.f32 %v579, %v9890
        %v9900 = vmul.f32 %v579, %v9894
        %v9901 = vmul.f32 %v583, %v9890
        %v9902 = vmul.f32 %v583, %v9894
        %v9903 = vmul.f32 %v587, %v9890
        %v9904 = vmul.f32 %v587, %v9894
        %v9905 = vadd.f32 %v9878, %v9897
        %v9906 = vadd.f32 %v9879, %v9898
        %v9907 = vadd.f32 %v9880, %v9899
        %v9908 = vadd.f32 %v9881, %v9900
        %v9909 = vadd.f32 %v9882, %v9901
        %v9910 = vadd.f32 %v9883, %v9902
        %v9911 = vadd.f32 %v9884, %v9903
        %v9912 = vadd.f32 %v9885, %v9904
        %v9914 = vlaneseq
        %v9915 = vshrl.u32 %v9914, 7
        %v9916 = vsub.s32 0, %v9915
        %v9917 = vrot.slane %v9866, %v9916
        %v9918 = vlaneseq
        %v9919 = vshrl.u32 %v9918, 7
        %v9920 = vsub.s32 1, %v9919
        %v9921 = vrot.slane %v9866, %v9920
        %v9924 = vmul.f32 %v618, %v9917
        %v9925 = vmul.f32 %v618, %v9921
        %v9926 = vmul.f32 %v622, %v9917
        %v9927 = vmul.f32 %v622, %v9921
        %v9928 = vmul.f32 %v626, %v9917
        %v9929 = vmul.f32 %v626, %v9921
        %v9930 = vmul.f32 %v630, %v9917
        %v9931 = vmul.f32 %v630, %v9921
        %v9932 = vadd.f32 %v9905, %v9924
        %v9933 = vadd.f32 %v9906, %v9925
        %v9934 = vadd.f32 %v9907, %v9926
        %v9935 = vadd.f32 %v9908, %v9927
        %v9936 = vadd.f32 %v9909, %v9928
        %v9937 = vadd.f32 %v9910, %v9929
        %v9938 = vadd.f32 %v9911, %v9930
        %v9939 = vadd.f32 %v9912, %v9931
        %v9940 = vadd.f32 %v9932, %v662
        %v9941 = vadd.f32 %v9933, %v662
        %v9942 = vadd.f32 %v9934, %v667
        %v9943 = vadd.f32 %v9935, %v667
        %v9944 = vadd.f32 %v9936, %v672
        %v9945 = vadd.f32 %v9937, %v672
        %v9946 = vadd.f32 %v9938, %v677
        %v9947 = vadd.f32 %v9939, %v677
        %v9948 = vmax.f32 %v9940, 0.0
        %v9949 = vmax.f32 %v9941, 0.0
        %v9950 = vmax.f32 %v9942, 0.0
        %v9951 = vmax.f32 %v9943, 0.0
        %v9952 = vmax.f32 %v9944, 0.0
        %v9953 = vmax.f32 %v9945, 0.0
        %v9954 = vmax.f32 %v9946, 0.0
        %v9955 = vmax.f32 %v9947, 0.0
        %v9956 = vpack.c.bf16 %v9950, %v9948
        %v9957 = vpack.c.bf16 %v9951, %v9949
        %v9958 = vpack.c.bf16 %v9954, %v9952
        %v9959 = vpack.c.bf16 %v9955, %v9953
        %9960 = vmatprep.subr.bf16.mxu0 %v9957
        %9961 = vmatpush1.bf16.msra.mxu0 %v9956
        %9962 = vmatprep.subr.bf16.mxu0 %v9959
        %9963 = vmatpush1.bf16.msra.mxu0 %v9958
        %9964 = vmatprep.subr.bf16.mxu0 0
        %9965 = vmatpush1.bf16.msra.mxu0 0
        %9966 = vmatprep.subr.bf16.mxu0 0
        %9967 = vmatpush1.bf16.msra.mxu0 0
        %9968 = vmatprep.subr.bf16.mxu0 0
        %9969 = vmatpush1.bf16.msra.mxu0 0
        %9970 = vmatprep.subr.bf16.mxu0 0
        %9971 = vmatpush1.bf16.msra.mxu0 0
        %9972 = vmatprep.subr.bf16.mxu0 0
        %9973 = vmatpush1.bf16.msra.mxu0 0
        %9974 = vmatprep.subr.bf16.mxu0 0
        %9975 = vmatpush1.bf16.msra.mxu0 0
        %9976 = vmatprep.subr.bf16.mxu0 0
        %9977 = vmatpush1.bf16.msra.mxu0 0
        %9978 = vmatprep.subr.bf16.mxu0 0
        %9979 = vmatpush1.bf16.msra.mxu0 0
        %9980 = vmatprep.subr.bf16.mxu0 0
        %9981 = vmatpush1.bf16.msra.mxu0 0
        %9982 = vmatprep.subr.bf16.mxu0 0
        %9983 = vmatpush1.bf16.msra.mxu0 0
        %9984 = vmatprep.subr.bf16.mxu0 0
        %9985 = vmatpush1.bf16.msra.mxu0 0
        %9986 = vmatprep.subr.bf16.mxu0 0
        %9987 = vmatpush1.bf16.msra.mxu0 0
        %9988 = vmatprep.subr.bf16.mxu0 0
        %9989 = vmatpush1.bf16.msra.mxu0 0
        %9990 = vmatprep.subr.bf16.mxu0 0
        %9991 = vmatpush1.bf16.msra.mxu0 0
        %9992 = vmatprep.mubr.bf16.mxu0 0
        %9993 = vmatmul.mubr.bf16.gmra.mrb[0].mxu0 %v731
        %v9994 = vpop.f32.mrb[0].mxu0
        %v9995 = vadd.f32 %v702, %v9994
        %v9996 = vpop.f32.mrb[0].mxu0
        %v9997 = vadd.f32 %v702, %v9996
        %v9998 = vpop.f32.mrb[0].mxu0
        %v9999 = vadd.f32 %v707, %v9998
        %v10000 = vpop.f32.mrb[0].mxu0
        %v10001 = vadd.f32 %v707, %v10000
        %10002 = vmatprep.mubr.bf16.mxu0 0
        %10003 = vmatmul.mubr.bf16.gmra.mrb[0].mxu0 %v734
        %v10004 = vpop.f32.mrb[0].mxu0
        %v10005 = vadd.f32 %v712, %v10004
        %v10006 = vpop.f32.mrb[0].mxu0
        %v10007 = vadd.f32 %v712, %v10006
        %v10008 = vpop.f32.mrb[0].mxu0
        %v10009 = vadd.f32 %v717, %v10008
        %v10010 = vpop.f32.mrb[0].mxu0
        %v10011 = vadd.f32 %v717, %v10010
        %10012 = vdwg.mxu0
        %v10021 = vrot.slane %v9995, 1
        %v10022 = vrot.slane %v9997, 1
        %v10023 = vrot.slane %v9995, 2
        %v10024 = vrot.slane %v9997, 2
        %v10025 = vrot.slane %v9995, 3
        %v10026 = vrot.slane %v9997, 3
        %v10027 = vrot.slane %v9995, 4
        %v10028 = vrot.slane %v9997, 4
        %v10029 = vrot.slane %v9995, 5
        %v10030 = vrot.slane %v9997, 5
        %v10031 = vrot.slane %v9995, 6
        %v10032 = vrot.slane %v9997, 6
        %v10033 = vrot.slane %v9995, 7
        %v10034 = vrot.slane %v9997, 7
        %v10035 = vrot.slane %v9999, 1
        %v10036 = vrot.slane %v10001, 1
        %v10037 = vrot.slane %v9999, 2
        %v10038 = vrot.slane %v10001, 2
        %v10039 = vrot.slane %v9999, 3
        %v10040 = vrot.slane %v10001, 3
        %v10041 = vrot.slane %v9999, 4
        %v10042 = vrot.slane %v10001, 4
        %v10043 = vrot.slane %v9999, 5
        %v10044 = vrot.slane %v10001, 5
        %v10045 = vrot.slane %v9999, 6
        %v10046 = vrot.slane %v10001, 6
        %v10047 = vrot.slane %v9999, 7
        %v10048 = vrot.slane %v10001, 7
        %v10049 = vrot.slane %v10005, 1
        %v10050 = vrot.slane %v10007, 1
        %v10051 = vrot.slane %v10005, 2
        %v10052 = vrot.slane %v10007, 2
        %v10053 = vrot.slane %v10005, 3
        %v10054 = vrot.slane %v10007, 3
        %v10055 = vrot.slane %v10005, 4
        %v10056 = vrot.slane %v10007, 4
        %v10057 = vrot.slane %v10005, 5
        %v10058 = vrot.slane %v10007, 5
        %v10059 = vrot.slane %v10005, 6
        %v10060 = vrot.slane %v10007, 6
        %v10061 = vrot.slane %v10005, 7
        %v10062 = vrot.slane %v10007, 7
        %v10063 = vrot.slane %v10009, 1
        %v10064 = vrot.slane %v10011, 1
        %v10065 = vrot.slane %v10009, 2
        %v10066 = vrot.slane %v10011, 2
        %v10067 = vrot.slane %v10009, 3
        %v10068 = vrot.slane %v10011, 3
        %v10069 = vrot.slane %v10009, 4
        %v10070 = vrot.slane %v10011, 4
        %v10071 = vrot.slane %v10009, 5
        %v10072 = vrot.slane %v10011, 5
        %v10073 = vrot.slane %v10009, 6
        %v10074 = vrot.slane %v10011, 6
        %v10075 = vrot.slane %v10009, 7
        %v10076 = vrot.slane %v10011, 7
        %v10141 = vmul.f32 %v9203, %v10021
        %v10142 = vmul.f32 %v9204, %v10022
        %v10143 = vmul.f32 %v9205, %v10023
        %v10144 = vmul.f32 %v9206, %v10024
        %v10145 = vmul.f32 %v9207, %v10025
        %v10146 = vmul.f32 %v9208, %v10026
        %v10147 = vmul.f32 %v9209, %v10027
        %v10148 = vmul.f32 %v9210, %v10028
        %v10149 = vmul.f32 %v9211, %v10029
        %v10150 = vmul.f32 %v9212, %v10030
        %v10151 = vmul.f32 %v9213, %v10031
        %v10152 = vmul.f32 %v9214, %v10032
        %v10153 = vmul.f32 %v9215, %v10033
        %v10154 = vmul.f32 %v9216, %v10034
        %v10155 = vmul.f32 %v9217, %v9995
        %v10156 = vmul.f32 %v9218, %v9997
        %v10157 = vmul.f32 %v9219, %v10035
        %v10158 = vmul.f32 %v9220, %v10036
        %v10159 = vmul.f32 %v9221, %v10037
        %v10160 = vmul.f32 %v9222, %v10038
        %v10161 = vmul.f32 %v9223, %v10039
        %v10162 = vmul.f32 %v9224, %v10040
        %v10163 = vmul.f32 %v9225, %v10041
        %v10164 = vmul.f32 %v9226, %v10042
        %v10165 = vmul.f32 %v9227, %v10043
        %v10166 = vmul.f32 %v9228, %v10044
        %v10167 = vmul.f32 %v9229, %v10045
        %v10168 = vmul.f32 %v9230, %v10046
        %v10169 = vmul.f32 %v9231, %v10047
        %v10170 = vmul.f32 %v9232, %v10048
        %v10171 = vmul.f32 %v9233, %v9999
        %v10172 = vmul.f32 %v9234, %v10001
        %v10173 = vmul.f32 %v9235, %v10049
        %v10174 = vmul.f32 %v9236, %v10050
        %v10175 = vmul.f32 %v9237, %v10051
        %v10176 = vmul.f32 %v9238, %v10052
        %v10177 = vmul.f32 %v9239, %v10053
        %v10178 = vmul.f32 %v9240, %v10054
        %v10179 = vmul.f32 %v9241, %v10055
        %v10180 = vmul.f32 %v9242, %v10056
        %v10181 = vmul.f32 %v9243, %v10057
        %v10182 = vmul.f32 %v9244, %v10058
        %v10183 = vmul.f32 %v9245, %v10059
        %v10184 = vmul.f32 %v9246, %v10060
        %v10185 = vmul.f32 %v9247, %v10061
        %v10186 = vmul.f32 %v9248, %v10062
        %v10187 = vmul.f32 %v9249, %v10005
        %v10188 = vmul.f32 %v9250, %v10007
        %v10189 = vmul.f32 %v9251, %v10063
        %v10190 = vmul.f32 %v9252, %v10064
        %v10191 = vmul.f32 %v9253, %v10065
        %v10192 = vmul.f32 %v9254, %v10066
        %v10193 = vmul.f32 %v9255, %v10067
        %v10194 = vmul.f32 %v9256, %v10068
        %v10195 = vmul.f32 %v9257, %v10069
        %v10196 = vmul.f32 %v9258, %v10070
        %v10197 = vmul.f32 %v9259, %v10071
        %v10198 = vmul.f32 %v9260, %v10072
        %v10199 = vmul.f32 %v9261, %v10073
        %v10200 = vmul.f32 %v9262, %v10074
        %v10201 = vmul.f32 %v9263, %v10075
        %v10202 = vmul.f32 %v9264, %v10076
        %v10203 = vmul.f32 %v9265, %v10009
        %v10204 = vmul.f32 %v9266, %v10011
        %v10269 = vrot.slane %v10141, 7
        %v10270 = vrot.slane %v10142, 7
        %v10271 = vrot.slane %v10143, 7
        %v10272 = vrot.slane %v10144, 7
        %v10273 = vrot.slane %v10145, 7
        %v10274 = vrot.slane %v10146, 7
        %v10275 = vrot.slane %v10147, 7
        %v10276 = vrot.slane %v10148, 7
        %v10277 = vrot.slane %v10149, 7
        %v10278 = vrot.slane %v10150, 7
        %v10279 = vrot.slane %v10151, 7
        %v10280 = vrot.slane %v10152, 7
        %v10281 = vrot.slane %v10153, 7
        %v10282 = vrot.slane %v10154, 7
        %v10283 = vrot.slane %v10155, 7
        %v10284 = vrot.slane %v10156, 7
        %v10285 = vrot.slane %v10157, 7
        %v10286 = vrot.slane %v10158, 7
        %v10287 = vrot.slane %v10159, 7
        %v10288 = vrot.slane %v10160, 7
        %v10289 = vrot.slane %v10161, 7
        %v10290 = vrot.slane %v10162, 7
        %v10291 = vrot.slane %v10163, 7
        %v10292 = vrot.slane %v10164, 7
        %v10293 = vrot.slane %v10165, 7
        %v10294 = vrot.slane %v10166, 7
        %v10295 = vrot.slane %v10167, 7
        %v10296 = vrot.slane %v10168, 7
        %v10297 = vrot.slane %v10169, 7
        %v10298 = vrot.slane %v10170, 7
        %v10299 = vrot.slane %v10171, 7
        %v10300 = vrot.slane %v10172, 7
        %v10301 = vrot.slane %v10173, 7
        %v10302 = vrot.slane %v10174, 7
        %v10303 = vrot.slane %v10175, 7
        %v10304 = vrot.slane %v10176, 7
        %v10305 = vrot.slane %v10177, 7
        %v10306 = vrot.slane %v10178, 7
        %v10307 = vrot.slane %v10179, 7
        %v10308 = vrot.slane %v10180, 7
        %v10309 = vrot.slane %v10181, 7
        %v10310 = vrot.slane %v10182, 7
        %v10311 = vrot.slane %v10183, 7
        %v10312 = vrot.slane %v10184, 7
        %v10313 = vrot.slane %v10185, 7
        %v10314 = vrot.slane %v10186, 7
        %v10315 = vrot.slane %v10187, 7
        %v10316 = vrot.slane %v10188, 7
        %v10317 = vrot.slane %v10189, 7
        %v10318 = vrot.slane %v10190, 7
        %v10319 = vrot.slane %v10191, 7
        %v10320 = vrot.slane %v10192, 7
        %v10321 = vrot.slane %v10193, 7
        %v10322 = vrot.slane %v10194, 7
        %v10323 = vrot.slane %v10195, 7
        %v10324 = vrot.slane %v10196, 7
        %v10325 = vrot.slane %v10197, 7
        %v10326 = vrot.slane %v10198, 7
        %v10327 = vrot.slane %v10199, 7
        %v10328 = vrot.slane %v10200, 7
        %v10329 = vrot.slane %v10201, 7
        %v10330 = vrot.slane %v10202, 7
        %v10331 = vrot.slane %v10203, 7
        %v10332 = vrot.slane %v10204, 7
        %v10397 = vmax.f32 %v9797, %v10269
        %v10398 = vmax.f32 %v9798, %v10270
        %v10399 = vmax.f32 %v9799, %v10271
        %v10400 = vmax.f32 %v9800, %v10272
        %v10401 = vmax.f32 %v9801, %v10273
        %v10402 = vmax.f32 %v9802, %v10274
        %v10403 = vmax.f32 %v9803, %v10275
        %v10404 = vmax.f32 %v9804, %v10276
        %v10405 = vmax.f32 %v9805, %v10277
        %v10406 = vmax.f32 %v9806, %v10278
        %v10407 = vmax.f32 %v9807, %v10279
        %v10408 = vmax.f32 %v9808, %v10280
        %v10409 = vmax.f32 %v9809, %v10281
        %v10410 = vmax.f32 %v9810, %v10282
        %v10411 = vmax.f32 %v9811, %v10283
        %v10412 = vmax.f32 %v9812, %v10284
        %v10413 = vmax.f32 %v9813, %v10285
        %v10414 = vmax.f32 %v9814, %v10286
        %v10415 = vmax.f32 %v9815, %v10287
        %v10416 = vmax.f32 %v9816, %v10288
        %v10417 = vmax.f32 %v9817, %v10289
        %v10418 = vmax.f32 %v9818, %v10290
        %v10419 = vmax.f32 %v9819, %v10291
        %v10420 = vmax.f32 %v9820, %v10292
        %v10421 = vmax.f32 %v9821, %v10293
        %v10422 = vmax.f32 %v9822, %v10294
        %v10423 = vmax.f32 %v9823, %v10295
        %v10424 = vmax.f32 %v9824, %v10296
        %v10425 = vmax.f32 %v9825, %v10297
        %v10426 = vmax.f32 %v9826, %v10298
        %v10427 = vmax.f32 %v9827, %v10299
        %v10428 = vmax.f32 %v9828, %v10300
        %v10429 = vmax.f32 %v9829, %v10301
        %v10430 = vmax.f32 %v9830, %v10302
        %v10431 = vmax.f32 %v9831, %v10303
        %v10432 = vmax.f32 %v9832, %v10304
        %v10433 = vmax.f32 %v9833, %v10305
        %v10434 = vmax.f32 %v9834, %v10306
        %v10435 = vmax.f32 %v9835, %v10307
        %v10436 = vmax.f32 %v9836, %v10308
        %v10437 = vmax.f32 %v9837, %v10309
        %v10438 = vmax.f32 %v9838, %v10310
        %v10439 = vmax.f32 %v9839, %v10311
        %v10440 = vmax.f32 %v9840, %v10312
        %v10441 = vmax.f32 %v9841, %v10313
        %v10442 = vmax.f32 %v9842, %v10314
        %v10443 = vmax.f32 %v9843, %v10315
        %v10444 = vmax.f32 %v9844, %v10316
        %v10445 = vmax.f32 %v9845, %v10317
        %v10446 = vmax.f32 %v9846, %v10318
        %v10447 = vmax.f32 %v9847, %v10319
        %v10448 = vmax.f32 %v9848, %v10320
        %v10449 = vmax.f32 %v9849, %v10321
        %v10450 = vmax.f32 %v9850, %v10322
        %v10451 = vmax.f32 %v9851, %v10323
        %v10452 = vmax.f32 %v9852, %v10324
        %v10453 = vmax.f32 %v9853, %v10325
        %v10454 = vmax.f32 %v9854, %v10326
        %v10455 = vmax.f32 %v9855, %v10327
        %v10456 = vmax.f32 %v9856, %v10328
        %v10457 = vmax.f32 %v9857, %v10329
        %v10458 = vmax.f32 %v9858, %v10330
        %v10459 = vmax.f32 %v9859, %v10331
        %v10460 = vmax.f32 %v9860, %v10332
        %v10461 = vld [vmem:[%s6] sm:$0xf]
        %v10462 = vld [vmem:[%s6 + $0x4] sm:$0xf]
        %v10463 = vld [vmem:[%s6 + $0x8] sm:$0xf]
        %v10464 = vld [vmem:[%s6 + $0xc] sm:$0xf]
        %v10465 = vld [vmem:[%s6 + $0x10] sm:$0xf]
        %v10466 = vld [vmem:[%s6 + $0x14] sm:$0xf]
        %v10467 = vld [vmem:[%s6 + $0x18] sm:$0xf]
        %v10468 = vld [vmem:[%s6 + $0x1c] sm:$0xf]
        %v10469 = vpack.c.bf16 %v10397, %v10397
        %v10470 = vpack.c.bf16 %v10398, %v10398
        %v10471 = vpack.c.bf16 %v10399, %v10399
        %v10472 = vpack.c.bf16 %v10400, %v10400
        %v10473 = vpack.c.bf16 %v10401, %v10401
        %v10474 = vpack.c.bf16 %v10402, %v10402
        %v10475 = vpack.c.bf16 %v10403, %v10403
        %v10476 = vpack.c.bf16 %v10404, %v10404
        %v10477 = vpack.c.bf16 %v10405, %v10405
        %v10478 = vpack.c.bf16 %v10406, %v10406
        %v10479 = vpack.c.bf16 %v10407, %v10407
        %v10480 = vpack.c.bf16 %v10408, %v10408
        %v10481 = vpack.c.bf16 %v10409, %v10409
        %v10482 = vpack.c.bf16 %v10410, %v10410
        %v10483 = vpack.c.bf16 %v10411, %v10411
        %v10484 = vpack.c.bf16 %v10412, %v10412
        %v10485 = vpack.c.bf16 %v10413, %v10413
        %v10486 = vpack.c.bf16 %v10414, %v10414
        %v10487 = vpack.c.bf16 %v10415, %v10415
        %v10488 = vpack.c.bf16 %v10416, %v10416
        %v10489 = vpack.c.bf16 %v10417, %v10417
        %v10490 = vpack.c.bf16 %v10418, %v10418
        %v10491 = vpack.c.bf16 %v10419, %v10419
        %v10492 = vpack.c.bf16 %v10420, %v10420
        %v10493 = vpack.c.bf16 %v10421, %v10421
        %v10494 = vpack.c.bf16 %v10422, %v10422
        %v10495 = vpack.c.bf16 %v10423, %v10423
        %v10496 = vpack.c.bf16 %v10424, %v10424
        %v10497 = vpack.c.bf16 %v10425, %v10425
        %v10498 = vpack.c.bf16 %v10426, %v10426
        %v10499 = vpack.c.bf16 %v10427, %v10427
        %v10500 = vpack.c.bf16 %v10428, %v10428
        %v10501 = vpack.c.bf16 %v10429, %v10429
        %v10502 = vpack.c.bf16 %v10430, %v10430
        %v10503 = vpack.c.bf16 %v10431, %v10431
        %v10504 = vpack.c.bf16 %v10432, %v10432
        %v10505 = vpack.c.bf16 %v10433, %v10433
        %v10506 = vpack.c.bf16 %v10434, %v10434
        %v10507 = vpack.c.bf16 %v10435, %v10435
        %v10508 = vpack.c.bf16 %v10436, %v10436
        %v10509 = vpack.c.bf16 %v10437, %v10437
        %v10510 = vpack.c.bf16 %v10438, %v10438
        %v10511 = vpack.c.bf16 %v10439, %v10439
        %v10512 = vpack.c.bf16 %v10440, %v10440
        %v10513 = vpack.c.bf16 %v10441, %v10441
        %v10514 = vpack.c.bf16 %v10442, %v10442
        %v10515 = vpack.c.bf16 %v10443, %v10443
        %v10516 = vpack.c.bf16 %v10444, %v10444
        %v10517 = vpack.c.bf16 %v10445, %v10445
        %v10518 = vpack.c.bf16 %v10446, %v10446
        %v10519 = vpack.c.bf16 %v10447, %v10447
        %v10520 = vpack.c.bf16 %v10448, %v10448
        %v10521 = vpack.c.bf16 %v10449, %v10449
        %v10522 = vpack.c.bf16 %v10450, %v10450
        %v10523 = vpack.c.bf16 %v10451, %v10451
        %v10524 = vpack.c.bf16 %v10452, %v10452
        %v10525 = vpack.c.bf16 %v10453, %v10453
        %v10526 = vpack.c.bf16 %v10454, %v10454
        %v10527 = vpack.c.bf16 %v10455, %v10455
        %v10528 = vpack.c.bf16 %v10456, %v10456
        %v10529 = vpack.c.bf16 %v10457, %v10457
        %v10530 = vpack.c.bf16 %v10458, %v10458
        %v10531 = vpack.c.bf16 %v10459, %v10459
        %v10532 = vpack.c.bf16 %v10460, %v10460
        %v10541 = vunpack.c.l.b16 %v10461
        %v10542 = vunpack.c.l.b16 %v10462
        %v10543 = vunpack.c.l.b16 %v10463
        %v10544 = vunpack.c.l.b16 %v10464
        %v10545 = vunpack.c.l.b16 %v10465
        %v10546 = vunpack.c.l.b16 %v10466
        %v10547 = vunpack.c.l.b16 %v10467
        %v10548 = vunpack.c.l.b16 %v10468
        %v10549 = vpack.c.b16 %v10542, %v10541
        %v10550 = vpack.c.b16 %v10544, %v10543
        %v10551 = vpack.c.b16 %v10546, %v10545
        %v10552 = vpack.c.b16 %v10548, %v10547
        %v10617 = vunpack.c.l.b16 %v10469
        %v10618 = vunpack.c.l.b16 %v10470
        %v10619 = vunpack.c.l.b16 %v10471
        %v10620 = vunpack.c.l.b16 %v10472
        %v10621 = vunpack.c.l.b16 %v10473
        %v10622 = vunpack.c.l.b16 %v10474
        %v10623 = vunpack.c.l.b16 %v10475
        %v10624 = vunpack.c.l.b16 %v10476
        %v10625 = vunpack.c.l.b16 %v10477
        %v10626 = vunpack.c.l.b16 %v10478
        %v10627 = vunpack.c.l.b16 %v10479
        %v10628 = vunpack.c.l.b16 %v10480
        %v10629 = vunpack.c.l.b16 %v10481
        %v10630 = vunpack.c.l.b16 %v10482
        %v10631 = vunpack.c.l.b16 %v10483
        %v10632 = vunpack.c.l.b16 %v10484
        %v10633 = vunpack.c.l.b16 %v10485
        %v10634 = vunpack.c.l.b16 %v10486
        %v10635 = vunpack.c.l.b16 %v10487
        %v10636 = vunpack.c.l.b16 %v10488
        %v10637 = vunpack.c.l.b16 %v10489
        %v10638 = vunpack.c.l.b16 %v10490
        %v10639 = vunpack.c.l.b16 %v10491
        %v10640 = vunpack.c.l.b16 %v10492
        %v10641 = vunpack.c.l.b16 %v10493
        %v10642 = vunpack.c.l.b16 %v10494
        %v10643 = vunpack.c.l.b16 %v10495
        %v10644 = vunpack.c.l.b16 %v10496
        %v10645 = vunpack.c.l.b16 %v10497
        %v10646 = vunpack.c.l.b16 %v10498
        %v10647 = vunpack.c.l.b16 %v10499
        %v10648 = vunpack.c.l.b16 %v10500
        %v10649 = vunpack.c.l.b16 %v10501
        %v10650 = vunpack.c.l.b16 %v10502
        %v10651 = vunpack.c.l.b16 %v10503
        %v10652 = vunpack.c.l.b16 %v10504
        %v10653 = vunpack.c.l.b16 %v10505
        %v10654 = vunpack.c.l.b16 %v10506
        %v10655 = vunpack.c.l.b16 %v10507
        %v10656 = vunpack.c.l.b16 %v10508
        %v10657 = vunpack.c.l.b16 %v10509
        %v10658 = vunpack.c.l.b16 %v10510
        %v10659 = vunpack.c.l.b16 %v10511
        %v10660 = vunpack.c.l.b16 %v10512
        %v10661 = vunpack.c.l.b16 %v10513
        %v10662 = vunpack.c.l.b16 %v10514
        %v10663 = vunpack.c.l.b16 %v10515
        %v10664 = vunpack.c.l.b16 %v10516
        %v10665 = vunpack.c.l.b16 %v10517
        %v10666 = vunpack.c.l.b16 %v10518
        %v10667 = vunpack.c.l.b16 %v10519
        %v10668 = vunpack.c.l.b16 %v10520
        %v10669 = vunpack.c.l.b16 %v10521
        %v10670 = vunpack.c.l.b16 %v10522
        %v10671 = vunpack.c.l.b16 %v10523
        %v10672 = vunpack.c.l.b16 %v10524
        %v10673 = vunpack.c.l.b16 %v10525
        %v10674 = vunpack.c.l.b16 %v10526
        %v10675 = vunpack.c.l.b16 %v10527
        %v10676 = vunpack.c.l.b16 %v10528
        %v10677 = vunpack.c.l.b16 %v10529
        %v10678 = vunpack.c.l.b16 %v10530
        %v10679 = vunpack.c.l.b16 %v10531
        %v10680 = vunpack.c.l.b16 %v10532
        %v10681 = vrot.slane %v10619, 7
        %vm10682 = vcmask 1041409
        %v10683 = vsel %vm10682, %v10681, %v10617
        %v10684 = vrot.slane %v10621, 6
        %vm10685 = vcmask 1042434
        %v10686 = vsel %vm10685, %v10684, %v10683
        %v10687 = vrot.slane %v10623, 5
        %vm10688 = vcmask 1043459
        %v10689 = vsel %vm10688, %v10687, %v10686
        %v10690 = vrot.slane %v10625, 4
        %vm10691 = vcmask 1044484
        %v10692 = vsel %vm10691, %v10690, %v10689
        %v10693 = vrot.slane %v10627, 3
        %vm10694 = vcmask 1045509
        %v10695 = vsel %vm10694, %v10693, %v10692
        %v10696 = vrot.slane %v10629, 2
        %vm10697 = vcmask 1046534
        %v10698 = vsel %vm10697, %v10696, %v10695
        %v10699 = vrot.slane %v10631, 1
        %vm10700 = vcmask 1047559
        %v10701 = vsel %vm10700, %v10699, %v10698
        %v10702 = vrot.slane %v10620, 7
        %v10703 = vsel %vm10682, %v10702, %v10618
        %v10704 = vrot.slane %v10622, 6
        %v10705 = vsel %vm10685, %v10704, %v10703
        %v10706 = vrot.slane %v10624, 5
        %v10707 = vsel %vm10688, %v10706, %v10705
        %v10708 = vrot.slane %v10626, 4
        %v10709 = vsel %vm10691, %v10708, %v10707
        %v10710 = vrot.slane %v10628, 3
        %v10711 = vsel %vm10694, %v10710, %v10709
        %v10712 = vrot.slane %v10630, 2
        %v10713 = vsel %vm10697, %v10712, %v10711
        %v10714 = vrot.slane %v10632, 1
        %v10715 = vsel %vm10700, %v10714, %v10713
        %v10716 = vrot.slane %v10635, 7
        %v10717 = vsel %vm10682, %v10716, %v10633
        %v10718 = vrot.slane %v10637, 6
        %v10719 = vsel %vm10685, %v10718, %v10717
        %v10720 = vrot.slane %v10639, 5
        %v10721 = vsel %vm10688, %v10720, %v10719
        %v10722 = vrot.slane %v10641, 4
        %v10723 = vsel %vm10691, %v10722, %v10721
        %v10724 = vrot.slane %v10643, 3
        %v10725 = vsel %vm10694, %v10724, %v10723
        %v10726 = vrot.slane %v10645, 2
        %v10727 = vsel %vm10697, %v10726, %v10725
        %v10728 = vrot.slane %v10647, 1
        %v10729 = vsel %vm10700, %v10728, %v10727
        %v10730 = vrot.slane %v10636, 7
        %v10731 = vsel %vm10682, %v10730, %v10634
        %v10732 = vrot.slane %v10638, 6
        %v10733 = vsel %vm10685, %v10732, %v10731
        %v10734 = vrot.slane %v10640, 5
        %v10735 = vsel %vm10688, %v10734, %v10733
        %v10736 = vrot.slane %v10642, 4
        %v10737 = vsel %vm10691, %v10736, %v10735
        %v10738 = vrot.slane %v10644, 3
        %v10739 = vsel %vm10694, %v10738, %v10737
        %v10740 = vrot.slane %v10646, 2
        %v10741 = vsel %vm10697, %v10740, %v10739
        %v10742 = vrot.slane %v10648, 1
        %v10743 = vsel %vm10700, %v10742, %v10741
        %v10744 = vrot.slane %v10651, 7
        %v10745 = vsel %vm10682, %v10744, %v10649
        %v10746 = vrot.slane %v10653, 6
        %v10747 = vsel %vm10685, %v10746, %v10745
        %v10748 = vrot.slane %v10655, 5
        %v10749 = vsel %vm10688, %v10748, %v10747
        %v10750 = vrot.slane %v10657, 4
        %v10751 = vsel %vm10691, %v10750, %v10749
        %v10752 = vrot.slane %v10659, 3
        %v10753 = vsel %vm10694, %v10752, %v10751
        %v10754 = vrot.slane %v10661, 2
        %v10755 = vsel %vm10697, %v10754, %v10753
        %v10756 = vrot.slane %v10663, 1
        %v10757 = vsel %vm10700, %v10756, %v10755
        %v10758 = vrot.slane %v10652, 7
        %v10759 = vsel %vm10682, %v10758, %v10650
        %v10760 = vrot.slane %v10654, 6
        %v10761 = vsel %vm10685, %v10760, %v10759
        %v10762 = vrot.slane %v10656, 5
        %v10763 = vsel %vm10688, %v10762, %v10761
        %v10764 = vrot.slane %v10658, 4
        %v10765 = vsel %vm10691, %v10764, %v10763
        %v10766 = vrot.slane %v10660, 3
        %v10767 = vsel %vm10694, %v10766, %v10765
        %v10768 = vrot.slane %v10662, 2
        %v10769 = vsel %vm10697, %v10768, %v10767
        %v10770 = vrot.slane %v10664, 1
        %v10771 = vsel %vm10700, %v10770, %v10769
        %v10772 = vrot.slane %v10667, 7
        %v10773 = vsel %vm10682, %v10772, %v10665
        %v10774 = vrot.slane %v10669, 6
        %v10775 = vsel %vm10685, %v10774, %v10773
        %v10776 = vrot.slane %v10671, 5
        %v10777 = vsel %vm10688, %v10776, %v10775
        %v10778 = vrot.slane %v10673, 4
        %v10779 = vsel %vm10691, %v10778, %v10777
        %v10780 = vrot.slane %v10675, 3
        %v10781 = vsel %vm10694, %v10780, %v10779
        %v10782 = vrot.slane %v10677, 2
        %v10783 = vsel %vm10697, %v10782, %v10781
        %v10784 = vrot.slane %v10679, 1
        %v10785 = vsel %vm10700, %v10784, %v10783
        %v10786 = vrot.slane %v10668, 7
        %v10787 = vsel %vm10682, %v10786, %v10666
        %v10788 = vrot.slane %v10670, 6
        %v10789 = vsel %vm10685, %v10788, %v10787
        %v10790 = vrot.slane %v10672, 5
        %v10791 = vsel %vm10688, %v10790, %v10789
        %v10792 = vrot.slane %v10674, 4
        %v10793 = vsel %vm10691, %v10792, %v10791
        %v10794 = vrot.slane %v10676, 3
        %v10795 = vsel %vm10694, %v10794, %v10793
        %v10796 = vrot.slane %v10678, 2
        %v10797 = vsel %vm10697, %v10796, %v10795
        %v10798 = vrot.slane %v10680, 1
        %v10799 = vsel %vm10700, %v10798, %v10797
        %v10800 = vpack.c.b16 %v10729, %v10701
        %v10801 = vpack.c.b16 %v10743, %v10715
        %v10802 = vpack.c.b16 %v10785, %v10757
        %v10803 = vpack.c.b16 %v10799, %v10771
        %v10809 = vsel %vm729, %v10549, 0
        %v10812 = vsel %vm729, %v10550, 0
        %v10815 = vsel %vm729, %v10551, 0
        %v10818 = vsel %vm729, %v10552, 0
        %10820 = vmatprep.subr.bf16.mxu0 %v10801
        %10821 = vmatpush1.bf16.msra.mxu0 %v10800
        %10822 = vmatprep.subr.bf16.mxu0 %v10803
        %10823 = vmatpush1.bf16.msra.mxu0 %v10802
        %10824 = vmatprep.subr.bf16.mxu0 0
        %10825 = vmatpush1.bf16.msra.mxu0 0
        %10826 = vmatprep.subr.bf16.mxu0 0
        %10827 = vmatpush1.bf16.msra.mxu0 0
        %10828 = vmatprep.subr.bf16.mxu0 0
        %10829 = vmatpush1.bf16.msra.mxu0 0
        %10830 = vmatprep.subr.bf16.mxu0 0
        %10831 = vmatpush1.bf16.msra.mxu0 0
        %10832 = vmatprep.subr.bf16.mxu0 0
        %10833 = vmatpush1.bf16.msra.mxu0 0
        %10834 = vmatprep.subr.bf16.mxu0 0
        %10835 = vmatpush1.bf16.msra.mxu0 0
        %10836 = vmatprep.subr.bf16.mxu0 0
        %10837 = vmatpush1.bf16.msra.mxu0 0
        %10838 = vmatprep.subr.bf16.mxu0 0
        %10839 = vmatpush1.bf16.msra.mxu0 0
        %10840 = vmatprep.subr.bf16.mxu0 0
        %10841 = vmatpush1.bf16.msra.mxu0 0
        %10842 = vmatprep.subr.bf16.mxu0 0
        %10843 = vmatpush1.bf16.msra.mxu0 0
        %10844 = vmatprep.subr.bf16.mxu0 0
        %10845 = vmatpush1.bf16.msra.mxu0 0
        %10846 = vmatprep.subr.bf16.mxu0 0
        %10847 = vmatpush1.bf16.msra.mxu0 0
        %10848 = vmatprep.subr.bf16.mxu0 0
        %10849 = vmatpush1.bf16.msra.mxu0 0
        %10850 = vmatprep.subr.bf16.mxu0 0
        %10851 = vmatpush1.bf16.msra.mxu0 0
        %10852 = vmatprep.mubr.bf16.mxu0 0
        %10853 = vmatmul.mubr.bf16.gmra.mrb[0].mxu0 %v10809
        %v10854 = vpop.f32.mrb[0].mxu0
        %v10855 = vadd.f32 0.0, %v10854
        %v10856 = vpop.f32.mrb[0].mxu0
        %v10857 = vadd.f32 0.0, %v10856
        %v10858 = vpop.f32.mrb[0].mxu0
        %v10859 = vadd.f32 0.0, %v10858
        %v10860 = vpop.f32.mrb[0].mxu0
        %v10861 = vadd.f32 0.0, %v10860
        %10862 = vmatprep.mubr.bf16.mxu0 0
        %10863 = vmatmul.mubr.bf16.gmra.mrb[0].mxu0 %v10812
        %v10864 = vpop.f32.mrb[0].mxu0
        %v10865 = vadd.f32 0.0, %v10864
        %v10866 = vpop.f32.mrb[0].mxu0
        %v10867 = vadd.f32 0.0, %v10866
        %v10868 = vpop.f32.mrb[0].mxu0
        %v10869 = vadd.f32 0.0, %v10868
        %v10870 = vpop.f32.mrb[0].mxu0
        %v10871 = vadd.f32 0.0, %v10870
        %10872 = vmatprep.mubr.bf16.mxu0 0
        %10873 = vmatmul.mubr.bf16.gmra.mrb[0].mxu0 %v10815
        %v10874 = vpop.f32.mrb[0].mxu0
        %v10875 = vadd.f32 0.0, %v10874
        %v10876 = vpop.f32.mrb[0].mxu0
        %v10877 = vadd.f32 0.0, %v10876
        %v10878 = vpop.f32.mrb[0].mxu0
        %v10879 = vadd.f32 0.0, %v10878
        %v10880 = vpop.f32.mrb[0].mxu0
        %v10881 = vadd.f32 0.0, %v10880
        %10882 = vmatprep.mubr.bf16.mxu0 0
        %10883 = vmatmul.mubr.bf16.gmra.mrb[0].mxu0 %v10818
        %v10884 = vpop.f32.mrb[0].mxu0
        %v10885 = vadd.f32 0.0, %v10884
        %v10886 = vpop.f32.mrb[0].mxu0
        %v10887 = vadd.f32 0.0, %v10886
        %v10888 = vpop.f32.mrb[0].mxu0
        %v10889 = vadd.f32 0.0, %v10888
        %v10890 = vpop.f32.mrb[0].mxu0
        %v10891 = vadd.f32 0.0, %v10890
        %10892 = vdwg.mxu0
        %v10893 = vld [vmem:[%s7] sm:$0xff]
        %v10894 = vld [vmem:[%s7 + $0x8] sm:$0xff]
        %v10895 = vld [vmem:[%s7 + $0x10] sm:$0xff]
        %v10896 = vld [vmem:[%s7 + $0x18] sm:$0xff]
        %v10897 = vld [vmem:[%s7 + $0x20] sm:$0xff]
        %v10898 = vld [vmem:[%s7 + $0x28] sm:$0xff]
        %v10899 = vld [vmem:[%s7 + $0x30] sm:$0xff]
        %v10900 = vld [vmem:[%s7 + $0x38] sm:$0xff]
        %10902 = vset.pattern.permute.xlu0 0
        %10903 = vperm.xlu0 %10902, %v10893
        %v10904 = vpop.permute.xlu0 %10903
        %10907 = vset.pattern.permute.xlu0 0
        %10908 = vperm.xlu0 %10907, %v10894
        %v10909 = vpop.permute.xlu0 %10908
        %10912 = vset.pattern.permute.xlu0 0
        %10913 = vperm.xlu0 %10912, %v10895
        %v10914 = vpop.permute.xlu0 %10913
        %10917 = vset.pattern.permute.xlu0 0
        %10918 = vperm.xlu0 %10917, %v10896
        %v10919 = vpop.permute.xlu0 %10918
        %10922 = vset.pattern.permute.xlu0 0
        %10923 = vperm.xlu0 %10922, %v10897
        %v10924 = vpop.permute.xlu0 %10923
        %10927 = vset.pattern.permute.xlu0 0
        %10928 = vperm.xlu0 %10927, %v10898
        %v10929 = vpop.permute.xlu0 %10928
        %10932 = vset.pattern.permute.xlu0 0
        %10933 = vperm.xlu0 %10932, %v10899
        %v10934 = vpop.permute.xlu0 %10933
        %10937 = vset.pattern.permute.xlu0 0
        %10938 = vperm.xlu0 %10937, %v10900
        %v10939 = vpop.permute.xlu0 %10938
        %v10941 = vmul.f32 %v10855, %v10904
        %v10942 = vmul.f32 %v10857, %v10904
        %v10943 = vmul.f32 %v10859, %v10909
        %v10944 = vmul.f32 %v10861, %v10909
        %v10945 = vmul.f32 %v10865, %v10914
        %v10946 = vmul.f32 %v10867, %v10914
        %v10947 = vmul.f32 %v10869, %v10919
        %v10948 = vmul.f32 %v10871, %v10919
        %v10949 = vmul.f32 %v10875, %v10924
        %v10950 = vmul.f32 %v10877, %v10924
        %v10951 = vmul.f32 %v10879, %v10929
        %v10952 = vmul.f32 %v10881, %v10929
        %v10953 = vmul.f32 %v10885, %v10934
        %v10954 = vmul.f32 %v10887, %v10934
        %v10955 = vmul.f32 %v10889, %v10939
        %v10956 = vmul.f32 %v10891, %v10939
        %v10957 = vld [vmem:[%s8] sm:$0xff]
        %v10958 = vld [vmem:[%s8 + $0x8] sm:$0xff]
        %v10959 = vld [vmem:[%s8 + $0x10] sm:$0xff]
        %v10960 = vld [vmem:[%s8 + $0x18] sm:$0xff]
        %v10961 = vld [vmem:[%s8 + $0x20] sm:$0xff]
        %v10962 = vld [vmem:[%s8 + $0x28] sm:$0xff]
        %v10963 = vld [vmem:[%s8 + $0x30] sm:$0xff]
        %v10964 = vld [vmem:[%s8 + $0x38] sm:$0xff]
        %10966 = vset.pattern.permute.xlu0 0
        %10967 = vperm.xlu0 %10966, %v10957
        %v10968 = vpop.permute.xlu0 %10967
        %10971 = vset.pattern.permute.xlu0 0
        %10972 = vperm.xlu0 %10971, %v10958
        %v10973 = vpop.permute.xlu0 %10972
        %10976 = vset.pattern.permute.xlu0 0
        %10977 = vperm.xlu0 %10976, %v10959
        %v10978 = vpop.permute.xlu0 %10977
        %10981 = vset.pattern.permute.xlu0 0
        %10982 = vperm.xlu0 %10981, %v10960
        %v10983 = vpop.permute.xlu0 %10982
        %10986 = vset.pattern.permute.xlu0 0
        %10987 = vperm.xlu0 %10986, %v10961
        %v10988 = vpop.permute.xlu0 %10987
        %10991 = vset.pattern.permute.xlu0 0
        %10992 = vperm.xlu0 %10991, %v10962
        %v10993 = vpop.permute.xlu0 %10992
        %10996 = vset.pattern.permute.xlu0 0
        %10997 = vperm.xlu0 %10996, %v10963
        %v10998 = vpop.permute.xlu0 %10997
        %11001 = vset.pattern.permute.xlu0 0
        %11002 = vperm.xlu0 %11001, %v10964
        %v11003 = vpop.permute.xlu0 %11002
        %v11005 = vadd.f32 %v10941, %v10968
        %v11006 = vadd.f32 %v10942, %v10968
        %v11007 = vadd.f32 %v10943, %v10973
        %v11008 = vadd.f32 %v10944, %v10973
        %v11009 = vadd.f32 %v10945, %v10978
        %v11010 = vadd.f32 %v10946, %v10978
        %v11011 = vadd.f32 %v10947, %v10983
        %v11012 = vadd.f32 %v10948, %v10983
        %v11013 = vadd.f32 %v10949, %v10988
        %v11014 = vadd.f32 %v10950, %v10988
        %v11015 = vadd.f32 %v10951, %v10993
        %v11016 = vadd.f32 %v10952, %v10993
        %v11017 = vadd.f32 %v10953, %v10998
        %v11018 = vadd.f32 %v10954, %v10998
        %v11019 = vadd.f32 %v10955, %v11003
        %v11020 = vadd.f32 %v10956, %v11003
        %v11021 = vmax.f32 %v11005, 0.0
        %v11022 = vmax.f32 %v11006, 0.0
        %v11023 = vmax.f32 %v11007, 0.0
        %v11024 = vmax.f32 %v11008, 0.0
        %v11025 = vmax.f32 %v11009, 0.0
        %v11026 = vmax.f32 %v11010, 0.0
        %v11027 = vmax.f32 %v11011, 0.0
        %v11028 = vmax.f32 %v11012, 0.0
        %v11029 = vmax.f32 %v11013, 0.0
        %v11030 = vmax.f32 %v11014, 0.0
        %v11031 = vmax.f32 %v11015, 0.0
        %v11032 = vmax.f32 %v11016, 0.0
        %v11033 = vmax.f32 %v11017, 0.0
        %v11034 = vmax.f32 %v11018, 0.0
        %v11035 = vmax.f32 %v11019, 0.0
        %v11036 = vmax.f32 %v11020, 0.0
        %11037 = vst [vmem:[%s412] sm:$0xff] %v11021
        %11038 = vst [vmem:[%s412 + $0x8] sm:$0xff] %v11022
        %11039 = vst [vmem:[%s412 + $0x10] sm:$0xff] %v11023
        %11040 = vst [vmem:[%s412 + $0x18] sm:$0xff] %v11024
        %11041 = vst [vmem:[%s412 + $0x20] sm:$0xff] %v11025
        %11042 = vst [vmem:[%s412 + $0x28] sm:$0xff] %v11026
        %11043 = vst [vmem:[%s412 + $0x30] sm:$0xff] %v11027
        %11044 = vst [vmem:[%s412 + $0x38] sm:$0xff] %v11028
        %11045 = vst [vmem:[%s412 + $0x40] sm:$0xff] %v11029
        %11046 = vst [vmem:[%s412 + $0x48] sm:$0xff] %v11030
        %11047 = vst [vmem:[%s412 + $0x50] sm:$0xff] %v11031
        %11048 = vst [vmem:[%s412 + $0x58] sm:$0xff] %v11032
        %11049 = vst [vmem:[%s412 + $0x60] sm:$0xff] %v11033
        %11050 = vst [vmem:[%s412 + $0x68] sm:$0xff] %v11034
        %11051 = vst [vmem:[%s412 + $0x70] sm:$0xff] %v11035
        %11052 = vst [vmem:[%s412 + $0x78] sm:$0xff] %v11036
        %s11053 = sand.u32 %s254, 1
        %s11054 = scalar_lea.sflag [#allocation4], %s11053
        %s11055 = sand.u32 %s254, 1
        %s11056 = smul.addr %s11055, 128
        %s11057 = scalar_lea.vmem [#allocation7], %s11056
        // Predicated region
        $region65: #{tpu_custom_call.1} parent=55 // pred_check
          %p11058 = pneg %p264
        $region66: #{tpu_custom_call.1} parent=55 // pred_check_branch
          %11060 = sbr.rel (%p11058) target = $region68
        $region67: #{tpu_custom_call.1} parent=55 // pred_region
          %s11061 = smul.u32 2, %s34
          %s11063 = ssub.s32 2048, 2048
          %11064 = vsyncadd %s11054, %s11063
          %s11065 = smul.addr %s33, 32
          %s11066 = sadd.s32 %s11061, %s11065
          %s11067 = smul.addr %s11066, 128
          %s11068 = scalar_lea.hbm %s9, %s11067
          %s11069 = sshll.u32 %s11057, 4
          %s11070 = int_to_ptr.vmem [resolvable:$true] %s11069
          %11075 = dma.vmem_to_hbm [thread:$0]  %s11070, 2048, %s11068, %s11054, 256, 512, 16
        $region68: #{tpu_custom_call.1} parent=55 // pred_fallthru
          _
      $region56: #{tpu_custom_call.1} parent=5 // pred_fallthru
        _
      %p11076 = scmp.le.s32.totalorder 2, %s24
      // Predicated region
      $region69: #{tpu_custom_call.1} parent=5 // pred_check
        %p11077 = pneg %p11076
      $region70: #{tpu_custom_call.1} parent=5 // pred_check_branch
        %11079 = sbr.rel (%p11077) target = $region72
      $region71: #{tpu_custom_call.1} parent=5 // pred_region
        %s11080 = ssub.s32 %s24, 2
        // Predicated region
        $region73: #{tpu_custom_call.1} parent=71 // pred_check
          %p11081 = pneg %p270
        $region74: #{tpu_custom_call.1} parent=71 // pred_check_branch
          %11083 = sbr.rel (%p11081) target = $region76
        $region75: #{tpu_custom_call.1} parent=71 // pred_region
          %s11084 = sand.u32 %s255, 1
          %s11085 = scalar_lea.sflag [#allocation4], %s11084
          %s11086 = sand.u32 %s255, 1
          %s11087 = smul.addr %s11086, 128
          %s11088 = scalar_lea.vmem [#allocation7], %s11087
          %11089 = dma.done %s11085, 2048
        $region76: #{tpu_custom_call.1} parent=71 // pred_fallthru
          _
      $region72: #{tpu_custom_call.1} parent=5 // pred_fallthru
        _
    $region6: #{tpu_custom_call.1} parent=1 // loop_footer
      %s28 = sadd.s32 1, %s24
    $region7: #{tpu_custom_call.1} parent=1 // loop_footer_branch
      %23 = sbr.rel target = $region3
    $region8: #{tpu_custom_call.1} parent=1 // loop_exit
      _
    %11090 = vsyncpa [#allocation3], 1
    %s11091 = scalar_lea.sflag [#allocation3], 1
    %11092 = vsyncpa %s11091, 1
    %11093 = vsyncpa [#allocation6], 1
    %s11094 = scalar_lea.sflag [#allocation6], 1
    %11095 = vsyncpa %s11094, 1
    %11096 = vsyncpa [#allocation4], 1
    %s11097 = scalar_lea.sflag [#allocation4], 1
    %11098 = vsyncpa %s11097, 1

</llo_original>
